<compile_context>
chip_gen: v6e
topology: v6e:2x2x1
jax: 0.10.0
libtpu: 0.0.40
codegen_flags: <defaults>
</compile_context>

<pallas_src>
import jax
import jax.numpy as jnp
from jax.experimental import pallas as pl
from jax.experimental.pallas import tpu as pltpu


# ----------------------------------------------------------------------------
# small helpers
# ----------------------------------------------------------------------------
def _round_up(x, m):
    return ((x + m - 1) // m) * m


def _pick_divisor_tile(n, candidates):
    for c in candidates:
        if n % c == 0:
            return c
    return None


# ----------------------------------------------------------------------------
# Kernel 1: (M,K)@(K,N) + folded-BN bias + SiLU                 (cv1, 1x1 conv)
# ----------------------------------------------------------------------------
def _mm_bias_silu_kernel(x_ref, w_ref, b_ref, o_ref):
    y = jnp.dot(x_ref[...], w_ref[...], preferred_element_type=jnp.float32)
    y = y + b_ref[...]
    sig = 1.0 / (1.0 + jnp.exp(-y))           # exact sigmoid (EUP exp + div)
    o_ref[...] = (y * sig).astype(o_ref.dtype)


def matmul_bias_silu(x, w, bias, *, tm, out_dtype=jnp.bfloat16):
    """SiLU(x @ w + bias).  x:(M,K) bf16, w:(K,N) bf16, bias:(1,N) f32.

    K and N are GSConv channel dims (small), so the weight/bias use constant
    index_maps -> a single VMEM-resident block, DMA'd once for the whole M
    loop.  Full-K tile => no reduction axis, no accumulator scratch.
    """
    M, K = x.shape
    Kw, N = w.shape
    assert K == Kw and M % tm == 0 and N % 128 == 0
    return pl.pallas_call(
        _mm_bias_silu_kernel,
        out_shape=jax.ShapeDtypeStruct((M, N), out_dtype),
        grid=(M // tm,),
        in_specs=[
            pl.BlockSpec((tm, K), lambda i: (i, 0)),
            pl.BlockSpec((K, N), lambda i: (0, 0)),     # weight: VMEM-resident
            pl.BlockSpec((1, N), lambda i: (0, 0)),
        ],
        out_specs=pl.BlockSpec((tm, N), lambda i: (i, 0)),
        compiler_params=pltpu.CompilerParams(
            dimension_semantics=("parallel",)),
    )(x, w, bias)


# ----------------------------------------------------------------------------
# Kernel 2: 5x5 depthwise conv (stride 1, pad 2) + bias + SiLU          (cv2)
# ----------------------------------------------------------------------------
def _dw5x5_bias_silu_kernel(cur_ref, halo_ref, w_ref, b_ref, o_ref):
    # cur : (TR, W+4, tc) bf16  -- padded-input rows [r*TR, r*TR + TR)
    # halo: (4,  W+4, tc) bf16  -- padded-input rows [r*TR + TR, r*TR + TR + 4)
    # w   : (25, tc) f32 ; b: (1, tc) f32 ; o: (TR, W, tc)
    TR, W, _ = o_ref.shape
    win = jnp.concatenate([cur_ref[...], halo_ref[...]], axis=0)  # (TR+4,W+4,tc)
    acc = jnp.zeros(o_ref.shape, jnp.float32)
    for ky in range(5):
        # cast the row slab to the accumulate dtype once per ky (5 casts
        # instead of 25); the ky slice is a major-dim offset (cheap).
        slab = win[ky:ky + TR].astype(jnp.float32)      # (TR, W+4, tc)
        for kx in range(5):
            acc = acc + slab[:, kx:kx + W, :] * w_ref[ky * 5 + kx, :]
    y = acc + b_ref[0, :]
    sig = 1.0 / (1.0 + jnp.exp(-y))
    o_ref[...] = (y * sig).astype(o_ref.dtype)


def depthwise5x5_bias_silu(x_nhwc, w25, bias, *, out_dtype=jnp.bfloat16):
    """Depthwise 5x5 conv (stride 1, pad 2, groups=C) + bias + SiLU.

    x:(N,H,W,C) bf16 with C % 128 == 0 ; w25:(25,C) f32 ; bias:(1,C) f32.
    Row-tiled with a 4-row halo block so VMEM use is independent of H; all
    grid axes are independent => fully "parallel" (megacore-splittable).
    """
    N, H, W, C = x_nhwc.shape
    assert C % 128 == 0
    tc = 256 if C % 256 == 0 else 128     # cap per-block channels (use 128 on v5e)
    Hp = _round_up(H, 8)                  # output rows (padded only if ragged)
    TR = _pick_divisor_tile(Hp, (32, 16, 8))   # row tile, multiple of 4

    # 2-pixel spatial zero pad (+ bottom rows up to Hp).  One HBM pass.
    # TODO(synk): fold this pad into in-kernel boundary handling (masked edge
    # taps) to save this extra pass over x1.
    xp = jnp.pad(x_nhwc, ((0, 0), (2, Hp - H + 2), (2, 2), (0, 0)))

    out = pl.pallas_call(
        _dw5x5_bias_silu_kernel,
        out_shape=jax.ShapeDtypeStruct((N, Hp, W, C), out_dtype),
        grid=(N, C // tc, Hp // TR),
        in_specs=[
            # current TR rows of the padded input
            pl.BlockSpec((None, TR, W + 4, tc), lambda n, c, r: (n, r, 0, c)),
            # 4-row halo just below (block-granularity 4; TR % 4 == 0)
            pl.BlockSpec((None, 4, W + 4, tc),
                         lambda n, c, r: (n, (r + 1) * (TR // 4), 0, c)),
            pl.BlockSpec((25, tc), lambda n, c, r: (0, c)),
            pl.BlockSpec((1, tc), lambda n, c, r: (0, c)),
        ],
        out_specs=pl.BlockSpec((None, TR, W, tc), lambda n, c, r: (n, r, 0, c)),
        compiler_params=pltpu.CompilerParams(
            dimension_semantics=("parallel", "parallel", "parallel")),
    )(xp, xp, w25, bias)
    return out[:, :H] if Hp != H else out


# ----------------------------------------------------------------------------
# Kernel 3: fused "concat + 1x1 conv + ReLU":  relu(a @ Wa + b @ Wb)     (shuf)
# ----------------------------------------------------------------------------
def _dual_mm_relu_kernel(a_ref, wa_ref, b_ref, wb_ref, o_ref):
    acc = jnp.dot(a_ref[...], wa_ref[...], preferred_element_type=jnp.float32)
    acc = acc + jnp.dot(b_ref[...], wb_ref[...],
                        preferred_element_type=jnp.float32)
    o_ref[...] = jnp.maximum(acc, 0.0).astype(o_ref.dtype)


def dual_matmul_relu(a, wa, b, wb, *, tm, out_dtype=jnp.bfloat16):
    """relu(a @ wa + b @ wb) — fuses the channel concat into the shuf conv."""
    M, K = a.shape
    assert b.shape == (M, K)
    Kw, N = wa.shape
    assert wb.shape == (Kw, N) and K == Kw
    assert M % tm == 0 and K % 128 == 0 and N % 128 == 0
    return pl.pallas_call(
        _dual_mm_relu_kernel,
        out_shape=jax.ShapeDtypeStruct((M, N), out_dtype),
        grid=(M // tm,),
        in_specs=[
            pl.BlockSpec((tm, K), lambda i: (i, 0)),
            pl.BlockSpec((K, N), lambda i: (0, 0)),     # VMEM-resident weights
            pl.BlockSpec((tm, K), lambda i: (i, 0)),
            pl.BlockSpec((K, N), lambda i: (0, 0)),
        ],
        out_specs=pl.BlockSpec((tm, N), lambda i: (i, 0)),
        compiler_params=pltpu.CompilerParams(
            dimension_semantics=("parallel",)),
    )(a, wa, b, wb)


# ----------------------------------------------------------------------------
# Parameter construction (deterministic, synthetic) + folded BatchNorm
# ----------------------------------------------------------------------------
def _fold_bn(key, cout, eps=1e-5):
    kg, kb, km, kv = jax.random.split(key, 4)
    gamma = 1.0 + 0.1 * jax.random.normal(kg, (cout,), jnp.float32)
    beta = 0.1 * jax.random.normal(kb, (cout,), jnp.float32)
    mean = 0.1 * jax.random.normal(km, (cout,), jnp.float32)
    var = jax.nn.softplus(jax.random.normal(kv, (cout,), jnp.float32)) + 0.5
    scale = gamma / jnp.sqrt(var + eps)
    bias = beta - mean * scale
    return scale, bias


def init_gsconvns_params(key, c1, c2):
    c_ = c2 // 2
    k1, k2, ks, kb1, kb2 = jax.random.split(key, 5)
    params = {}
    # cv1: 1x1 conv c1 -> c_ ; weight stored as (K=c1, N=c_)
    params["w1"] = 0.3 * jax.random.normal(k1, (c1, c_), jnp.float32)
    params["s1"], params["b1"] = _fold_bn(kb1, c_)
    # cv2: 5x5 depthwise conv (groups=c_) ; weight stored as (5, 5, c_)
    params["w2"] = 0.3 * jax.random.normal(k2, (5, 5, c_), jnp.float32)
    params["s2"], params["b2"] = _fold_bn(kb2, c_)
    # shuf: 1x1 conv 2*c_ -> c2, no bias / no BN ; weight as (K=2*c_, N=c2)
    params["ws"] = 0.3 * jax.random.normal(ks, (2 * c_, c2), jnp.float32)
    return params


# ----------------------------------------------------------------------------
# GSConvns forward (Pallas pipeline)
# ----------------------------------------------------------------------------
def gsconvns_forward(x_nchw, params, c1, c2):
    c_ = c2 // 2
    N, C1, H, W = x_nchw.shape
    assert C1 == c1
    M = N * H * W

    # Only output-channel dims are 128-padded (via the tiny weights), so the
    # activations never need a channel-pad HBM pass and every store is
    # lane-dense.  NOTE: for tiny channel counts (toy c_=4) the 128-padding
    # wastes MXU work; real GSConv layers have c_ >= 64 where this is right.
    C1p = _round_up(c1, 128)
    Cp = _round_up(c_, 128)
    C2p = _round_up(c2, 128)

    TM = _pick_divisor_tile(M, (512, 256, 128, 64, 32, 16, 8))
    if TM is None:                       # rare ragged-M fallback
        TM, Mp = 8, _round_up(M, 8)
    else:
        Mp = M

    # Layout glue: bf16 cast *before* the NCHW->NHWC transpose (halves the
    # transpose bytes); under jit the cast/transpose/pad fuse into one pass.
    x2d = jnp.transpose(x_nchw.astype(jnp.bfloat16), (0, 2, 3, 1)).reshape(M, c1)
    x2d = jnp.pad(x2d, ((0, Mp - M), (0, C1p - c1)))

    # ---- cv1: 1x1 conv c1 -> c_, BN folded into the weight, SiLU ----------
    w1 = jnp.zeros((C1p, Cp), jnp.bfloat16).at[:c1, :c_].set(
        (params["w1"] * params["s1"][None, :]).astype(jnp.bfloat16))
    b1 = jnp.zeros((1, Cp), jnp.float32).at[0, :c_].set(params["b1"])
    x1p = matmul_bias_silu(x2d, w1, b1, tm=TM)              # (Mp, Cp) bf16

    # ---- cv2: 5x5 depthwise conv on x1, BN folded, SiLU -------------------
    x1_nhwc = x1p[:M].reshape(N, H, W, Cp)    # slice/reshape are no-ops at Mp==M
    w2 = jnp.zeros((25, Cp), jnp.float32).at[:, :c_].set(
        params["w2"].reshape(25, c_) * params["s2"][None, :])
    b2 = jnp.zeros((1, Cp), jnp.float32).at[0, :c_].set(params["b2"])
    dw = depthwise5x5_bias_silu(x1_nhwc, w2, b2)            # (N,H,W,Cp) bf16

    # ---- shuf + ReLU: relu(cat(x1, dw) @ Ws) == relu(x1@Wa + dw@Wb) --------
    # TODO(synk): the dw tile could be computed on the fly inside this kernel
    # (haloed x1 tile) so dw never round-trips HBM.
    dw2d = dw.reshape(M, Cp)
    if Mp != M:
        dw2d = jnp.pad(dw2d, ((0, Mp - M), (0, 0)))
    wa = jnp.zeros((Cp, C2p), jnp.bfloat16).at[:c_, :c2].set(
        params["ws"][:c_].astype(jnp.bfloat16))
    wb = jnp.zeros((Cp, C2p), jnp.bfloat16).at[:c_, :c2].set(
        params["ws"][c_:].astype(jnp.bfloat16))
    out2d = dual_matmul_relu(x1p, wa, dw2d, wb, tm=TM)      # (Mp, C2p) bf16

    out = out2d[:M, :c2].reshape(N, H, W, c2)
    return jnp.transpose(out, (0, 3, 1, 2)).astype(x_nchw.dtype)   # NCHW


# ----------------------------------------------------------------------------
# Pure-JAX f32 reference (for validation only)
# ----------------------------------------------------------------------------
def gsconvns_reference(x_nchw, params, c1, c2):
    c_ = c2 // 2
    x = jnp.transpose(x_nchw.astype(jnp.float32), (0, 2, 3, 1))
    y = jnp.einsum("nhwc,co->nhwo", x, params["w1"] * params["s1"][None, :])
    y = y + params["b1"]
    x1 = y * jax.nn.sigmoid(y)
    H, W = x1.shape[1], x1.shape[2]
    w2 = params["w2"] * params["s2"][None, None, :]
    xp = jnp.pad(x1, ((0, 0), (2, 2), (2, 2), (0, 0)))
    y2 = jnp.zeros_like(x1)
    for ky in range(5):
        for kx in range(5):
            y2 = y2 + xp[:, ky:ky + H, kx:kx + W, :] * w2[ky, kx, :]
    y2 = y2 + params["b2"]
    dw = y2 * jax.nn.sigmoid(y2)
    cat = jnp.concatenate([x1, dw], axis=-1)
    out = jnp.maximum(jnp.einsum("nhwc,co->nhwo", cat, params["ws"]), 0.0)
    return jnp.transpose(out, (0, 3, 1, 2))


# ----------------------------------------------------------------------------
if __name__ == "__main__":
    c1, c2 = 4, 8
    N, H, W = 2, 16, 16

    key = jax.random.PRNGKey(0)
    k_x, k_p = jax.random.split(key)
    x = jax.random.normal(k_x, (N, c1, H, W), jnp.float32)   # NCHW input
    params = init_gsconvns_params(k_p, c1, c2)

    fwd = jax.jit(gsconvns_forward, static_argnums=(2, 3))
    out = jax.block_until_ready(fwd(x, params, c1, c2))

    assert out.shape == (N, c2, H, W), out.shape
    assert bool(jnp.all(jnp.isfinite(out)))

    # Loose, bf16-aware correctness check against a pure-JAX f32 reference.
    ref = gsconvns_reference(x, params, c1, c2)
    err = float(jnp.max(jnp.abs(out - ref)))
    tol = 0.05 * (1.0 + float(jnp.max(jnp.abs(ref))))
    assert err < tol, (err, tol)

    print("KERNEL_OK")
</pallas_src>

<mosaic_0001>
module attributes {stable_mosaic.version = 11 : i64} {
  func.func @_mm_bias_silu_kernel(%arg0: i32, %arg1: memref<512x128xbf16, #tpu.memory_space<vmem>>, %arg2: memref<128x128xbf16, #tpu.memory_space<vmem>>, %arg3: memref<1x128xf32, #tpu.memory_space<vmem>>, %arg4: memref<512x128xbf16, #tpu.memory_space<vmem>>) attributes {dimension_semantics = [#tpu.dimension_semantics<parallel>], iteration_bounds = array<i64: 1>, scalar_prefetch = 0 : i64, scratch_operands = 0 : i64, tpu.core_type = #tpu.core_type<tc>, window_params = [{transform_indices = @transform_0, window_bounds = array<i64: 512, 128>}, {pipeline_mode = #tpu.pipeline_mode<synchronous>, transform_indices = @transform_1, window_bounds = array<i64: 128, 128>}, {pipeline_mode = #tpu.pipeline_mode<synchronous>, transform_indices = @transform_2, window_bounds = array<i64: 1, 128>}, {transform_indices = @transform_3, window_bounds = array<i64: 512, 128>}]} {
    %c0 = arith.constant 0 : index
    %c0_0 = arith.constant 0 : index
    %0 = vector.load %arg1[%c0, %c0_0] : memref<512x128xbf16, #tpu.memory_space<vmem>>, vector<512x128xbf16>
    %c0_1 = arith.constant 0 : index
    %c0_2 = arith.constant 0 : index
    %1 = vector.load %arg2[%c0_1, %c0_2] : memref<128x128xbf16, #tpu.memory_space<vmem>>, vector<128x128xbf16>
    %cst = arith.constant dense<0.000000e+00> : vector<512x128xf32>
    %2 = tpu.matmul %0, %1, %cst {dimension_numbers = #tpu.dot_dimension_numbers<[1], [0], [0], [1], [0, 0, 1, 1], [], []>} : vector<512x128xbf16>, vector<128x128xbf16>, vector<512x128xf32> -> vector<512x128xf32>
    %c0_3 = arith.constant 0 : index
    %c0_4 = arith.constant 0 : index
    %3 = vector.load %arg3[%c0_3, %c0_4] : memref<1x128xf32, #tpu.memory_space<vmem>>, vector<1x128xf32>
    %4 = vector.broadcast %3 : vector<1x128xf32> to vector<512x128xf32>
    %5 = arith.addf %2, %4 : vector<512x128xf32>
    %cst_5 = arith.constant 0.000000e+00 : f32
    %6 = vector.broadcast %cst_5 : f32 to vector<512x128xf32>
    %7 = arith.subf %6, %5 : vector<512x128xf32>
    %8 = math.exp %7 : vector<512x128xf32>
    %cst_6 = arith.constant 1.000000e+00 : f32
    %9 = vector.broadcast %cst_6 : f32 to vector<512x128xf32>
    %10 = arith.addf %9, %8 : vector<512x128xf32>
    %cst_7 = arith.constant 1.000000e+00 : f32
    %11 = vector.broadcast %cst_7 : f32 to vector<512x128xf32>
    %12 = arith.divf %11, %10 : vector<512x128xf32>
    %13 = arith.mulf %5, %12 : vector<512x128xf32>
    %14 = arith.truncf %13 : vector<512x128xf32> to vector<512x128xbf16>
    %c0_8 = arith.constant 0 : index
    %c0_9 = arith.constant 0 : index
    %15 = vector.load %arg4[%c0_8, %c0_9] : memref<512x128xbf16, #tpu.memory_space<vmem>>, vector<512x128xbf16>
    tpu.vector_store %arg4[%c0_8, %c0_9], %14 {strides = array<i32>} : memref<512x128xbf16, #tpu.memory_space<vmem>>, vector<512x128xbf16>,
    return
  }
  func.func @transform_0(%arg0: i32) -> (i32, i32) {
    %c0_i32 = arith.constant 0 : i32
    %c0_i32_0 = arith.constant 0 : i32
    return %arg0, %c0_i32 : i32, i32
  }
  func.func @transform_1(%arg0: i32) -> (i32, i32) {
    %c0_i32 = arith.constant 0 : i32
    %c0_i32_0 = arith.constant 0 : i32
    %c0_i32_1 = arith.constant 0 : i32
    return %c0_i32, %c0_i32_0 : i32, i32
  }
  func.func @transform_2(%arg0: i32) -> (i32, i32) {
    %c0_i32 = arith.constant 0 : i32
    %c0_i32_0 = arith.constant 0 : i32
    %c0_i32_1 = arith.constant 0 : i32
    return %c0_i32, %c0_i32_0 : i32, i32
  }
  func.func @transform_3(%arg0: i32) -> (i32, i32) {
    %c0_i32 = arith.constant 0 : i32
    %c0_i32_0 = arith.constant 0 : i32
    return %arg0, %c0_i32 : i32, i32
  }
}

module attributes {stable_mosaic.version = 11 : i64} {
  func.func @_dual_mm_relu_kernel(%arg0: i32, %arg1: memref<512x128xbf16, #tpu.memory_space<vmem>>, %arg2: memref<128x128xbf16, #tpu.memory_space<vmem>>, %arg3: memref<512x128xbf16, #tpu.memory_space<vmem>>, %arg4: memref<128x128xbf16, #tpu.memory_space<vmem>>, %arg5: memref<512x128xbf16, #tpu.memory_space<vmem>>) attributes {dimension_semantics = [#tpu.dimension_semantics<parallel>], iteration_bounds = array<i64: 1>, scalar_prefetch = 0 : i64, scratch_operands = 0 : i64, tpu.core_type = #tpu.core_type<tc>, window_params = [{transform_indices = @transform_0, window_bounds = array<i64: 512, 128>}, {pipeline_mode = #tpu.pipeline_mode<synchronous>, transform_indices = @transform_1, window_bounds = array<i64: 128, 128>}, {transform_indices = @transform_2, window_bounds = array<i64: 512, 128>}, {pipeline_mode = #tpu.pipeline_mode<synchronous>, transform_indices = @transform_3, window_bounds = array<i64: 128, 128>}, {transform_indices = @transform_4, window_bounds = array<i64: 512, 128>}]} {
    %c0 = arith.constant 0 : index
    %c0_0 = arith.constant 0 : index
    %0 = vector.load %arg1[%c0, %c0_0] : memref<512x128xbf16, #tpu.memory_space<vmem>>, vector<512x128xbf16>
    %c0_1 = arith.constant 0 : index
    %c0_2 = arith.constant 0 : index
    %1 = vector.load %arg2[%c0_1, %c0_2] : memref<128x128xbf16, #tpu.memory_space<vmem>>, vector<128x128xbf16>
    %cst = arith.constant dense<0.000000e+00> : vector<512x128xf32>
    %2 = tpu.matmul %0, %1, %cst {dimension_numbers = #tpu.dot_dimension_numbers<[1], [0], [0], [1], [0, 0, 1, 1], [], []>} : vector<512x128xbf16>, vector<128x128xbf16>, vector<512x128xf32> -> vector<512x128xf32>
    %c0_3 = arith.constant 0 : index
    %c0_4 = arith.constant 0 : index
    %3 = vector.load %arg3[%c0_3, %c0_4] : memref<512x128xbf16, #tpu.memory_space<vmem>>, vector<512x128xbf16>
    %c0_5 = arith.constant 0 : index
    %c0_6 = arith.constant 0 : index
    %4 = vector.load %arg4[%c0_5, %c0_6] : memref<128x128xbf16, #tpu.memory_space<vmem>>, vector<128x128xbf16>
    %cst_7 = arith.constant dense<0.000000e+00> : vector<512x128xf32>
    %5 = tpu.matmul %3, %4, %cst_7 {dimension_numbers = #tpu.dot_dimension_numbers<[1], [0], [0], [1], [0, 0, 1, 1], [], []>} : vector<512x128xbf16>, vector<128x128xbf16>, vector<512x128xf32> -> vector<512x128xf32>
    %6 = arith.addf %2, %5 : vector<512x128xf32>
    %cst_8 = arith.constant 0.000000e+00 : f32
    %7 = vector.broadcast %cst_8 : f32 to vector<512x128xf32>
    %8 = arith.maximumf %6, %7 : vector<512x128xf32>
    %9 = arith.truncf %8 : vector<512x128xf32> to vector<512x128xbf16>
    %c0_9 = arith.constant 0 : index
    %c0_10 = arith.constant 0 : index
    %10 = vector.load %arg5[%c0_9, %c0_10] : memref<512x128xbf16, #tpu.memory_space<vmem>>, vector<512x128xbf16>
    tpu.vector_store %arg5[%c0_9, %c0_10], %9 {strides = array<i32>} : memref<512x128xbf16, #tpu.memory_space<vmem>>, vector<512x128xbf16>,
    return
  }
  func.func @transform_0(%arg0: i32) -> (i32, i32) {
    %c0_i32 = arith.constant 0 : i32
    %c0_i32_0 = arith.constant 0 : i32
    return %arg0, %c0_i32 : i32, i32
  }
  func.func @transform_1(%arg0: i32) -> (i32, i32) {
    %c0_i32 = arith.constant 0 : i32
    %c0_i32_0 = arith.constant 0 : i32
    %c0_i32_1 = arith.constant 0 : i32
    return %c0_i32, %c0_i32_0 : i32, i32
  }
  func.func @transform_2(%arg0: i32) -> (i32, i32) {
    %c0_i32 = arith.constant 0 : i32
    %c0_i32_0 = arith.constant 0 : i32
    return %arg0, %c0_i32 : i32, i32
  }
  func.func @transform_3(%arg0: i32) -> (i32, i32) {
    %c0_i32 = arith.constant 0 : i32
    %c0_i32_0 = arith.constant 0 : i32
    %c0_i32_1 = arith.constant 0 : i32
    return %c0_i32, %c0_i32_0 : i32, i32
  }
  func.func @transform_4(%arg0: i32) -> (i32, i32) {
    %c0_i32 = arith.constant 0 : i32
    %c0_i32_0 = arith.constant 0 : i32
    return %arg0, %c0_i32 : i32, i32
  }
}

module attributes {stable_mosaic.version = 11 : i64} {
  func.func @_dw5x5_bias_silu_kernel(%arg0: i32, %arg1: i32, %arg2: i32, %arg3: memref<1x16x20x128xbf16, #tpu.memory_space<vmem>>, %arg4: memref<1x4x20x128xbf16, #tpu.memory_space<vmem>>, %arg5: memref<25x128xf32, #tpu.memory_space<vmem>>, %arg6: memref<1x128xf32, #tpu.memory_space<vmem>>, %arg7: memref<1x16x16x128xbf16, #tpu.memory_space<vmem>>) attributes {dimension_semantics = [#tpu.dimension_semantics<parallel>, #tpu.dimension_semantics<parallel>, #tpu.dimension_semantics<parallel>], iteration_bounds = array<i64: 2, 1, 1>, scalar_prefetch = 0 : i64, scratch_operands = 0 : i64, tpu.core_type = #tpu.core_type<tc>, window_params = [{transform_indices = @transform_0, window_bounds = array<i64: 1, 16, 20, 128>}, {transform_indices = @transform_1, window_bounds = array<i64: 1, 4, 20, 128>}, {transform_indices = @transform_2, window_bounds = array<i64: 25, 128>}, {transform_indices = @transform_3, window_bounds = array<i64: 1, 128>}, {transform_indices = @transform_4, window_bounds = array<i64: 1, 16, 16, 128>}]} {
    %c0 = arith.constant 0 : index
    %c0_0 = arith.constant 0 : index
    %c0_1 = arith.constant 0 : index
    %c0_2 = arith.constant 0 : index
    %0 = vector.load %arg3[%c0, %c0_0, %c0_1, %c0_2] : memref<1x16x20x128xbf16, #tpu.memory_space<vmem>>, vector<1x16x20x128xbf16>
    %1 = vector.shape_cast %0 : vector<1x16x20x128xbf16> to vector<16x20x128xbf16>
    %c0_3 = arith.constant 0 : index
    %c0_4 = arith.constant 0 : index
    %c0_5 = arith.constant 0 : index
    %c0_6 = arith.constant 0 : index
    %2 = vector.load %arg4[%c0_3, %c0_4, %c0_5, %c0_6] : memref<1x4x20x128xbf16, #tpu.memory_space<vmem>>, vector<1x4x20x128xbf16>
    %3 = vector.shape_cast %2 : vector<1x4x20x128xbf16> to vector<4x20x128xbf16>
    %4 = tpu.concatenate %1, %3 in 0 : vector<16x20x128xbf16>, vector<4x20x128xbf16> -> vector<20x20x128xbf16>
    %cst = arith.constant 0.000000e+00 : f32
    %5 = vector.broadcast %cst : f32 to vector<16x16x128xf32>
    %6 = vector.extract_strided_slice %4 {offsets = [0, 0, 0], sizes = [16, 20, 128], strides = [1, 1, 1]} : vector<20x20x128xbf16> to vector<16x20x128xbf16>
    %7 = arith.extf %6 : vector<16x20x128xbf16> to vector<16x20x128xf32>
    %8 = vector.extract_strided_slice %7 {offsets = [0, 0, 0], sizes = [16, 16, 128], strides = [1, 1, 1]} : vector<16x20x128xf32> to vector<16x16x128xf32>
    %c0_7 = arith.constant 0 : index
    %c0_8 = arith.constant 0 : index
    %9 = vector.load %arg5[%c0_7, %c0_8] : memref<25x128xf32, #tpu.memory_space<vmem>>, vector<1x128xf32>
    %10 = vector.shape_cast %9 : vector<1x128xf32> to vector<128xf32>
    %11 = vector.shape_cast %10 : vector<128xf32> to vector<1x1x128xf32>
    %12 = vector.broadcast %11 : vector<1x1x128xf32> to vector<16x16x128xf32>
    %13 = arith.mulf %8, %12 : vector<16x16x128xf32>
    %14 = arith.addf %5, %13 : vector<16x16x128xf32>
    %15 = vector.extract_strided_slice %7 {offsets = [0, 1, 0], sizes = [16, 16, 128], strides = [1, 1, 1]} : vector<16x20x128xf32> to vector<16x16x128xf32>
    %c1 = arith.constant 1 : index
    %c0_9 = arith.constant 0 : index
    %16 = vector.load %arg5[%c1, %c0_9] : memref<25x128xf32, #tpu.memory_space<vmem>>, vector<1x128xf32>
    %17 = vector.shape_cast %16 : vector<1x128xf32> to vector<128xf32>
    %18 = vector.shape_cast %17 : vector<128xf32> to vector<1x1x128xf32>
    %19 = vector.broadcast %18 : vector<1x1x128xf32> to vector<16x16x128xf32>
    %20 = arith.mulf %15, %19 : vector<16x16x128xf32>
    %21 = arith.addf %14, %20 : vector<16x16x128xf32>
    %22 = vector.extract_strided_slice %7 {offsets = [0, 2, 0], sizes = [16, 16, 128], strides = [1, 1, 1]} : vector<16x20x128xf32> to vector<16x16x128xf32>
    %c2 = arith.constant 2 : index
    %c0_10 = arith.constant 0 : index
    %23 = vector.load %arg5[%c2, %c0_10] : memref<25x128xf32, #tpu.memory_space<vmem>>, vector<1x128xf32>
    %24 = vector.shape_cast %23 : vector<1x128xf32> to vector<128xf32>
    %25 = vector.shape_cast %24 : vector<128xf32> to vector<1x1x128xf32>
    %26 = vector.broadcast %25 : vector<1x1x128xf32> to vector<16x16x128xf32>
    %27 = arith.mulf %22, %26 : vector<16x16x128xf32>
    %28 = arith.addf %21, %27 : vector<16x16x128xf32>
    %29 = vector.extract_strided_slice %7 {offsets = [0, 3, 0], sizes = [16, 16, 128], strides = [1, 1, 1]} : vector<16x20x128xf32> to vector<16x16x128xf32>
    %c3 = arith.constant 3 : index
    %c0_11 = arith.constant 0 : index
    %30 = vector.load %arg5[%c3, %c0_11] : memref<25x128xf32, #tpu.memory_space<vmem>>, vector<1x128xf32>
    %31 = vector.shape_cast %30 : vector<1x128xf32> to vector<128xf32>
    %32 = vector.shape_cast %31 : vector<128xf32> to vector<1x1x128xf32>
    %33 = vector.broadcast %32 : vector<1x1x128xf32> to vector<16x16x128xf32>
    %34 = arith.mulf %29, %33 : vector<16x16x128xf32>
    %35 = arith.addf %28, %34 : vector<16x16x128xf32>
    %36 = vector.extract_strided_slice %7 {offsets = [0, 4, 0], sizes = [16, 16, 128], strides = [1, 1, 1]} : vector<16x20x128xf32> to vector<16x16x128xf32>
    %c4 = arith.constant 4 : index
    %c0_12 = arith.constant 0 : index
    %37 = vector.load %arg5[%c4, %c0_12] : memref<25x128xf32, #tpu.memory_space<vmem>>, vector<1x128xf32>
    %38 = vector.shape_cast %37 : vector<1x128xf32> to vector<128xf32>
    %39 = vector.shape_cast %38 : vector<128xf32> to vector<1x1x128xf32>
    %40 = vector.broadcast %39 : vector<1x1x128xf32> to vector<16x16x128xf32>
    %41 = arith.mulf %36, %40 : vector<16x16x128xf32>
    %42 = arith.addf %35, %41 : vector<16x16x128xf32>
    %43 = vector.extract_strided_slice %4 {offsets = [1, 0, 0], sizes = [16, 20, 128], strides = [1, 1, 1]} : vector<20x20x128xbf16> to vector<16x20x128xbf16>
    %44 = arith.extf %43 : vector<16x20x128xbf16> to vector<16x20x128xf32>
    %45 = vector.extract_strided_slice %44 {offsets = [0, 0, 0], sizes = [16, 16, 128], strides = [1, 1, 1]} : vector<16x20x128xf32> to vector<16x16x128xf32>
    %c5 = arith.constant 5 : index
    %c0_13 = arith.constant 0 : index
    %46 = vector.load %arg5[%c5, %c0_13] : memref<25x128xf32, #tpu.memory_space<vmem>>, vector<1x128xf32>
    %47 = vector.shape_cast %46 : vector<1x128xf32> to vector<128xf32>
    %48 = vector.shape_cast %47 : vector<128xf32> to vector<1x1x128xf32>
    %49 = vector.broadcast %48 : vector<1x1x128xf32> to vector<16x16x128xf32>
    %50 = arith.mulf %45, %49 : vector<16x16x128xf32>
    %51 = arith.addf %42, %50 : vector<16x16x128xf32>
    %52 = vector.extract_strided_slice %44 {offsets = [0, 1, 0], sizes = [16, 16, 128], strides = [1, 1, 1]} : vector<16x20x128xf32> to vector<16x16x128xf32>
    %c6 = arith.constant 6 : index
    %c0_14 = arith.constant 0 : index
    %53 = vector.load %arg5[%c6, %c0_14] : memref<25x128xf32, #tpu.memory_space<vmem>>, vector<1x128xf32>
    %54 = vector.shape_cast %53 : vector<1x128xf32> to vector<128xf32>
    %55 = vector.shape_cast %54 : vector<128xf32> to vector<1x1x128xf32>
    %56 = vector.broadcast %55 : vector<1x1x128xf32> to vector<16x16x128xf32>
    %57 = arith.mulf %52, %56 : vector<16x16x128xf32>
    %58 = arith.addf %51, %57 : vector<16x16x128xf32>
    %59 = vector.extract_strided_slice %44 {offsets = [0, 2, 0], sizes = [16, 16, 128], strides = [1, 1, 1]} : vector<16x20x128xf32> to vector<16x16x128xf32>
    %c7 = arith.constant 7 : index
    %c0_15 = arith.constant 0 : index
    %60 = vector.load %arg5[%c7, %c0_15] : memref<25x128xf32, #tpu.memory_space<vmem>>, vector<1x128xf32>
    %61 = vector.shape_cast %60 : vector<1x128xf32> to vector<128xf32>
    %62 = vector.shape_cast %61 : vector<128xf32> to vector<1x1x128xf32>
    %63 = vector.broadcast %62 : vector<1x1x128xf32> to vector<16x16x128xf32>
    %64 = arith.mulf %59, %63 : vector<16x16x128xf32>
    %65 = arith.addf %58, %64 : vector<16x16x128xf32>
    %66 = vector.extract_strided_slice %44 {offsets = [0, 3, 0], sizes = [16, 16, 128], strides = [1, 1, 1]} : vector<16x20x128xf32> to vector<16x16x128xf32>
    %c8 = arith.constant 8 : index
    %c0_16 = arith.constant 0 : index
    %67 = vector.load %arg5[%c8, %c0_16] : memref<25x128xf32, #tpu.memory_space<vmem>>, vector<1x128xf32>
    %68 = vector.shape_cast %67 : vector<1x128xf32> to vector<128xf32>
    %69 = vector.shape_cast %68 : vector<128xf32> to vector<1x1x128xf32>
    %70 = vector.broadcast %69 : vector<1x1x128xf32> to vector<16x16x128xf32>
    %71 = arith.mulf %66, %70 : vector<16x16x128xf32>
    %72 = arith.addf %65, %71 : vector<16x16x128xf32>
    %73 = vector.extract_strided_slice %44 {offsets = [0, 4, 0], sizes = [16, 16, 128], strides = [1, 1, 1]} : vector<16x20x128xf32> to vector<16x16x128xf32>
    %c9 = arith.constant 9 : index
    %c0_17 = arith.constant 0 : index
    %74 = vector.load %arg5[%c9, %c0_17] : memref<25x128xf32, #tpu.memory_space<vmem>>, vector<1x128xf32>
    %75 = vector.shape_cast %74 : vector<1x128xf32> to vector<128xf32>
    %76 = vector.shape_cast %75 : vector<128xf32> to vector<1x1x128xf32>
    %77 = vector.broadcast %76 : vector<1x1x128xf32> to vector<16x16x128xf32>
    %78 = arith.mulf %73, %77 : vector<16x16x128xf32>
    %79 = arith.addf %72, %78 : vector<16x16x128xf32>
    %80 = vector.extract_strided_slice %4 {offsets = [2, 0, 0], sizes = [16, 20, 128], strides = [1, 1, 1]} : vector<20x20x128xbf16> to vector<16x20x128xbf16>
    %81 = arith.extf %80 : vector<16x20x128xbf16> to vector<16x20x128xf32>
    %82 = vector.extract_strided_slice %81 {offsets = [0, 0, 0], sizes = [16, 16, 128], strides = [1, 1, 1]} : vector<16x20x128xf32> to vector<16x16x128xf32>
    %c10 = arith.constant 10 : index
    %c0_18 = arith.constant 0 : index
    %83 = vector.load %arg5[%c10, %c0_18] : memref<25x128xf32, #tpu.memory_space<vmem>>, vector<1x128xf32>
    %84 = vector.shape_cast %83 : vector<1x128xf32> to vector<128xf32>
    %85 = vector.shape_cast %84 : vector<128xf32> to vector<1x1x128xf32>
    %86 = vector.broadcast %85 : vector<1x1x128xf32> to vector<16x16x128xf32>
    %87 = arith.mulf %82, %86 : vector<16x16x128xf32>
    %88 = arith.addf %79, %87 : vector<16x16x128xf32>
    %89 = vector.extract_strided_slice %81 {offsets = [0, 1, 0], sizes = [16, 16, 128], strides = [1, 1, 1]} : vector<16x20x128xf32> to vector<16x16x128xf32>
    %c11 = arith.constant 11 : index
    %c0_19 = arith.constant 0 : index
    %90 = vector.load %arg5[%c11, %c0_19] : memref<25x128xf32, #tpu.memory_space<vmem>>, vector<1x128xf32>
    %91 = vector.shape_cast %90 : vector<1x128xf32> to vector<128xf32>
    %92 = vector.shape_cast %91 : vector<128xf32> to vector<1x1x128xf32>
    %93 = vector.broadcast %92 : vector<1x1x128xf32> to vector<16x16x128xf32>
    %94 = arith.mulf %89, %93 : vector<16x16x128xf32>
    %95 = arith.addf %88, %94 : vector<16x16x128xf32>
    %96 = vector.extract_strided_slice %81 {offsets = [0, 2, 0], sizes = [16, 16, 128], strides = [1, 1, 1]} : vector<16x20x128xf32> to vector<16x16x128xf32>
    %c12 = arith.constant 12 : index
    %c0_20 = arith.constant 0 : index
    %97 = vector.load %arg5[%c12, %c0_20] : memref<25x128xf32, #tpu.memory_space<vmem>>, vector<1x128xf32>
    %98 = vector.shape_cast %97 : vector<1x128xf32> to vector<128xf32>
    %99 = vector.shape_cast %98 : vector<128xf32> to vector<1x1x128xf32>
    %100 = vector.broadcast %99 : vector<1x1x128xf32> to vector<16x16x128xf32>
    %101 = arith.mulf %96, %100 : vector<16x16x128xf32>
    %102 = arith.addf %95, %101 : vector<16x16x128xf32>
    %103 = vector.extract_strided_slice %81 {offsets = [0, 3, 0], sizes = [16, 16, 128], strides = [1, 1, 1]} : vector<16x20x128xf32> to vector<16x16x128xf32>
    %c13 = arith.constant 13 : index
    %c0_21 = arith.constant 0 : index
    %104 = vector.load %arg5[%c13, %c0_21] : memref<25x128xf32, #tpu.memory_space<vmem>>, vector<1x128xf32>
    %105 = vector.shape_cast %104 : vector<1x128xf32> to vector<128xf32>
    %106 = vector.shape_cast %105 : vector<128xf32> to vector<1x1x128xf32>
    %107 = vector.broadcast %106 : vector<1x1x128xf32> to vector<16x16x128xf32>
    %108 = arith.mulf %103, %107 : vector<16x16x128xf32>
    %109 = arith.addf %102, %108 : vector<16x16x128xf32>
    %110 = vector.extract_strided_slice %81 {offsets = [0, 4, 0], sizes = [16, 16, 128], strides = [1, 1, 1]} : vector<16x20x128xf32> to vector<16x16x128xf32>
    %c14 = arith.constant 14 : index
    %c0_22 = arith.constant 0 : index
    %111 = vector.load %arg5[%c14, %c0_22] : memref<25x128xf32, #tpu.memory_space<vmem>>, vector<1x128xf32>
    %112 = vector.shape_cast %111 : vector<1x128xf32> to vector<128xf32>
    %113 = vector.shape_cast %112 : vector<128xf32> to vector<1x1x128xf32>
    %114 = vector.broadcast %113 : vector<1x1x128xf32> to vector<16x16x128xf32>
    %115 = arith.mulf %110, %114 : vector<16x16x128xf32>
    %116 = arith.addf %109, %115 : vector<16x16x128xf32>
    %117 = vector.extract_strided_slice %4 {offsets = [3, 0, 0], sizes = [16, 20, 128], strides = [1, 1, 1]} : vector<20x20x128xbf16> to vector<16x20x128xbf16>
    %118 = arith.extf %117 : vector<16x20x128xbf16> to vector<16x20x128xf32>
    %119 = vector.extract_strided_slice %118 {offsets = [0, 0, 0], sizes = [16, 16, 128], strides = [1, 1, 1]} : vector<16x20x128xf32> to vector<16x16x128xf32>
    %c15 = arith.constant 15 : index
    %c0_23 = arith.constant 0 : index
    %120 = vector.load %arg5[%c15, %c0_23] : memref<25x128xf32, #tpu.memory_space<vmem>>, vector<1x128xf32>
    %121 = vector.shape_cast %120 : vector<1x128xf32> to vector<128xf32>
    %122 = vector.shape_cast %121 : vector<128xf32> to vector<1x1x128xf32>
    %123 = vector.broadcast %122 : vector<1x1x128xf32> to vector<16x16x128xf32>
    %124 = arith.mulf %119, %123 : vector<16x16x128xf32>
    %125 = arith.addf %116, %124 : vector<16x16x128xf32>
    %126 = vector.extract_strided_slice %118 {offsets = [0, 1, 0], sizes = [16, 16, 128], strides = [1, 1, 1]} : vector<16x20x128xf32> to vector<16x16x128xf32>
    %c16 = arith.constant 16 : index
    %c0_24 = arith.constant 0 : index
    %127 = vector.load %arg5[%c16, %c0_24] : memref<25x128xf32, #tpu.memory_space<vmem>>, vector<1x128xf32>
    %128 = vector.shape_cast %127 : vector<1x128xf32> to vector<128xf32>
    %129 = vector.shape_cast %128 : vector<128xf32> to vector<1x1x128xf32>
    %130 = vector.broadcast %129 : vector<1x1x128xf32> to vector<16x16x128xf32>
    %131 = arith.mulf %126, %130 : vector<16x16x128xf32>
    %132 = arith.addf %125, %131 : vector<16x16x128xf32>
    %133 = vector.extract_strided_slice %118 {offsets = [0, 2, 0], sizes = [16, 16, 128], strides = [1, 1, 1]} : vector<16x20x128xf32> to vector<16x16x128xf32>
    %c17 = arith.constant 17 : index
    %c0_25 = arith.constant 0 : index
    %134 = vector.load %arg5[%c17, %c0_25] : memref<25x128xf32, #tpu.memory_space<vmem>>, vector<1x128xf32>
    %135 = vector.shape_cast %134 : vector<1x128xf32> to vector<128xf32>
    %136 = vector.shape_cast %135 : vector<128xf32> to vector<1x1x128xf32>
    %137 = vector.broadcast %136 : vector<1x1x128xf32> to vector<16x16x128xf32>
    %138 = arith.mulf %133, %137 : vector<16x16x128xf32>
    %139 = arith.addf %132, %138 : vector<16x16x128xf32>
    %140 = vector.extract_strided_slice %118 {offsets = [0, 3, 0], sizes = [16, 16, 128], strides = [1, 1, 1]} : vector<16x20x128xf32> to vector<16x16x128xf32>
    %c18 = arith.constant 18 : index
    %c0_26 = arith.constant 0 : index
    %141 = vector.load %arg5[%c18, %c0_26] : memref<25x128xf32, #tpu.memory_space<vmem>>, vector<1x128xf32>
    %142 = vector.shape_cast %141 : vector<1x128xf32> to vector<128xf32>
    %143 = vector.shape_cast %142 : vector<128xf32> to vector<1x1x128xf32>
    %144 = vector.broadcast %143 : vector<1x1x128xf32> to vector<16x16x128xf32>
    %145 = arith.mulf %140, %144 : vector<16x16x128xf32>
    %146 = arith.addf %139, %145 : vector<16x16x128xf32>
    %147 = vector.extract_strided_slice %118 {offsets = [0, 4, 0], sizes = [16, 16, 128], strides = [1, 1, 1]} : vector<16x20x128xf32> to vector<16x16x128xf32>
    %c19 = arith.constant 19 : index
    %c0_27 = arith.constant 0 : index
    %148 = vector.load %arg5[%c19, %c0_27] : memref<25x128xf32, #tpu.memory_space<vmem>>, vector<1x128xf32>
    %149 = vector.shape_cast %148 : vector<1x128xf32> to vector<128xf32>
    %150 = vector.shape_cast %149 : vector<128xf32> to vector<1x1x128xf32>
    %151 = vector.broadcast %150 : vector<1x1x128xf32> to vector<16x16x128xf32>
    %152 = arith.mulf %147, %151 : vector<16x16x128xf32>
    %153 = arith.addf %146, %152 : vector<16x16x128xf32>
    %154 = vector.extract_strided_slice %4 {offsets = [4, 0, 0], sizes = [16, 20, 128], strides = [1, 1, 1]} : vector<20x20x128xbf16> to vector<16x20x128xbf16>
    %155 = arith.extf %154 : vector<16x20x128xbf16> to vector<16x20x128xf32>
    %156 = vector.extract_strided_slice %155 {offsets = [0, 0, 0], sizes = [16, 16, 128], strides = [1, 1, 1]} : vector<16x20x128xf32> to vector<16x16x128xf32>
    %c20 = arith.constant 20 : index
    %c0_28 = arith.constant 0 : index
    %157 = vector.load %arg5[%c20, %c0_28] : memref<25x128xf32, #tpu.memory_space<vmem>>, vector<1x128xf32>
    %158 = vector.shape_cast %157 : vector<1x128xf32> to vector<128xf32>
    %159 = vector.shape_cast %158 : vector<128xf32> to vector<1x1x128xf32>
    %160 = vector.broadcast %159 : vector<1x1x128xf32> to vector<16x16x128xf32>
    %161 = arith.mulf %156, %160 : vector<16x16x128xf32>
    %162 = arith.addf %153, %161 : vector<16x16x128xf32>
    %163 = vector.extract_strided_slice %155 {offsets = [0, 1, 0], sizes = [16, 16, 128], strides = [1, 1, 1]} : vector<16x20x128xf32> to vector<16x16x128xf32>
    %c21 = arith.constant 21 : index
    %c0_29 = arith.constant 0 : index
    %164 = vector.load %arg5[%c21, %c0_29] : memref<25x128xf32, #tpu.memory_space<vmem>>, vector<1x128xf32>
    %165 = vector.shape_cast %164 : vector<1x128xf32> to vector<128xf32>
    %166 = vector.shape_cast %165 : vector<128xf32> to vector<1x1x128xf32>
    %167 = vector.broadcast %166 : vector<1x1x128xf32> to vector<16x16x128xf32>
    %168 = arith.mulf %163, %167 : vector<16x16x128xf32>
    %169 = arith.addf %162, %168 : vector<16x16x128xf32>
    %170 = vector.extract_strided_slice %155 {offsets = [0, 2, 0], sizes = [16, 16, 128], strides = [1, 1, 1]} : vector<16x20x128xf32> to vector<16x16x128xf32>
    %c22 = arith.constant 22 : index
    %c0_30 = arith.constant 0 : index
    %171 = vector.load %arg5[%c22, %c0_30] : memref<25x128xf32, #tpu.memory_space<vmem>>, vector<1x128xf32>
    %172 = vector.shape_cast %171 : vector<1x128xf32> to vector<128xf32>
    %173 = vector.shape_cast %172 : vector<128xf32> to vector<1x1x128xf32>
    %174 = vector.broadcast %173 : vector<1x1x128xf32> to vector<16x16x128xf32>
    %175 = arith.mulf %170, %174 : vector<16x16x128xf32>
    %176 = arith.addf %169, %175 : vector<16x16x128xf32>
    %177 = vector.extract_strided_slice %155 {offsets = [0, 3, 0], sizes = [16, 16, 128], strides = [1, 1, 1]} : vector<16x20x128xf32> to vector<16x16x128xf32>
    %c23 = arith.constant 23 : index
    %c0_31 = arith.constant 0 : index
    %178 = vector.load %arg5[%c23, %c0_31] : memref<25x128xf32, #tpu.memory_space<vmem>>, vector<1x128xf32>
    %179 = vector.shape_cast %178 : vector<1x128xf32> to vector<128xf32>
    %180 = vector.shape_cast %179 : vector<128xf32> to vector<1x1x128xf32>
    %181 = vector.broadcast %180 : vector<1x1x128xf32> to vector<16x16x128xf32>
    %182 = arith.mulf %177, %181 : vector<16x16x128xf32>
    %183 = arith.addf %176, %182 : vector<16x16x128xf32>
    %184 = vector.extract_strided_slice %155 {offsets = [0, 4, 0], sizes = [16, 16, 128], strides = [1, 1, 1]} : vector<16x20x128xf32> to vector<16x16x128xf32>
    %c24 = arith.constant 24 : index
    %c0_32 = arith.constant 0 : index
    %185 = vector.load %arg5[%c24, %c0_32] : memref<25x128xf32, #tpu.memory_space<vmem>>, vector<1x128xf32>
    %186 = vector.shape_cast %185 : vector<1x128xf32> to vector<128xf32>
    %187 = vector.shape_cast %186 : vector<128xf32> to vector<1x1x128xf32>
    %188 = vector.broadcast %187 : vector<1x1x128xf32> to vector<16x16x128xf32>
    %189 = arith.mulf %184, %188 : vector<16x16x128xf32>
    %190 = arith.addf %183, %189 : vector<16x16x128xf32>
    %c0_33 = arith.constant 0 : index
    %c0_34 = arith.constant 0 : index
    %191 = vector.load %arg6[%c0_33, %c0_34] : memref<1x128xf32, #tpu.memory_space<vmem>>, vector<1x128xf32>
    %192 = vector.shape_cast %191 : vector<1x128xf32> to vector<128xf32>
    %193 = vector.shape_cast %192 : vector<128xf32> to vector<1x1x128xf32>
    %194 = vector.broadcast %193 : vector<1x1x128xf32> to vector<16x16x128xf32>
    %195 = arith.addf %190, %194 : vector<16x16x128xf32>
    %cst_35 = arith.constant 0.000000e+00 : f32
    %196 = vector.broadcast %cst_35 : f32 to vector<16x16x128xf32>
    %197 = arith.subf %196, %195 : vector<16x16x128xf32>
    %198 = math.exp %197 : vector<16x16x128xf32>
    %cst_36 = arith.constant 1.000000e+00 : f32
    %199 = vector.broadcast %cst_36 : f32 to vector<16x16x128xf32>
    %200 = arith.addf %199, %198 : vector<16x16x128xf32>
    %cst_37 = arith.constant 1.000000e+00 : f32
    %201 = vector.broadcast %cst_37 : f32 to vector<16x16x128xf32>
    %202 = arith.divf %201, %200 : vector<16x16x128xf32>
    %203 = arith.mulf %195, %202 : vector<16x16x128xf32>
    %204 = arith.truncf %203 : vector<16x16x128xf32> to vector<16x16x128xbf16>
    %c0_38 = arith.constant 0 : index
    %c0_39 = arith.constant 0 : index
    %c0_40 = arith.constant 0 : index
    %c0_41 = arith.constant 0 : index
    %205 = vector.load %arg7[%c0_38, %c0_39, %c0_40, %c0_41] : memref<1x16x16x128xbf16, #tpu.memory_space<vmem>>, vector<1x16x16x128xbf16>
    %206 = vector.shape_cast %205 : vector<1x16x16x128xbf16> to vector<16x16x128xbf16>
    %207 = vector.shape_cast %204 : vector<16x16x128xbf16> to vector<1x16x16x128xbf16>
    tpu.vector_store %arg7[%c0_38, %c0_39, %c0_40, %c0_41], %207 {strides = array<i32>} : memref<1x16x16x128xbf16, #tpu.memory_space<vmem>>, vector<1x16x16x128xbf16>,
    return
  }
  func.func @transform_0(%arg0: i32, %arg1: i32, %arg2: i32) -> (i32, i32, i32, i32) {
    %c0_i32 = arith.constant 0 : i32
    %c0_i32_0 = arith.constant 0 : i32
    return %arg0, %arg2, %c0_i32, %arg1 : i32, i32, i32, i32
  }
  func.func @transform_1(%arg0: i32, %arg1: i32, %arg2: i32) -> (i32, i32, i32, i32) {
    %c1_i32 = arith.constant 1 : i32
    %0 = arith.addi %arg2, %c1_i32 : i32
    %c4_i32 = arith.constant 4 : i32
    %1 = arith.muli %0, %c4_i32 : i32
    %c0_i32 = arith.constant 0 : i32
    %c0_i32_0 = arith.constant 0 : i32
    return %arg0, %1, %c0_i32, %arg1 : i32, i32, i32, i32
  }
  func.func @transform_2(%arg0: i32, %arg1: i32, %arg2: i32) -> (i32, i32) {
    %c0_i32 = arith.constant 0 : i32
    %c0_i32_0 = arith.constant 0 : i32
    return %c0_i32, %arg1 : i32, i32
  }
  func.func @transform_3(%arg0: i32, %arg1: i32, %arg2: i32) -> (i32, i32) {
    %c0_i32 = arith.constant 0 : i32
    %c0_i32_0 = arith.constant 0 : i32
    return %c0_i32, %arg1 : i32, i32
  }
  func.func @transform_4(%arg0: i32, %arg1: i32, %arg2: i32) -> (i32, i32, i32, i32) {
    %c0_i32 = arith.constant 0 : i32
    %c0_i32_0 = arith.constant 0 : i32
    return %arg0, %arg2, %c0_i32, %arg1 : i32, i32, i32, i32
  }
}

</mosaic_0001>

<llo_original>
// kernel: gsconvns_forward.3
$region0: #{gsconvns_forward.3}
  #allocation0 [shape = 'u32[]', space=smem, size = 0x4, offset = 0x4, fixed_abs, tag = 'smem constant byte address 0x4 - core index']
  #allocation1 [shape = 'u32[144,128]{1,0:T(1,128)}', space=vmem, size = 0x12000, scoped, tag = 'internal scratch']
  %s0 = inlined_call_operand.vmem [shape: bf16[512,128], index: 0, kind: input, shape index: {}]
  %s1 = inlined_call_operand.vmem [shape: bf16[128,128], index: 1, kind: input, shape index: {}]
  %s2 = inlined_call_operand.vmem [shape: f32[1,128], index: 2, kind: input, shape index: {}]
  %s3 = inlined_call_operand.vmem [shape: bf16[512,128], index: 3, kind: output, shape index: {}]
  %s4 = sld [smem:[#allocation0]]
  $region22: #{gsconvns_forward.3} parent=0
    _
  %s6 = ssub.s32 1, %s4
  %s7 = scalar_select 0, %s6, %s4
  // Predicated region
  $region2: #{gsconvns_forward.3} parent=0 // pred_check
    _
  $region3: #{gsconvns_forward.3} parent=0 // pred_check_branch
    %9 = sbr.rel (0) target = $region5
  $region4: #{gsconvns_forward.3} parent=0 // pred_region
    _
  $region5: #{gsconvns_forward.3} parent=0 // pred_fallthru
    _
  // Predicated region
  $region6: #{gsconvns_forward.3} parent=0 // pred_check
    _
  $region7: #{gsconvns_forward.3} parent=0 // pred_check_branch
    %11 = sbr.rel (0) target = $region9
  $region8: #{gsconvns_forward.3} parent=0 // pred_region
    _
  $region9: #{gsconvns_forward.3} parent=0 // pred_fallthru
    _
  // Predicated region
  $region10: #{gsconvns_forward.3} parent=0 // pred_check
    _
  $region11: #{gsconvns_forward.3} parent=0 // pred_check_branch
    %13 = sbr.rel (0) target = $region13
  $region12: #{gsconvns_forward.3} parent=0 // pred_region
    _
  $region13: #{gsconvns_forward.3} parent=0 // pred_fallthru
    _
  %v15 = vld [vmem:[%s0] sm:$0xf]
  %v16 = vld [vmem:[%s0 + $0x4] sm:$0xf]
  %v17 = vld [vmem:[%s0 + $0x8] sm:$0xf]
  %v18 = vld [vmem:[%s0 + $0xc] sm:$0xf]
  %v19 = vld [vmem:[%s0 + $0x10] sm:$0xf]
  %v20 = vld [vmem:[%s0 + $0x14] sm:$0xf]
  %v21 = vld [vmem:[%s0 + $0x18] sm:$0xf]
  %v22 = vld [vmem:[%s0 + $0x1c] sm:$0xf]
  %v23 = vld [vmem:[%s0 + $0x20] sm:$0xf]
  %v24 = vld [vmem:[%s0 + $0x24] sm:$0xf]
  %v25 = vld [vmem:[%s0 + $0x28] sm:$0xf]
  %v26 = vld [vmem:[%s0 + $0x2c] sm:$0xf]
  %v27 = vld [vmem:[%s0 + $0x30] sm:$0xf]
  %v28 = vld [vmem:[%s0 + $0x34] sm:$0xf]
  %v29 = vld [vmem:[%s0 + $0x38] sm:$0xf]
  %v30 = vld [vmem:[%s0 + $0x3c] sm:$0xf]
  %v31 = vld [vmem:[%s0 + $0x40] sm:$0xf]
  %v32 = vld [vmem:[%s0 + $0x44] sm:$0xf]
  %v33 = vld [vmem:[%s0 + $0x48] sm:$0xf]
  %v34 = vld [vmem:[%s0 + $0x4c] sm:$0xf]
  %v35 = vld [vmem:[%s0 + $0x50] sm:$0xf]
  %v36 = vld [vmem:[%s0 + $0x54] sm:$0xf]
  %v37 = vld [vmem:[%s0 + $0x58] sm:$0xf]
  %v38 = vld [vmem:[%s0 + $0x5c] sm:$0xf]
  %v39 = vld [vmem:[%s0 + $0x60] sm:$0xf]
  %v40 = vld [vmem:[%s0 + $0x64] sm:$0xf]
  %v41 = vld [vmem:[%s0 + $0x68] sm:$0xf]
  %v42 = vld [vmem:[%s0 + $0x6c] sm:$0xf]
  %v43 = vld [vmem:[%s0 + $0x70] sm:$0xf]
  %v44 = vld [vmem:[%s0 + $0x74] sm:$0xf]
  %v45 = vld [vmem:[%s0 + $0x78] sm:$0xf]
  %v46 = vld [vmem:[%s0 + $0x7c] sm:$0xf]
  %v47 = vld [vmem:[%s0 + $0x80] sm:$0xf]
  %v48 = vld [vmem:[%s0 + $0x84] sm:$0xf]
  %v49 = vld [vmem:[%s0 + $0x88] sm:$0xf]
  %v50 = vld [vmem:[%s0 + $0x8c] sm:$0xf]
  %v51 = vld [vmem:[%s0 + $0x90] sm:$0xf]
  %v52 = vld [vmem:[%s0 + $0x94] sm:$0xf]
  %v53 = vld [vmem:[%s0 + $0x98] sm:$0xf]
  %v54 = vld [vmem:[%s0 + $0x9c] sm:$0xf]
  %v55 = vld [vmem:[%s0 + $0xa0] sm:$0xf]
  %v56 = vld [vmem:[%s0 + $0xa4] sm:$0xf]
  %v57 = vld [vmem:[%s0 + $0xa8] sm:$0xf]
  %v58 = vld [vmem:[%s0 + $0xac] sm:$0xf]
  %v59 = vld [vmem:[%s0 + $0xb0] sm:$0xf]
  %v60 = vld [vmem:[%s0 + $0xb4] sm:$0xf]
  %v61 = vld [vmem:[%s0 + $0xb8] sm:$0xf]
  %v62 = vld [vmem:[%s0 + $0xbc] sm:$0xf]
  %v63 = vld [vmem:[%s0 + $0xc0] sm:$0xf]
  %v64 = vld [vmem:[%s0 + $0xc4] sm:$0xf]
  %v65 = vld [vmem:[%s0 + $0xc8] sm:$0xf]
  %v66 = vld [vmem:[%s0 + $0xcc] sm:$0xf]
  %v67 = vld [vmem:[%s0 + $0xd0] sm:$0xf]
  %v68 = vld [vmem:[%s0 + $0xd4] sm:$0xf]
  %v69 = vld [vmem:[%s0 + $0xd8] sm:$0xf]
  %v70 = vld [vmem:[%s0 + $0xdc] sm:$0xf]
  %v71 = vld [vmem:[%s0 + $0xe0] sm:$0xf]
  %v72 = vld [vmem:[%s0 + $0xe4] sm:$0xf]
  %v73 = vld [vmem:[%s0 + $0xe8] sm:$0xf]
  %v74 = vld [vmem:[%s0 + $0xec] sm:$0xf]
  %v75 = vld [vmem:[%s0 + $0xf0] sm:$0xf]
  %v76 = vld [vmem:[%s0 + $0xf4] sm:$0xf]
  %v77 = vld [vmem:[%s0 + $0xf8] sm:$0xf]
  %v78 = vld [vmem:[%s0 + $0xfc] sm:$0xf]
  %v79 = vld [vmem:[%s1] sm:$0xf]
  %v80 = vld [vmem:[%s1 + $0x4] sm:$0xf]
  %v81 = vld [vmem:[%s1 + $0x8] sm:$0xf]
  %v82 = vld [vmem:[%s1 + $0xc] sm:$0xf]
  %v83 = vld [vmem:[%s1 + $0x10] sm:$0xf]
  %v84 = vld [vmem:[%s1 + $0x14] sm:$0xf]
  %v85 = vld [vmem:[%s1 + $0x18] sm:$0xf]
  %v86 = vld [vmem:[%s1 + $0x1c] sm:$0xf]
  %v87 = vld [vmem:[%s1 + $0x20] sm:$0xf]
  %v88 = vld [vmem:[%s1 + $0x24] sm:$0xf]
  %v89 = vld [vmem:[%s1 + $0x28] sm:$0xf]
  %v90 = vld [vmem:[%s1 + $0x2c] sm:$0xf]
  %v91 = vld [vmem:[%s1 + $0x30] sm:$0xf]
  %v92 = vld [vmem:[%s1 + $0x34] sm:$0xf]
  %v93 = vld [vmem:[%s1 + $0x38] sm:$0xf]
  %v94 = vld [vmem:[%s1 + $0x3c] sm:$0xf]
  %v95 = vld [vmem:[%s2] sm:$0x1]
  %v97 = vlaneseq
  %v98 = vshrl.u32 %v97, 7
  %v99 = vsub.s32 0, %v98
  %v100 = vrot.slane %v95, %v99
  %v166 = vunpack.c.l.b16 %v15
  %v167 = vunpack.c.l.b16 %v16
  %v168 = vunpack.c.l.b16 %v17
  %v169 = vunpack.c.l.b16 %v18
  %v170 = vunpack.c.l.b16 %v19
  %v171 = vunpack.c.l.b16 %v20
  %v172 = vunpack.c.l.b16 %v21
  %v173 = vunpack.c.l.b16 %v22
  %v174 = vunpack.c.l.b16 %v23
  %v175 = vunpack.c.l.b16 %v24
  %v176 = vunpack.c.l.b16 %v25
  %v177 = vunpack.c.l.b16 %v26
  %v178 = vunpack.c.l.b16 %v27
  %v179 = vunpack.c.l.b16 %v28
  %v180 = vunpack.c.l.b16 %v29
  %v181 = vunpack.c.l.b16 %v30
  %v182 = vunpack.c.l.b16 %v31
  %v183 = vunpack.c.l.b16 %v32
  %v184 = vunpack.c.l.b16 %v33
  %v185 = vunpack.c.l.b16 %v34
  %v186 = vunpack.c.l.b16 %v35
  %v187 = vunpack.c.l.b16 %v36
  %v188 = vunpack.c.l.b16 %v37
  %v189 = vunpack.c.l.b16 %v38
  %v190 = vunpack.c.l.b16 %v39
  %v191 = vunpack.c.l.b16 %v40
  %v192 = vunpack.c.l.b16 %v41
  %v193 = vunpack.c.l.b16 %v42
  %v194 = vunpack.c.l.b16 %v43
  %v195 = vunpack.c.l.b16 %v44
  %v196 = vunpack.c.l.b16 %v45
  %v197 = vunpack.c.l.b16 %v46
  %v198 = vunpack.c.l.b16 %v47
  %v199 = vunpack.c.l.b16 %v48
  %v200 = vunpack.c.l.b16 %v49
  %v201 = vunpack.c.l.b16 %v50
  %v202 = vunpack.c.l.b16 %v51
  %v203 = vunpack.c.l.b16 %v52
  %v204 = vunpack.c.l.b16 %v53
  %v205 = vunpack.c.l.b16 %v54
  %v206 = vunpack.c.l.b16 %v55
  %v207 = vunpack.c.l.b16 %v56
  %v208 = vunpack.c.l.b16 %v57
  %v209 = vunpack.c.l.b16 %v58
  %v210 = vunpack.c.l.b16 %v59
  %v211 = vunpack.c.l.b16 %v60
  %v212 = vunpack.c.l.b16 %v61
  %v213 = vunpack.c.l.b16 %v62
  %v214 = vunpack.c.l.b16 %v63
  %v215 = vunpack.c.l.b16 %v64
  %v216 = vunpack.c.l.b16 %v65
  %v217 = vunpack.c.l.b16 %v66
  %v218 = vunpack.c.l.b16 %v67
  %v219 = vunpack.c.l.b16 %v68
  %v220 = vunpack.c.l.b16 %v69
  %v221 = vunpack.c.l.b16 %v70
  %v222 = vunpack.c.l.b16 %v71
  %v223 = vunpack.c.l.b16 %v72
  %v224 = vunpack.c.l.b16 %v73
  %v225 = vunpack.c.l.b16 %v74
  %v226 = vunpack.c.l.b16 %v75
  %v227 = vunpack.c.l.b16 %v76
  %v228 = vunpack.c.l.b16 %v77
  %v229 = vunpack.c.l.b16 %v78
  %v230 = vpack.c.b16 %v167, %v166
  %v231 = vpack.c.b16 %v169, %v168
  %v232 = vpack.c.b16 %v171, %v170
  %v233 = vpack.c.b16 %v173, %v172
  %v234 = vpack.c.b16 %v175, %v174
  %v235 = vpack.c.b16 %v177, %v176
  %v236 = vpack.c.b16 %v179, %v178
  %v237 = vpack.c.b16 %v181, %v180
  %v238 = vpack.c.b16 %v183, %v182
  %v239 = vpack.c.b16 %v185, %v184
  %v240 = vpack.c.b16 %v187, %v186
  %v241 = vpack.c.b16 %v189, %v188
  %v242 = vpack.c.b16 %v191, %v190
  %v243 = vpack.c.b16 %v193, %v192
  %v244 = vpack.c.b16 %v195, %v194
  %v245 = vpack.c.b16 %v197, %v196
  %v246 = vpack.c.b16 %v199, %v198
  %v247 = vpack.c.b16 %v201, %v200
  %v248 = vpack.c.b16 %v203, %v202
  %v249 = vpack.c.b16 %v205, %v204
  %v250 = vpack.c.b16 %v207, %v206
  %v251 = vpack.c.b16 %v209, %v208
  %v252 = vpack.c.b16 %v211, %v210
  %v253 = vpack.c.b16 %v213, %v212
  %v254 = vpack.c.b16 %v215, %v214
  %v255 = vpack.c.b16 %v217, %v216
  %v256 = vpack.c.b16 %v219, %v218
  %v257 = vpack.c.b16 %v221, %v220
  %v258 = vpack.c.b16 %v223, %v222
  %v259 = vpack.c.b16 %v225, %v224
  %v260 = vpack.c.b16 %v227, %v226
  %v261 = vpack.c.b16 %v229, %v228
  %v310 = vunpack.c.l.b16 %v79
  %v311 = vunpack.c.l.b16 %v80
  %v312 = vunpack.c.l.b16 %v81
  %v313 = vunpack.c.l.b16 %v82
  %v314 = vunpack.c.l.b16 %v83
  %v315 = vunpack.c.l.b16 %v84
  %v316 = vunpack.c.l.b16 %v85
  %v317 = vunpack.c.l.b16 %v86
  %v318 = vunpack.c.l.b16 %v87
  %v319 = vunpack.c.l.b16 %v88
  %v320 = vunpack.c.l.b16 %v89
  %v321 = vunpack.c.l.b16 %v90
  %v322 = vunpack.c.l.b16 %v91
  %v323 = vunpack.c.l.b16 %v92
  %v324 = vunpack.c.l.b16 %v93
  %v325 = vunpack.c.l.b16 %v94
  %v326 = vpack.c.b16 %v311, %v310
  %v327 = vpack.c.b16 %v313, %v312
  %v328 = vpack.c.b16 %v315, %v314
  %v329 = vpack.c.b16 %v317, %v316
  %v330 = vpack.c.b16 %v319, %v318
  %v331 = vpack.c.b16 %v321, %v320
  %v332 = vpack.c.b16 %v323, %v322
  %v333 = vpack.c.b16 %v325, %v324
  %342 = vmatprep.subr.bf16.mxu0 0
  %343 = vmatpush1.bf16.msra.mxu0 %v333
  %344 = vmatprep.subr.bf16.mxu0 0
  %345 = vmatpush1.bf16.msra.mxu0 %v332
  %346 = vmatprep.subr.bf16.mxu0 0
  %347 = vmatpush1.bf16.msra.mxu0 %v331
  %348 = vmatprep.subr.bf16.mxu0 0
  %349 = vmatpush1.bf16.msra.mxu0 %v330
  %350 = vmatprep.subr.bf16.mxu0 0
  %351 = vmatpush1.bf16.msra.mxu0 %v329
  %352 = vmatprep.subr.bf16.mxu0 0
  %353 = vmatpush1.bf16.msra.mxu0 %v328
  %354 = vmatprep.subr.bf16.mxu0 0
  %355 = vmatpush1.bf16.msra.mxu0 %v327
  %356 = vmatprep.subr.bf16.mxu0 0
  %357 = vmatpush1.bf16.msra.mxu0 %v326
  %358 = vmatprep.subr.bf16.mxu0 0
  %359 = vmatpush2.bf16.msra.mxu0 0
  %360 = vmatprep.subr.bf16.mxu0 0
  %361 = vmatpush2.bf16.msra.mxu0 0
  %362 = vmatprep.subr.bf16.mxu0 0
  %363 = vmatpush2.bf16.msra.mxu0 0
  %364 = vmatprep.subr.bf16.mxu0 0
  %365 = vmatpush2.bf16.msra.mxu0 0
  %366 = vmatprep.subr.bf16.mxu0 0
  %367 = vmatpush2.bf16.msra.mxu0 0
  %368 = vmatprep.subr.bf16.mxu0 0
  %369 = vmatpush2.bf16.msra.mxu0 0
  %370 = vmatprep.subr.bf16.mxu0 0
  %371 = vmatpush2.bf16.msra.mxu0 0
  %372 = vmatprep.subr.bf16.mxu0 0
  %373 = vmatpush2.bf16.msra.mxu0 0
  %374 = vmatprep.mubr.bf16.mxu0 0
  %375 = vmatmul.mubr.bf16.gmra.mxu0 %v230
  %v376 = vpop.f32.mrf.mxu0
  %v377 = vadd.f32 %v100, %v376
  %v378 = vpop.f32.mrf.mxu0
  %v379 = vpop.f32.mrf.mxu0
  %v380 = vadd.f32 %v100, %v379
  %v381 = vpop.f32.mrf.mxu0
  %382 = vmatprep.mubr.bf16.mxu0 0
  %383 = vmatmul.mubr.bf16.gmra.mxu0 %v231
  %v384 = vpop.f32.mrf.mxu0
  %v385 = vadd.f32 %v100, %v384
  %v386 = vpop.f32.mrf.mxu0
  %v387 = vpop.f32.mrf.mxu0
  %v388 = vadd.f32 %v100, %v387
  %v389 = vpop.f32.mrf.mxu0
  %390 = vmatprep.mubr.bf16.mxu0 0
  %391 = vmatmul.mubr.bf16.gmra.mxu0 %v232
  %v392 = vpop.f32.mrf.mxu0
  %v393 = vadd.f32 %v100, %v392
  %v394 = vpop.f32.mrf.mxu0
  %v395 = vpop.f32.mrf.mxu0
  %v396 = vadd.f32 %v100, %v395
  %v397 = vpop.f32.mrf.mxu0
  %398 = vmatprep.mubr.bf16.mxu0 0
  %399 = vmatmul.mubr.bf16.gmra.mxu0 %v233
  %v400 = vpop.f32.mrf.mxu0
  %v401 = vadd.f32 %v100, %v400
  %v402 = vpop.f32.mrf.mxu0
  %v403 = vpop.f32.mrf.mxu0
  %v404 = vadd.f32 %v100, %v403
  %v405 = vpop.f32.mrf.mxu0
  %406 = vmatprep.mubr.bf16.mxu0 0
  %407 = vmatmul.mubr.bf16.gmra.mxu0 %v234
  %v408 = vpop.f32.mrf.mxu0
  %v409 = vadd.f32 %v100, %v408
  %v410 = vpop.f32.mrf.mxu0
  %v411 = vpop.f32.mrf.mxu0
  %v412 = vadd.f32 %v100, %v411
  %v413 = vpop.f32.mrf.mxu0
  %414 = vmatprep.mubr.bf16.mxu0 0
  %415 = vmatmul.mubr.bf16.gmra.mxu0 %v235
  %v416 = vpop.f32.mrf.mxu0
  %v417 = vadd.f32 %v100, %v416
  %v418 = vpop.f32.mrf.mxu0
  %v419 = vpop.f32.mrf.mxu0
  %v420 = vadd.f32 %v100, %v419
  %v421 = vpop.f32.mrf.mxu0
  %422 = vmatprep.mubr.bf16.mxu0 0
  %423 = vmatmul.mubr.bf16.gmra.mxu0 %v236
  %v424 = vpop.f32.mrf.mxu0
  %v425 = vadd.f32 %v100, %v424
  %v426 = vpop.f32.mrf.mxu0
  %v427 = vpop.f32.mrf.mxu0
  %v428 = vadd.f32 %v100, %v427
  %v429 = vpop.f32.mrf.mxu0
  %430 = vmatprep.mubr.bf16.mxu0 0
  %431 = vmatmul.mubr.bf16.gmra.mxu0 %v237
  %v432 = vpop.f32.mrf.mxu0
  %v433 = vadd.f32 %v100, %v432
  %v434 = vpop.f32.mrf.mxu0
  %v435 = vpop.f32.mrf.mxu0
  %v436 = vadd.f32 %v100, %v435
  %v437 = vpop.f32.mrf.mxu0
  %438 = vmatprep.mubr.bf16.mxu0 0
  %439 = vmatmul.mubr.bf16.gmra.mxu0 %v238
  %v440 = vpop.f32.mrf.mxu0
  %v441 = vadd.f32 %v100, %v440
  %v442 = vpop.f32.mrf.mxu0
  %v443 = vpop.f32.mrf.mxu0
  %v444 = vadd.f32 %v100, %v443
  %v445 = vpop.f32.mrf.mxu0
  %446 = vmatprep.mubr.bf16.mxu0 0
  %447 = vmatmul.mubr.bf16.gmra.mxu0 %v239
  %v448 = vpop.f32.mrf.mxu0
  %v449 = vadd.f32 %v100, %v448
  %v450 = vpop.f32.mrf.mxu0
  %v451 = vpop.f32.mrf.mxu0
  %v452 = vadd.f32 %v100, %v451
  %v453 = vpop.f32.mrf.mxu0
  %454 = vmatprep.mubr.bf16.mxu0 0
  %455 = vmatmul.mubr.bf16.gmra.mxu0 %v240
  %v456 = vpop.f32.mrf.mxu0
  %v457 = vadd.f32 %v100, %v456
  %v458 = vpop.f32.mrf.mxu0
  %v459 = vpop.f32.mrf.mxu0
  %v460 = vadd.f32 %v100, %v459
  %v461 = vpop.f32.mrf.mxu0
  %462 = vmatprep.mubr.bf16.mxu0 0
  %463 = vmatmul.mubr.bf16.gmra.mxu0 %v241
  %v464 = vpop.f32.mrf.mxu0
  %v465 = vadd.f32 %v100, %v464
  %v466 = vpop.f32.mrf.mxu0
  %v467 = vpop.f32.mrf.mxu0
  %v468 = vadd.f32 %v100, %v467
  %v469 = vpop.f32.mrf.mxu0
  %470 = vmatprep.mubr.bf16.mxu0 0
  %471 = vmatmul.mubr.bf16.gmra.mxu0 %v242
  %v472 = vpop.f32.mrf.mxu0
  %v473 = vadd.f32 %v100, %v472
  %v474 = vpop.f32.mrf.mxu0
  %v475 = vpop.f32.mrf.mxu0
  %v476 = vadd.f32 %v100, %v475
  %v477 = vpop.f32.mrf.mxu0
  %478 = vmatprep.mubr.bf16.mxu0 0
  %479 = vmatmul.mubr.bf16.gmra.mxu0 %v243
  %v480 = vpop.f32.mrf.mxu0
  %v481 = vadd.f32 %v100, %v480
  %v482 = vpop.f32.mrf.mxu0
  %v483 = vpop.f32.mrf.mxu0
  %v484 = vadd.f32 %v100, %v483
  %v485 = vpop.f32.mrf.mxu0
  %486 = vmatprep.mubr.bf16.mxu0 0
  %487 = vmatmul.mubr.bf16.gmra.mxu0 %v244
  %v488 = vpop.f32.mrf.mxu0
  %v489 = vadd.f32 %v100, %v488
  %v490 = vpop.f32.mrf.mxu0
  %v491 = vpop.f32.mrf.mxu0
  %v492 = vadd.f32 %v100, %v491
  %v493 = vpop.f32.mrf.mxu0
  %494 = vmatprep.mubr.bf16.mxu0 0
  %495 = vmatmul.mubr.bf16.gmra.mxu0 %v245
  %v496 = vpop.f32.mrf.mxu0
  %v497 = vadd.f32 %v100, %v496
  %v498 = vpop.f32.mrf.mxu0
  %v499 = vpop.f32.mrf.mxu0
  %v500 = vadd.f32 %v100, %v499
  %v501 = vpop.f32.mrf.mxu0
  %502 = vmatprep.mubr.bf16.mxu0 0
  %503 = vmatmul.mubr.bf16.gmra.mxu0 %v246
  %v504 = vpop.f32.mrf.mxu0
  %v505 = vadd.f32 %v100, %v504
  %v506 = vpop.f32.mrf.mxu0
  %v507 = vpop.f32.mrf.mxu0
  %v508 = vadd.f32 %v100, %v507
  %v509 = vpop.f32.mrf.mxu0
  %510 = vmatprep.mubr.bf16.mxu0 0
  %511 = vmatmul.mubr.bf16.gmra.mxu0 %v247
  %v512 = vpop.f32.mrf.mxu0
  %v513 = vadd.f32 %v100, %v512
  %v514 = vpop.f32.mrf.mxu0
  %v515 = vpop.f32.mrf.mxu0
  %v516 = vadd.f32 %v100, %v515
  %v517 = vpop.f32.mrf.mxu0
  %518 = vmatprep.mubr.bf16.mxu0 0
  %519 = vmatmul.mubr.bf16.gmra.mxu0 %v248
  %v520 = vpop.f32.mrf.mxu0
  %v521 = vadd.f32 %v100, %v520
  %v522 = vpop.f32.mrf.mxu0
  %v523 = vpop.f32.mrf.mxu0
  %v524 = vadd.f32 %v100, %v523
  %v525 = vpop.f32.mrf.mxu0
  %526 = vmatprep.mubr.bf16.mxu0 0
  %527 = vmatmul.mubr.bf16.gmra.mxu0 %v249
  %v528 = vpop.f32.mrf.mxu0
  %v529 = vadd.f32 %v100, %v528
  %v530 = vpop.f32.mrf.mxu0
  %v531 = vpop.f32.mrf.mxu0
  %v532 = vadd.f32 %v100, %v531
  %v533 = vpop.f32.mrf.mxu0
  %534 = vmatprep.mubr.bf16.mxu0 0
  %535 = vmatmul.mubr.bf16.gmra.mxu0 %v250
  %v536 = vpop.f32.mrf.mxu0
  %v537 = vadd.f32 %v100, %v536
  %v538 = vpop.f32.mrf.mxu0
  %v539 = vpop.f32.mrf.mxu0
  %v540 = vadd.f32 %v100, %v539
  %v541 = vpop.f32.mrf.mxu0
  %542 = vmatprep.mubr.bf16.mxu0 0
  %543 = vmatmul.mubr.bf16.gmra.mxu0 %v251
  %v544 = vpop.f32.mrf.mxu0
  %v545 = vadd.f32 %v100, %v544
  %v546 = vpop.f32.mrf.mxu0
  %v547 = vpop.f32.mrf.mxu0
  %v548 = vadd.f32 %v100, %v547
  %v549 = vpop.f32.mrf.mxu0
  %550 = vmatprep.mubr.bf16.mxu0 0
  %551 = vmatmul.mubr.bf16.gmra.mxu0 %v252
  %v552 = vpop.f32.mrf.mxu0
  %v553 = vadd.f32 %v100, %v552
  %v554 = vpop.f32.mrf.mxu0
  %v555 = vpop.f32.mrf.mxu0
  %v556 = vadd.f32 %v100, %v555
  %v557 = vpop.f32.mrf.mxu0
  %558 = vmatprep.mubr.bf16.mxu0 0
  %559 = vmatmul.mubr.bf16.gmra.mxu0 %v253
  %v560 = vpop.f32.mrf.mxu0
  %v561 = vadd.f32 %v100, %v560
  %v562 = vpop.f32.mrf.mxu0
  %v563 = vpop.f32.mrf.mxu0
  %v564 = vadd.f32 %v100, %v563
  %v565 = vpop.f32.mrf.mxu0
  %566 = vmatprep.mubr.bf16.mxu0 0
  %567 = vmatmul.mubr.bf16.gmra.mxu0 %v254
  %v568 = vpop.f32.mrf.mxu0
  %v569 = vadd.f32 %v100, %v568
  %v570 = vpop.f32.mrf.mxu0
  %v571 = vpop.f32.mrf.mxu0
  %v572 = vadd.f32 %v100, %v571
  %v573 = vpop.f32.mrf.mxu0
  %574 = vmatprep.mubr.bf16.mxu0 0
  %575 = vmatmul.mubr.bf16.gmra.mxu0 %v255
  %v576 = vpop.f32.mrf.mxu0
  %v577 = vadd.f32 %v100, %v576
  %v578 = vpop.f32.mrf.mxu0
  %v579 = vpop.f32.mrf.mxu0
  %v580 = vadd.f32 %v100, %v579
  %v581 = vpop.f32.mrf.mxu0
  %582 = vmatprep.mubr.bf16.mxu0 0
  %583 = vmatmul.mubr.bf16.gmra.mxu0 %v256
  %v584 = vpop.f32.mrf.mxu0
  %v585 = vadd.f32 %v100, %v584
  %v586 = vpop.f32.mrf.mxu0
  %v587 = vpop.f32.mrf.mxu0
  %v588 = vadd.f32 %v100, %v587
  %v589 = vpop.f32.mrf.mxu0
  %590 = vmatprep.mubr.bf16.mxu0 0
  %591 = vmatmul.mubr.bf16.gmra.mxu0 %v257
  %v592 = vpop.f32.mrf.mxu0
  %v593 = vadd.f32 %v100, %v592
  %v594 = vpop.f32.mrf.mxu0
  %v595 = vpop.f32.mrf.mxu0
  %v596 = vadd.f32 %v100, %v595
  %v597 = vpop.f32.mrf.mxu0
  %598 = vmatprep.mubr.bf16.mxu0 0
  %599 = vmatmul.mubr.bf16.gmra.mxu0 %v258
  %v600 = vpop.f32.mrf.mxu0
  %v601 = vadd.f32 %v100, %v600
  %v602 = vpop.f32.mrf.mxu0
  %v603 = vpop.f32.mrf.mxu0
  %v604 = vadd.f32 %v100, %v603
  %v605 = vpop.f32.mrf.mxu0
  %606 = vmatprep.mubr.bf16.mxu0 0
  %607 = vmatmul.mubr.bf16.gmra.mxu0 %v259
  %v608 = vpop.f32.mrf.mxu0
  %v609 = vadd.f32 %v100, %v608
  %v610 = vpop.f32.mrf.mxu0
  %v611 = vpop.f32.mrf.mxu0
  %v612 = vadd.f32 %v100, %v611
  %v613 = vpop.f32.mrf.mxu0
  %614 = vmatprep.mubr.bf16.mxu0 0
  %615 = vmatmul.mubr.bf16.gmra.mxu0 %v260
  %v616 = vpop.f32.mrf.mxu0
  %v617 = vadd.f32 %v100, %v616
  %v618 = vpop.f32.mrf.mxu0
  %v619 = vpop.f32.mrf.mxu0
  %v620 = vadd.f32 %v100, %v619
  %v621 = vpop.f32.mrf.mxu0
  %622 = vmatprep.mubr.bf16.mxu0 0
  %623 = vmatmul.mubr.bf16.gmra.mxu0 %v261
  %v624 = vpop.f32.mrf.mxu0
  %v625 = vadd.f32 %v100, %v624
  %v626 = vpop.f32.mrf.mxu0
  %v627 = vpop.f32.mrf.mxu0
  %v628 = vadd.f32 %v100, %v627
  %v629 = vpop.f32.mrf.mxu0
  %630 = vdwg.mxu0
  %v631 = vsub.f32 0.0, %v377
  %v632 = vsub.f32 0.0, %v380
  %v633 = vsub.f32 0.0, %v385
  %v634 = vsub.f32 0.0, %v388
  %v635 = vsub.f32 0.0, %v393
  %v636 = vsub.f32 0.0, %v396
  %v637 = vsub.f32 0.0, %v401
  %v638 = vsub.f32 0.0, %v404
  %v639 = vsub.f32 0.0, %v409
  %v640 = vsub.f32 0.0, %v412
  %v641 = vsub.f32 0.0, %v417
  %v642 = vsub.f32 0.0, %v420
  %v643 = vsub.f32 0.0, %v425
  %v644 = vsub.f32 0.0, %v428
  %v645 = vsub.f32 0.0, %v433
  %v646 = vsub.f32 0.0, %v436
  %v647 = vsub.f32 0.0, %v441
  %v648 = vsub.f32 0.0, %v444
  %v649 = vsub.f32 0.0, %v449
  %v650 = vsub.f32 0.0, %v452
  %v651 = vsub.f32 0.0, %v457
  %v652 = vsub.f32 0.0, %v460
  %v653 = vsub.f32 0.0, %v465
  %v654 = vsub.f32 0.0, %v468
  %v655 = vsub.f32 0.0, %v473
  %v656 = vsub.f32 0.0, %v476
  %v657 = vsub.f32 0.0, %v481
  %v658 = vsub.f32 0.0, %v484
  %v659 = vsub.f32 0.0, %v489
  %v660 = vsub.f32 0.0, %v492
  %v661 = vsub.f32 0.0, %v497
  %v662 = vsub.f32 0.0, %v500
  %v663 = vsub.f32 0.0, %v505
  %v664 = vsub.f32 0.0, %v508
  %v665 = vsub.f32 0.0, %v513
  %v666 = vsub.f32 0.0, %v516
  %v667 = vsub.f32 0.0, %v521
  %v668 = vsub.f32 0.0, %v524
  %v669 = vsub.f32 0.0, %v529
  %v670 = vsub.f32 0.0, %v532
  %v671 = vsub.f32 0.0, %v537
  %v672 = vsub.f32 0.0, %v540
  %v673 = vsub.f32 0.0, %v545
  %v674 = vsub.f32 0.0, %v548
  %v675 = vsub.f32 0.0, %v553
  %v676 = vsub.f32 0.0, %v556
  %v677 = vsub.f32 0.0, %v561
  %v678 = vsub.f32 0.0, %v564
  %v679 = vsub.f32 0.0, %v569
  %v680 = vsub.f32 0.0, %v572
  %v681 = vsub.f32 0.0, %v577
  %v682 = vsub.f32 0.0, %v580
  %v683 = vsub.f32 0.0, %v585
  %v684 = vsub.f32 0.0, %v588
  %v685 = vsub.f32 0.0, %v593
  %v686 = vsub.f32 0.0, %v596
  %v687 = vsub.f32 0.0, %v601
  %v688 = vsub.f32 0.0, %v604
  %v689 = vsub.f32 0.0, %v609
  %v690 = vsub.f32 0.0, %v612
  %v691 = vsub.f32 0.0, %v617
  %v692 = vsub.f32 0.0, %v620
  %v693 = vsub.f32 0.0, %v625
  %v694 = vsub.f32 0.0, %v628
  %v695 = vmul.f32 %v631, 1.442695
  %v696 = vpow.pop %v695
  %v697 = vmul.f32 %v632, 1.442695
  %v698 = vpow.pop %v697
  %v699 = vmul.f32 %v633, 1.442695
  %v700 = vpow.pop %v699
  %v701 = vmul.f32 %v634, 1.442695
  %v702 = vpow.pop %v701
  %v703 = vmul.f32 %v635, 1.442695
  %v704 = vpow.pop %v703
  %v705 = vmul.f32 %v636, 1.442695
  %v706 = vpow.pop %v705
  %v707 = vmul.f32 %v637, 1.442695
  %v708 = vpow.pop %v707
  %v709 = vmul.f32 %v638, 1.442695
  %v710 = vpow.pop %v709
  %v711 = vmul.f32 %v639, 1.442695
  %v712 = vpow.pop %v711
  %v713 = vmul.f32 %v640, 1.442695
  %v714 = vpow.pop %v713
  %v715 = vmul.f32 %v641, 1.442695
  %v716 = vpow.pop %v715
  %v717 = vmul.f32 %v642, 1.442695
  %v718 = vpow.pop %v717
  %v719 = vmul.f32 %v643, 1.442695
  %v720 = vpow.pop %v719
  %v721 = vmul.f32 %v644, 1.442695
  %v722 = vpow.pop %v721
  %v723 = vmul.f32 %v645, 1.442695
  %v724 = vpow.pop %v723
  %v725 = vmul.f32 %v646, 1.442695
  %v726 = vpow.pop %v725
  %v727 = vmul.f32 %v647, 1.442695
  %v728 = vpow.pop %v727
  %v729 = vmul.f32 %v648, 1.442695
  %v730 = vpow.pop %v729
  %v731 = vmul.f32 %v649, 1.442695
  %v732 = vpow.pop %v731
  %v733 = vmul.f32 %v650, 1.442695
  %v734 = vpow.pop %v733
  %v735 = vmul.f32 %v651, 1.442695
  %v736 = vpow.pop %v735
  %v737 = vmul.f32 %v652, 1.442695
  %v738 = vpow.pop %v737
  %v739 = vmul.f32 %v653, 1.442695
  %v740 = vpow.pop %v739
  %v741 = vmul.f32 %v654, 1.442695
  %v742 = vpow.pop %v741
  %v743 = vmul.f32 %v655, 1.442695
  %v744 = vpow.pop %v743
  %v745 = vmul.f32 %v656, 1.442695
  %v746 = vpow.pop %v745
  %v747 = vmul.f32 %v657, 1.442695
  %v748 = vpow.pop %v747
  %v749 = vmul.f32 %v658, 1.442695
  %v750 = vpow.pop %v749
  %v751 = vmul.f32 %v659, 1.442695
  %v752 = vpow.pop %v751
  %v753 = vmul.f32 %v660, 1.442695
  %v754 = vpow.pop %v753
  %v755 = vmul.f32 %v661, 1.442695
  %v756 = vpow.pop %v755
  %v757 = vmul.f32 %v662, 1.442695
  %v758 = vpow.pop %v757
  %v759 = vmul.f32 %v663, 1.442695
  %v760 = vpow.pop %v759
  %v761 = vmul.f32 %v664, 1.442695
  %v762 = vpow.pop %v761
  %v763 = vmul.f32 %v665, 1.442695
  %v764 = vpow.pop %v763
  %v765 = vmul.f32 %v666, 1.442695
  %v766 = vpow.pop %v765
  %v767 = vmul.f32 %v667, 1.442695
  %v768 = vpow.pop %v767
  %v769 = vmul.f32 %v668, 1.442695
  %v770 = vpow.pop %v769
  %v771 = vmul.f32 %v669, 1.442695
  %v772 = vpow.pop %v771
  %v773 = vmul.f32 %v670, 1.442695
  %v774 = vpow.pop %v773
  %v775 = vmul.f32 %v671, 1.442695
  %v776 = vpow.pop %v775
  %v777 = vmul.f32 %v672, 1.442695
  %v778 = vpow.pop %v777
  %v779 = vmul.f32 %v673, 1.442695
  %v780 = vpow.pop %v779
  %v781 = vmul.f32 %v674, 1.442695
  %v782 = vpow.pop %v781
  %v783 = vmul.f32 %v675, 1.442695
  %v784 = vpow.pop %v783
  %v785 = vmul.f32 %v676, 1.442695
  %v786 = vpow.pop %v785
  %v787 = vmul.f32 %v677, 1.442695
  %v788 = vpow.pop %v787
  %v789 = vmul.f32 %v678, 1.442695
  %v790 = vpow.pop %v789
  %v791 = vmul.f32 %v679, 1.442695
  %v792 = vpow.pop %v791
  %v793 = vmul.f32 %v680, 1.442695
  %v794 = vpow.pop %v793
  %v795 = vmul.f32 %v681, 1.442695
  %v796 = vpow.pop %v795
  %v797 = vmul.f32 %v682, 1.442695
  %v798 = vpow.pop %v797
  %v799 = vmul.f32 %v683, 1.442695
  %v800 = vpow.pop %v799
  %v801 = vmul.f32 %v684, 1.442695
  %v802 = vpow.pop %v801
  %v803 = vmul.f32 %v685, 1.442695
  %v804 = vpow.pop %v803
  %v805 = vmul.f32 %v686, 1.442695
  %v806 = vpow.pop %v805
  %v807 = vmul.f32 %v687, 1.442695
  %v808 = vpow.pop %v807
  %v809 = vmul.f32 %v688, 1.442695
  %v810 = vpow.pop %v809
  %v811 = vmul.f32 %v689, 1.442695
  %v812 = vpow.pop %v811
  %v813 = vmul.f32 %v690, 1.442695
  %v814 = vpow.pop %v813
  %v815 = vmul.f32 %v691, 1.442695
  %v816 = vpow.pop %v815
  %v817 = vmul.f32 %v692, 1.442695
  %v818 = vpow.pop %v817
  %v819 = vmul.f32 %v693, 1.442695
  %v820 = vpow.pop %v819
  %v821 = vmul.f32 %v694, 1.442695
  %v822 = vpow.pop %v821
  %v823 = vadd.f32 %v696, 1.0
  %v824 = vadd.f32 %v698, 1.0
  %v825 = vadd.f32 %v700, 1.0
  %v826 = vadd.f32 %v702, 1.0
  %v827 = vadd.f32 %v704, 1.0
  %v828 = vadd.f32 %v706, 1.0
  %v829 = vadd.f32 %v708, 1.0
  %v830 = vadd.f32 %v710, 1.0
  %v831 = vadd.f32 %v712, 1.0
  %v832 = vadd.f32 %v714, 1.0
  %v833 = vadd.f32 %v716, 1.0
  %v834 = vadd.f32 %v718, 1.0
  %v835 = vadd.f32 %v720, 1.0
  %v836 = vadd.f32 %v722, 1.0
  %v837 = vadd.f32 %v724, 1.0
  %v838 = vadd.f32 %v726, 1.0
  %v839 = vadd.f32 %v728, 1.0
  %v840 = vadd.f32 %v730, 1.0
  %v841 = vadd.f32 %v732, 1.0
  %v842 = vadd.f32 %v734, 1.0
  %v843 = vadd.f32 %v736, 1.0
  %v844 = vadd.f32 %v738, 1.0
  %v845 = vadd.f32 %v740, 1.0
  %v846 = vadd.f32 %v742, 1.0
  %v847 = vadd.f32 %v744, 1.0
  %v848 = vadd.f32 %v746, 1.0
  %v849 = vadd.f32 %v748, 1.0
  %v850 = vadd.f32 %v750, 1.0
  %v851 = vadd.f32 %v752, 1.0
  %v852 = vadd.f32 %v754, 1.0
  %v853 = vadd.f32 %v756, 1.0
  %v854 = vadd.f32 %v758, 1.0
  %v855 = vadd.f32 %v760, 1.0
  %v856 = vadd.f32 %v762, 1.0
  %v857 = vadd.f32 %v764, 1.0
  %v858 = vadd.f32 %v766, 1.0
  %v859 = vadd.f32 %v768, 1.0
  %v860 = vadd.f32 %v770, 1.0
  %v861 = vadd.f32 %v772, 1.0
  %v862 = vadd.f32 %v774, 1.0
  %v863 = vadd.f32 %v776, 1.0
  %v864 = vadd.f32 %v778, 1.0
  %v865 = vadd.f32 %v780, 1.0
  %v866 = vadd.f32 %v782, 1.0
  %v867 = vadd.f32 %v784, 1.0
  %v868 = vadd.f32 %v786, 1.0
  %v869 = vadd.f32 %v788, 1.0
  %v870 = vadd.f32 %v790, 1.0
  %v871 = vadd.f32 %v792, 1.0
  %v872 = vadd.f32 %v794, 1.0
  %v873 = vadd.f32 %v796, 1.0
  %v874 = vadd.f32 %v798, 1.0
  %v875 = vadd.f32 %v800, 1.0
  %v876 = vadd.f32 %v802, 1.0
  %v877 = vadd.f32 %v804, 1.0
  %v878 = vadd.f32 %v806, 1.0
  %v879 = vadd.f32 %v808, 1.0
  %v880 = vadd.f32 %v810, 1.0
  %v881 = vadd.f32 %v812, 1.0
  %v882 = vadd.f32 %v814, 1.0
  %v883 = vadd.f32 %v816, 1.0
  %v884 = vadd.f32 %v818, 1.0
  %v885 = vadd.f32 %v820, 1.0
  %v886 = vadd.f32 %v822, 1.0
  %v887 = vrcp.pop %v823
  %v888 = vmul.f32 1.0, %v887
  %v889 = vrcp.pop %v824
  %v890 = vmul.f32 1.0, %v889
  %v891 = vrcp.pop %v825
  %v892 = vmul.f32 1.0, %v891
  %v893 = vrcp.pop %v826
  %v894 = vmul.f32 1.0, %v893
  %v895 = vrcp.pop %v827
  %v896 = vmul.f32 1.0, %v895
  %v897 = vrcp.pop %v828
  %v898 = vmul.f32 1.0, %v897
  %v899 = vrcp.pop %v829
  %v900 = vmul.f32 1.0, %v899
  %v901 = vrcp.pop %v830
  %v902 = vmul.f32 1.0, %v901
  %v903 = vrcp.pop %v831
  %v904 = vmul.f32 1.0, %v903
  %v905 = vrcp.pop %v832
  %v906 = vmul.f32 1.0, %v905
  %v907 = vrcp.pop %v833
  %v908 = vmul.f32 1.0, %v907
  %v909 = vrcp.pop %v834
  %v910 = vmul.f32 1.0, %v909
  %v911 = vrcp.pop %v835
  %v912 = vmul.f32 1.0, %v911
  %v913 = vrcp.pop %v836
  %v914 = vmul.f32 1.0, %v913
  %v915 = vrcp.pop %v837
  %v916 = vmul.f32 1.0, %v915
  %v917 = vrcp.pop %v838
  %v918 = vmul.f32 1.0, %v917
  %v919 = vrcp.pop %v839
  %v920 = vmul.f32 1.0, %v919
  %v921 = vrcp.pop %v840
  %v922 = vmul.f32 1.0, %v921
  %v923 = vrcp.pop %v841
  %v924 = vmul.f32 1.0, %v923
  %v925 = vrcp.pop %v842
  %v926 = vmul.f32 1.0, %v925
  %v927 = vrcp.pop %v843
  %v928 = vmul.f32 1.0, %v927
  %v929 = vrcp.pop %v844
  %v930 = vmul.f32 1.0, %v929
  %v931 = vrcp.pop %v845
  %v932 = vmul.f32 1.0, %v931
  %v933 = vrcp.pop %v846
  %v934 = vmul.f32 1.0, %v933
  %v935 = vrcp.pop %v847
  %v936 = vmul.f32 1.0, %v935
  %v937 = vrcp.pop %v848
  %v938 = vmul.f32 1.0, %v937
  %v939 = vrcp.pop %v849
  %v940 = vmul.f32 1.0, %v939
  %v941 = vrcp.pop %v850
  %v942 = vmul.f32 1.0, %v941
  %v943 = vrcp.pop %v851
  %v944 = vmul.f32 1.0, %v943
  %v945 = vrcp.pop %v852
  %v946 = vmul.f32 1.0, %v945
  %v947 = vrcp.pop %v853
  %v948 = vmul.f32 1.0, %v947
  %v949 = vrcp.pop %v854
  %v950 = vmul.f32 1.0, %v949
  %v951 = vrcp.pop %v855
  %v952 = vmul.f32 1.0, %v951
  %v953 = vrcp.pop %v856
  %v954 = vmul.f32 1.0, %v953
  %v955 = vrcp.pop %v857
  %v956 = vmul.f32 1.0, %v955
  %v957 = vrcp.pop %v858
  %v958 = vmul.f32 1.0, %v957
  %v959 = vrcp.pop %v859
  %v960 = vmul.f32 1.0, %v959
  %v961 = vrcp.pop %v860
  %v962 = vmul.f32 1.0, %v961
  %v963 = vrcp.pop %v861
  %v964 = vmul.f32 1.0, %v963
  %v965 = vrcp.pop %v862
  %v966 = vmul.f32 1.0, %v965
  %v967 = vrcp.pop %v863
  %v968 = vmul.f32 1.0, %v967
  %v969 = vrcp.pop %v864
  %v970 = vmul.f32 1.0, %v969
  %v971 = vrcp.pop %v865
  %v972 = vmul.f32 1.0, %v971
  %v973 = vrcp.pop %v866
  %v974 = vmul.f32 1.0, %v973
  %v975 = vrcp.pop %v867
  %v976 = vmul.f32 1.0, %v975
  %v977 = vrcp.pop %v868
  %v978 = vmul.f32 1.0, %v977
  %v979 = vrcp.pop %v869
  %v980 = vmul.f32 1.0, %v979
  %v981 = vrcp.pop %v870
  %v982 = vmul.f32 1.0, %v981
  %v983 = vrcp.pop %v871
  %v984 = vmul.f32 1.0, %v983
  %v985 = vrcp.pop %v872
  %v986 = vmul.f32 1.0, %v985
  %v987 = vrcp.pop %v873
  %v988 = vmul.f32 1.0, %v987
  %v989 = vrcp.pop %v874
  %v990 = vmul.f32 1.0, %v989
  %v991 = vrcp.pop %v875
  %v992 = vmul.f32 1.0, %v991
  %v993 = vrcp.pop %v876
  %v994 = vmul.f32 1.0, %v993
  %v995 = vrcp.pop %v877
  %v996 = vmul.f32 1.0, %v995
  %v997 = vrcp.pop %v878
  %v998 = vmul.f32 1.0, %v997
  %v999 = vrcp.pop %v879
  %v1000 = vmul.f32 1.0, %v999
  %v1001 = vrcp.pop %v880
  %v1002 = vmul.f32 1.0, %v1001
  %v1003 = vrcp.pop %v881
  %v1004 = vmul.f32 1.0, %v1003
  %v1005 = vrcp.pop %v882
  %v1006 = vmul.f32 1.0, %v1005
  %v1007 = vrcp.pop %v883
  %v1008 = vmul.f32 1.0, %v1007
  %v1009 = vrcp.pop %v884
  %v1010 = vmul.f32 1.0, %v1009
  %v1011 = vrcp.pop %v885
  %v1012 = vmul.f32 1.0, %v1011
  %v1013 = vrcp.pop %v886
  %v1014 = vmul.f32 1.0, %v1013
  %v1015 = vmul.f32 %v377, %v888
  %v1016 = vmul.f32 %v380, %v890
  %v1017 = vmul.f32 %v385, %v892
  %v1018 = vmul.f32 %v388, %v894
  %v1019 = vmul.f32 %v393, %v896
  %v1020 = vmul.f32 %v396, %v898
  %v1021 = vmul.f32 %v401, %v900
  %v1022 = vmul.f32 %v404, %v902
  %v1023 = vmul.f32 %v409, %v904
  %v1024 = vmul.f32 %v412, %v906
  %v1025 = vmul.f32 %v417, %v908
  %v1026 = vmul.f32 %v420, %v910
  %v1027 = vmul.f32 %v425, %v912
  %v1028 = vmul.f32 %v428, %v914
  %v1029 = vmul.f32 %v433, %v916
  %v1030 = vmul.f32 %v436, %v918
  %v1031 = vmul.f32 %v441, %v920
  %v1032 = vmul.f32 %v444, %v922
  %v1033 = vmul.f32 %v449, %v924
  %v1034 = vmul.f32 %v452, %v926
  %v1035 = vmul.f32 %v457, %v928
  %v1036 = vmul.f32 %v460, %v930
  %v1037 = vmul.f32 %v465, %v932
  %v1038 = vmul.f32 %v468, %v934
  %v1039 = vmul.f32 %v473, %v936
  %v1040 = vmul.f32 %v476, %v938
  %v1041 = vmul.f32 %v481, %v940
  %v1042 = vmul.f32 %v484, %v942
  %v1043 = vmul.f32 %v489, %v944
  %v1044 = vmul.f32 %v492, %v946
  %v1045 = vmul.f32 %v497, %v948
  %v1046 = vmul.f32 %v500, %v950
  %v1047 = vmul.f32 %v505, %v952
  %v1048 = vmul.f32 %v508, %v954
  %v1049 = vmul.f32 %v513, %v956
  %v1050 = vmul.f32 %v516, %v958
  %v1051 = vmul.f32 %v521, %v960
  %v1052 = vmul.f32 %v524, %v962
  %v1053 = vmul.f32 %v529, %v964
  %v1054 = vmul.f32 %v532, %v966
  %v1055 = vmul.f32 %v537, %v968
  %v1056 = vmul.f32 %v540, %v970
  %v1057 = vmul.f32 %v545, %v972
  %v1058 = vmul.f32 %v548, %v974
  %v1059 = vmul.f32 %v553, %v976
  %v1060 = vmul.f32 %v556, %v978
  %v1061 = vmul.f32 %v561, %v980
  %v1062 = vmul.f32 %v564, %v982
  %v1063 = vmul.f32 %v569, %v984
  %v1064 = vmul.f32 %v572, %v986
  %v1065 = vmul.f32 %v577, %v988
  %v1066 = vmul.f32 %v580, %v990
  %v1067 = vmul.f32 %v585, %v992
  %v1068 = vmul.f32 %v588, %v994
  %v1069 = vmul.f32 %v593, %v996
  %v1070 = vmul.f32 %v596, %v998
  %v1071 = vmul.f32 %v601, %v1000
  %v1072 = vmul.f32 %v604, %v1002
  %v1073 = vmul.f32 %v609, %v1004
  %v1074 = vmul.f32 %v612, %v1006
  %v1075 = vmul.f32 %v617, %v1008
  %v1076 = vmul.f32 %v620, %v1010
  %v1077 = vmul.f32 %v625, %v1012
  %v1078 = vmul.f32 %v628, %v1014
  %v1079 = vpack.c.bf16 %v1016, %v1015
  %v1080 = vpack.c.bf16 %v1018, %v1017
  %v1081 = vpack.c.bf16 %v1020, %v1019
  %v1082 = vpack.c.bf16 %v1022, %v1021
  %v1083 = vpack.c.bf16 %v1024, %v1023
  %v1084 = vpack.c.bf16 %v1026, %v1025
  %v1085 = vpack.c.bf16 %v1028, %v1027
  %v1086 = vpack.c.bf16 %v1030, %v1029
  %v1087 = vpack.c.bf16 %v1032, %v1031
  %v1088 = vpack.c.bf16 %v1034, %v1033
  %v1089 = vpack.c.bf16 %v1036, %v1035
  %v1090 = vpack.c.bf16 %v1038, %v1037
  %v1091 = vpack.c.bf16 %v1040, %v1039
  %v1092 = vpack.c.bf16 %v1042, %v1041
  %v1093 = vpack.c.bf16 %v1044, %v1043
  %v1094 = vpack.c.bf16 %v1046, %v1045
  %v1095 = vpack.c.bf16 %v1048, %v1047
  %v1096 = vpack.c.bf16 %v1050, %v1049
  %v1097 = vpack.c.bf16 %v1052, %v1051
  %v1098 = vpack.c.bf16 %v1054, %v1053
  %v1099 = vpack.c.bf16 %v1056, %v1055
  %v1100 = vpack.c.bf16 %v1058, %v1057
  %v1101 = vpack.c.bf16 %v1060, %v1059
  %v1102 = vpack.c.bf16 %v1062, %v1061
  %v1103 = vpack.c.bf16 %v1064, %v1063
  %v1104 = vpack.c.bf16 %v1066, %v1065
  %v1105 = vpack.c.bf16 %v1068, %v1067
  %v1106 = vpack.c.bf16 %v1070, %v1069
  %v1107 = vpack.c.bf16 %v1072, %v1071
  %v1108 = vpack.c.bf16 %v1074, %v1073
  %v1109 = vpack.c.bf16 %v1076, %v1075
  %v1110 = vpack.c.bf16 %v1078, %v1077
  %v1143 = vunpack.c.l.b16 %v1079
  %v1144 = vunpack.c.h.b16 %v1079
  %v1145 = vunpack.c.l.b16 %v1080
  %v1146 = vunpack.c.h.b16 %v1080
  %v1147 = vunpack.c.l.b16 %v1081
  %v1148 = vunpack.c.h.b16 %v1081
  %v1149 = vunpack.c.l.b16 %v1082
  %v1150 = vunpack.c.h.b16 %v1082
  %v1151 = vunpack.c.l.b16 %v1083
  %v1152 = vunpack.c.h.b16 %v1083
  %v1153 = vunpack.c.l.b16 %v1084
  %v1154 = vunpack.c.h.b16 %v1084
  %v1155 = vunpack.c.l.b16 %v1085
  %v1156 = vunpack.c.h.b16 %v1085
  %v1157 = vunpack.c.l.b16 %v1086
  %v1158 = vunpack.c.h.b16 %v1086
  %v1159 = vunpack.c.l.b16 %v1087
  %v1160 = vunpack.c.h.b16 %v1087
  %v1161 = vunpack.c.l.b16 %v1088
  %v1162 = vunpack.c.h.b16 %v1088
  %v1163 = vunpack.c.l.b16 %v1089
  %v1164 = vunpack.c.h.b16 %v1089
  %v1165 = vunpack.c.l.b16 %v1090
  %v1166 = vunpack.c.h.b16 %v1090
  %v1167 = vunpack.c.l.b16 %v1091
  %v1168 = vunpack.c.h.b16 %v1091
  %v1169 = vunpack.c.l.b16 %v1092
  %v1170 = vunpack.c.h.b16 %v1092
  %v1171 = vunpack.c.l.b16 %v1093
  %v1172 = vunpack.c.h.b16 %v1093
  %v1173 = vunpack.c.l.b16 %v1094
  %v1174 = vunpack.c.h.b16 %v1094
  %v1175 = vunpack.c.l.b16 %v1095
  %v1176 = vunpack.c.h.b16 %v1095
  %v1177 = vunpack.c.l.b16 %v1096
  %v1178 = vunpack.c.h.b16 %v1096
  %v1179 = vunpack.c.l.b16 %v1097
  %v1180 = vunpack.c.h.b16 %v1097
  %v1181 = vunpack.c.l.b16 %v1098
  %v1182 = vunpack.c.h.b16 %v1098
  %v1183 = vunpack.c.l.b16 %v1099
  %v1184 = vunpack.c.h.b16 %v1099
  %v1185 = vunpack.c.l.b16 %v1100
  %v1186 = vunpack.c.h.b16 %v1100
  %v1187 = vunpack.c.l.b16 %v1101
  %v1188 = vunpack.c.h.b16 %v1101
  %v1189 = vunpack.c.l.b16 %v1102
  %v1190 = vunpack.c.h.b16 %v1102
  %v1191 = vunpack.c.l.b16 %v1103
  %v1192 = vunpack.c.h.b16 %v1103
  %v1193 = vunpack.c.l.b16 %v1104
  %v1194 = vunpack.c.h.b16 %v1104
  %v1195 = vunpack.c.l.b16 %v1105
  %v1196 = vunpack.c.h.b16 %v1105
  %v1197 = vunpack.c.l.b16 %v1106
  %v1198 = vunpack.c.h.b16 %v1106
  %v1199 = vunpack.c.l.b16 %v1107
  %v1200 = vunpack.c.h.b16 %v1107
  %v1201 = vunpack.c.l.b16 %v1108
  %v1202 = vunpack.c.h.b16 %v1108
  %v1203 = vunpack.c.l.b16 %v1109
  %v1204 = vunpack.c.h.b16 %v1109
  %v1205 = vunpack.c.l.b16 %v1110
  %v1206 = vunpack.c.h.b16 %v1110
  %v1207 = vpack.c.b16 %v1143, %v1143
  %v1208 = vpack.c.b16 %v1144, %v1144
  %v1209 = vpack.c.b16 %v1145, %v1145
  %v1210 = vpack.c.b16 %v1146, %v1146
  %v1211 = vpack.c.b16 %v1147, %v1147
  %v1212 = vpack.c.b16 %v1148, %v1148
  %v1213 = vpack.c.b16 %v1149, %v1149
  %v1214 = vpack.c.b16 %v1150, %v1150
  %v1215 = vpack.c.b16 %v1151, %v1151
  %v1216 = vpack.c.b16 %v1152, %v1152
  %v1217 = vpack.c.b16 %v1153, %v1153
  %v1218 = vpack.c.b16 %v1154, %v1154
  %v1219 = vpack.c.b16 %v1155, %v1155
  %v1220 = vpack.c.b16 %v1156, %v1156
  %v1221 = vpack.c.b16 %v1157, %v1157
  %v1222 = vpack.c.b16 %v1158, %v1158
  %v1223 = vpack.c.b16 %v1159, %v1159
  %v1224 = vpack.c.b16 %v1160, %v1160
  %v1225 = vpack.c.b16 %v1161, %v1161
  %v1226 = vpack.c.b16 %v1162, %v1162
  %v1227 = vpack.c.b16 %v1163, %v1163
  %v1228 = vpack.c.b16 %v1164, %v1164
  %v1229 = vpack.c.b16 %v1165, %v1165
  %v1230 = vpack.c.b16 %v1166, %v1166
  %v1231 = vpack.c.b16 %v1167, %v1167
  %v1232 = vpack.c.b16 %v1168, %v1168
  %v1233 = vpack.c.b16 %v1169, %v1169
  %v1234 = vpack.c.b16 %v1170, %v1170
  %v1235 = vpack.c.b16 %v1171, %v1171
  %v1236 = vpack.c.b16 %v1172, %v1172
  %v1237 = vpack.c.b16 %v1173, %v1173
  %v1238 = vpack.c.b16 %v1174, %v1174
  %v1239 = vpack.c.b16 %v1175, %v1175
  %v1240 = vpack.c.b16 %v1176, %v1176
  %v1241 = vpack.c.b16 %v1177, %v1177
  %v1242 = vpack.c.b16 %v1178, %v1178
  %v1243 = vpack.c.b16 %v1179, %v1179
  %v1244 = vpack.c.b16 %v1180, %v1180
  %v1245 = vpack.c.b16 %v1181, %v1181
  %v1246 = vpack.c.b16 %v1182, %v1182
  %v1247 = vpack.c.b16 %v1183, %v1183
  %v1248 = vpack.c.b16 %v1184, %v1184
  %v1249 = vpack.c.b16 %v1185, %v1185
  %v1250 = vpack.c.b16 %v1186, %v1186
  %v1251 = vpack.c.b16 %v1187, %v1187
  %v1252 = vpack.c.b16 %v1188, %v1188
  %v1253 = vpack.c.b16 %v1189, %v1189
  %v1254 = vpack.c.b16 %v1190, %v1190
  %v1255 = vpack.c.b16 %v1191, %v1191
  %v1256 = vpack.c.b16 %v1192, %v1192
  %v1257 = vpack.c.b16 %v1193, %v1193
  %v1258 = vpack.c.b16 %v1194, %v1194
  %v1259 = vpack.c.b16 %v1195, %v1195
  %v1260 = vpack.c.b16 %v1196, %v1196
  %v1261 = vpack.c.b16 %v1197, %v1197
  %v1262 = vpack.c.b16 %v1198, %v1198
  %v1263 = vpack.c.b16 %v1199, %v1199
  %v1264 = vpack.c.b16 %v1200, %v1200
  %v1265 = vpack.c.b16 %v1201, %v1201
  %v1266 = vpack.c.b16 %v1202, %v1202
  %v1267 = vpack.c.b16 %v1203, %v1203
  %v1268 = vpack.c.b16 %v1204, %v1204
  %v1269 = vpack.c.b16 %v1205, %v1205
  %v1270 = vpack.c.b16 %v1206, %v1206
  %1335 = vst [vmem:[%s3] sm:$0xf] %v1207
  %1336 = vst [vmem:[%s3 + $0x4] sm:$0xf] %v1208
  %1337 = vst [vmem:[%s3 + $0x8] sm:$0xf] %v1209
  %1338 = vst [vmem:[%s3 + $0xc] sm:$0xf] %v1210
  %1339 = vst [vmem:[%s3 + $0x10] sm:$0xf] %v1211
  %1340 = vst [vmem:[%s3 + $0x14] sm:$0xf] %v1212
  %1341 = vst [vmem:[%s3 + $0x18] sm:$0xf] %v1213
  %1342 = vst [vmem:[%s3 + $0x1c] sm:$0xf] %v1214
  %1343 = vst [vmem:[%s3 + $0x20] sm:$0xf] %v1215
  %1344 = vst [vmem:[%s3 + $0x24] sm:$0xf] %v1216
  %1345 = vst [vmem:[%s3 + $0x28] sm:$0xf] %v1217
  %1346 = vst [vmem:[%s3 + $0x2c] sm:$0xf] %v1218
  %1347 = vst [vmem:[%s3 + $0x30] sm:$0xf] %v1219
  %1348 = vst [vmem:[%s3 + $0x34] sm:$0xf] %v1220
  %1349 = vst [vmem:[%s3 + $0x38] sm:$0xf] %v1221
  %1350 = vst [vmem:[%s3 + $0x3c] sm:$0xf] %v1222
  %1351 = vst [vmem:[%s3 + $0x40] sm:$0xf] %v1223
  %1352 = vst [vmem:[%s3 + $0x44] sm:$0xf] %v1224
  %1353 = vst [vmem:[%s3 + $0x48] sm:$0xf] %v1225
  %1354 = vst [vmem:[%s3 + $0x4c] sm:$0xf] %v1226
  %1355 = vst [vmem:[%s3 + $0x50] sm:$0xf] %v1227
  %1356 = vst [vmem:[%s3 + $0x54] sm:$0xf] %v1228
  %1357 = vst [vmem:[%s3 + $0x58] sm:$0xf] %v1229
  %1358 = vst [vmem:[%s3 + $0x5c] sm:$0xf] %v1230
  %1359 = vst [vmem:[%s3 + $0x60] sm:$0xf] %v1231
  %1360 = vst [vmem:[%s3 + $0x64] sm:$0xf] %v1232
  %1361 = vst [vmem:[%s3 + $0x68] sm:$0xf] %v1233
  %1362 = vst [vmem:[%s3 + $0x6c] sm:$0xf] %v1234
  %1363 = vst [vmem:[%s3 + $0x70] sm:$0xf] %v1235
  %1364 = vst [vmem:[%s3 + $0x74] sm:$0xf] %v1236
  %1365 = vst [vmem:[%s3 + $0x78] sm:$0xf] %v1237
  %1366 = vst [vmem:[%s3 + $0x7c] sm:$0xf] %v1238
  %1367 = vst [vmem:[%s3 + $0x80] sm:$0xf] %v1239
  %1368 = vst [vmem:[%s3 + $0x84] sm:$0xf] %v1240
  %1369 = vst [vmem:[%s3 + $0x88] sm:$0xf] %v1241
  %1370 = vst [vmem:[%s3 + $0x8c] sm:$0xf] %v1242
  %1371 = vst [vmem:[%s3 + $0x90] sm:$0xf] %v1243
  %1372 = vst [vmem:[%s3 + $0x94] sm:$0xf] %v1244
  %1373 = vst [vmem:[%s3 + $0x98] sm:$0xf] %v1245
  %1374 = vst [vmem:[%s3 + $0x9c] sm:$0xf] %v1246
  %1375 = vst [vmem:[%s3 + $0xa0] sm:$0xf] %v1247
  %1376 = vst [vmem:[%s3 + $0xa4] sm:$0xf] %v1248
  %1377 = vst [vmem:[%s3 + $0xa8] sm:$0xf] %v1249
  %1378 = vst [vmem:[%s3 + $0xac] sm:$0xf] %v1250
  %1379 = vst [vmem:[%s3 + $0xb0] sm:$0xf] %v1251
  %1380 = vst [vmem:[%s3 + $0xb4] sm:$0xf] %v1252
  %1381 = vst [vmem:[%s3 + $0xb8] sm:$0xf] %v1253
  %1382 = vst [vmem:[%s3 + $0xbc] sm:$0xf] %v1254
  %1383 = vst [vmem:[%s3 + $0xc0] sm:$0xf] %v1255
  %1384 = vst [vmem:[%s3 + $0xc4] sm:$0xf] %v1256
  %1385 = vst [vmem:[%s3 + $0xc8] sm:$0xf] %v1257
  %1386 = vst [vmem:[%s3 + $0xcc] sm:$0xf] %v1258
  %1387 = vst [vmem:[%s3 + $0xd0] sm:$0xf] %v1259
  %1388 = vst [vmem:[%s3 + $0xd4] sm:$0xf] %v1260
  %1389 = vst [vmem:[%s3 + $0xd8] sm:$0xf] %v1261
  %1390 = vst [vmem:[%s3 + $0xdc] sm:$0xf] %v1262
  %1391 = vst [vmem:[%s3 + $0xe0] sm:$0xf] %v1263
  %1392 = vst [vmem:[%s3 + $0xe4] sm:$0xf] %v1264
  %1393 = vst [vmem:[%s3 + $0xe8] sm:$0xf] %v1265
  %1394 = vst [vmem:[%s3 + $0xec] sm:$0xf] %v1266
  %1395 = vst [vmem:[%s3 + $0xf0] sm:$0xf] %v1267
  %1396 = vst [vmem:[%s3 + $0xf4] sm:$0xf] %v1268
  %1397 = vst [vmem:[%s3 + $0xf8] sm:$0xf] %v1269
  %1398 = vst [vmem:[%s3 + $0xfc] sm:$0xf] %v1270
  // Predicated region
  $region14: #{gsconvns_forward.3} parent=0 // pred_check
    _
  $region15: #{gsconvns_forward.3} parent=0 // pred_check_branch
    %1400 = sbr.rel (0) target = $region17
  $region16: #{gsconvns_forward.3} parent=0 // pred_region
    _
  $region17: #{gsconvns_forward.3} parent=0 // pred_fallthru
    _
  // Predicated region
  $region18: #{gsconvns_forward.3} parent=0 // pred_check
    _
  $region19: #{gsconvns_forward.3} parent=0 // pred_check_branch
    %1402 = sbr.rel (0) target = $region21
  $region20: #{gsconvns_forward.3} parent=0 // pred_region
    _
  $region21: #{gsconvns_forward.3} parent=0 // pred_fallthru
    _

// kernel: gsconvns_forward.5
$region0: #{gsconvns_forward.5}
  #allocation0 [shape = 'u32[]', space=smem, size = 0x4, offset = 0x4, fixed_abs, tag = 'smem constant byte address 0x4 - core index']
  #allocation1 [shape = 'u32[144,128]{1,0:T(1,128)}', space=vmem, size = 0x12000, scoped, tag = 'internal scratch']
  %s0 = inlined_call_operand.vmem [shape: bf16[512,128], index: 0, kind: input, shape index: {}]
  %s1 = inlined_call_operand.vmem [shape: bf16[128,128], index: 1, kind: input, shape index: {}]
  %s2 = inlined_call_operand.vmem [shape: bf16[512,128], index: 2, kind: input, shape index: {}]
  %s3 = inlined_call_operand.vmem [shape: bf16[128,128], index: 3, kind: input, shape index: {}]
  %s4 = inlined_call_operand.vmem [shape: bf16[512,128], index: 4, kind: output, shape index: {}]
  %s5 = sld [smem:[#allocation0]]
  $region26: #{gsconvns_forward.5} parent=0
    _
  %s7 = ssub.s32 1, %s5
  %s8 = scalar_select 0, %s7, %s5
  // Predicated region
  $region2: #{gsconvns_forward.5} parent=0 // pred_check
    _
  $region3: #{gsconvns_forward.5} parent=0 // pred_check_branch
    %10 = sbr.rel (0) target = $region5
  $region4: #{gsconvns_forward.5} parent=0 // pred_region
    _
  $region5: #{gsconvns_forward.5} parent=0 // pred_fallthru
    _
  // Predicated region
  $region6: #{gsconvns_forward.5} parent=0 // pred_check
    _
  $region7: #{gsconvns_forward.5} parent=0 // pred_check_branch
    %12 = sbr.rel (0) target = $region9
  $region8: #{gsconvns_forward.5} parent=0 // pred_region
    _
  $region9: #{gsconvns_forward.5} parent=0 // pred_fallthru
    _
  // Predicated region
  $region10: #{gsconvns_forward.5} parent=0 // pred_check
    _
  $region11: #{gsconvns_forward.5} parent=0 // pred_check_branch
    %14 = sbr.rel (0) target = $region13
  $region12: #{gsconvns_forward.5} parent=0 // pred_region
    _
  $region13: #{gsconvns_forward.5} parent=0 // pred_fallthru
    _
  // Predicated region
  $region14: #{gsconvns_forward.5} parent=0 // pred_check
    _
  $region15: #{gsconvns_forward.5} parent=0 // pred_check_branch
    %16 = sbr.rel (0) target = $region17
  $region16: #{gsconvns_forward.5} parent=0 // pred_region
    _
  $region17: #{gsconvns_forward.5} parent=0 // pred_fallthru
    _
  %v18 = vld [vmem:[%s0] sm:$0xf]
  %v19 = vld [vmem:[%s0 + $0x4] sm:$0xf]
  %v20 = vld [vmem:[%s0 + $0x8] sm:$0xf]
  %v21 = vld [vmem:[%s0 + $0xc] sm:$0xf]
  %v22 = vld [vmem:[%s0 + $0x10] sm:$0xf]
  %v23 = vld [vmem:[%s0 + $0x14] sm:$0xf]
  %v24 = vld [vmem:[%s0 + $0x18] sm:$0xf]
  %v25 = vld [vmem:[%s0 + $0x1c] sm:$0xf]
  %v26 = vld [vmem:[%s0 + $0x20] sm:$0xf]
  %v27 = vld [vmem:[%s0 + $0x24] sm:$0xf]
  %v28 = vld [vmem:[%s0 + $0x28] sm:$0xf]
  %v29 = vld [vmem:[%s0 + $0x2c] sm:$0xf]
  %v30 = vld [vmem:[%s0 + $0x30] sm:$0xf]
  %v31 = vld [vmem:[%s0 + $0x34] sm:$0xf]
  %v32 = vld [vmem:[%s0 + $0x38] sm:$0xf]
  %v33 = vld [vmem:[%s0 + $0x3c] sm:$0xf]
  %v34 = vld [vmem:[%s0 + $0x40] sm:$0xf]
  %v35 = vld [vmem:[%s0 + $0x44] sm:$0xf]
  %v36 = vld [vmem:[%s0 + $0x48] sm:$0xf]
  %v37 = vld [vmem:[%s0 + $0x4c] sm:$0xf]
  %v38 = vld [vmem:[%s0 + $0x50] sm:$0xf]
  %v39 = vld [vmem:[%s0 + $0x54] sm:$0xf]
  %v40 = vld [vmem:[%s0 + $0x58] sm:$0xf]
  %v41 = vld [vmem:[%s0 + $0x5c] sm:$0xf]
  %v42 = vld [vmem:[%s0 + $0x60] sm:$0xf]
  %v43 = vld [vmem:[%s0 + $0x64] sm:$0xf]
  %v44 = vld [vmem:[%s0 + $0x68] sm:$0xf]
  %v45 = vld [vmem:[%s0 + $0x6c] sm:$0xf]
  %v46 = vld [vmem:[%s0 + $0x70] sm:$0xf]
  %v47 = vld [vmem:[%s0 + $0x74] sm:$0xf]
  %v48 = vld [vmem:[%s0 + $0x78] sm:$0xf]
  %v49 = vld [vmem:[%s0 + $0x7c] sm:$0xf]
  %v50 = vld [vmem:[%s0 + $0x80] sm:$0xf]
  %v51 = vld [vmem:[%s0 + $0x84] sm:$0xf]
  %v52 = vld [vmem:[%s0 + $0x88] sm:$0xf]
  %v53 = vld [vmem:[%s0 + $0x8c] sm:$0xf]
  %v54 = vld [vmem:[%s0 + $0x90] sm:$0xf]
  %v55 = vld [vmem:[%s0 + $0x94] sm:$0xf]
  %v56 = vld [vmem:[%s0 + $0x98] sm:$0xf]
  %v57 = vld [vmem:[%s0 + $0x9c] sm:$0xf]
  %v58 = vld [vmem:[%s0 + $0xa0] sm:$0xf]
  %v59 = vld [vmem:[%s0 + $0xa4] sm:$0xf]
  %v60 = vld [vmem:[%s0 + $0xa8] sm:$0xf]
  %v61 = vld [vmem:[%s0 + $0xac] sm:$0xf]
  %v62 = vld [vmem:[%s0 + $0xb0] sm:$0xf]
  %v63 = vld [vmem:[%s0 + $0xb4] sm:$0xf]
  %v64 = vld [vmem:[%s0 + $0xb8] sm:$0xf]
  %v65 = vld [vmem:[%s0 + $0xbc] sm:$0xf]
  %v66 = vld [vmem:[%s0 + $0xc0] sm:$0xf]
  %v67 = vld [vmem:[%s0 + $0xc4] sm:$0xf]
  %v68 = vld [vmem:[%s0 + $0xc8] sm:$0xf]
  %v69 = vld [vmem:[%s0 + $0xcc] sm:$0xf]
  %v70 = vld [vmem:[%s0 + $0xd0] sm:$0xf]
  %v71 = vld [vmem:[%s0 + $0xd4] sm:$0xf]
  %v72 = vld [vmem:[%s0 + $0xd8] sm:$0xf]
  %v73 = vld [vmem:[%s0 + $0xdc] sm:$0xf]
  %v74 = vld [vmem:[%s0 + $0xe0] sm:$0xf]
  %v75 = vld [vmem:[%s0 + $0xe4] sm:$0xf]
  %v76 = vld [vmem:[%s0 + $0xe8] sm:$0xf]
  %v77 = vld [vmem:[%s0 + $0xec] sm:$0xf]
  %v78 = vld [vmem:[%s0 + $0xf0] sm:$0xf]
  %v79 = vld [vmem:[%s0 + $0xf4] sm:$0xf]
  %v80 = vld [vmem:[%s0 + $0xf8] sm:$0xf]
  %v81 = vld [vmem:[%s0 + $0xfc] sm:$0xf]
  %v82 = vld [vmem:[%s1] sm:$0xf]
  %v83 = vld [vmem:[%s1 + $0x4] sm:$0xf]
  %v84 = vld [vmem:[%s1 + $0x8] sm:$0xf]
  %v85 = vld [vmem:[%s1 + $0xc] sm:$0xf]
  %v86 = vld [vmem:[%s1 + $0x10] sm:$0xf]
  %v87 = vld [vmem:[%s1 + $0x14] sm:$0xf]
  %v88 = vld [vmem:[%s1 + $0x18] sm:$0xf]
  %v89 = vld [vmem:[%s1 + $0x1c] sm:$0xf]
  %v90 = vld [vmem:[%s1 + $0x20] sm:$0xf]
  %v91 = vld [vmem:[%s1 + $0x24] sm:$0xf]
  %v92 = vld [vmem:[%s1 + $0x28] sm:$0xf]
  %v93 = vld [vmem:[%s1 + $0x2c] sm:$0xf]
  %v94 = vld [vmem:[%s1 + $0x30] sm:$0xf]
  %v95 = vld [vmem:[%s1 + $0x34] sm:$0xf]
  %v96 = vld [vmem:[%s1 + $0x38] sm:$0xf]
  %v97 = vld [vmem:[%s1 + $0x3c] sm:$0xf]
  %v98 = vld [vmem:[%s2] sm:$0xf]
  %v99 = vld [vmem:[%s2 + $0x4] sm:$0xf]
  %v100 = vld [vmem:[%s2 + $0x8] sm:$0xf]
  %v101 = vld [vmem:[%s2 + $0xc] sm:$0xf]
  %v102 = vld [vmem:[%s2 + $0x10] sm:$0xf]
  %v103 = vld [vmem:[%s2 + $0x14] sm:$0xf]
  %v104 = vld [vmem:[%s2 + $0x18] sm:$0xf]
  %v105 = vld [vmem:[%s2 + $0x1c] sm:$0xf]
  %v106 = vld [vmem:[%s2 + $0x20] sm:$0xf]
  %v107 = vld [vmem:[%s2 + $0x24] sm:$0xf]
  %v108 = vld [vmem:[%s2 + $0x28] sm:$0xf]
  %v109 = vld [vmem:[%s2 + $0x2c] sm:$0xf]
  %v110 = vld [vmem:[%s2 + $0x30] sm:$0xf]
  %v111 = vld [vmem:[%s2 + $0x34] sm:$0xf]
  %v112 = vld [vmem:[%s2 + $0x38] sm:$0xf]
  %v113 = vld [vmem:[%s2 + $0x3c] sm:$0xf]
  %v114 = vld [vmem:[%s2 + $0x40] sm:$0xf]
  %v115 = vld [vmem:[%s2 + $0x44] sm:$0xf]
  %v116 = vld [vmem:[%s2 + $0x48] sm:$0xf]
  %v117 = vld [vmem:[%s2 + $0x4c] sm:$0xf]
  %v118 = vld [vmem:[%s2 + $0x50] sm:$0xf]
  %v119 = vld [vmem:[%s2 + $0x54] sm:$0xf]
  %v120 = vld [vmem:[%s2 + $0x58] sm:$0xf]
  %v121 = vld [vmem:[%s2 + $0x5c] sm:$0xf]
  %v122 = vld [vmem:[%s2 + $0x60] sm:$0xf]
  %v123 = vld [vmem:[%s2 + $0x64] sm:$0xf]
  %v124 = vld [vmem:[%s2 + $0x68] sm:$0xf]
  %v125 = vld [vmem:[%s2 + $0x6c] sm:$0xf]
  %v126 = vld [vmem:[%s2 + $0x70] sm:$0xf]
  %v127 = vld [vmem:[%s2 + $0x74] sm:$0xf]
  %v128 = vld [vmem:[%s2 + $0x78] sm:$0xf]
  %v129 = vld [vmem:[%s2 + $0x7c] sm:$0xf]
  %v130 = vld [vmem:[%s2 + $0x80] sm:$0xf]
  %v131 = vld [vmem:[%s2 + $0x84] sm:$0xf]
  %v132 = vld [vmem:[%s2 + $0x88] sm:$0xf]
  %v133 = vld [vmem:[%s2 + $0x8c] sm:$0xf]
  %v134 = vld [vmem:[%s2 + $0x90] sm:$0xf]
  %v135 = vld [vmem:[%s2 + $0x94] sm:$0xf]
  %v136 = vld [vmem:[%s2 + $0x98] sm:$0xf]
  %v137 = vld [vmem:[%s2 + $0x9c] sm:$0xf]
  %v138 = vld [vmem:[%s2 + $0xa0] sm:$0xf]
  %v139 = vld [vmem:[%s2 + $0xa4] sm:$0xf]
  %v140 = vld [vmem:[%s2 + $0xa8] sm:$0xf]
  %v141 = vld [vmem:[%s2 + $0xac] sm:$0xf]
  %v142 = vld [vmem:[%s2 + $0xb0] sm:$0xf]
  %v143 = vld [vmem:[%s2 + $0xb4] sm:$0xf]
  %v144 = vld [vmem:[%s2 + $0xb8] sm:$0xf]
  %v145 = vld [vmem:[%s2 + $0xbc] sm:$0xf]
  %v146 = vld [vmem:[%s2 + $0xc0] sm:$0xf]
  %v147 = vld [vmem:[%s2 + $0xc4] sm:$0xf]
  %v148 = vld [vmem:[%s2 + $0xc8] sm:$0xf]
  %v149 = vld [vmem:[%s2 + $0xcc] sm:$0xf]
  %v150 = vld [vmem:[%s2 + $0xd0] sm:$0xf]
  %v151 = vld [vmem:[%s2 + $0xd4] sm:$0xf]
  %v152 = vld [vmem:[%s2 + $0xd8] sm:$0xf]
  %v153 = vld [vmem:[%s2 + $0xdc] sm:$0xf]
  %v154 = vld [vmem:[%s2 + $0xe0] sm:$0xf]
  %v155 = vld [vmem:[%s2 + $0xe4] sm:$0xf]
  %v156 = vld [vmem:[%s2 + $0xe8] sm:$0xf]
  %v157 = vld [vmem:[%s2 + $0xec] sm:$0xf]
  %v158 = vld [vmem:[%s2 + $0xf0] sm:$0xf]
  %v159 = vld [vmem:[%s2 + $0xf4] sm:$0xf]
  %v160 = vld [vmem:[%s2 + $0xf8] sm:$0xf]
  %v161 = vld [vmem:[%s2 + $0xfc] sm:$0xf]
  %v162 = vld [vmem:[%s3] sm:$0xf]
  %v163 = vld [vmem:[%s3 + $0x4] sm:$0xf]
  %v164 = vld [vmem:[%s3 + $0x8] sm:$0xf]
  %v165 = vld [vmem:[%s3 + $0xc] sm:$0xf]
  %v166 = vld [vmem:[%s3 + $0x10] sm:$0xf]
  %v167 = vld [vmem:[%s3 + $0x14] sm:$0xf]
  %v168 = vld [vmem:[%s3 + $0x18] sm:$0xf]
  %v169 = vld [vmem:[%s3 + $0x1c] sm:$0xf]
  %v170 = vld [vmem:[%s3 + $0x20] sm:$0xf]
  %v171 = vld [vmem:[%s3 + $0x24] sm:$0xf]
  %v172 = vld [vmem:[%s3 + $0x28] sm:$0xf]
  %v173 = vld [vmem:[%s3 + $0x2c] sm:$0xf]
  %v174 = vld [vmem:[%s3 + $0x30] sm:$0xf]
  %v175 = vld [vmem:[%s3 + $0x34] sm:$0xf]
  %v176 = vld [vmem:[%s3 + $0x38] sm:$0xf]
  %v177 = vld [vmem:[%s3 + $0x3c] sm:$0xf]
  %v242 = vunpack.c.l.b16 %v98
  %v243 = vunpack.c.l.b16 %v99
  %v244 = vunpack.c.l.b16 %v100
  %v245 = vunpack.c.l.b16 %v101
  %v246 = vunpack.c.l.b16 %v102
  %v247 = vunpack.c.l.b16 %v103
  %v248 = vunpack.c.l.b16 %v104
  %v249 = vunpack.c.l.b16 %v105
  %v250 = vunpack.c.l.b16 %v106
  %v251 = vunpack.c.l.b16 %v107
  %v252 = vunpack.c.l.b16 %v108
  %v253 = vunpack.c.l.b16 %v109
  %v254 = vunpack.c.l.b16 %v110
  %v255 = vunpack.c.l.b16 %v111
  %v256 = vunpack.c.l.b16 %v112
  %v257 = vunpack.c.l.b16 %v113
  %v258 = vunpack.c.l.b16 %v114
  %v259 = vunpack.c.l.b16 %v115
  %v260 = vunpack.c.l.b16 %v116
  %v261 = vunpack.c.l.b16 %v117
  %v262 = vunpack.c.l.b16 %v118
  %v263 = vunpack.c.l.b16 %v119
  %v264 = vunpack.c.l.b16 %v120
  %v265 = vunpack.c.l.b16 %v121
  %v266 = vunpack.c.l.b16 %v122
  %v267 = vunpack.c.l.b16 %v123
  %v268 = vunpack.c.l.b16 %v124
  %v269 = vunpack.c.l.b16 %v125
  %v270 = vunpack.c.l.b16 %v126
  %v271 = vunpack.c.l.b16 %v127
  %v272 = vunpack.c.l.b16 %v128
  %v273 = vunpack.c.l.b16 %v129
  %v274 = vunpack.c.l.b16 %v130
  %v275 = vunpack.c.l.b16 %v131
  %v276 = vunpack.c.l.b16 %v132
  %v277 = vunpack.c.l.b16 %v133
  %v278 = vunpack.c.l.b16 %v134
  %v279 = vunpack.c.l.b16 %v135
  %v280 = vunpack.c.l.b16 %v136
  %v281 = vunpack.c.l.b16 %v137
  %v282 = vunpack.c.l.b16 %v138
  %v283 = vunpack.c.l.b16 %v139
  %v284 = vunpack.c.l.b16 %v140
  %v285 = vunpack.c.l.b16 %v141
  %v286 = vunpack.c.l.b16 %v142
  %v287 = vunpack.c.l.b16 %v143
  %v288 = vunpack.c.l.b16 %v144
  %v289 = vunpack.c.l.b16 %v145
  %v290 = vunpack.c.l.b16 %v146
  %v291 = vunpack.c.l.b16 %v147
  %v292 = vunpack.c.l.b16 %v148
  %v293 = vunpack.c.l.b16 %v149
  %v294 = vunpack.c.l.b16 %v150
  %v295 = vunpack.c.l.b16 %v151
  %v296 = vunpack.c.l.b16 %v152
  %v297 = vunpack.c.l.b16 %v153
  %v298 = vunpack.c.l.b16 %v154
  %v299 = vunpack.c.l.b16 %v155
  %v300 = vunpack.c.l.b16 %v156
  %v301 = vunpack.c.l.b16 %v157
  %v302 = vunpack.c.l.b16 %v158
  %v303 = vunpack.c.l.b16 %v159
  %v304 = vunpack.c.l.b16 %v160
  %v305 = vunpack.c.l.b16 %v161
  %v306 = vpack.c.b16 %v243, %v242
  %v307 = vpack.c.b16 %v245, %v244
  %v308 = vpack.c.b16 %v247, %v246
  %v309 = vpack.c.b16 %v249, %v248
  %v310 = vpack.c.b16 %v251, %v250
  %v311 = vpack.c.b16 %v253, %v252
  %v312 = vpack.c.b16 %v255, %v254
  %v313 = vpack.c.b16 %v257, %v256
  %v314 = vpack.c.b16 %v259, %v258
  %v315 = vpack.c.b16 %v261, %v260
  %v316 = vpack.c.b16 %v263, %v262
  %v317 = vpack.c.b16 %v265, %v264
  %v318 = vpack.c.b16 %v267, %v266
  %v319 = vpack.c.b16 %v269, %v268
  %v320 = vpack.c.b16 %v271, %v270
  %v321 = vpack.c.b16 %v273, %v272
  %v322 = vpack.c.b16 %v275, %v274
  %v323 = vpack.c.b16 %v277, %v276
  %v324 = vpack.c.b16 %v279, %v278
  %v325 = vpack.c.b16 %v281, %v280
  %v326 = vpack.c.b16 %v283, %v282
  %v327 = vpack.c.b16 %v285, %v284
  %v328 = vpack.c.b16 %v287, %v286
  %v329 = vpack.c.b16 %v289, %v288
  %v330 = vpack.c.b16 %v291, %v290
  %v331 = vpack.c.b16 %v293, %v292
  %v332 = vpack.c.b16 %v295, %v294
  %v333 = vpack.c.b16 %v297, %v296
  %v334 = vpack.c.b16 %v299, %v298
  %v335 = vpack.c.b16 %v301, %v300
  %v336 = vpack.c.b16 %v303, %v302
  %v337 = vpack.c.b16 %v305, %v304
  %v386 = vunpack.c.l.b16 %v162
  %v387 = vunpack.c.l.b16 %v163
  %v388 = vunpack.c.l.b16 %v164
  %v389 = vunpack.c.l.b16 %v165
  %v390 = vunpack.c.l.b16 %v166
  %v391 = vunpack.c.l.b16 %v167
  %v392 = vunpack.c.l.b16 %v168
  %v393 = vunpack.c.l.b16 %v169
  %v394 = vunpack.c.l.b16 %v170
  %v395 = vunpack.c.l.b16 %v171
  %v396 = vunpack.c.l.b16 %v172
  %v397 = vunpack.c.l.b16 %v173
  %v398 = vunpack.c.l.b16 %v174
  %v399 = vunpack.c.l.b16 %v175
  %v400 = vunpack.c.l.b16 %v176
  %v401 = vunpack.c.l.b16 %v177
  %v402 = vpack.c.b16 %v387, %v386
  %v403 = vpack.c.b16 %v389, %v388
  %v404 = vpack.c.b16 %v391, %v390
  %v405 = vpack.c.b16 %v393, %v392
  %v406 = vpack.c.b16 %v395, %v394
  %v407 = vpack.c.b16 %v397, %v396
  %v408 = vpack.c.b16 %v399, %v398
  %v409 = vpack.c.b16 %v401, %v400
  %418 = vmatprep.subr.bf16.mxu0 0
  %419 = vmatpush1.bf16.msra.mxu0 %v409
  %420 = vmatprep.subr.bf16.mxu0 0
  %421 = vmatpush1.bf16.msra.mxu0 %v408
  %422 = vmatprep.subr.bf16.mxu0 0
  %423 = vmatpush1.bf16.msra.mxu0 %v407
  %424 = vmatprep.subr.bf16.mxu0 0
  %425 = vmatpush1.bf16.msra.mxu0 %v406
  %426 = vmatprep.subr.bf16.mxu0 0
  %427 = vmatpush1.bf16.msra.mxu0 %v405
  %428 = vmatprep.subr.bf16.mxu0 0
  %429 = vmatpush1.bf16.msra.mxu0 %v404
  %430 = vmatprep.subr.bf16.mxu0 0
  %431 = vmatpush1.bf16.msra.mxu0 %v403
  %432 = vmatprep.subr.bf16.mxu0 0
  %433 = vmatpush1.bf16.msra.mxu0 %v402
  %434 = vmatprep.subr.bf16.mxu0 0
  %435 = vmatpush2.bf16.msra.mxu0 0
  %436 = vmatprep.subr.bf16.mxu0 0
  %437 = vmatpush2.bf16.msra.mxu0 0
  %438 = vmatprep.subr.bf16.mxu0 0
  %439 = vmatpush2.bf16.msra.mxu0 0
  %440 = vmatprep.subr.bf16.mxu0 0
  %441 = vmatpush2.bf16.msra.mxu0 0
  %442 = vmatprep.subr.bf16.mxu0 0
  %443 = vmatpush2.bf16.msra.mxu0 0
  %444 = vmatprep.subr.bf16.mxu0 0
  %445 = vmatpush2.bf16.msra.mxu0 0
  %446 = vmatprep.subr.bf16.mxu0 0
  %447 = vmatpush2.bf16.msra.mxu0 0
  %448 = vmatprep.subr.bf16.mxu0 0
  %449 = vmatpush2.bf16.msra.mxu0 0
  %450 = vmatprep.mubr.bf16.mxu0 0
  %451 = vmatmul.mubr.bf16.gmra.mxu0 %v306
  %v452 = vpop.f32.mrf.mxu0
  %v453 = vadd.f32 0.0, %v452
  %v454 = vpop.f32.mrf.mxu0
  %v455 = vpop.f32.mrf.mxu0
  %v456 = vadd.f32 0.0, %v455
  %v457 = vpop.f32.mrf.mxu0
  %458 = vmatprep.mubr.bf16.mxu0 0
  %459 = vmatmul.mubr.bf16.gmra.mxu0 %v307
  %v460 = vpop.f32.mrf.mxu0
  %v461 = vadd.f32 0.0, %v460
  %v462 = vpop.f32.mrf.mxu0
  %v463 = vpop.f32.mrf.mxu0
  %v464 = vadd.f32 0.0, %v463
  %v465 = vpop.f32.mrf.mxu0
  %466 = vmatprep.mubr.bf16.mxu0 0
  %467 = vmatmul.mubr.bf16.gmra.mxu0 %v308
  %v468 = vpop.f32.mrf.mxu0
  %v469 = vadd.f32 0.0, %v468
  %v470 = vpop.f32.mrf.mxu0
  %v471 = vpop.f32.mrf.mxu0
  %v472 = vadd.f32 0.0, %v471
  %v473 = vpop.f32.mrf.mxu0
  %474 = vmatprep.mubr.bf16.mxu0 0
  %475 = vmatmul.mubr.bf16.gmra.mxu0 %v309
  %v476 = vpop.f32.mrf.mxu0
  %v477 = vadd.f32 0.0, %v476
  %v478 = vpop.f32.mrf.mxu0
  %v479 = vpop.f32.mrf.mxu0
  %v480 = vadd.f32 0.0, %v479
  %v481 = vpop.f32.mrf.mxu0
  %482 = vmatprep.mubr.bf16.mxu0 0
  %483 = vmatmul.mubr.bf16.gmra.mxu0 %v310
  %v484 = vpop.f32.mrf.mxu0
  %v485 = vadd.f32 0.0, %v484
  %v486 = vpop.f32.mrf.mxu0
  %v487 = vpop.f32.mrf.mxu0
  %v488 = vadd.f32 0.0, %v487
  %v489 = vpop.f32.mrf.mxu0
  %490 = vmatprep.mubr.bf16.mxu0 0
  %491 = vmatmul.mubr.bf16.gmra.mxu0 %v311
  %v492 = vpop.f32.mrf.mxu0
  %v493 = vadd.f32 0.0, %v492
  %v494 = vpop.f32.mrf.mxu0
  %v495 = vpop.f32.mrf.mxu0
  %v496 = vadd.f32 0.0, %v495
  %v497 = vpop.f32.mrf.mxu0
  %498 = vmatprep.mubr.bf16.mxu0 0
  %499 = vmatmul.mubr.bf16.gmra.mxu0 %v312
  %v500 = vpop.f32.mrf.mxu0
  %v501 = vadd.f32 0.0, %v500
  %v502 = vpop.f32.mrf.mxu0
  %v503 = vpop.f32.mrf.mxu0
  %v504 = vadd.f32 0.0, %v503
  %v505 = vpop.f32.mrf.mxu0
  %506 = vmatprep.mubr.bf16.mxu0 0
  %507 = vmatmul.mubr.bf16.gmra.mxu0 %v313
  %v508 = vpop.f32.mrf.mxu0
  %v509 = vadd.f32 0.0, %v508
  %v510 = vpop.f32.mrf.mxu0
  %v511 = vpop.f32.mrf.mxu0
  %v512 = vadd.f32 0.0, %v511
  %v513 = vpop.f32.mrf.mxu0
  %514 = vmatprep.mubr.bf16.mxu0 0
  %515 = vmatmul.mubr.bf16.gmra.mxu0 %v314
  %v516 = vpop.f32.mrf.mxu0
  %v517 = vadd.f32 0.0, %v516
  %v518 = vpop.f32.mrf.mxu0
  %v519 = vpop.f32.mrf.mxu0
  %v520 = vadd.f32 0.0, %v519
  %v521 = vpop.f32.mrf.mxu0
  %522 = vmatprep.mubr.bf16.mxu0 0
  %523 = vmatmul.mubr.bf16.gmra.mxu0 %v315
  %v524 = vpop.f32.mrf.mxu0
  %v525 = vadd.f32 0.0, %v524
  %v526 = vpop.f32.mrf.mxu0
  %v527 = vpop.f32.mrf.mxu0
  %v528 = vadd.f32 0.0, %v527
  %v529 = vpop.f32.mrf.mxu0
  %530 = vmatprep.mubr.bf16.mxu0 0
  %531 = vmatmul.mubr.bf16.gmra.mxu0 %v316
  %v532 = vpop.f32.mrf.mxu0
  %v533 = vadd.f32 0.0, %v532
  %v534 = vpop.f32.mrf.mxu0
  %v535 = vpop.f32.mrf.mxu0
  %v536 = vadd.f32 0.0, %v535
  %v537 = vpop.f32.mrf.mxu0
  %538 = vmatprep.mubr.bf16.mxu0 0
  %539 = vmatmul.mubr.bf16.gmra.mxu0 %v317
  %v540 = vpop.f32.mrf.mxu0
  %v541 = vadd.f32 0.0, %v540
  %v542 = vpop.f32.mrf.mxu0
  %v543 = vpop.f32.mrf.mxu0
  %v544 = vadd.f32 0.0, %v543
  %v545 = vpop.f32.mrf.mxu0
  %546 = vmatprep.mubr.bf16.mxu0 0
  %547 = vmatmul.mubr.bf16.gmra.mxu0 %v318
  %v548 = vpop.f32.mrf.mxu0
  %v549 = vadd.f32 0.0, %v548
  %v550 = vpop.f32.mrf.mxu0
  %v551 = vpop.f32.mrf.mxu0
  %v552 = vadd.f32 0.0, %v551
  %v553 = vpop.f32.mrf.mxu0
  %554 = vmatprep.mubr.bf16.mxu0 0
  %555 = vmatmul.mubr.bf16.gmra.mxu0 %v319
  %v556 = vpop.f32.mrf.mxu0
  %v557 = vadd.f32 0.0, %v556
  %v558 = vpop.f32.mrf.mxu0
  %v559 = vpop.f32.mrf.mxu0
  %v560 = vadd.f32 0.0, %v559
  %v561 = vpop.f32.mrf.mxu0
  %562 = vmatprep.mubr.bf16.mxu0 0
  %563 = vmatmul.mubr.bf16.gmra.mxu0 %v320
  %v564 = vpop.f32.mrf.mxu0
  %v565 = vadd.f32 0.0, %v564
  %v566 = vpop.f32.mrf.mxu0
  %v567 = vpop.f32.mrf.mxu0
  %v568 = vadd.f32 0.0, %v567
  %v569 = vpop.f32.mrf.mxu0
  %570 = vmatprep.mubr.bf16.mxu0 0
  %571 = vmatmul.mubr.bf16.gmra.mxu0 %v321
  %v572 = vpop.f32.mrf.mxu0
  %v573 = vadd.f32 0.0, %v572
  %v574 = vpop.f32.mrf.mxu0
  %v575 = vpop.f32.mrf.mxu0
  %v576 = vadd.f32 0.0, %v575
  %v577 = vpop.f32.mrf.mxu0
  %578 = vmatprep.mubr.bf16.mxu0 0
  %579 = vmatmul.mubr.bf16.gmra.mxu0 %v322
  %v580 = vpop.f32.mrf.mxu0
  %v581 = vadd.f32 0.0, %v580
  %v582 = vpop.f32.mrf.mxu0
  %v583 = vpop.f32.mrf.mxu0
  %v584 = vadd.f32 0.0, %v583
  %v585 = vpop.f32.mrf.mxu0
  %586 = vmatprep.mubr.bf16.mxu0 0
  %587 = vmatmul.mubr.bf16.gmra.mxu0 %v323
  %v588 = vpop.f32.mrf.mxu0
  %v589 = vadd.f32 0.0, %v588
  %v590 = vpop.f32.mrf.mxu0
  %v591 = vpop.f32.mrf.mxu0
  %v592 = vadd.f32 0.0, %v591
  %v593 = vpop.f32.mrf.mxu0
  %594 = vmatprep.mubr.bf16.mxu0 0
  %595 = vmatmul.mubr.bf16.gmra.mxu0 %v324
  %v596 = vpop.f32.mrf.mxu0
  %v597 = vadd.f32 0.0, %v596
  %v598 = vpop.f32.mrf.mxu0
  %v599 = vpop.f32.mrf.mxu0
  %v600 = vadd.f32 0.0, %v599
  %v601 = vpop.f32.mrf.mxu0
  %602 = vmatprep.mubr.bf16.mxu0 0
  %603 = vmatmul.mubr.bf16.gmra.mxu0 %v325
  %v604 = vpop.f32.mrf.mxu0
  %v605 = vadd.f32 0.0, %v604
  %v606 = vpop.f32.mrf.mxu0
  %v607 = vpop.f32.mrf.mxu0
  %v608 = vadd.f32 0.0, %v607
  %v609 = vpop.f32.mrf.mxu0
  %610 = vmatprep.mubr.bf16.mxu0 0
  %611 = vmatmul.mubr.bf16.gmra.mxu0 %v326
  %v612 = vpop.f32.mrf.mxu0
  %v613 = vadd.f32 0.0, %v612
  %v614 = vpop.f32.mrf.mxu0
  %v615 = vpop.f32.mrf.mxu0
  %v616 = vadd.f32 0.0, %v615
  %v617 = vpop.f32.mrf.mxu0
  %618 = vmatprep.mubr.bf16.mxu0 0
  %619 = vmatmul.mubr.bf16.gmra.mxu0 %v327
  %v620 = vpop.f32.mrf.mxu0
  %v621 = vadd.f32 0.0, %v620
  %v622 = vpop.f32.mrf.mxu0
  %v623 = vpop.f32.mrf.mxu0
  %v624 = vadd.f32 0.0, %v623
  %v625 = vpop.f32.mrf.mxu0
  %626 = vmatprep.mubr.bf16.mxu0 0
  %627 = vmatmul.mubr.bf16.gmra.mxu0 %v328
  %v628 = vpop.f32.mrf.mxu0
  %v629 = vadd.f32 0.0, %v628
  %v630 = vpop.f32.mrf.mxu0
  %v631 = vpop.f32.mrf.mxu0
  %v632 = vadd.f32 0.0, %v631
  %v633 = vpop.f32.mrf.mxu0
  %634 = vmatprep.mubr.bf16.mxu0 0
  %635 = vmatmul.mubr.bf16.gmra.mxu0 %v329
  %v636 = vpop.f32.mrf.mxu0
  %v637 = vadd.f32 0.0, %v636
  %v638 = vpop.f32.mrf.mxu0
  %v639 = vpop.f32.mrf.mxu0
  %v640 = vadd.f32 0.0, %v639
  %v641 = vpop.f32.mrf.mxu0
  %642 = vmatprep.mubr.bf16.mxu0 0
  %643 = vmatmul.mubr.bf16.gmra.mxu0 %v330
  %v644 = vpop.f32.mrf.mxu0
  %v645 = vadd.f32 0.0, %v644
  %v646 = vpop.f32.mrf.mxu0
  %v647 = vpop.f32.mrf.mxu0
  %v648 = vadd.f32 0.0, %v647
  %v649 = vpop.f32.mrf.mxu0
  %650 = vmatprep.mubr.bf16.mxu0 0
  %651 = vmatmul.mubr.bf16.gmra.mxu0 %v331
  %v652 = vpop.f32.mrf.mxu0
  %v653 = vadd.f32 0.0, %v652
  %v654 = vpop.f32.mrf.mxu0
  %v655 = vpop.f32.mrf.mxu0
  %v656 = vadd.f32 0.0, %v655
  %v657 = vpop.f32.mrf.mxu0
  %658 = vmatprep.mubr.bf16.mxu0 0
  %659 = vmatmul.mubr.bf16.gmra.mxu0 %v332
  %v660 = vpop.f32.mrf.mxu0
  %v661 = vadd.f32 0.0, %v660
  %v662 = vpop.f32.mrf.mxu0
  %v663 = vpop.f32.mrf.mxu0
  %v664 = vadd.f32 0.0, %v663
  %v665 = vpop.f32.mrf.mxu0
  %666 = vmatprep.mubr.bf16.mxu0 0
  %667 = vmatmul.mubr.bf16.gmra.mxu0 %v333
  %v668 = vpop.f32.mrf.mxu0
  %v669 = vadd.f32 0.0, %v668
  %v670 = vpop.f32.mrf.mxu0
  %v671 = vpop.f32.mrf.mxu0
  %v672 = vadd.f32 0.0, %v671
  %v673 = vpop.f32.mrf.mxu0
  %674 = vmatprep.mubr.bf16.mxu0 0
  %675 = vmatmul.mubr.bf16.gmra.mxu0 %v334
  %v676 = vpop.f32.mrf.mxu0
  %v677 = vadd.f32 0.0, %v676
  %v678 = vpop.f32.mrf.mxu0
  %v679 = vpop.f32.mrf.mxu0
  %v680 = vadd.f32 0.0, %v679
  %v681 = vpop.f32.mrf.mxu0
  %682 = vmatprep.mubr.bf16.mxu0 0
  %683 = vmatmul.mubr.bf16.gmra.mxu0 %v335
  %v684 = vpop.f32.mrf.mxu0
  %v685 = vadd.f32 0.0, %v684
  %v686 = vpop.f32.mrf.mxu0
  %v687 = vpop.f32.mrf.mxu0
  %v688 = vadd.f32 0.0, %v687
  %v689 = vpop.f32.mrf.mxu0
  %690 = vmatprep.mubr.bf16.mxu0 0
  %691 = vmatmul.mubr.bf16.gmra.mxu0 %v336
  %v692 = vpop.f32.mrf.mxu0
  %v693 = vadd.f32 0.0, %v692
  %v694 = vpop.f32.mrf.mxu0
  %v695 = vpop.f32.mrf.mxu0
  %v696 = vadd.f32 0.0, %v695
  %v697 = vpop.f32.mrf.mxu0
  %698 = vmatprep.mubr.bf16.mxu0 0
  %699 = vmatmul.mubr.bf16.gmra.mxu0 %v337
  %v700 = vpop.f32.mrf.mxu0
  %v701 = vadd.f32 0.0, %v700
  %v702 = vpop.f32.mrf.mxu0
  %v703 = vpop.f32.mrf.mxu0
  %v704 = vadd.f32 0.0, %v703
  %v705 = vpop.f32.mrf.mxu0
  %706 = vdwg.mxu0
  %v771 = vunpack.c.l.b16 %v18
  %v772 = vunpack.c.l.b16 %v19
  %v773 = vunpack.c.l.b16 %v20
  %v774 = vunpack.c.l.b16 %v21
  %v775 = vunpack.c.l.b16 %v22
  %v776 = vunpack.c.l.b16 %v23
  %v777 = vunpack.c.l.b16 %v24
  %v778 = vunpack.c.l.b16 %v25
  %v779 = vunpack.c.l.b16 %v26
  %v780 = vunpack.c.l.b16 %v27
  %v781 = vunpack.c.l.b16 %v28
  %v782 = vunpack.c.l.b16 %v29
  %v783 = vunpack.c.l.b16 %v30
  %v784 = vunpack.c.l.b16 %v31
  %v785 = vunpack.c.l.b16 %v32
  %v786 = vunpack.c.l.b16 %v33
  %v787 = vunpack.c.l.b16 %v34
  %v788 = vunpack.c.l.b16 %v35
  %v789 = vunpack.c.l.b16 %v36
  %v790 = vunpack.c.l.b16 %v37
  %v791 = vunpack.c.l.b16 %v38
  %v792 = vunpack.c.l.b16 %v39
  %v793 = vunpack.c.l.b16 %v40
  %v794 = vunpack.c.l.b16 %v41
  %v795 = vunpack.c.l.b16 %v42
  %v796 = vunpack.c.l.b16 %v43
  %v797 = vunpack.c.l.b16 %v44
  %v798 = vunpack.c.l.b16 %v45
  %v799 = vunpack.c.l.b16 %v46
  %v800 = vunpack.c.l.b16 %v47
  %v801 = vunpack.c.l.b16 %v48
  %v802 = vunpack.c.l.b16 %v49
  %v803 = vunpack.c.l.b16 %v50
  %v804 = vunpack.c.l.b16 %v51
  %v805 = vunpack.c.l.b16 %v52
  %v806 = vunpack.c.l.b16 %v53
  %v807 = vunpack.c.l.b16 %v54
  %v808 = vunpack.c.l.b16 %v55
  %v809 = vunpack.c.l.b16 %v56
  %v810 = vunpack.c.l.b16 %v57
  %v811 = vunpack.c.l.b16 %v58
  %v812 = vunpack.c.l.b16 %v59
  %v813 = vunpack.c.l.b16 %v60
  %v814 = vunpack.c.l.b16 %v61
  %v815 = vunpack.c.l.b16 %v62
  %v816 = vunpack.c.l.b16 %v63
  %v817 = vunpack.c.l.b16 %v64
  %v818 = vunpack.c.l.b16 %v65
  %v819 = vunpack.c.l.b16 %v66
  %v820 = vunpack.c.l.b16 %v67
  %v821 = vunpack.c.l.b16 %v68
  %v822 = vunpack.c.l.b16 %v69
  %v823 = vunpack.c.l.b16 %v70
  %v824 = vunpack.c.l.b16 %v71
  %v825 = vunpack.c.l.b16 %v72
  %v826 = vunpack.c.l.b16 %v73
  %v827 = vunpack.c.l.b16 %v74
  %v828 = vunpack.c.l.b16 %v75
  %v829 = vunpack.c.l.b16 %v76
  %v830 = vunpack.c.l.b16 %v77
  %v831 = vunpack.c.l.b16 %v78
  %v832 = vunpack.c.l.b16 %v79
  %v833 = vunpack.c.l.b16 %v80
  %v834 = vunpack.c.l.b16 %v81
  %v835 = vpack.c.b16 %v772, %v771
  %v836 = vpack.c.b16 %v774, %v773
  %v837 = vpack.c.b16 %v776, %v775
  %v838 = vpack.c.b16 %v778, %v777
  %v839 = vpack.c.b16 %v780, %v779
  %v840 = vpack.c.b16 %v782, %v781
  %v841 = vpack.c.b16 %v784, %v783
  %v842 = vpack.c.b16 %v786, %v785
  %v843 = vpack.c.b16 %v788, %v787
  %v844 = vpack.c.b16 %v790, %v789
  %v845 = vpack.c.b16 %v792, %v791
  %v846 = vpack.c.b16 %v794, %v793
  %v847 = vpack.c.b16 %v796, %v795
  %v848 = vpack.c.b16 %v798, %v797
  %v849 = vpack.c.b16 %v800, %v799
  %v850 = vpack.c.b16 %v802, %v801
  %v851 = vpack.c.b16 %v804, %v803
  %v852 = vpack.c.b16 %v806, %v805
  %v853 = vpack.c.b16 %v808, %v807
  %v854 = vpack.c.b16 %v810, %v809
  %v855 = vpack.c.b16 %v812, %v811
  %v856 = vpack.c.b16 %v814, %v813
  %v857 = vpack.c.b16 %v816, %v815
  %v858 = vpack.c.b16 %v818, %v817
  %v859 = vpack.c.b16 %v820, %v819
  %v860 = vpack.c.b16 %v822, %v821
  %v861 = vpack.c.b16 %v824, %v823
  %v862 = vpack.c.b16 %v826, %v825
  %v863 = vpack.c.b16 %v828, %v827
  %v864 = vpack.c.b16 %v830, %v829
  %v865 = vpack.c.b16 %v832, %v831
  %v866 = vpack.c.b16 %v834, %v833
  %v915 = vunpack.c.l.b16 %v82
  %v916 = vunpack.c.l.b16 %v83
  %v917 = vunpack.c.l.b16 %v84
  %v918 = vunpack.c.l.b16 %v85
  %v919 = vunpack.c.l.b16 %v86
  %v920 = vunpack.c.l.b16 %v87
  %v921 = vunpack.c.l.b16 %v88
  %v922 = vunpack.c.l.b16 %v89
  %v923 = vunpack.c.l.b16 %v90
  %v924 = vunpack.c.l.b16 %v91
  %v925 = vunpack.c.l.b16 %v92
  %v926 = vunpack.c.l.b16 %v93
  %v927 = vunpack.c.l.b16 %v94
  %v928 = vunpack.c.l.b16 %v95
  %v929 = vunpack.c.l.b16 %v96
  %v930 = vunpack.c.l.b16 %v97
  %v931 = vpack.c.b16 %v916, %v915
  %v932 = vpack.c.b16 %v918, %v917
  %v933 = vpack.c.b16 %v920, %v919
  %v934 = vpack.c.b16 %v922, %v921
  %v935 = vpack.c.b16 %v924, %v923
  %v936 = vpack.c.b16 %v926, %v925
  %v937 = vpack.c.b16 %v928, %v927
  %v938 = vpack.c.b16 %v930, %v929
  %947 = vmatprep.subr.bf16.mxu0 0
  %948 = vmatpush1.bf16.msra.mxu0 %v938
  %949 = vmatprep.subr.bf16.mxu0 0
  %950 = vmatpush1.bf16.msra.mxu0 %v937
  %951 = vmatprep.subr.bf16.mxu0 0
  %952 = vmatpush1.bf16.msra.mxu0 %v936
  %953 = vmatprep.subr.bf16.mxu0 0
  %954 = vmatpush1.bf16.msra.mxu0 %v935
  %955 = vmatprep.subr.bf16.mxu0 0
  %956 = vmatpush1.bf16.msra.mxu0 %v934
  %957 = vmatprep.subr.bf16.mxu0 0
  %958 = vmatpush1.bf16.msra.mxu0 %v933
  %959 = vmatprep.subr.bf16.mxu0 0
  %960 = vmatpush1.bf16.msra.mxu0 %v932
  %961 = vmatprep.subr.bf16.mxu0 0
  %962 = vmatpush1.bf16.msra.mxu0 %v931
  %963 = vmatprep.subr.bf16.mxu0 0
  %964 = vmatpush2.bf16.msra.mxu0 0
  %965 = vmatprep.subr.bf16.mxu0 0
  %966 = vmatpush2.bf16.msra.mxu0 0
  %967 = vmatprep.subr.bf16.mxu0 0
  %968 = vmatpush2.bf16.msra.mxu0 0
  %969 = vmatprep.subr.bf16.mxu0 0
  %970 = vmatpush2.bf16.msra.mxu0 0
  %971 = vmatprep.subr.bf16.mxu0 0
  %972 = vmatpush2.bf16.msra.mxu0 0
  %973 = vmatprep.subr.bf16.mxu0 0
  %974 = vmatpush2.bf16.msra.mxu0 0
  %975 = vmatprep.subr.bf16.mxu0 0
  %976 = vmatpush2.bf16.msra.mxu0 0
  %977 = vmatprep.subr.bf16.mxu0 0
  %978 = vmatpush2.bf16.msra.mxu0 0
  %979 = vmatprep.mubr.bf16.mxu0 0
  %980 = vmatmul.mubr.bf16.gmra.mxu0 %v835
  %v981 = vpop.f32.mrf.mxu0
  %v982 = vadd.f32 %v453, %v981
  %v983 = vpop.f32.mrf.mxu0
  %v984 = vpop.f32.mrf.mxu0
  %v985 = vadd.f32 %v456, %v984
  %v986 = vpop.f32.mrf.mxu0
  %987 = vmatprep.mubr.bf16.mxu0 0
  %988 = vmatmul.mubr.bf16.gmra.mxu0 %v836
  %v989 = vpop.f32.mrf.mxu0
  %v990 = vadd.f32 %v461, %v989
  %v991 = vpop.f32.mrf.mxu0
  %v992 = vpop.f32.mrf.mxu0
  %v993 = vadd.f32 %v464, %v992
  %v994 = vpop.f32.mrf.mxu0
  %995 = vmatprep.mubr.bf16.mxu0 0
  %996 = vmatmul.mubr.bf16.gmra.mxu0 %v837
  %v997 = vpop.f32.mrf.mxu0
  %v998 = vadd.f32 %v469, %v997
  %v999 = vpop.f32.mrf.mxu0
  %v1000 = vpop.f32.mrf.mxu0
  %v1001 = vadd.f32 %v472, %v1000
  %v1002 = vpop.f32.mrf.mxu0
  %1003 = vmatprep.mubr.bf16.mxu0 0
  %1004 = vmatmul.mubr.bf16.gmra.mxu0 %v838
  %v1005 = vpop.f32.mrf.mxu0
  %v1006 = vadd.f32 %v477, %v1005
  %v1007 = vpop.f32.mrf.mxu0
  %v1008 = vpop.f32.mrf.mxu0
  %v1009 = vadd.f32 %v480, %v1008
  %v1010 = vpop.f32.mrf.mxu0
  %1011 = vmatprep.mubr.bf16.mxu0 0
  %1012 = vmatmul.mubr.bf16.gmra.mxu0 %v839
  %v1013 = vpop.f32.mrf.mxu0
  %v1014 = vadd.f32 %v485, %v1013
  %v1015 = vpop.f32.mrf.mxu0
  %v1016 = vpop.f32.mrf.mxu0
  %v1017 = vadd.f32 %v488, %v1016
  %v1018 = vpop.f32.mrf.mxu0
  %1019 = vmatprep.mubr.bf16.mxu0 0
  %1020 = vmatmul.mubr.bf16.gmra.mxu0 %v840
  %v1021 = vpop.f32.mrf.mxu0
  %v1022 = vadd.f32 %v493, %v1021
  %v1023 = vpop.f32.mrf.mxu0
  %v1024 = vpop.f32.mrf.mxu0
  %v1025 = vadd.f32 %v496, %v1024
  %v1026 = vpop.f32.mrf.mxu0
  %1027 = vmatprep.mubr.bf16.mxu0 0
  %1028 = vmatmul.mubr.bf16.gmra.mxu0 %v841
  %v1029 = vpop.f32.mrf.mxu0
  %v1030 = vadd.f32 %v501, %v1029
  %v1031 = vpop.f32.mrf.mxu0
  %v1032 = vpop.f32.mrf.mxu0
  %v1033 = vadd.f32 %v504, %v1032
  %v1034 = vpop.f32.mrf.mxu0
  %1035 = vmatprep.mubr.bf16.mxu0 0
  %1036 = vmatmul.mubr.bf16.gmra.mxu0 %v842
  %v1037 = vpop.f32.mrf.mxu0
  %v1038 = vadd.f32 %v509, %v1037
  %v1039 = vpop.f32.mrf.mxu0
  %v1040 = vpop.f32.mrf.mxu0
  %v1041 = vadd.f32 %v512, %v1040
  %v1042 = vpop.f32.mrf.mxu0
  %1043 = vmatprep.mubr.bf16.mxu0 0
  %1044 = vmatmul.mubr.bf16.gmra.mxu0 %v843
  %v1045 = vpop.f32.mrf.mxu0
  %v1046 = vadd.f32 %v517, %v1045
  %v1047 = vpop.f32.mrf.mxu0
  %v1048 = vpop.f32.mrf.mxu0
  %v1049 = vadd.f32 %v520, %v1048
  %v1050 = vpop.f32.mrf.mxu0
  %1051 = vmatprep.mubr.bf16.mxu0 0
  %1052 = vmatmul.mubr.bf16.gmra.mxu0 %v844
  %v1053 = vpop.f32.mrf.mxu0
  %v1054 = vadd.f32 %v525, %v1053
  %v1055 = vpop.f32.mrf.mxu0
  %v1056 = vpop.f32.mrf.mxu0
  %v1057 = vadd.f32 %v528, %v1056
  %v1058 = vpop.f32.mrf.mxu0
  %1059 = vmatprep.mubr.bf16.mxu0 0
  %1060 = vmatmul.mubr.bf16.gmra.mxu0 %v845
  %v1061 = vpop.f32.mrf.mxu0
  %v1062 = vadd.f32 %v533, %v1061
  %v1063 = vpop.f32.mrf.mxu0
  %v1064 = vpop.f32.mrf.mxu0
  %v1065 = vadd.f32 %v536, %v1064
  %v1066 = vpop.f32.mrf.mxu0
  %1067 = vmatprep.mubr.bf16.mxu0 0
  %1068 = vmatmul.mubr.bf16.gmra.mxu0 %v846
  %v1069 = vpop.f32.mrf.mxu0
  %v1070 = vadd.f32 %v541, %v1069
  %v1071 = vpop.f32.mrf.mxu0
  %v1072 = vpop.f32.mrf.mxu0
  %v1073 = vadd.f32 %v544, %v1072
  %v1074 = vpop.f32.mrf.mxu0
  %1075 = vmatprep.mubr.bf16.mxu0 0
  %1076 = vmatmul.mubr.bf16.gmra.mxu0 %v847
  %v1077 = vpop.f32.mrf.mxu0
  %v1078 = vadd.f32 %v549, %v1077
  %v1079 = vpop.f32.mrf.mxu0
  %v1080 = vpop.f32.mrf.mxu0
  %v1081 = vadd.f32 %v552, %v1080
  %v1082 = vpop.f32.mrf.mxu0
  %1083 = vmatprep.mubr.bf16.mxu0 0
  %1084 = vmatmul.mubr.bf16.gmra.mxu0 %v848
  %v1085 = vpop.f32.mrf.mxu0
  %v1086 = vadd.f32 %v557, %v1085
  %v1087 = vpop.f32.mrf.mxu0
  %v1088 = vpop.f32.mrf.mxu0
  %v1089 = vadd.f32 %v560, %v1088
  %v1090 = vpop.f32.mrf.mxu0
  %1091 = vmatprep.mubr.bf16.mxu0 0
  %1092 = vmatmul.mubr.bf16.gmra.mxu0 %v849
  %v1093 = vpop.f32.mrf.mxu0
  %v1094 = vadd.f32 %v565, %v1093
  %v1095 = vpop.f32.mrf.mxu0
  %v1096 = vpop.f32.mrf.mxu0
  %v1097 = vadd.f32 %v568, %v1096
  %v1098 = vpop.f32.mrf.mxu0
  %1099 = vmatprep.mubr.bf16.mxu0 0
  %1100 = vmatmul.mubr.bf16.gmra.mxu0 %v850
  %v1101 = vpop.f32.mrf.mxu0
  %v1102 = vadd.f32 %v573, %v1101
  %v1103 = vpop.f32.mrf.mxu0
  %v1104 = vpop.f32.mrf.mxu0
  %v1105 = vadd.f32 %v576, %v1104
  %v1106 = vpop.f32.mrf.mxu0
  %1107 = vmatprep.mubr.bf16.mxu0 0
  %1108 = vmatmul.mubr.bf16.gmra.mxu0 %v851
  %v1109 = vpop.f32.mrf.mxu0
  %v1110 = vadd.f32 %v581, %v1109
  %v1111 = vpop.f32.mrf.mxu0
  %v1112 = vpop.f32.mrf.mxu0
  %v1113 = vadd.f32 %v584, %v1112
  %v1114 = vpop.f32.mrf.mxu0
  %1115 = vmatprep.mubr.bf16.mxu0 0
  %1116 = vmatmul.mubr.bf16.gmra.mxu0 %v852
  %v1117 = vpop.f32.mrf.mxu0
  %v1118 = vadd.f32 %v589, %v1117
  %v1119 = vpop.f32.mrf.mxu0
  %v1120 = vpop.f32.mrf.mxu0
  %v1121 = vadd.f32 %v592, %v1120
  %v1122 = vpop.f32.mrf.mxu0
  %1123 = vmatprep.mubr.bf16.mxu0 0
  %1124 = vmatmul.mubr.bf16.gmra.mxu0 %v853
  %v1125 = vpop.f32.mrf.mxu0
  %v1126 = vadd.f32 %v597, %v1125
  %v1127 = vpop.f32.mrf.mxu0
  %v1128 = vpop.f32.mrf.mxu0
  %v1129 = vadd.f32 %v600, %v1128
  %v1130 = vpop.f32.mrf.mxu0
  %1131 = vmatprep.mubr.bf16.mxu0 0
  %1132 = vmatmul.mubr.bf16.gmra.mxu0 %v854
  %v1133 = vpop.f32.mrf.mxu0
  %v1134 = vadd.f32 %v605, %v1133
  %v1135 = vpop.f32.mrf.mxu0
  %v1136 = vpop.f32.mrf.mxu0
  %v1137 = vadd.f32 %v608, %v1136
  %v1138 = vpop.f32.mrf.mxu0
  %1139 = vmatprep.mubr.bf16.mxu0 0
  %1140 = vmatmul.mubr.bf16.gmra.mxu0 %v855
  %v1141 = vpop.f32.mrf.mxu0
  %v1142 = vadd.f32 %v613, %v1141
  %v1143 = vpop.f32.mrf.mxu0
  %v1144 = vpop.f32.mrf.mxu0
  %v1145 = vadd.f32 %v616, %v1144
  %v1146 = vpop.f32.mrf.mxu0
  %1147 = vmatprep.mubr.bf16.mxu0 0
  %1148 = vmatmul.mubr.bf16.gmra.mxu0 %v856
  %v1149 = vpop.f32.mrf.mxu0
  %v1150 = vadd.f32 %v621, %v1149
  %v1151 = vpop.f32.mrf.mxu0
  %v1152 = vpop.f32.mrf.mxu0
  %v1153 = vadd.f32 %v624, %v1152
  %v1154 = vpop.f32.mrf.mxu0
  %1155 = vmatprep.mubr.bf16.mxu0 0
  %1156 = vmatmul.mubr.bf16.gmra.mxu0 %v857
  %v1157 = vpop.f32.mrf.mxu0
  %v1158 = vadd.f32 %v629, %v1157
  %v1159 = vpop.f32.mrf.mxu0
  %v1160 = vpop.f32.mrf.mxu0
  %v1161 = vadd.f32 %v632, %v1160
  %v1162 = vpop.f32.mrf.mxu0
  %1163 = vmatprep.mubr.bf16.mxu0 0
  %1164 = vmatmul.mubr.bf16.gmra.mxu0 %v858
  %v1165 = vpop.f32.mrf.mxu0
  %v1166 = vadd.f32 %v637, %v1165
  %v1167 = vpop.f32.mrf.mxu0
  %v1168 = vpop.f32.mrf.mxu0
  %v1169 = vadd.f32 %v640, %v1168
  %v1170 = vpop.f32.mrf.mxu0
  %1171 = vmatprep.mubr.bf16.mxu0 0
  %1172 = vmatmul.mubr.bf16.gmra.mxu0 %v859
  %v1173 = vpop.f32.mrf.mxu0
  %v1174 = vadd.f32 %v645, %v1173
  %v1175 = vpop.f32.mrf.mxu0
  %v1176 = vpop.f32.mrf.mxu0
  %v1177 = vadd.f32 %v648, %v1176
  %v1178 = vpop.f32.mrf.mxu0
  %1179 = vmatprep.mubr.bf16.mxu0 0
  %1180 = vmatmul.mubr.bf16.gmra.mxu0 %v860
  %v1181 = vpop.f32.mrf.mxu0
  %v1182 = vadd.f32 %v653, %v1181
  %v1183 = vpop.f32.mrf.mxu0
  %v1184 = vpop.f32.mrf.mxu0
  %v1185 = vadd.f32 %v656, %v1184
  %v1186 = vpop.f32.mrf.mxu0
  %1187 = vmatprep.mubr.bf16.mxu0 0
  %1188 = vmatmul.mubr.bf16.gmra.mxu0 %v861
  %v1189 = vpop.f32.mrf.mxu0
  %v1190 = vadd.f32 %v661, %v1189
  %v1191 = vpop.f32.mrf.mxu0
  %v1192 = vpop.f32.mrf.mxu0
  %v1193 = vadd.f32 %v664, %v1192
  %v1194 = vpop.f32.mrf.mxu0
  %1195 = vmatprep.mubr.bf16.mxu0 0
  %1196 = vmatmul.mubr.bf16.gmra.mxu0 %v862
  %v1197 = vpop.f32.mrf.mxu0
  %v1198 = vadd.f32 %v669, %v1197
  %v1199 = vpop.f32.mrf.mxu0
  %v1200 = vpop.f32.mrf.mxu0
  %v1201 = vadd.f32 %v672, %v1200
  %v1202 = vpop.f32.mrf.mxu0
  %1203 = vmatprep.mubr.bf16.mxu0 0
  %1204 = vmatmul.mubr.bf16.gmra.mxu0 %v863
  %v1205 = vpop.f32.mrf.mxu0
  %v1206 = vadd.f32 %v677, %v1205
  %v1207 = vpop.f32.mrf.mxu0
  %v1208 = vpop.f32.mrf.mxu0
  %v1209 = vadd.f32 %v680, %v1208
  %v1210 = vpop.f32.mrf.mxu0
  %1211 = vmatprep.mubr.bf16.mxu0 0
  %1212 = vmatmul.mubr.bf16.gmra.mxu0 %v864
  %v1213 = vpop.f32.mrf.mxu0
  %v1214 = vadd.f32 %v685, %v1213
  %v1215 = vpop.f32.mrf.mxu0
  %v1216 = vpop.f32.mrf.mxu0
  %v1217 = vadd.f32 %v688, %v1216
  %v1218 = vpop.f32.mrf.mxu0
  %1219 = vmatprep.mubr.bf16.mxu0 0
  %1220 = vmatmul.mubr.bf16.gmra.mxu0 %v865
  %v1221 = vpop.f32.mrf.mxu0
  %v1222 = vadd.f32 %v693, %v1221
  %v1223 = vpop.f32.mrf.mxu0
  %v1224 = vpop.f32.mrf.mxu0
  %v1225 = vadd.f32 %v696, %v1224
  %v1226 = vpop.f32.mrf.mxu0
  %1227 = vmatprep.mubr.bf16.mxu0 0
  %1228 = vmatmul.mubr.bf16.gmra.mxu0 %v866
  %v1229 = vpop.f32.mrf.mxu0
  %v1230 = vadd.f32 %v701, %v1229
  %v1231 = vpop.f32.mrf.mxu0
  %v1232 = vpop.f32.mrf.mxu0
  %v1233 = vadd.f32 %v704, %v1232
  %v1234 = vpop.f32.mrf.mxu0
  %1235 = vdwg.mxu0
  %v1236 = vmax.f32 %v982, 0.0
  %v1237 = vmax.f32 %v985, 0.0
  %v1238 = vmax.f32 %v990, 0.0
  %v1239 = vmax.f32 %v993, 0.0
  %v1240 = vmax.f32 %v998, 0.0
  %v1241 = vmax.f32 %v1001, 0.0
  %v1242 = vmax.f32 %v1006, 0.0
  %v1243 = vmax.f32 %v1009, 0.0
  %v1244 = vmax.f32 %v1014, 0.0
  %v1245 = vmax.f32 %v1017, 0.0
  %v1246 = vmax.f32 %v1022, 0.0
  %v1247 = vmax.f32 %v1025, 0.0
  %v1248 = vmax.f32 %v1030, 0.0
  %v1249 = vmax.f32 %v1033, 0.0
  %v1250 = vmax.f32 %v1038, 0.0
  %v1251 = vmax.f32 %v1041, 0.0
  %v1252 = vmax.f32 %v1046, 0.0
  %v1253 = vmax.f32 %v1049, 0.0
  %v1254 = vmax.f32 %v1054, 0.0
  %v1255 = vmax.f32 %v1057, 0.0
  %v1256 = vmax.f32 %v1062, 0.0
  %v1257 = vmax.f32 %v1065, 0.0
  %v1258 = vmax.f32 %v1070, 0.0
  %v1259 = vmax.f32 %v1073, 0.0
  %v1260 = vmax.f32 %v1078, 0.0
  %v1261 = vmax.f32 %v1081, 0.0
  %v1262 = vmax.f32 %v1086, 0.0
  %v1263 = vmax.f32 %v1089, 0.0
  %v1264 = vmax.f32 %v1094, 0.0
  %v1265 = vmax.f32 %v1097, 0.0
  %v1266 = vmax.f32 %v1102, 0.0
  %v1267 = vmax.f32 %v1105, 0.0
  %v1268 = vmax.f32 %v1110, 0.0
  %v1269 = vmax.f32 %v1113, 0.0
  %v1270 = vmax.f32 %v1118, 0.0
  %v1271 = vmax.f32 %v1121, 0.0
  %v1272 = vmax.f32 %v1126, 0.0
  %v1273 = vmax.f32 %v1129, 0.0
  %v1274 = vmax.f32 %v1134, 0.0
  %v1275 = vmax.f32 %v1137, 0.0
  %v1276 = vmax.f32 %v1142, 0.0
  %v1277 = vmax.f32 %v1145, 0.0
  %v1278 = vmax.f32 %v1150, 0.0
  %v1279 = vmax.f32 %v1153, 0.0
  %v1280 = vmax.f32 %v1158, 0.0
  %v1281 = vmax.f32 %v1161, 0.0
  %v1282 = vmax.f32 %v1166, 0.0
  %v1283 = vmax.f32 %v1169, 0.0
  %v1284 = vmax.f32 %v1174, 0.0
  %v1285 = vmax.f32 %v1177, 0.0
  %v1286 = vmax.f32 %v1182, 0.0
  %v1287 = vmax.f32 %v1185, 0.0
  %v1288 = vmax.f32 %v1190, 0.0
  %v1289 = vmax.f32 %v1193, 0.0
  %v1290 = vmax.f32 %v1198, 0.0
  %v1291 = vmax.f32 %v1201, 0.0
  %v1292 = vmax.f32 %v1206, 0.0
  %v1293 = vmax.f32 %v1209, 0.0
  %v1294 = vmax.f32 %v1214, 0.0
  %v1295 = vmax.f32 %v1217, 0.0
  %v1296 = vmax.f32 %v1222, 0.0
  %v1297 = vmax.f32 %v1225, 0.0
  %v1298 = vmax.f32 %v1230, 0.0
  %v1299 = vmax.f32 %v1233, 0.0
  %v1300 = vpack.c.bf16 %v1237, %v1236
  %v1301 = vpack.c.bf16 %v1239, %v1238
  %v1302 = vpack.c.bf16 %v1241, %v1240
  %v1303 = vpack.c.bf16 %v1243, %v1242
  %v1304 = vpack.c.bf16 %v1245, %v1244
  %v1305 = vpack.c.bf16 %v1247, %v1246
  %v1306 = vpack.c.bf16 %v1249, %v1248
  %v1307 = vpack.c.bf16 %v1251, %v1250
  %v1308 = vpack.c.bf16 %v1253, %v1252
  %v1309 = vpack.c.bf16 %v1255, %v1254
  %v1310 = vpack.c.bf16 %v1257, %v1256
  %v1311 = vpack.c.bf16 %v1259, %v1258
  %v1312 = vpack.c.bf16 %v1261, %v1260
  %v1313 = vpack.c.bf16 %v1263, %v1262
  %v1314 = vpack.c.bf16 %v1265, %v1264
  %v1315 = vpack.c.bf16 %v1267, %v1266
  %v1316 = vpack.c.bf16 %v1269, %v1268
  %v1317 = vpack.c.bf16 %v1271, %v1270
  %v1318 = vpack.c.bf16 %v1273, %v1272
  %v1319 = vpack.c.bf16 %v1275, %v1274
  %v1320 = vpack.c.bf16 %v1277, %v1276
  %v1321 = vpack.c.bf16 %v1279, %v1278
  %v1322 = vpack.c.bf16 %v1281, %v1280
  %v1323 = vpack.c.bf16 %v1283, %v1282
  %v1324 = vpack.c.bf16 %v1285, %v1284
  %v1325 = vpack.c.bf16 %v1287, %v1286
  %v1326 = vpack.c.bf16 %v1289, %v1288
  %v1327 = vpack.c.bf16 %v1291, %v1290
  %v1328 = vpack.c.bf16 %v1293, %v1292
  %v1329 = vpack.c.bf16 %v1295, %v1294
  %v1330 = vpack.c.bf16 %v1297, %v1296
  %v1331 = vpack.c.bf16 %v1299, %v1298
  %v1364 = vunpack.c.l.b16 %v1300
  %v1365 = vunpack.c.h.b16 %v1300
  %v1366 = vunpack.c.l.b16 %v1301
  %v1367 = vunpack.c.h.b16 %v1301
  %v1368 = vunpack.c.l.b16 %v1302
  %v1369 = vunpack.c.h.b16 %v1302
  %v1370 = vunpack.c.l.b16 %v1303
  %v1371 = vunpack.c.h.b16 %v1303
  %v1372 = vunpack.c.l.b16 %v1304
  %v1373 = vunpack.c.h.b16 %v1304
  %v1374 = vunpack.c.l.b16 %v1305
  %v1375 = vunpack.c.h.b16 %v1305
  %v1376 = vunpack.c.l.b16 %v1306
  %v1377 = vunpack.c.h.b16 %v1306
  %v1378 = vunpack.c.l.b16 %v1307
  %v1379 = vunpack.c.h.b16 %v1307
  %v1380 = vunpack.c.l.b16 %v1308
  %v1381 = vunpack.c.h.b16 %v1308
  %v1382 = vunpack.c.l.b16 %v1309
  %v1383 = vunpack.c.h.b16 %v1309
  %v1384 = vunpack.c.l.b16 %v1310
  %v1385 = vunpack.c.h.b16 %v1310
  %v1386 = vunpack.c.l.b16 %v1311
  %v1387 = vunpack.c.h.b16 %v1311
  %v1388 = vunpack.c.l.b16 %v1312
  %v1389 = vunpack.c.h.b16 %v1312
  %v1390 = vunpack.c.l.b16 %v1313
  %v1391 = vunpack.c.h.b16 %v1313
  %v1392 = vunpack.c.l.b16 %v1314
  %v1393 = vunpack.c.h.b16 %v1314
  %v1394 = vunpack.c.l.b16 %v1315
  %v1395 = vunpack.c.h.b16 %v1315
  %v1396 = vunpack.c.l.b16 %v1316
  %v1397 = vunpack.c.h.b16 %v1316
  %v1398 = vunpack.c.l.b16 %v1317
  %v1399 = vunpack.c.h.b16 %v1317
  %v1400 = vunpack.c.l.b16 %v1318
  %v1401 = vunpack.c.h.b16 %v1318
  %v1402 = vunpack.c.l.b16 %v1319
  %v1403 = vunpack.c.h.b16 %v1319
  %v1404 = vunpack.c.l.b16 %v1320
  %v1405 = vunpack.c.h.b16 %v1320
  %v1406 = vunpack.c.l.b16 %v1321
  %v1407 = vunpack.c.h.b16 %v1321
  %v1408 = vunpack.c.l.b16 %v1322
  %v1409 = vunpack.c.h.b16 %v1322
  %v1410 = vunpack.c.l.b16 %v1323
  %v1411 = vunpack.c.h.b16 %v1323
  %v1412 = vunpack.c.l.b16 %v1324
  %v1413 = vunpack.c.h.b16 %v1324
  %v1414 = vunpack.c.l.b16 %v1325
  %v1415 = vunpack.c.h.b16 %v1325
  %v1416 = vunpack.c.l.b16 %v1326
  %v1417 = vunpack.c.h.b16 %v1326
  %v1418 = vunpack.c.l.b16 %v1327
  %v1419 = vunpack.c.h.b16 %v1327
  %v1420 = vunpack.c.l.b16 %v1328
  %v1421 = vunpack.c.h.b16 %v1328
  %v1422 = vunpack.c.l.b16 %v1329
  %v1423 = vunpack.c.h.b16 %v1329
  %v1424 = vunpack.c.l.b16 %v1330
  %v1425 = vunpack.c.h.b16 %v1330
  %v1426 = vunpack.c.l.b16 %v1331
  %v1427 = vunpack.c.h.b16 %v1331
  %v1428 = vpack.c.b16 %v1364, %v1364
  %v1429 = vpack.c.b16 %v1365, %v1365
  %v1430 = vpack.c.b16 %v1366, %v1366
  %v1431 = vpack.c.b16 %v1367, %v1367
  %v1432 = vpack.c.b16 %v1368, %v1368
  %v1433 = vpack.c.b16 %v1369, %v1369
  %v1434 = vpack.c.b16 %v1370, %v1370
  %v1435 = vpack.c.b16 %v1371, %v1371
  %v1436 = vpack.c.b16 %v1372, %v1372
  %v1437 = vpack.c.b16 %v1373, %v1373
  %v1438 = vpack.c.b16 %v1374, %v1374
  %v1439 = vpack.c.b16 %v1375, %v1375
  %v1440 = vpack.c.b16 %v1376, %v1376
  %v1441 = vpack.c.b16 %v1377, %v1377
  %v1442 = vpack.c.b16 %v1378, %v1378
  %v1443 = vpack.c.b16 %v1379, %v1379
  %v1444 = vpack.c.b16 %v1380, %v1380
  %v1445 = vpack.c.b16 %v1381, %v1381
  %v1446 = vpack.c.b16 %v1382, %v1382
  %v1447 = vpack.c.b16 %v1383, %v1383
  %v1448 = vpack.c.b16 %v1384, %v1384
  %v1449 = vpack.c.b16 %v1385, %v1385
  %v1450 = vpack.c.b16 %v1386, %v1386
  %v1451 = vpack.c.b16 %v1387, %v1387
  %v1452 = vpack.c.b16 %v1388, %v1388
  %v1453 = vpack.c.b16 %v1389, %v1389
  %v1454 = vpack.c.b16 %v1390, %v1390
  %v1455 = vpack.c.b16 %v1391, %v1391
  %v1456 = vpack.c.b16 %v1392, %v1392
  %v1457 = vpack.c.b16 %v1393, %v1393
  %v1458 = vpack.c.b16 %v1394, %v1394
  %v1459 = vpack.c.b16 %v1395, %v1395
  %v1460 = vpack.c.b16 %v1396, %v1396
  %v1461 = vpack.c.b16 %v1397, %v1397
  %v1462 = vpack.c.b16 %v1398, %v1398
  %v1463 = vpack.c.b16 %v1399, %v1399
  %v1464 = vpack.c.b16 %v1400, %v1400
  %v1465 = vpack.c.b16 %v1401, %v1401
  %v1466 = vpack.c.b16 %v1402, %v1402
  %v1467 = vpack.c.b16 %v1403, %v1403
  %v1468 = vpack.c.b16 %v1404, %v1404
  %v1469 = vpack.c.b16 %v1405, %v1405
  %v1470 = vpack.c.b16 %v1406, %v1406
  %v1471 = vpack.c.b16 %v1407, %v1407
  %v1472 = vpack.c.b16 %v1408, %v1408
  %v1473 = vpack.c.b16 %v1409, %v1409
  %v1474 = vpack.c.b16 %v1410, %v1410
  %v1475 = vpack.c.b16 %v1411, %v1411
  %v1476 = vpack.c.b16 %v1412, %v1412
  %v1477 = vpack.c.b16 %v1413, %v1413
  %v1478 = vpack.c.b16 %v1414, %v1414
  %v1479 = vpack.c.b16 %v1415, %v1415
  %v1480 = vpack.c.b16 %v1416, %v1416
  %v1481 = vpack.c.b16 %v1417, %v1417
  %v1482 = vpack.c.b16 %v1418, %v1418
  %v1483 = vpack.c.b16 %v1419, %v1419
  %v1484 = vpack.c.b16 %v1420, %v1420
  %v1485 = vpack.c.b16 %v1421, %v1421
  %v1486 = vpack.c.b16 %v1422, %v1422
  %v1487 = vpack.c.b16 %v1423, %v1423
  %v1488 = vpack.c.b16 %v1424, %v1424
  %v1489 = vpack.c.b16 %v1425, %v1425
  %v1490 = vpack.c.b16 %v1426, %v1426
  %v1491 = vpack.c.b16 %v1427, %v1427
  %1556 = vst [vmem:[%s4] sm:$0xf] %v1428
  %1557 = vst [vmem:[%s4 + $0x4] sm:$0xf] %v1429
  %1558 = vst [vmem:[%s4 + $0x8] sm:$0xf] %v1430
  %1559 = vst [vmem:[%s4 + $0xc] sm:$0xf] %v1431
  %1560 = vst [vmem:[%s4 + $0x10] sm:$0xf] %v1432
  %1561 = vst [vmem:[%s4 + $0x14] sm:$0xf] %v1433
  %1562 = vst [vmem:[%s4 + $0x18] sm:$0xf] %v1434
  %1563 = vst [vmem:[%s4 + $0x1c] sm:$0xf] %v1435
  %1564 = vst [vmem:[%s4 + $0x20] sm:$0xf] %v1436
  %1565 = vst [vmem:[%s4 + $0x24] sm:$0xf] %v1437
  %1566 = vst [vmem:[%s4 + $0x28] sm:$0xf] %v1438
  %1567 = vst [vmem:[%s4 + $0x2c] sm:$0xf] %v1439
  %1568 = vst [vmem:[%s4 + $0x30] sm:$0xf] %v1440
  %1569 = vst [vmem:[%s4 + $0x34] sm:$0xf] %v1441
  %1570 = vst [vmem:[%s4 + $0x38] sm:$0xf] %v1442
  %1571 = vst [vmem:[%s4 + $0x3c] sm:$0xf] %v1443
  %1572 = vst [vmem:[%s4 + $0x40] sm:$0xf] %v1444
  %1573 = vst [vmem:[%s4 + $0x44] sm:$0xf] %v1445
  %1574 = vst [vmem:[%s4 + $0x48] sm:$0xf] %v1446
  %1575 = vst [vmem:[%s4 + $0x4c] sm:$0xf] %v1447
  %1576 = vst [vmem:[%s4 + $0x50] sm:$0xf] %v1448
  %1577 = vst [vmem:[%s4 + $0x54] sm:$0xf] %v1449
  %1578 = vst [vmem:[%s4 + $0x58] sm:$0xf] %v1450
  %1579 = vst [vmem:[%s4 + $0x5c] sm:$0xf] %v1451
  %1580 = vst [vmem:[%s4 + $0x60] sm:$0xf] %v1452
  %1581 = vst [vmem:[%s4 + $0x64] sm:$0xf] %v1453
  %1582 = vst [vmem:[%s4 + $0x68] sm:$0xf] %v1454
  %1583 = vst [vmem:[%s4 + $0x6c] sm:$0xf] %v1455
  %1584 = vst [vmem:[%s4 + $0x70] sm:$0xf] %v1456
  %1585 = vst [vmem:[%s4 + $0x74] sm:$0xf] %v1457
  %1586 = vst [vmem:[%s4 + $0x78] sm:$0xf] %v1458
  %1587 = vst [vmem:[%s4 + $0x7c] sm:$0xf] %v1459
  %1588 = vst [vmem:[%s4 + $0x80] sm:$0xf] %v1460
  %1589 = vst [vmem:[%s4 + $0x84] sm:$0xf] %v1461
  %1590 = vst [vmem:[%s4 + $0x88] sm:$0xf] %v1462
  %1591 = vst [vmem:[%s4 + $0x8c] sm:$0xf] %v1463
  %1592 = vst [vmem:[%s4 + $0x90] sm:$0xf] %v1464
  %1593 = vst [vmem:[%s4 + $0x94] sm:$0xf] %v1465
  %1594 = vst [vmem:[%s4 + $0x98] sm:$0xf] %v1466
  %1595 = vst [vmem:[%s4 + $0x9c] sm:$0xf] %v1467
  %1596 = vst [vmem:[%s4 + $0xa0] sm:$0xf] %v1468
  %1597 = vst [vmem:[%s4 + $0xa4] sm:$0xf] %v1469
  %1598 = vst [vmem:[%s4 + $0xa8] sm:$0xf] %v1470
  %1599 = vst [vmem:[%s4 + $0xac] sm:$0xf] %v1471
  %1600 = vst [vmem:[%s4 + $0xb0] sm:$0xf] %v1472
  %1601 = vst [vmem:[%s4 + $0xb4] sm:$0xf] %v1473
  %1602 = vst [vmem:[%s4 + $0xb8] sm:$0xf] %v1474
  %1603 = vst [vmem:[%s4 + $0xbc] sm:$0xf] %v1475
  %1604 = vst [vmem:[%s4 + $0xc0] sm:$0xf] %v1476
  %1605 = vst [vmem:[%s4 + $0xc4] sm:$0xf] %v1477
  %1606 = vst [vmem:[%s4 + $0xc8] sm:$0xf] %v1478
  %1607 = vst [vmem:[%s4 + $0xcc] sm:$0xf] %v1479
  %1608 = vst [vmem:[%s4 + $0xd0] sm:$0xf] %v1480
  %1609 = vst [vmem:[%s4 + $0xd4] sm:$0xf] %v1481
  %1610 = vst [vmem:[%s4 + $0xd8] sm:$0xf] %v1482
  %1611 = vst [vmem:[%s4 + $0xdc] sm:$0xf] %v1483
  %1612 = vst [vmem:[%s4 + $0xe0] sm:$0xf] %v1484
  %1613 = vst [vmem:[%s4 + $0xe4] sm:$0xf] %v1485
  %1614 = vst [vmem:[%s4 + $0xe8] sm:$0xf] %v1486
  %1615 = vst [vmem:[%s4 + $0xec] sm:$0xf] %v1487
  %1616 = vst [vmem:[%s4 + $0xf0] sm:$0xf] %v1488
  %1617 = vst [vmem:[%s4 + $0xf4] sm:$0xf] %v1489
  %1618 = vst [vmem:[%s4 + $0xf8] sm:$0xf] %v1490
  %1619 = vst [vmem:[%s4 + $0xfc] sm:$0xf] %v1491
  // Predicated region
  $region18: #{gsconvns_forward.5} parent=0 // pred_check
    _
  $region19: #{gsconvns_forward.5} parent=0 // pred_check_branch
    %1621 = sbr.rel (0) target = $region21
  $region20: #{gsconvns_forward.5} parent=0 // pred_region
    _
  $region21: #{gsconvns_forward.5} parent=0 // pred_fallthru
    _
  // Predicated region
  $region22: #{gsconvns_forward.5} parent=0 // pred_check
    _
  $region23: #{gsconvns_forward.5} parent=0 // pred_check_branch
    %1623 = sbr.rel (0) target = $region25
  $region24: #{gsconvns_forward.5} parent=0 // pred_region
    _
  $region25: #{gsconvns_forward.5} parent=0 // pred_fallthru
    _

// kernel: gsconvns_forward.4
$region0: #{gsconvns_forward.4}
  #allocation0 [shape = 'u32[]', space=smem, size = 0x4, offset = 0x4, fixed_abs, tag = 'smem constant byte address 0x4 - core index']
  #allocation1 [shape = 'u32[144,128]{1,0:T(1,128)}', space=vmem, size = 0x12000, scoped, tag = 'internal scratch']
  %s0 = inlined_call_operand.vmem [shape: bf16[2,20,20,128], index: 0, kind: input, shape index: {}, may-alias: {0,1}]
  %s1 = inlined_call_operand.vmem [shape: bf16[2,20,20,128], index: 1, kind: input, shape index: {}, may-alias: {0,1}]
  %s2 = inlined_call_operand.vmem [shape: f32[25,128], index: 2, kind: input, shape index: {}]
  %s3 = inlined_call_operand.vmem [shape: f32[1,128], index: 3, kind: input, shape index: {}]
  %s4 = inlined_call_operand.vmem [shape: bf16[2,16,16,128], index: 4, kind: output, shape index: {}]
  %s5 = sld [smem:[#allocation0]]
  $region49: #{gsconvns_forward.4} parent=0
    _
  %s7 = ssub.s32 1, %s5
  %s8 = scalar_select 0, %s7, %s5
  loop: start=0, step=1, limit=4
  $region2: #{gsconvns_forward.4} parent=0 // loop_pre_header
    _
  $region3: #{gsconvns_forward.4} parent=0 // loop_header
    %s10 = sphi 0, %s14
    %p11 = scmp.ge.s32.totalorder %s10, 4
    %s17 = sphi 0, %s36
    %s18 = sphi 0, %s32
    %s19 = sphi 0, %s28
    %s20 = sphi 0, %s17
    %s21 = sphi 0, %s18
    %s22 = sphi 0, %s19
    %s23 = sphi 0, %s20
    %s24 = sphi 0, %s21
    %s25 = sphi 0, %s22
    %s43 = sphi 0, %s45
    %s46 = sphi 0, %s43
    %s47 = sphi 0, %s46
    %s63 = sphi 0, %s47
    %s77 = sphi 0, %s79
    %s80 = sphi 0, %s77
    %s81 = sphi 0, %s80
    %s97 = sphi 0, %s81
    %s103 = sphi 0, %s105
    %s106 = sphi 0, %s103
    %s107 = sphi 0, %s106
    %s123 = sphi 0, %s107
    %s129 = sphi 0, %s131
    %s132 = sphi 0, %s129
    %s133 = sphi 0, %s132
    %s149 = sphi 0, %s133
    %s159 = sphi 0, %s161
    %s162 = sphi 0, %s159
    %s163 = sphi 0, %s162
    %s179 = sphi 0, %s163
  $region4: #{gsconvns_forward.4} parent=0 // loop_header_branch
    %13 = sbr.rel (%p11) target = $region8
  $region5: #{gsconvns_forward.4} parent=0 // loop_body
    %s15 = ssub.s32 %s10, 1
    %s16 = ssub.s32 %s10, 2
    %s26 = sadd.s32 1, %s19
    %p27 = scmp.ge.s32.totalorder %s26, 1
    %s28 = scalar_select %p27, 0, %s26
    %s29 = sadd.s32 1, %s18
    %s30 = scalar_select %p27, %s29, %s18
    %p31 = scmp.ge.s32.totalorder %s30, 1
    %s32 = scalar_select %p31, 0, %s30
    %s33 = sadd.s32 1, %s17
    %s34 = scalar_select %p31, %s33, %s17
    %p35 = scmp.ge.s32.totalorder %s34, 2
    %s36 = scalar_select %p35, 0, %s34
    %s37 = ssub.s32 %s17, %s36
    %s38 = ssub.s32 %s19, %s28
    %s39 = sor.u32 %s37, %s38
    %s40 = ssub.s32 %s18, %s32
    %s41 = sor.u32 %s39, %s40
    %p42 = scmp.eq.s32.totalorder %s41, 0
    %s44 = sadd.s32 %s43, 1
    %s45 = scalar_select %p42, %s43, %s44
    %p48 = pneg %p42
    %p49 = scmp.eq.s32.totalorder %s10, 1
    %p50 = por %p48, %p49
    %p51 = scmp.ne.s32.totalorder %s43, %s46
    %p52 = scmp.eq.s32.totalorder %s10, 0
    %p53 = por %p51, %p52
    %p54 = scmp.ne.s32.totalorder %s43, %s46
    %p55 = scmp.eq.s32.totalorder %s15, 1
    %p56 = por %p54, %p55
    %p57 = scmp.ne.s32.totalorder %s46, %s47
    %p58 = scmp.eq.s32.totalorder %s15, 0
    %p59 = por %p57, %p58
    %p60 = scmp.ne.s32.totalorder %s46, %s47
    %p61 = scmp.eq.s32.totalorder %s16, 1
    %p62 = por %p60, %p61
    %p64 = scmp.ne.s32.totalorder %s47, %s63
    %p65 = scmp.eq.s32.totalorder %s16, 0
    %p66 = por %p64, %p65
    %s67 = sadd.s32 %s19, 1
    %s68 = smul.u32 %s67, 4
    %s69 = sadd.s32 %s28, 1
    %s70 = smul.u32 %s69, 4
    %s71 = ssub.s32 %s17, %s36
    %s72 = ssub.s32 %s68, %s70
    %s73 = sor.u32 %s71, %s72
    %s74 = ssub.s32 %s18, %s32
    %s75 = sor.u32 %s73, %s74
    %p76 = scmp.eq.s32.totalorder %s75, 0
    %s78 = sadd.s32 %s77, 1
    %s79 = scalar_select %p76, %s77, %s78
    %p82 = pneg %p76
    %p83 = scmp.eq.s32.totalorder %s10, 1
    %p84 = por %p82, %p83
    %p85 = scmp.ne.s32.totalorder %s77, %s80
    %p86 = scmp.eq.s32.totalorder %s10, 0
    %p87 = por %p85, %p86
    %p88 = scmp.ne.s32.totalorder %s77, %s80
    %p89 = scmp.eq.s32.totalorder %s15, 1
    %p90 = por %p88, %p89
    %p91 = scmp.ne.s32.totalorder %s80, %s81
    %p92 = scmp.eq.s32.totalorder %s15, 0
    %p93 = por %p91, %p92
    %p94 = scmp.ne.s32.totalorder %s80, %s81
    %p95 = scmp.eq.s32.totalorder %s16, 1
    %p96 = por %p94, %p95
    %p98 = scmp.ne.s32.totalorder %s81, %s97
    %p99 = scmp.eq.s32.totalorder %s16, 0
    %p100 = por %p98, %p99
    %s101 = ssub.s32 %s18, %s32
    %p102 = scmp.eq.s32.totalorder %s101, 0
    %s104 = sadd.s32 %s103, 1
    %s105 = scalar_select %p102, %s103, %s104
    %p108 = pneg %p102
    %p109 = scmp.eq.s32.totalorder %s10, 1
    %p110 = por %p108, %p109
    %p111 = scmp.ne.s32.totalorder %s103, %s106
    %p112 = scmp.eq.s32.totalorder %s10, 0
    %p113 = por %p111, %p112
    %p114 = scmp.ne.s32.totalorder %s103, %s106
    %p115 = scmp.eq.s32.totalorder %s15, 1
    %p116 = por %p114, %p115
    %p117 = scmp.ne.s32.totalorder %s106, %s107
    %p118 = scmp.eq.s32.totalorder %s15, 0
    %p119 = por %p117, %p118
    %p120 = scmp.ne.s32.totalorder %s106, %s107
    %p121 = scmp.eq.s32.totalorder %s16, 1
    %p122 = por %p120, %p121
    %p124 = scmp.ne.s32.totalorder %s107, %s123
    %p125 = scmp.eq.s32.totalorder %s16, 0
    %p126 = por %p124, %p125
    %s127 = ssub.s32 %s18, %s32
    %p128 = scmp.eq.s32.totalorder %s127, 0
    %s130 = sadd.s32 %s129, 1
    %s131 = scalar_select %p128, %s129, %s130
    %p134 = pneg %p128
    %p135 = scmp.eq.s32.totalorder %s10, 1
    %p136 = por %p134, %p135
    %p137 = scmp.ne.s32.totalorder %s129, %s132
    %p138 = scmp.eq.s32.totalorder %s10, 0
    %p139 = por %p137, %p138
    %p140 = scmp.ne.s32.totalorder %s129, %s132
    %p141 = scmp.eq.s32.totalorder %s15, 1
    %p142 = por %p140, %p141
    %p143 = scmp.ne.s32.totalorder %s132, %s133
    %p144 = scmp.eq.s32.totalorder %s15, 0
    %p145 = por %p143, %p144
    %p146 = scmp.ne.s32.totalorder %s132, %s133
    %p147 = scmp.eq.s32.totalorder %s16, 1
    %p148 = por %p146, %p147
    %p150 = scmp.ne.s32.totalorder %s133, %s149
    %p151 = scmp.eq.s32.totalorder %s16, 0
    %p152 = por %p150, %p151
    %s153 = ssub.s32 %s17, %s36
    %s154 = ssub.s32 %s19, %s28
    %s155 = sor.u32 %s153, %s154
    %s156 = ssub.s32 %s18, %s32
    %s157 = sor.u32 %s155, %s156
    %p158 = scmp.eq.s32.totalorder %s157, 0
    %s160 = sadd.s32 %s159, 1
    %s161 = scalar_select %p158, %s159, %s160
    %p164 = pneg %p158
    %p165 = scmp.eq.s32.totalorder %s10, 1
    %p166 = por %p164, %p165
    %p167 = scmp.ne.s32.totalorder %s159, %s162
    %p168 = scmp.eq.s32.totalorder %s10, 0
    %p169 = por %p167, %p168
    %p170 = scmp.ne.s32.totalorder %s159, %s162
    %p171 = scmp.eq.s32.totalorder %s15, 1
    %p172 = por %p170, %p171
    %p173 = scmp.ne.s32.totalorder %s162, %s163
    %p174 = scmp.eq.s32.totalorder %s15, 0
    %p175 = por %p173, %p174
    %p176 = scmp.ne.s32.totalorder %s162, %s163
    %p177 = scmp.eq.s32.totalorder %s16, 1
    %p178 = por %p176, %p177
    %p180 = scmp.ne.s32.totalorder %s163, %s179
    %p181 = scmp.eq.s32.totalorder %s16, 0
    %p182 = por %p180, %p181
    %p183 = scmp.le.s32.totalorder 1, %s10
    %p184 = scmp.lt.s32.totalorder %s10, 3
    %p185 = pnand %p183, %p184
    %p186 = pneg %p185
    // Predicated region
    $region9: #{gsconvns_forward.4} parent=5 // pred_check
      _
    $region10: #{gsconvns_forward.4} parent=5 // pred_check_branch
      %188 = sbr.rel (%p185) target = $region12
    $region11: #{gsconvns_forward.4} parent=5 // pred_region
      %s189 = ssub.s32 %s10, 1
      // Predicated region
      $region13: #{gsconvns_forward.4} parent=11 // pred_check
        %p190 = pneg %p119
      $region14: #{gsconvns_forward.4} parent=11 // pred_check_branch
        %192 = sbr.rel (%p190) target = $region16
      $region15: #{gsconvns_forward.4} parent=11 // pred_region
        %p193 = scmp.lt.s32.totalorder %s21, 0
        %s194 = scalar_select %p193, %s21, 0
        %s195 = smul.addr %s194, 8
        %s196 = scalar_lea.vmem %s2, %s195
      $region16: #{gsconvns_forward.4} parent=11 // pred_fallthru
        _
      // Predicated region
      $region17: #{gsconvns_forward.4} parent=11 // pred_check
        %p197 = pneg %p145
      $region18: #{gsconvns_forward.4} parent=11 // pred_check_branch
        %199 = sbr.rel (%p197) target = $region20
      $region19: #{gsconvns_forward.4} parent=11 // pred_region
        %p200 = scmp.lt.s32.totalorder %s21, 0
        %s201 = scalar_select %p200, %s21, 0
        %s202 = scalar_lea.vmem %s3, %s201
      $region20: #{gsconvns_forward.4} parent=11 // pred_fallthru
        _
    $region12: #{gsconvns_forward.4} parent=5 // pred_fallthru
      _
    %p203 = scmp.lt.s32.totalorder %s10, 2
    // Predicated region
    $region21: #{gsconvns_forward.4} parent=5 // pred_check
      %p204 = pneg %p203
    $region22: #{gsconvns_forward.4} parent=5 // pred_check_branch
      %206 = sbr.rel (%p204) target = $region24
    $region23: #{gsconvns_forward.4} parent=5 // pred_region
      // Predicated region
      $region25: #{gsconvns_forward.4} parent=23 // pred_check
        %p207 = pneg %p53
      $region26: #{gsconvns_forward.4} parent=23 // pred_check_branch
        %209 = sbr.rel (%p207) target = $region28
      $region27: #{gsconvns_forward.4} parent=23 // pred_region
        %s210 = smul.u32 16, %s19
        %s211 = ssub.s32 20, %s210
        %p212 = scmp.lt.s32.totalorder %s211, 16
        %s213 = scalar_select %p212, %s211, 16
        %s214 = smul.u32 64, %s213
        %s215 = smul.u32 %s214, 3
        %p216 = scmp.lt.s32.totalorder %s17, 1
        %s217 = scalar_select %p216, %s17, 1
        %p218 = scmp.lt.s32.totalorder %s210, 19
        %s219 = scalar_select %p218, %s210, 19
        %p220 = scmp.lt.s32.totalorder %s18, 0
        %s221 = scalar_select %p220, %s18, 0
        %s222 = smul.addr %s219, 3
        %s223 = sadd.s32 %s221, %s222
        %s224 = smul.addr %s217, 60
        %s225 = sadd.s32 %s223, %s224
        %s226 = smul.addr %s225, 4
        %s227 = scalar_lea.vmem %s0, %s226
        %s228 = smul.u32 16, %s19
        %s229 = ssub.s32 20, %s228
        %p230 = scmp.lt.s32.totalorder %s229, 16
        %s231 = scalar_select %p230, %s229, 16
        %s232 = smul.u32 64, %s231
        %s233 = smul.u32 %s232, 3
      $region28: #{gsconvns_forward.4} parent=23 // pred_fallthru
        _
      // Predicated region
      $region29: #{gsconvns_forward.4} parent=23 // pred_check
        %p234 = pneg %p87
      $region30: #{gsconvns_forward.4} parent=23 // pred_check_branch
        %236 = sbr.rel (%p234) target = $region32
      $region31: #{gsconvns_forward.4} parent=23 // pred_region
        %s237 = sadd.s32 %s19, 1
        %s238 = smul.u32 %s237, 4
        %s239 = smul.u32 4, %s238
        %p240 = scmp.lt.s32.totalorder %s17, 1
        %s241 = scalar_select %p240, %s17, 1
        %p242 = scmp.lt.s32.totalorder %s239, 19
        %s243 = scalar_select %p242, %s239, 19
        %p244 = scmp.lt.s32.totalorder %s18, 0
        %s245 = scalar_select %p244, %s18, 0
        %s246 = smul.addr %s243, 3
        %s247 = sadd.s32 %s245, %s246
        %s248 = smul.addr %s241, 60
        %s249 = sadd.s32 %s247, %s248
        %s250 = smul.addr %s249, 4
        %s251 = scalar_lea.vmem %s1, %s250
        %s252 = sadd.s32 %s19, 1
        %s253 = smul.u32 %s252, 4
        %s254 = smul.u32 4, %s253
      $region32: #{gsconvns_forward.4} parent=23 // pred_fallthru
        _
    $region24: #{gsconvns_forward.4} parent=5 // pred_fallthru
      _
    %p255 = scmp.le.s32.totalorder 1, %s10
    %p256 = scmp.lt.s32.totalorder %s10, 3
    %p257 = pnand %p255, %p256
    %p258 = pneg %p257
    // Predicated region
    $region33: #{gsconvns_forward.4} parent=5 // pred_check
      _
    $region34: #{gsconvns_forward.4} parent=5 // pred_check_branch
      %260 = sbr.rel (%p257) target = $region36
    $region35: #{gsconvns_forward.4} parent=5 // pred_region
      %s261 = ssub.s32 %s10, 1
      %s262 = smul.u32 16, %s22
      %s263 = ssub.s32 20, %s262
      %p264 = scmp.lt.s32.totalorder %s263, 16
      %s265 = scalar_select %p264, %s263, 16
      %s266 = smul.u32 64, %s265
      %s267 = smul.u32 %s266, 3
      %p268 = scmp.lt.s32.totalorder %s20, 1
      %s269 = scalar_select %p268, %s20, 1
      %p270 = scmp.lt.s32.totalorder %s262, 19
      %s271 = scalar_select %p270, %s262, 19
      %p272 = scmp.lt.s32.totalorder %s21, 0
      %s273 = scalar_select %p272, %s21, 0
      %s274 = smul.addr %s271, 3
      %s275 = sadd.s32 %s273, %s274
      %s276 = smul.addr %s269, 60
      %s277 = sadd.s32 %s275, %s276
      %s278 = smul.addr %s277, 4
      %s279 = scalar_lea.vmem %s0, %s278
      %p280 = pneg %p59
      %p281 = pneg %p56
      %s282 = sadd.s32 %s22, 1
      %s283 = smul.u32 %s282, 4
      %s284 = smul.u32 4, %s283
      %p285 = scmp.lt.s32.totalorder %s20, 1
      %s286 = scalar_select %p285, %s20, 1
      %p287 = scmp.lt.s32.totalorder %s284, 19
      %s288 = scalar_select %p287, %s284, 19
      %p289 = scmp.lt.s32.totalorder %s21, 0
      %s290 = scalar_select %p289, %s21, 0
      %s291 = smul.addr %s288, 3
      %s292 = sadd.s32 %s290, %s291
      %s293 = smul.addr %s286, 60
      %s294 = sadd.s32 %s292, %s293
      %s295 = smul.addr %s294, 4
      %s296 = scalar_lea.vmem %s1, %s295
      %p297 = pneg %p93
      %p298 = pneg %p90
      %p299 = scmp.lt.s32.totalorder %s21, 0
      %s300 = scalar_select %p299, %s21, 0
      %s301 = smul.addr %s300, 8
      %s302 = scalar_lea.vmem %s2, %s301
      %p303 = pneg %p119
      %p304 = pneg %p116
      %p305 = scmp.lt.s32.totalorder %s21, 0
      %s306 = scalar_select %p305, %s21, 0
      %s307 = scalar_lea.vmem %s3, %s306
      %p308 = pneg %p145
      %p309 = pneg %p142
      %p310 = pneg %p175
      %p311 = pneg %p172
      %s312 = smul.u32 16, %s22
      %p313 = scmp.lt.s32.totalorder %s20, 1
      %s314 = scalar_select %p313, %s20, 1
      %p315 = scmp.lt.s32.totalorder %s312, 15
      %s316 = scalar_select %p315, %s312, 15
      %p317 = scmp.lt.s32.totalorder %s21, 0
      %s318 = scalar_select %p317, %s21, 0
      %s319 = smul.addr %s316, 2
      %s320 = sadd.s32 %s318, %s319
      %s321 = smul.addr %s314, 32
      %s322 = sadd.s32 %s320, %s321
      %s323 = smul.addr %s322, 4
      %s324 = scalar_lea.vmem %s4, %s323
      %s325 = smul.u32 16, %s22
      %s326 = ssub.s32 20, %s325
      %p327 = scmp.lt.s32.totalorder %s326, 16
      %s328 = scalar_select %p327, %s326, 16
      %s329 = smul.u32 64, %s328
      %s330 = smul.u32 %s329, 3
      %p331 = scmp.lt.s32.totalorder %s20, 1
      %s332 = scalar_select %p331, %s20, 1
      %p333 = scmp.lt.s32.totalorder %s325, 19
      %s334 = scalar_select %p333, %s325, 19
      %p335 = scmp.lt.s32.totalorder %s21, 0
      %s336 = scalar_select %p335, %s21, 0
      %s337 = smul.addr %s334, 3
      %s338 = sadd.s32 %s336, %s337
      %s339 = smul.addr %s332, 60
      %s340 = sadd.s32 %s338, %s339
      %s341 = smul.addr %s340, 4
      %s342 = scalar_lea.vmem %s0, %s341
      %s343 = smul.u32 16, %s22
      %s344 = ssub.s32 20, %s343
      %p345 = scmp.lt.s32.totalorder %s344, 16
      %s346 = scalar_select %p345, %s344, 16
      %s347 = smul.u32 64, %s346
      %s348 = smul.u32 %s347, 3
      %s349 = sadd.s32 %s22, 1
      %s350 = smul.u32 %s349, 4
      %s351 = smul.u32 4, %s350
      %p352 = scmp.lt.s32.totalorder %s20, 1
      %s353 = scalar_select %p352, %s20, 1
      %p354 = scmp.lt.s32.totalorder %s351, 19
      %s355 = scalar_select %p354, %s351, 19
      %p356 = scmp.lt.s32.totalorder %s21, 0
      %s357 = scalar_select %p356, %s21, 0
      %s358 = smul.addr %s355, 3
      %s359 = sadd.s32 %s357, %s358
      %s360 = smul.addr %s353, 60
      %s361 = sadd.s32 %s359, %s360
      %s362 = smul.addr %s361, 4
      %s363 = scalar_lea.vmem %s1, %s362
      %s364 = sadd.s32 %s22, 1
      %s365 = smul.u32 %s364, 4
      %s366 = smul.u32 4, %s365
      %p367 = scmp.lt.s32.totalorder %s21, 0
      %s368 = scalar_select %p367, %s21, 0
      %s369 = smul.addr %s368, 8
      %s370 = scalar_lea.vmem %s2, %s369
      %p371 = scmp.lt.s32.totalorder %s21, 0
      %s372 = scalar_select %p371, %s21, 0
      %s373 = scalar_lea.vmem %s3, %s372
      %s374 = smul.u32 16, %s22
      %p375 = scmp.lt.s32.totalorder %s20, 1
      %s376 = scalar_select %p375, %s20, 1
      %p377 = scmp.lt.s32.totalorder %s374, 15
      %s378 = scalar_select %p377, %s374, 15
      %p379 = scmp.lt.s32.totalorder %s21, 0
      %s380 = scalar_select %p379, %s21, 0
      %s381 = smul.addr %s378, 2
      %s382 = sadd.s32 %s380, %s381
      %s383 = smul.addr %s376, 32
      %s384 = sadd.s32 %s382, %s383
      %s385 = smul.addr %s384, 4
      %s386 = scalar_lea.vmem %s4, %s385
      %s387 = smul.u32 16, %s22
      %v388 = vld [vmem:[%s342] sm:$0xf]
      %v389 = vld [vmem:[%s342 + $0x4] sm:$0xf]
      %v390 = vld [vmem:[%s342 + $0x8] sm:$0x3]
      %v391 = vld [vmem:[%s342 + $0xc] sm:$0xf]
      %v392 = vld [vmem:[%s342 + $0x10] sm:$0xf]
      %v393 = vld [vmem:[%s342 + $0x14] sm:$0x3]
      %v394 = vld [vmem:[%s342 + $0x18] sm:$0xf]
      %v395 = vld [vmem:[%s342 + $0x1c] sm:$0xf]
      %v396 = vld [vmem:[%s342 + $0x20] sm:$0x3]
      %v397 = vld [vmem:[%s342 + $0x24] sm:$0xf]
      %v398 = vld [vmem:[%s342 + $0x28] sm:$0xf]
      %v399 = vld [vmem:[%s342 + $0x2c] sm:$0x3]
      %v400 = vld [vmem:[%s342 + $0x30] sm:$0xf]
      %v401 = vld [vmem:[%s342 + $0x34] sm:$0xf]
      %v402 = vld [vmem:[%s342 + $0x38] sm:$0x3]
      %v403 = vld [vmem:[%s342 + $0x3c] sm:$0xf]
      %v404 = vld [vmem:[%s342 + $0x40] sm:$0xf]
      %v405 = vld [vmem:[%s342 + $0x44] sm:$0x3]
      %v406 = vld [vmem:[%s342 + $0x48] sm:$0xf]
      %v407 = vld [vmem:[%s342 + $0x4c] sm:$0xf]
      %v408 = vld [vmem:[%s342 + $0x50] sm:$0x3]
      %v409 = vld [vmem:[%s342 + $0x54] sm:$0xf]
      %v410 = vld [vmem:[%s342 + $0x58] sm:$0xf]
      %v411 = vld [vmem:[%s342 + $0x5c] sm:$0x3]
      %v412 = vld [vmem:[%s342 + $0x60] sm:$0xf]
      %v413 = vld [vmem:[%s342 + $0x64] sm:$0xf]
      %v414 = vld [vmem:[%s342 + $0x68] sm:$0x3]
      %v415 = vld [vmem:[%s342 + $0x6c] sm:$0xf]
      %v416 = vld [vmem:[%s342 + $0x70] sm:$0xf]
      %v417 = vld [vmem:[%s342 + $0x74] sm:$0x3]
      %v418 = vld [vmem:[%s342 + $0x78] sm:$0xf]
      %v419 = vld [vmem:[%s342 + $0x7c] sm:$0xf]
      %v420 = vld [vmem:[%s342 + $0x80] sm:$0x3]
      %v421 = vld [vmem:[%s342 + $0x84] sm:$0xf]
      %v422 = vld [vmem:[%s342 + $0x88] sm:$0xf]
      %v423 = vld [vmem:[%s342 + $0x8c] sm:$0x3]
      %v424 = vld [vmem:[%s342 + $0x90] sm:$0xf]
      %v425 = vld [vmem:[%s342 + $0x94] sm:$0xf]
      %v426 = vld [vmem:[%s342 + $0x98] sm:$0x3]
      %v427 = vld [vmem:[%s342 + $0x9c] sm:$0xf]
      %v428 = vld [vmem:[%s342 + $0xa0] sm:$0xf]
      %v429 = vld [vmem:[%s342 + $0xa4] sm:$0x3]
      %v430 = vld [vmem:[%s342 + $0xa8] sm:$0xf]
      %v431 = vld [vmem:[%s342 + $0xac] sm:$0xf]
      %v432 = vld [vmem:[%s342 + $0xb0] sm:$0x3]
      %v433 = vld [vmem:[%s342 + $0xb4] sm:$0xf]
      %v434 = vld [vmem:[%s342 + $0xb8] sm:$0xf]
      %v435 = vld [vmem:[%s342 + $0xbc] sm:$0x3]
      %v436 = vld [vmem:[%s363] sm:$0xf]
      %v437 = vld [vmem:[%s363 + $0x4] sm:$0xf]
      %v438 = vld [vmem:[%s363 + $0x8] sm:$0x3]
      %v439 = vld [vmem:[%s363 + $0xc] sm:$0xf]
      %v440 = vld [vmem:[%s363 + $0x10] sm:$0xf]
      %v441 = vld [vmem:[%s363 + $0x14] sm:$0x3]
      %v442 = vld [vmem:[%s363 + $0x18] sm:$0xf]
      %v443 = vld [vmem:[%s363 + $0x1c] sm:$0xf]
      %v444 = vld [vmem:[%s363 + $0x20] sm:$0x3]
      %v445 = vld [vmem:[%s363 + $0x24] sm:$0xf]
      %v446 = vld [vmem:[%s363 + $0x28] sm:$0xf]
      %v447 = vld [vmem:[%s363 + $0x2c] sm:$0x3]
      %v448 = vunpack.c.l.bf16 %v388
      %v449 = vunpack.c.l.bf16 %v389
      %v450 = vunpack.c.l.bf16 %v390
      %v451 = vunpack.c.l.bf16 %v391
      %v452 = vunpack.c.l.bf16 %v392
      %v453 = vunpack.c.l.bf16 %v393
      %v454 = vunpack.c.l.bf16 %v394
      %v455 = vunpack.c.l.bf16 %v395
      %v456 = vunpack.c.l.bf16 %v396
      %v457 = vunpack.c.l.bf16 %v397
      %v458 = vunpack.c.l.bf16 %v398
      %v459 = vunpack.c.l.bf16 %v399
      %v460 = vunpack.c.l.bf16 %v400
      %v461 = vunpack.c.l.bf16 %v401
      %v462 = vunpack.c.l.bf16 %v402
      %v463 = vunpack.c.l.bf16 %v403
      %v464 = vunpack.c.l.bf16 %v404
      %v465 = vunpack.c.l.bf16 %v405
      %v466 = vunpack.c.l.bf16 %v406
      %v467 = vunpack.c.l.bf16 %v407
      %v468 = vunpack.c.l.bf16 %v408
      %v469 = vunpack.c.l.bf16 %v409
      %v470 = vunpack.c.l.bf16 %v410
      %v471 = vunpack.c.l.bf16 %v411
      %v472 = vunpack.c.l.bf16 %v412
      %v473 = vunpack.c.l.bf16 %v413
      %v474 = vunpack.c.l.bf16 %v414
      %v475 = vunpack.c.l.bf16 %v415
      %v476 = vunpack.c.l.bf16 %v416
      %v477 = vunpack.c.l.bf16 %v417
      %v478 = vunpack.c.l.bf16 %v418
      %v479 = vunpack.c.l.bf16 %v419
      %v480 = vunpack.c.l.bf16 %v420
      %v481 = vunpack.c.l.bf16 %v421
      %v482 = vunpack.c.l.bf16 %v422
      %v483 = vunpack.c.l.bf16 %v423
      %v484 = vunpack.c.l.bf16 %v424
      %v485 = vunpack.c.l.bf16 %v425
      %v486 = vunpack.c.l.bf16 %v426
      %v487 = vunpack.c.l.bf16 %v427
      %v488 = vunpack.c.l.bf16 %v428
      %v489 = vunpack.c.l.bf16 %v429
      %v490 = vunpack.c.l.bf16 %v430
      %v491 = vunpack.c.l.bf16 %v431
      %v492 = vunpack.c.l.bf16 %v432
      %v493 = vunpack.c.l.bf16 %v433
      %v494 = vunpack.c.l.bf16 %v434
      %v495 = vunpack.c.l.bf16 %v435
      %v496 = vld [vmem:[%s370] sm:$0x1]
      %v497 = vlaneseq
      %v498 = vshrl.u32 %v497, 7
      %v499 = vsub.s32 0, %v498
      %v500 = vrot.slane %v496, %v499
      %v501 = vmul.f32 %v448, %v500
      %v502 = vmul.f32 %v449, %v500
      %v503 = vmul.f32 %v451, %v500
      %v504 = vmul.f32 %v452, %v500
      %v505 = vmul.f32 %v454, %v500
      %v506 = vmul.f32 %v455, %v500
      %v507 = vmul.f32 %v457, %v500
      %v508 = vmul.f32 %v458, %v500
      %v509 = vmul.f32 %v460, %v500
      %v510 = vmul.f32 %v461, %v500
      %v511 = vmul.f32 %v463, %v500
      %v512 = vmul.f32 %v464, %v500
      %v513 = vmul.f32 %v466, %v500
      %v514 = vmul.f32 %v467, %v500
      %v515 = vmul.f32 %v469, %v500
      %v516 = vmul.f32 %v470, %v500
      %v517 = vmul.f32 %v472, %v500
      %v518 = vmul.f32 %v473, %v500
      %v519 = vmul.f32 %v475, %v500
      %v520 = vmul.f32 %v476, %v500
      %v521 = vmul.f32 %v478, %v500
      %v522 = vmul.f32 %v479, %v500
      %v523 = vmul.f32 %v481, %v500
      %v524 = vmul.f32 %v482, %v500
      %v525 = vmul.f32 %v484, %v500
      %v526 = vmul.f32 %v485, %v500
      %v527 = vmul.f32 %v487, %v500
      %v528 = vmul.f32 %v488, %v500
      %v529 = vmul.f32 %v490, %v500
      %v530 = vmul.f32 %v491, %v500
      %v531 = vmul.f32 %v493, %v500
      %v532 = vmul.f32 %v494, %v500
      %v533 = vadd.f32 %v501, 0.0
      %v534 = vadd.f32 %v502, 0.0
      %v535 = vadd.f32 %v503, 0.0
      %v536 = vadd.f32 %v504, 0.0
      %v537 = vadd.f32 %v505, 0.0
      %v538 = vadd.f32 %v506, 0.0
      %v539 = vadd.f32 %v507, 0.0
      %v540 = vadd.f32 %v508, 0.0
      %v541 = vadd.f32 %v509, 0.0
      %v542 = vadd.f32 %v510, 0.0
      %v543 = vadd.f32 %v511, 0.0
      %v544 = vadd.f32 %v512, 0.0
      %v545 = vadd.f32 %v513, 0.0
      %v546 = vadd.f32 %v514, 0.0
      %v547 = vadd.f32 %v515, 0.0
      %v548 = vadd.f32 %v516, 0.0
      %v549 = vadd.f32 %v517, 0.0
      %v550 = vadd.f32 %v518, 0.0
      %v551 = vadd.f32 %v519, 0.0
      %v552 = vadd.f32 %v520, 0.0
      %v553 = vadd.f32 %v521, 0.0
      %v554 = vadd.f32 %v522, 0.0
      %v555 = vadd.f32 %v523, 0.0
      %v556 = vadd.f32 %v524, 0.0
      %v557 = vadd.f32 %v525, 0.0
      %v558 = vadd.f32 %v526, 0.0
      %v559 = vadd.f32 %v527, 0.0
      %v560 = vadd.f32 %v528, 0.0
      %v561 = vadd.f32 %v529, 0.0
      %v562 = vadd.f32 %v530, 0.0
      %v563 = vadd.f32 %v531, 0.0
      %v564 = vadd.f32 %v532, 0.0
      %v565 = vld [vmem:[%s370 + $0x1] sm:$0x1]
      %v566 = vlaneseq
      %v567 = vshrl.u32 %v566, 7
      %v568 = vsub.s32 0, %v567
      %v569 = vrot.slane %v565, %v568
      %v570 = vmul.f32 %v448, %v569
      %v571 = vmul.f32 %v449, %v569
      %v572 = vmul.f32 %v450, %v569
      %v573 = vmul.f32 %v451, %v569
      %v574 = vmul.f32 %v452, %v569
      %v575 = vmul.f32 %v453, %v569
      %v576 = vmul.f32 %v454, %v569
      %v577 = vmul.f32 %v455, %v569
      %v578 = vmul.f32 %v456, %v569
      %v579 = vmul.f32 %v457, %v569
      %v580 = vmul.f32 %v458, %v569
      %v581 = vmul.f32 %v459, %v569
      %v582 = vmul.f32 %v460, %v569
      %v583 = vmul.f32 %v461, %v569
      %v584 = vmul.f32 %v462, %v569
      %v585 = vmul.f32 %v463, %v569
      %v586 = vmul.f32 %v464, %v569
      %v587 = vmul.f32 %v465, %v569
      %v588 = vmul.f32 %v466, %v569
      %v589 = vmul.f32 %v467, %v569
      %v590 = vmul.f32 %v468, %v569
      %v591 = vmul.f32 %v469, %v569
      %v592 = vmul.f32 %v470, %v569
      %v593 = vmul.f32 %v471, %v569
      %v594 = vmul.f32 %v472, %v569
      %v595 = vmul.f32 %v473, %v569
      %v596 = vmul.f32 %v474, %v569
      %v597 = vmul.f32 %v475, %v569
      %v598 = vmul.f32 %v476, %v569
      %v599 = vmul.f32 %v477, %v569
      %v600 = vmul.f32 %v478, %v569
      %v601 = vmul.f32 %v479, %v569
      %v602 = vmul.f32 %v480, %v569
      %v603 = vmul.f32 %v481, %v569
      %v604 = vmul.f32 %v482, %v569
      %v605 = vmul.f32 %v483, %v569
      %v606 = vmul.f32 %v484, %v569
      %v607 = vmul.f32 %v485, %v569
      %v608 = vmul.f32 %v486, %v569
      %v609 = vmul.f32 %v487, %v569
      %v610 = vmul.f32 %v488, %v569
      %v611 = vmul.f32 %v489, %v569
      %v612 = vmul.f32 %v490, %v569
      %v613 = vmul.f32 %v491, %v569
      %v614 = vmul.f32 %v492, %v569
      %v615 = vmul.f32 %v493, %v569
      %v616 = vmul.f32 %v494, %v569
      %v617 = vmul.f32 %v495, %v569
      %vm666 = vcmask 1046528
      %v667 = vrot.slane %v570, 1
      %v668 = vrot.slane %v571, 1
      %v669 = vsel %vm666, %v667, %v668
      %v670 = vrot.slane %v572, 1
      %v671 = vsel %vm666, %v668, %v670
      %v672 = vrot.slane %v573, 1
      %v673 = vrot.slane %v574, 1
      %v674 = vsel %vm666, %v672, %v673
      %v675 = vrot.slane %v575, 1
      %v676 = vsel %vm666, %v673, %v675
      %v677 = vrot.slane %v576, 1
      %v678 = vrot.slane %v577, 1
      %v679 = vsel %vm666, %v677, %v678
      %v680 = vrot.slane %v578, 1
      %v681 = vsel %vm666, %v678, %v680
      %v682 = vrot.slane %v579, 1
      %v683 = vrot.slane %v580, 1
      %v684 = vsel %vm666, %v682, %v683
      %v685 = vrot.slane %v581, 1
      %v686 = vsel %vm666, %v683, %v685
      %v687 = vrot.slane %v582, 1
      %v688 = vrot.slane %v583, 1
      %v689 = vsel %vm666, %v687, %v688
      %v690 = vrot.slane %v584, 1
      %v691 = vsel %vm666, %v688, %v690
      %v692 = vrot.slane %v585, 1
      %v693 = vrot.slane %v586, 1
      %v694 = vsel %vm666, %v692, %v693
      %v695 = vrot.slane %v587, 1
      %v696 = vsel %vm666, %v693, %v695
      %v697 = vrot.slane %v588, 1
      %v698 = vrot.slane %v589, 1
      %v699 = vsel %vm666, %v697, %v698
      %v700 = vrot.slane %v590, 1
      %v701 = vsel %vm666, %v698, %v700
      %v702 = vrot.slane %v591, 1
      %v703 = vrot.slane %v592, 1
      %v704 = vsel %vm666, %v702, %v703
      %v705 = vrot.slane %v593, 1
      %v706 = vsel %vm666, %v703, %v705
      %v707 = vrot.slane %v594, 1
      %v708 = vrot.slane %v595, 1
      %v709 = vsel %vm666, %v707, %v708
      %v710 = vrot.slane %v596, 1
      %v711 = vsel %vm666, %v708, %v710
      %v712 = vrot.slane %v597, 1
      %v713 = vrot.slane %v598, 1
      %v714 = vsel %vm666, %v712, %v713
      %v715 = vrot.slane %v599, 1
      %v716 = vsel %vm666, %v713, %v715
      %v717 = vrot.slane %v600, 1
      %v718 = vrot.slane %v601, 1
      %v719 = vsel %vm666, %v717, %v718
      %v720 = vrot.slane %v602, 1
      %v721 = vsel %vm666, %v718, %v720
      %v722 = vrot.slane %v603, 1
      %v723 = vrot.slane %v604, 1
      %v724 = vsel %vm666, %v722, %v723
      %v725 = vrot.slane %v605, 1
      %v726 = vsel %vm666, %v723, %v725
      %v727 = vrot.slane %v606, 1
      %v728 = vrot.slane %v607, 1
      %v729 = vsel %vm666, %v727, %v728
      %v730 = vrot.slane %v608, 1
      %v731 = vsel %vm666, %v728, %v730
      %v732 = vrot.slane %v609, 1
      %v733 = vrot.slane %v610, 1
      %v734 = vsel %vm666, %v732, %v733
      %v735 = vrot.slane %v611, 1
      %v736 = vsel %vm666, %v733, %v735
      %v737 = vrot.slane %v612, 1
      %v738 = vrot.slane %v613, 1
      %v739 = vsel %vm666, %v737, %v738
      %v740 = vrot.slane %v614, 1
      %v741 = vsel %vm666, %v738, %v740
      %v742 = vrot.slane %v615, 1
      %v743 = vrot.slane %v616, 1
      %v744 = vsel %vm666, %v742, %v743
      %v745 = vrot.slane %v617, 1
      %v746 = vsel %vm666, %v743, %v745
      %v779 = vadd.f32 %v533, %v669
      %v780 = vadd.f32 %v534, %v671
      %v781 = vadd.f32 %v535, %v674
      %v782 = vadd.f32 %v536, %v676
      %v783 = vadd.f32 %v537, %v679
      %v784 = vadd.f32 %v538, %v681
      %v785 = vadd.f32 %v539, %v684
      %v786 = vadd.f32 %v540, %v686
      %v787 = vadd.f32 %v541, %v689
      %v788 = vadd.f32 %v542, %v691
      %v789 = vadd.f32 %v543, %v694
      %v790 = vadd.f32 %v544, %v696
      %v791 = vadd.f32 %v545, %v699
      %v792 = vadd.f32 %v546, %v701
      %v793 = vadd.f32 %v547, %v704
      %v794 = vadd.f32 %v548, %v706
      %v795 = vadd.f32 %v549, %v709
      %v796 = vadd.f32 %v550, %v711
      %v797 = vadd.f32 %v551, %v714
      %v798 = vadd.f32 %v552, %v716
      %v799 = vadd.f32 %v553, %v719
      %v800 = vadd.f32 %v554, %v721
      %v801 = vadd.f32 %v555, %v724
      %v802 = vadd.f32 %v556, %v726
      %v803 = vadd.f32 %v557, %v729
      %v804 = vadd.f32 %v558, %v731
      %v805 = vadd.f32 %v559, %v734
      %v806 = vadd.f32 %v560, %v736
      %v807 = vadd.f32 %v561, %v739
      %v808 = vadd.f32 %v562, %v741
      %v809 = vadd.f32 %v563, %v744
      %v810 = vadd.f32 %v564, %v746
      %v811 = vld [vmem:[%s370 + $0x2] sm:$0x1]
      %v812 = vlaneseq
      %v813 = vshrl.u32 %v812, 7
      %v814 = vsub.s32 0, %v813
      %v815 = vrot.slane %v811, %v814
      %v816 = vmul.f32 %v448, %v815
      %v817 = vmul.f32 %v449, %v815
      %v818 = vmul.f32 %v450, %v815
      %v819 = vmul.f32 %v451, %v815
      %v820 = vmul.f32 %v452, %v815
      %v821 = vmul.f32 %v453, %v815
      %v822 = vmul.f32 %v454, %v815
      %v823 = vmul.f32 %v455, %v815
      %v824 = vmul.f32 %v456, %v815
      %v825 = vmul.f32 %v457, %v815
      %v826 = vmul.f32 %v458, %v815
      %v827 = vmul.f32 %v459, %v815
      %v828 = vmul.f32 %v460, %v815
      %v829 = vmul.f32 %v461, %v815
      %v830 = vmul.f32 %v462, %v815
      %v831 = vmul.f32 %v463, %v815
      %v832 = vmul.f32 %v464, %v815
      %v833 = vmul.f32 %v465, %v815
      %v834 = vmul.f32 %v466, %v815
      %v835 = vmul.f32 %v467, %v815
      %v836 = vmul.f32 %v468, %v815
      %v837 = vmul.f32 %v469, %v815
      %v838 = vmul.f32 %v470, %v815
      %v839 = vmul.f32 %v471, %v815
      %v840 = vmul.f32 %v472, %v815
      %v841 = vmul.f32 %v473, %v815
      %v842 = vmul.f32 %v474, %v815
      %v843 = vmul.f32 %v475, %v815
      %v844 = vmul.f32 %v476, %v815
      %v845 = vmul.f32 %v477, %v815
      %v846 = vmul.f32 %v478, %v815
      %v847 = vmul.f32 %v479, %v815
      %v848 = vmul.f32 %v480, %v815
      %v849 = vmul.f32 %v481, %v815
      %v850 = vmul.f32 %v482, %v815
      %v851 = vmul.f32 %v483, %v815
      %v852 = vmul.f32 %v484, %v815
      %v853 = vmul.f32 %v485, %v815
      %v854 = vmul.f32 %v486, %v815
      %v855 = vmul.f32 %v487, %v815
      %v856 = vmul.f32 %v488, %v815
      %v857 = vmul.f32 %v489, %v815
      %v858 = vmul.f32 %v490, %v815
      %v859 = vmul.f32 %v491, %v815
      %v860 = vmul.f32 %v492, %v815
      %v861 = vmul.f32 %v493, %v815
      %v862 = vmul.f32 %v494, %v815
      %v863 = vmul.f32 %v495, %v815
      %vm912 = vcmask 1045504
      %v913 = vrot.slane %v816, 2
      %v914 = vrot.slane %v817, 2
      %v915 = vsel %vm912, %v913, %v914
      %v916 = vrot.slane %v818, 2
      %v917 = vsel %vm912, %v914, %v916
      %v918 = vrot.slane %v819, 2
      %v919 = vrot.slane %v820, 2
      %v920 = vsel %vm912, %v918, %v919
      %v921 = vrot.slane %v821, 2
      %v922 = vsel %vm912, %v919, %v921
      %v923 = vrot.slane %v822, 2
      %v924 = vrot.slane %v823, 2
      %v925 = vsel %vm912, %v923, %v924
      %v926 = vrot.slane %v824, 2
      %v927 = vsel %vm912, %v924, %v926
      %v928 = vrot.slane %v825, 2
      %v929 = vrot.slane %v826, 2
      %v930 = vsel %vm912, %v928, %v929
      %v931 = vrot.slane %v827, 2
      %v932 = vsel %vm912, %v929, %v931
      %v933 = vrot.slane %v828, 2
      %v934 = vrot.slane %v829, 2
      %v935 = vsel %vm912, %v933, %v934
      %v936 = vrot.slane %v830, 2
      %v937 = vsel %vm912, %v934, %v936
      %v938 = vrot.slane %v831, 2
      %v939 = vrot.slane %v832, 2
      %v940 = vsel %vm912, %v938, %v939
      %v941 = vrot.slane %v833, 2
      %v942 = vsel %vm912, %v939, %v941
      %v943 = vrot.slane %v834, 2
      %v944 = vrot.slane %v835, 2
      %v945 = vsel %vm912, %v943, %v944
      %v946 = vrot.slane %v836, 2
      %v947 = vsel %vm912, %v944, %v946
      %v948 = vrot.slane %v837, 2
      %v949 = vrot.slane %v838, 2
      %v950 = vsel %vm912, %v948, %v949
      %v951 = vrot.slane %v839, 2
      %v952 = vsel %vm912, %v949, %v951
      %v953 = vrot.slane %v840, 2
      %v954 = vrot.slane %v841, 2
      %v955 = vsel %vm912, %v953, %v954
      %v956 = vrot.slane %v842, 2
      %v957 = vsel %vm912, %v954, %v956
      %v958 = vrot.slane %v843, 2
      %v959 = vrot.slane %v844, 2
      %v960 = vsel %vm912, %v958, %v959
      %v961 = vrot.slane %v845, 2
      %v962 = vsel %vm912, %v959, %v961
      %v963 = vrot.slane %v846, 2
      %v964 = vrot.slane %v847, 2
      %v965 = vsel %vm912, %v963, %v964
      %v966 = vrot.slane %v848, 2
      %v967 = vsel %vm912, %v964, %v966
      %v968 = vrot.slane %v849, 2
      %v969 = vrot.slane %v850, 2
      %v970 = vsel %vm912, %v968, %v969
      %v971 = vrot.slane %v851, 2
      %v972 = vsel %vm912, %v969, %v971
      %v973 = vrot.slane %v852, 2
      %v974 = vrot.slane %v853, 2
      %v975 = vsel %vm912, %v973, %v974
      %v976 = vrot.slane %v854, 2
      %v977 = vsel %vm912, %v974, %v976
      %v978 = vrot.slane %v855, 2
      %v979 = vrot.slane %v856, 2
      %v980 = vsel %vm912, %v978, %v979
      %v981 = vrot.slane %v857, 2
      %v982 = vsel %vm912, %v979, %v981
      %v983 = vrot.slane %v858, 2
      %v984 = vrot.slane %v859, 2
      %v985 = vsel %vm912, %v983, %v984
      %v986 = vrot.slane %v860, 2
      %v987 = vsel %vm912, %v984, %v986
      %v988 = vrot.slane %v861, 2
      %v989 = vrot.slane %v862, 2
      %v990 = vsel %vm912, %v988, %v989
      %v991 = vrot.slane %v863, 2
      %v992 = vsel %vm912, %v989, %v991
      %v1025 = vadd.f32 %v779, %v915
      %v1026 = vadd.f32 %v780, %v917
      %v1027 = vadd.f32 %v781, %v920
      %v1028 = vadd.f32 %v782, %v922
      %v1029 = vadd.f32 %v783, %v925
      %v1030 = vadd.f32 %v784, %v927
      %v1031 = vadd.f32 %v785, %v930
      %v1032 = vadd.f32 %v786, %v932
      %v1033 = vadd.f32 %v787, %v935
      %v1034 = vadd.f32 %v788, %v937
      %v1035 = vadd.f32 %v789, %v940
      %v1036 = vadd.f32 %v790, %v942
      %v1037 = vadd.f32 %v791, %v945
      %v1038 = vadd.f32 %v792, %v947
      %v1039 = vadd.f32 %v793, %v950
      %v1040 = vadd.f32 %v794, %v952
      %v1041 = vadd.f32 %v795, %v955
      %v1042 = vadd.f32 %v796, %v957
      %v1043 = vadd.f32 %v797, %v960
      %v1044 = vadd.f32 %v798, %v962
      %v1045 = vadd.f32 %v799, %v965
      %v1046 = vadd.f32 %v800, %v967
      %v1047 = vadd.f32 %v801, %v970
      %v1048 = vadd.f32 %v802, %v972
      %v1049 = vadd.f32 %v803, %v975
      %v1050 = vadd.f32 %v804, %v977
      %v1051 = vadd.f32 %v805, %v980
      %v1052 = vadd.f32 %v806, %v982
      %v1053 = vadd.f32 %v807, %v985
      %v1054 = vadd.f32 %v808, %v987
      %v1055 = vadd.f32 %v809, %v990
      %v1056 = vadd.f32 %v810, %v992
      %v1057 = vld [vmem:[%s370 + $0x3] sm:$0x1]
      %v1058 = vlaneseq
      %v1059 = vshrl.u32 %v1058, 7
      %v1060 = vsub.s32 0, %v1059
      %v1061 = vrot.slane %v1057, %v1060
      %v1062 = vmul.f32 %v448, %v1061
      %v1063 = vmul.f32 %v449, %v1061
      %v1064 = vmul.f32 %v450, %v1061
      %v1065 = vmul.f32 %v451, %v1061
      %v1066 = vmul.f32 %v452, %v1061
      %v1067 = vmul.f32 %v453, %v1061
      %v1068 = vmul.f32 %v454, %v1061
      %v1069 = vmul.f32 %v455, %v1061
      %v1070 = vmul.f32 %v456, %v1061
      %v1071 = vmul.f32 %v457, %v1061
      %v1072 = vmul.f32 %v458, %v1061
      %v1073 = vmul.f32 %v459, %v1061
      %v1074 = vmul.f32 %v460, %v1061
      %v1075 = vmul.f32 %v461, %v1061
      %v1076 = vmul.f32 %v462, %v1061
      %v1077 = vmul.f32 %v463, %v1061
      %v1078 = vmul.f32 %v464, %v1061
      %v1079 = vmul.f32 %v465, %v1061
      %v1080 = vmul.f32 %v466, %v1061
      %v1081 = vmul.f32 %v467, %v1061
      %v1082 = vmul.f32 %v468, %v1061
      %v1083 = vmul.f32 %v469, %v1061
      %v1084 = vmul.f32 %v470, %v1061
      %v1085 = vmul.f32 %v471, %v1061
      %v1086 = vmul.f32 %v472, %v1061
      %v1087 = vmul.f32 %v473, %v1061
      %v1088 = vmul.f32 %v474, %v1061
      %v1089 = vmul.f32 %v475, %v1061
      %v1090 = vmul.f32 %v476, %v1061
      %v1091 = vmul.f32 %v477, %v1061
      %v1092 = vmul.f32 %v478, %v1061
      %v1093 = vmul.f32 %v479, %v1061
      %v1094 = vmul.f32 %v480, %v1061
      %v1095 = vmul.f32 %v481, %v1061
      %v1096 = vmul.f32 %v482, %v1061
      %v1097 = vmul.f32 %v483, %v1061
      %v1098 = vmul.f32 %v484, %v1061
      %v1099 = vmul.f32 %v485, %v1061
      %v1100 = vmul.f32 %v486, %v1061
      %v1101 = vmul.f32 %v487, %v1061
      %v1102 = vmul.f32 %v488, %v1061
      %v1103 = vmul.f32 %v489, %v1061
      %v1104 = vmul.f32 %v490, %v1061
      %v1105 = vmul.f32 %v491, %v1061
      %v1106 = vmul.f32 %v492, %v1061
      %v1107 = vmul.f32 %v493, %v1061
      %v1108 = vmul.f32 %v494, %v1061
      %v1109 = vmul.f32 %v495, %v1061
      %vm1158 = vcmask 1044480
      %v1159 = vrot.slane %v1062, 3
      %v1160 = vrot.slane %v1063, 3
      %v1161 = vsel %vm1158, %v1159, %v1160
      %v1162 = vrot.slane %v1064, 3
      %v1163 = vsel %vm1158, %v1160, %v1162
      %v1164 = vrot.slane %v1065, 3
      %v1165 = vrot.slane %v1066, 3
      %v1166 = vsel %vm1158, %v1164, %v1165
      %v1167 = vrot.slane %v1067, 3
      %v1168 = vsel %vm1158, %v1165, %v1167
      %v1169 = vrot.slane %v1068, 3
      %v1170 = vrot.slane %v1069, 3
      %v1171 = vsel %vm1158, %v1169, %v1170
      %v1172 = vrot.slane %v1070, 3
      %v1173 = vsel %vm1158, %v1170, %v1172
      %v1174 = vrot.slane %v1071, 3
      %v1175 = vrot.slane %v1072, 3
      %v1176 = vsel %vm1158, %v1174, %v1175
      %v1177 = vrot.slane %v1073, 3
      %v1178 = vsel %vm1158, %v1175, %v1177
      %v1179 = vrot.slane %v1074, 3
      %v1180 = vrot.slane %v1075, 3
      %v1181 = vsel %vm1158, %v1179, %v1180
      %v1182 = vrot.slane %v1076, 3
      %v1183 = vsel %vm1158, %v1180, %v1182
      %v1184 = vrot.slane %v1077, 3
      %v1185 = vrot.slane %v1078, 3
      %v1186 = vsel %vm1158, %v1184, %v1185
      %v1187 = vrot.slane %v1079, 3
      %v1188 = vsel %vm1158, %v1185, %v1187
      %v1189 = vrot.slane %v1080, 3
      %v1190 = vrot.slane %v1081, 3
      %v1191 = vsel %vm1158, %v1189, %v1190
      %v1192 = vrot.slane %v1082, 3
      %v1193 = vsel %vm1158, %v1190, %v1192
      %v1194 = vrot.slane %v1083, 3
      %v1195 = vrot.slane %v1084, 3
      %v1196 = vsel %vm1158, %v1194, %v1195
      %v1197 = vrot.slane %v1085, 3
      %v1198 = vsel %vm1158, %v1195, %v1197
      %v1199 = vrot.slane %v1086, 3
      %v1200 = vrot.slane %v1087, 3
      %v1201 = vsel %vm1158, %v1199, %v1200
      %v1202 = vrot.slane %v1088, 3
      %v1203 = vsel %vm1158, %v1200, %v1202
      %v1204 = vrot.slane %v1089, 3
      %v1205 = vrot.slane %v1090, 3
      %v1206 = vsel %vm1158, %v1204, %v1205
      %v1207 = vrot.slane %v1091, 3
      %v1208 = vsel %vm1158, %v1205, %v1207
      %v1209 = vrot.slane %v1092, 3
      %v1210 = vrot.slane %v1093, 3
      %v1211 = vsel %vm1158, %v1209, %v1210
      %v1212 = vrot.slane %v1094, 3
      %v1213 = vsel %vm1158, %v1210, %v1212
      %v1214 = vrot.slane %v1095, 3
      %v1215 = vrot.slane %v1096, 3
      %v1216 = vsel %vm1158, %v1214, %v1215
      %v1217 = vrot.slane %v1097, 3
      %v1218 = vsel %vm1158, %v1215, %v1217
      %v1219 = vrot.slane %v1098, 3
      %v1220 = vrot.slane %v1099, 3
      %v1221 = vsel %vm1158, %v1219, %v1220
      %v1222 = vrot.slane %v1100, 3
      %v1223 = vsel %vm1158, %v1220, %v1222
      %v1224 = vrot.slane %v1101, 3
      %v1225 = vrot.slane %v1102, 3
      %v1226 = vsel %vm1158, %v1224, %v1225
      %v1227 = vrot.slane %v1103, 3
      %v1228 = vsel %vm1158, %v1225, %v1227
      %v1229 = vrot.slane %v1104, 3
      %v1230 = vrot.slane %v1105, 3
      %v1231 = vsel %vm1158, %v1229, %v1230
      %v1232 = vrot.slane %v1106, 3
      %v1233 = vsel %vm1158, %v1230, %v1232
      %v1234 = vrot.slane %v1107, 3
      %v1235 = vrot.slane %v1108, 3
      %v1236 = vsel %vm1158, %v1234, %v1235
      %v1237 = vrot.slane %v1109, 3
      %v1238 = vsel %vm1158, %v1235, %v1237
      %v1271 = vadd.f32 %v1025, %v1161
      %v1272 = vadd.f32 %v1026, %v1163
      %v1273 = vadd.f32 %v1027, %v1166
      %v1274 = vadd.f32 %v1028, %v1168
      %v1275 = vadd.f32 %v1029, %v1171
      %v1276 = vadd.f32 %v1030, %v1173
      %v1277 = vadd.f32 %v1031, %v1176
      %v1278 = vadd.f32 %v1032, %v1178
      %v1279 = vadd.f32 %v1033, %v1181
      %v1280 = vadd.f32 %v1034, %v1183
      %v1281 = vadd.f32 %v1035, %v1186
      %v1282 = vadd.f32 %v1036, %v1188
      %v1283 = vadd.f32 %v1037, %v1191
      %v1284 = vadd.f32 %v1038, %v1193
      %v1285 = vadd.f32 %v1039, %v1196
      %v1286 = vadd.f32 %v1040, %v1198
      %v1287 = vadd.f32 %v1041, %v1201
      %v1288 = vadd.f32 %v1042, %v1203
      %v1289 = vadd.f32 %v1043, %v1206
      %v1290 = vadd.f32 %v1044, %v1208
      %v1291 = vadd.f32 %v1045, %v1211
      %v1292 = vadd.f32 %v1046, %v1213
      %v1293 = vadd.f32 %v1047, %v1216
      %v1294 = vadd.f32 %v1048, %v1218
      %v1295 = vadd.f32 %v1049, %v1221
      %v1296 = vadd.f32 %v1050, %v1223
      %v1297 = vadd.f32 %v1051, %v1226
      %v1298 = vadd.f32 %v1052, %v1228
      %v1299 = vadd.f32 %v1053, %v1231
      %v1300 = vadd.f32 %v1054, %v1233
      %v1301 = vadd.f32 %v1055, %v1236
      %v1302 = vadd.f32 %v1056, %v1238
      %v1303 = vld [vmem:[%s370 + $0x4] sm:$0x1]
      %v1304 = vlaneseq
      %v1305 = vshrl.u32 %v1304, 7
      %v1306 = vsub.s32 0, %v1305
      %v1307 = vrot.slane %v1303, %v1306
      %v1308 = vmul.f32 %v448, %v1307
      %v1309 = vmul.f32 %v449, %v1307
      %v1310 = vmul.f32 %v450, %v1307
      %v1311 = vmul.f32 %v451, %v1307
      %v1312 = vmul.f32 %v452, %v1307
      %v1313 = vmul.f32 %v453, %v1307
      %v1314 = vmul.f32 %v454, %v1307
      %v1315 = vmul.f32 %v455, %v1307
      %v1316 = vmul.f32 %v456, %v1307
      %v1317 = vmul.f32 %v457, %v1307
      %v1318 = vmul.f32 %v458, %v1307
      %v1319 = vmul.f32 %v459, %v1307
      %v1320 = vmul.f32 %v460, %v1307
      %v1321 = vmul.f32 %v461, %v1307
      %v1322 = vmul.f32 %v462, %v1307
      %v1323 = vmul.f32 %v463, %v1307
      %v1324 = vmul.f32 %v464, %v1307
      %v1325 = vmul.f32 %v465, %v1307
      %v1326 = vmul.f32 %v466, %v1307
      %v1327 = vmul.f32 %v467, %v1307
      %v1328 = vmul.f32 %v468, %v1307
      %v1329 = vmul.f32 %v469, %v1307
      %v1330 = vmul.f32 %v470, %v1307
      %v1331 = vmul.f32 %v471, %v1307
      %v1332 = vmul.f32 %v472, %v1307
      %v1333 = vmul.f32 %v473, %v1307
      %v1334 = vmul.f32 %v474, %v1307
      %v1335 = vmul.f32 %v475, %v1307
      %v1336 = vmul.f32 %v476, %v1307
      %v1337 = vmul.f32 %v477, %v1307
      %v1338 = vmul.f32 %v478, %v1307
      %v1339 = vmul.f32 %v479, %v1307
      %v1340 = vmul.f32 %v480, %v1307
      %v1341 = vmul.f32 %v481, %v1307
      %v1342 = vmul.f32 %v482, %v1307
      %v1343 = vmul.f32 %v483, %v1307
      %v1344 = vmul.f32 %v484, %v1307
      %v1345 = vmul.f32 %v485, %v1307
      %v1346 = vmul.f32 %v486, %v1307
      %v1347 = vmul.f32 %v487, %v1307
      %v1348 = vmul.f32 %v488, %v1307
      %v1349 = vmul.f32 %v489, %v1307
      %v1350 = vmul.f32 %v490, %v1307
      %v1351 = vmul.f32 %v491, %v1307
      %v1352 = vmul.f32 %v492, %v1307
      %v1353 = vmul.f32 %v493, %v1307
      %v1354 = vmul.f32 %v494, %v1307
      %v1355 = vmul.f32 %v495, %v1307
      %vm1404 = vcmask 1043456
      %v1405 = vrot.slane %v1308, 4
      %v1406 = vrot.slane %v1309, 4
      %v1407 = vsel %vm1404, %v1405, %v1406
      %v1408 = vrot.slane %v1310, 4
      %v1409 = vsel %vm1404, %v1406, %v1408
      %v1410 = vrot.slane %v1311, 4
      %v1411 = vrot.slane %v1312, 4
      %v1412 = vsel %vm1404, %v1410, %v1411
      %v1413 = vrot.slane %v1313, 4
      %v1414 = vsel %vm1404, %v1411, %v1413
      %v1415 = vrot.slane %v1314, 4
      %v1416 = vrot.slane %v1315, 4
      %v1417 = vsel %vm1404, %v1415, %v1416
      %v1418 = vrot.slane %v1316, 4
      %v1419 = vsel %vm1404, %v1416, %v1418
      %v1420 = vrot.slane %v1317, 4
      %v1421 = vrot.slane %v1318, 4
      %v1422 = vsel %vm1404, %v1420, %v1421
      %v1423 = vrot.slane %v1319, 4
      %v1424 = vsel %vm1404, %v1421, %v1423
      %v1425 = vrot.slane %v1320, 4
      %v1426 = vrot.slane %v1321, 4
      %v1427 = vsel %vm1404, %v1425, %v1426
      %v1428 = vrot.slane %v1322, 4
      %v1429 = vsel %vm1404, %v1426, %v1428
      %v1430 = vrot.slane %v1323, 4
      %v1431 = vrot.slane %v1324, 4
      %v1432 = vsel %vm1404, %v1430, %v1431
      %v1433 = vrot.slane %v1325, 4
      %v1434 = vsel %vm1404, %v1431, %v1433
      %v1435 = vrot.slane %v1326, 4
      %v1436 = vrot.slane %v1327, 4
      %v1437 = vsel %vm1404, %v1435, %v1436
      %v1438 = vrot.slane %v1328, 4
      %v1439 = vsel %vm1404, %v1436, %v1438
      %v1440 = vrot.slane %v1329, 4
      %v1441 = vrot.slane %v1330, 4
      %v1442 = vsel %vm1404, %v1440, %v1441
      %v1443 = vrot.slane %v1331, 4
      %v1444 = vsel %vm1404, %v1441, %v1443
      %v1445 = vrot.slane %v1332, 4
      %v1446 = vrot.slane %v1333, 4
      %v1447 = vsel %vm1404, %v1445, %v1446
      %v1448 = vrot.slane %v1334, 4
      %v1449 = vsel %vm1404, %v1446, %v1448
      %v1450 = vrot.slane %v1335, 4
      %v1451 = vrot.slane %v1336, 4
      %v1452 = vsel %vm1404, %v1450, %v1451
      %v1453 = vrot.slane %v1337, 4
      %v1454 = vsel %vm1404, %v1451, %v1453
      %v1455 = vrot.slane %v1338, 4
      %v1456 = vrot.slane %v1339, 4
      %v1457 = vsel %vm1404, %v1455, %v1456
      %v1458 = vrot.slane %v1340, 4
      %v1459 = vsel %vm1404, %v1456, %v1458
      %v1460 = vrot.slane %v1341, 4
      %v1461 = vrot.slane %v1342, 4
      %v1462 = vsel %vm1404, %v1460, %v1461
      %v1463 = vrot.slane %v1343, 4
      %v1464 = vsel %vm1404, %v1461, %v1463
      %v1465 = vrot.slane %v1344, 4
      %v1466 = vrot.slane %v1345, 4
      %v1467 = vsel %vm1404, %v1465, %v1466
      %v1468 = vrot.slane %v1346, 4
      %v1469 = vsel %vm1404, %v1466, %v1468
      %v1470 = vrot.slane %v1347, 4
      %v1471 = vrot.slane %v1348, 4
      %v1472 = vsel %vm1404, %v1470, %v1471
      %v1473 = vrot.slane %v1349, 4
      %v1474 = vsel %vm1404, %v1471, %v1473
      %v1475 = vrot.slane %v1350, 4
      %v1476 = vrot.slane %v1351, 4
      %v1477 = vsel %vm1404, %v1475, %v1476
      %v1478 = vrot.slane %v1352, 4
      %v1479 = vsel %vm1404, %v1476, %v1478
      %v1480 = vrot.slane %v1353, 4
      %v1481 = vrot.slane %v1354, 4
      %v1482 = vsel %vm1404, %v1480, %v1481
      %v1483 = vrot.slane %v1355, 4
      %v1484 = vsel %vm1404, %v1481, %v1483
      %v1517 = vadd.f32 %v1271, %v1407
      %v1518 = vadd.f32 %v1272, %v1409
      %v1519 = vadd.f32 %v1273, %v1412
      %v1520 = vadd.f32 %v1274, %v1414
      %v1521 = vadd.f32 %v1275, %v1417
      %v1522 = vadd.f32 %v1276, %v1419
      %v1523 = vadd.f32 %v1277, %v1422
      %v1524 = vadd.f32 %v1278, %v1424
      %v1525 = vadd.f32 %v1279, %v1427
      %v1526 = vadd.f32 %v1280, %v1429
      %v1527 = vadd.f32 %v1281, %v1432
      %v1528 = vadd.f32 %v1282, %v1434
      %v1529 = vadd.f32 %v1283, %v1437
      %v1530 = vadd.f32 %v1284, %v1439
      %v1531 = vadd.f32 %v1285, %v1442
      %v1532 = vadd.f32 %v1286, %v1444
      %v1533 = vadd.f32 %v1287, %v1447
      %v1534 = vadd.f32 %v1288, %v1449
      %v1535 = vadd.f32 %v1289, %v1452
      %v1536 = vadd.f32 %v1290, %v1454
      %v1537 = vadd.f32 %v1291, %v1457
      %v1538 = vadd.f32 %v1292, %v1459
      %v1539 = vadd.f32 %v1293, %v1462
      %v1540 = vadd.f32 %v1294, %v1464
      %v1541 = vadd.f32 %v1295, %v1467
      %v1542 = vadd.f32 %v1296, %v1469
      %v1543 = vadd.f32 %v1297, %v1472
      %v1544 = vadd.f32 %v1298, %v1474
      %v1545 = vadd.f32 %v1299, %v1477
      %v1546 = vadd.f32 %v1300, %v1479
      %v1547 = vadd.f32 %v1301, %v1482
      %v1548 = vadd.f32 %v1302, %v1484
      %v1549 = vunpack.c.l.bf16 %v436
      %v1550 = vunpack.c.l.bf16 %v437
      %v1551 = vunpack.c.l.bf16 %v438
      %v1552 = vld [vmem:[%s370 + $0x5] sm:$0x1]
      %v1553 = vlaneseq
      %v1554 = vshrl.u32 %v1553, 7
      %v1555 = vsub.s32 0, %v1554
      %v1556 = vrot.slane %v1552, %v1555
      %v1557 = vmul.f32 %v451, %v1556
      %v1558 = vmul.f32 %v452, %v1556
      %v1559 = vmul.f32 %v454, %v1556
      %v1560 = vmul.f32 %v455, %v1556
      %v1561 = vmul.f32 %v457, %v1556
      %v1562 = vmul.f32 %v458, %v1556
      %v1563 = vmul.f32 %v460, %v1556
      %v1564 = vmul.f32 %v461, %v1556
      %v1565 = vmul.f32 %v463, %v1556
      %v1566 = vmul.f32 %v464, %v1556
      %v1567 = vmul.f32 %v466, %v1556
      %v1568 = vmul.f32 %v467, %v1556
      %v1569 = vmul.f32 %v469, %v1556
      %v1570 = vmul.f32 %v470, %v1556
      %v1571 = vmul.f32 %v472, %v1556
      %v1572 = vmul.f32 %v473, %v1556
      %v1573 = vmul.f32 %v475, %v1556
      %v1574 = vmul.f32 %v476, %v1556
      %v1575 = vmul.f32 %v478, %v1556
      %v1576 = vmul.f32 %v479, %v1556
      %v1577 = vmul.f32 %v481, %v1556
      %v1578 = vmul.f32 %v482, %v1556
      %v1579 = vmul.f32 %v484, %v1556
      %v1580 = vmul.f32 %v485, %v1556
      %v1581 = vmul.f32 %v487, %v1556
      %v1582 = vmul.f32 %v488, %v1556
      %v1583 = vmul.f32 %v490, %v1556
      %v1584 = vmul.f32 %v491, %v1556
      %v1585 = vmul.f32 %v493, %v1556
      %v1586 = vmul.f32 %v494, %v1556
      %v1587 = vmul.f32 %v1549, %v1556
      %v1588 = vmul.f32 %v1550, %v1556
      %v1589 = vadd.f32 %v1517, %v1557
      %v1590 = vadd.f32 %v1518, %v1558
      %v1591 = vadd.f32 %v1519, %v1559
      %v1592 = vadd.f32 %v1520, %v1560
      %v1593 = vadd.f32 %v1521, %v1561
      %v1594 = vadd.f32 %v1522, %v1562
      %v1595 = vadd.f32 %v1523, %v1563
      %v1596 = vadd.f32 %v1524, %v1564
      %v1597 = vadd.f32 %v1525, %v1565
      %v1598 = vadd.f32 %v1526, %v1566
      %v1599 = vadd.f32 %v1527, %v1567
      %v1600 = vadd.f32 %v1528, %v1568
      %v1601 = vadd.f32 %v1529, %v1569
      %v1602 = vadd.f32 %v1530, %v1570
      %v1603 = vadd.f32 %v1531, %v1571
      %v1604 = vadd.f32 %v1532, %v1572
      %v1605 = vadd.f32 %v1533, %v1573
      %v1606 = vadd.f32 %v1534, %v1574
      %v1607 = vadd.f32 %v1535, %v1575
      %v1608 = vadd.f32 %v1536, %v1576
      %v1609 = vadd.f32 %v1537, %v1577
      %v1610 = vadd.f32 %v1538, %v1578
      %v1611 = vadd.f32 %v1539, %v1579
      %v1612 = vadd.f32 %v1540, %v1580
      %v1613 = vadd.f32 %v1541, %v1581
      %v1614 = vadd.f32 %v1542, %v1582
      %v1615 = vadd.f32 %v1543, %v1583
      %v1616 = vadd.f32 %v1544, %v1584
      %v1617 = vadd.f32 %v1545, %v1585
      %v1618 = vadd.f32 %v1546, %v1586
      %v1619 = vadd.f32 %v1547, %v1587
      %v1620 = vadd.f32 %v1548, %v1588
      %v1621 = vld [vmem:[%s370 + $0x6] sm:$0x1]
      %v1622 = vlaneseq
      %v1623 = vshrl.u32 %v1622, 7
      %v1624 = vsub.s32 0, %v1623
      %v1625 = vrot.slane %v1621, %v1624
      %v1626 = vmul.f32 %v451, %v1625
      %v1627 = vmul.f32 %v452, %v1625
      %v1628 = vmul.f32 %v453, %v1625
      %v1629 = vmul.f32 %v454, %v1625
      %v1630 = vmul.f32 %v455, %v1625
      %v1631 = vmul.f32 %v456, %v1625
      %v1632 = vmul.f32 %v457, %v1625
      %v1633 = vmul.f32 %v458, %v1625
      %v1634 = vmul.f32 %v459, %v1625
      %v1635 = vmul.f32 %v460, %v1625
      %v1636 = vmul.f32 %v461, %v1625
      %v1637 = vmul.f32 %v462, %v1625
      %v1638 = vmul.f32 %v463, %v1625
      %v1639 = vmul.f32 %v464, %v1625
      %v1640 = vmul.f32 %v465, %v1625
      %v1641 = vmul.f32 %v466, %v1625
      %v1642 = vmul.f32 %v467, %v1625
      %v1643 = vmul.f32 %v468, %v1625
      %v1644 = vmul.f32 %v469, %v1625
      %v1645 = vmul.f32 %v470, %v1625
      %v1646 = vmul.f32 %v471, %v1625
      %v1647 = vmul.f32 %v472, %v1625
      %v1648 = vmul.f32 %v473, %v1625
      %v1649 = vmul.f32 %v474, %v1625
      %v1650 = vmul.f32 %v475, %v1625
      %v1651 = vmul.f32 %v476, %v1625
      %v1652 = vmul.f32 %v477, %v1625
      %v1653 = vmul.f32 %v478, %v1625
      %v1654 = vmul.f32 %v479, %v1625
      %v1655 = vmul.f32 %v480, %v1625
      %v1656 = vmul.f32 %v481, %v1625
      %v1657 = vmul.f32 %v482, %v1625
      %v1658 = vmul.f32 %v483, %v1625
      %v1659 = vmul.f32 %v484, %v1625
      %v1660 = vmul.f32 %v485, %v1625
      %v1661 = vmul.f32 %v486, %v1625
      %v1662 = vmul.f32 %v487, %v1625
      %v1663 = vmul.f32 %v488, %v1625
      %v1664 = vmul.f32 %v489, %v1625
      %v1665 = vmul.f32 %v490, %v1625
      %v1666 = vmul.f32 %v491, %v1625
      %v1667 = vmul.f32 %v492, %v1625
      %v1668 = vmul.f32 %v493, %v1625
      %v1669 = vmul.f32 %v494, %v1625
      %v1670 = vmul.f32 %v495, %v1625
      %v1671 = vmul.f32 %v1549, %v1625
      %v1672 = vmul.f32 %v1550, %v1625
      %v1673 = vmul.f32 %v1551, %v1625
      %v1722 = vrot.slane %v1626, 1
      %v1723 = vrot.slane %v1627, 1
      %v1724 = vsel %vm666, %v1722, %v1723
      %v1725 = vrot.slane %v1628, 1
      %v1726 = vsel %vm666, %v1723, %v1725
      %v1727 = vrot.slane %v1629, 1
      %v1728 = vrot.slane %v1630, 1
      %v1729 = vsel %vm666, %v1727, %v1728
      %v1730 = vrot.slane %v1631, 1
      %v1731 = vsel %vm666, %v1728, %v1730
      %v1732 = vrot.slane %v1632, 1
      %v1733 = vrot.slane %v1633, 1
      %v1734 = vsel %vm666, %v1732, %v1733
      %v1735 = vrot.slane %v1634, 1
      %v1736 = vsel %vm666, %v1733, %v1735
      %v1737 = vrot.slane %v1635, 1
      %v1738 = vrot.slane %v1636, 1
      %v1739 = vsel %vm666, %v1737, %v1738
      %v1740 = vrot.slane %v1637, 1
      %v1741 = vsel %vm666, %v1738, %v1740
      %v1742 = vrot.slane %v1638, 1
      %v1743 = vrot.slane %v1639, 1
      %v1744 = vsel %vm666, %v1742, %v1743
      %v1745 = vrot.slane %v1640, 1
      %v1746 = vsel %vm666, %v1743, %v1745
      %v1747 = vrot.slane %v1641, 1
      %v1748 = vrot.slane %v1642, 1
      %v1749 = vsel %vm666, %v1747, %v1748
      %v1750 = vrot.slane %v1643, 1
      %v1751 = vsel %vm666, %v1748, %v1750
      %v1752 = vrot.slane %v1644, 1
      %v1753 = vrot.slane %v1645, 1
      %v1754 = vsel %vm666, %v1752, %v1753
      %v1755 = vrot.slane %v1646, 1
      %v1756 = vsel %vm666, %v1753, %v1755
      %v1757 = vrot.slane %v1647, 1
      %v1758 = vrot.slane %v1648, 1
      %v1759 = vsel %vm666, %v1757, %v1758
      %v1760 = vrot.slane %v1649, 1
      %v1761 = vsel %vm666, %v1758, %v1760
      %v1762 = vrot.slane %v1650, 1
      %v1763 = vrot.slane %v1651, 1
      %v1764 = vsel %vm666, %v1762, %v1763
      %v1765 = vrot.slane %v1652, 1
      %v1766 = vsel %vm666, %v1763, %v1765
      %v1767 = vrot.slane %v1653, 1
      %v1768 = vrot.slane %v1654, 1
      %v1769 = vsel %vm666, %v1767, %v1768
      %v1770 = vrot.slane %v1655, 1
      %v1771 = vsel %vm666, %v1768, %v1770
      %v1772 = vrot.slane %v1656, 1
      %v1773 = vrot.slane %v1657, 1
      %v1774 = vsel %vm666, %v1772, %v1773
      %v1775 = vrot.slane %v1658, 1
      %v1776 = vsel %vm666, %v1773, %v1775
      %v1777 = vrot.slane %v1659, 1
      %v1778 = vrot.slane %v1660, 1
      %v1779 = vsel %vm666, %v1777, %v1778
      %v1780 = vrot.slane %v1661, 1
      %v1781 = vsel %vm666, %v1778, %v1780
      %v1782 = vrot.slane %v1662, 1
      %v1783 = vrot.slane %v1663, 1
      %v1784 = vsel %vm666, %v1782, %v1783
      %v1785 = vrot.slane %v1664, 1
      %v1786 = vsel %vm666, %v1783, %v1785
      %v1787 = vrot.slane %v1665, 1
      %v1788 = vrot.slane %v1666, 1
      %v1789 = vsel %vm666, %v1787, %v1788
      %v1790 = vrot.slane %v1667, 1
      %v1791 = vsel %vm666, %v1788, %v1790
      %v1792 = vrot.slane %v1668, 1
      %v1793 = vrot.slane %v1669, 1
      %v1794 = vsel %vm666, %v1792, %v1793
      %v1795 = vrot.slane %v1670, 1
      %v1796 = vsel %vm666, %v1793, %v1795
      %v1797 = vrot.slane %v1671, 1
      %v1798 = vrot.slane %v1672, 1
      %v1799 = vsel %vm666, %v1797, %v1798
      %v1800 = vrot.slane %v1673, 1
      %v1801 = vsel %vm666, %v1798, %v1800
      %v1834 = vadd.f32 %v1589, %v1724
      %v1835 = vadd.f32 %v1590, %v1726
      %v1836 = vadd.f32 %v1591, %v1729
      %v1837 = vadd.f32 %v1592, %v1731
      %v1838 = vadd.f32 %v1593, %v1734
      %v1839 = vadd.f32 %v1594, %v1736
      %v1840 = vadd.f32 %v1595, %v1739
      %v1841 = vadd.f32 %v1596, %v1741
      %v1842 = vadd.f32 %v1597, %v1744
      %v1843 = vadd.f32 %v1598, %v1746
      %v1844 = vadd.f32 %v1599, %v1749
      %v1845 = vadd.f32 %v1600, %v1751
      %v1846 = vadd.f32 %v1601, %v1754
      %v1847 = vadd.f32 %v1602, %v1756
      %v1848 = vadd.f32 %v1603, %v1759
      %v1849 = vadd.f32 %v1604, %v1761
      %v1850 = vadd.f32 %v1605, %v1764
      %v1851 = vadd.f32 %v1606, %v1766
      %v1852 = vadd.f32 %v1607, %v1769
      %v1853 = vadd.f32 %v1608, %v1771
      %v1854 = vadd.f32 %v1609, %v1774
      %v1855 = vadd.f32 %v1610, %v1776
      %v1856 = vadd.f32 %v1611, %v1779
      %v1857 = vadd.f32 %v1612, %v1781
      %v1858 = vadd.f32 %v1613, %v1784
      %v1859 = vadd.f32 %v1614, %v1786
      %v1860 = vadd.f32 %v1615, %v1789
      %v1861 = vadd.f32 %v1616, %v1791
      %v1862 = vadd.f32 %v1617, %v1794
      %v1863 = vadd.f32 %v1618, %v1796
      %v1864 = vadd.f32 %v1619, %v1799
      %v1865 = vadd.f32 %v1620, %v1801
      %v1866 = vld [vmem:[%s370 + $0x7] sm:$0x1]
      %v1867 = vlaneseq
      %v1868 = vshrl.u32 %v1867, 7
      %v1869 = vsub.s32 0, %v1868
      %v1870 = vrot.slane %v1866, %v1869
      %v1871 = vmul.f32 %v451, %v1870
      %v1872 = vmul.f32 %v452, %v1870
      %v1873 = vmul.f32 %v453, %v1870
      %v1874 = vmul.f32 %v454, %v1870
      %v1875 = vmul.f32 %v455, %v1870
      %v1876 = vmul.f32 %v456, %v1870
      %v1877 = vmul.f32 %v457, %v1870
      %v1878 = vmul.f32 %v458, %v1870
      %v1879 = vmul.f32 %v459, %v1870
      %v1880 = vmul.f32 %v460, %v1870
      %v1881 = vmul.f32 %v461, %v1870
      %v1882 = vmul.f32 %v462, %v1870
      %v1883 = vmul.f32 %v463, %v1870
      %v1884 = vmul.f32 %v464, %v1870
      %v1885 = vmul.f32 %v465, %v1870
      %v1886 = vmul.f32 %v466, %v1870
      %v1887 = vmul.f32 %v467, %v1870
      %v1888 = vmul.f32 %v468, %v1870
      %v1889 = vmul.f32 %v469, %v1870
      %v1890 = vmul.f32 %v470, %v1870
      %v1891 = vmul.f32 %v471, %v1870
      %v1892 = vmul.f32 %v472, %v1870
      %v1893 = vmul.f32 %v473, %v1870
      %v1894 = vmul.f32 %v474, %v1870
      %v1895 = vmul.f32 %v475, %v1870
      %v1896 = vmul.f32 %v476, %v1870
      %v1897 = vmul.f32 %v477, %v1870
      %v1898 = vmul.f32 %v478, %v1870
      %v1899 = vmul.f32 %v479, %v1870
      %v1900 = vmul.f32 %v480, %v1870
      %v1901 = vmul.f32 %v481, %v1870
      %v1902 = vmul.f32 %v482, %v1870
      %v1903 = vmul.f32 %v483, %v1870
      %v1904 = vmul.f32 %v484, %v1870
      %v1905 = vmul.f32 %v485, %v1870
      %v1906 = vmul.f32 %v486, %v1870
      %v1907 = vmul.f32 %v487, %v1870
      %v1908 = vmul.f32 %v488, %v1870
      %v1909 = vmul.f32 %v489, %v1870
      %v1910 = vmul.f32 %v490, %v1870
      %v1911 = vmul.f32 %v491, %v1870
      %v1912 = vmul.f32 %v492, %v1870
      %v1913 = vmul.f32 %v493, %v1870
      %v1914 = vmul.f32 %v494, %v1870
      %v1915 = vmul.f32 %v495, %v1870
      %v1916 = vmul.f32 %v1549, %v1870
      %v1917 = vmul.f32 %v1550, %v1870
      %v1918 = vmul.f32 %v1551, %v1870
      %v1967 = vrot.slane %v1871, 2
      %v1968 = vrot.slane %v1872, 2
      %v1969 = vsel %vm912, %v1967, %v1968
      %v1970 = vrot.slane %v1873, 2
      %v1971 = vsel %vm912, %v1968, %v1970
      %v1972 = vrot.slane %v1874, 2
      %v1973 = vrot.slane %v1875, 2
      %v1974 = vsel %vm912, %v1972, %v1973
      %v1975 = vrot.slane %v1876, 2
      %v1976 = vsel %vm912, %v1973, %v1975
      %v1977 = vrot.slane %v1877, 2
      %v1978 = vrot.slane %v1878, 2
      %v1979 = vsel %vm912, %v1977, %v1978
      %v1980 = vrot.slane %v1879, 2
      %v1981 = vsel %vm912, %v1978, %v1980
      %v1982 = vrot.slane %v1880, 2
      %v1983 = vrot.slane %v1881, 2
      %v1984 = vsel %vm912, %v1982, %v1983
      %v1985 = vrot.slane %v1882, 2
      %v1986 = vsel %vm912, %v1983, %v1985
      %v1987 = vrot.slane %v1883, 2
      %v1988 = vrot.slane %v1884, 2
      %v1989 = vsel %vm912, %v1987, %v1988
      %v1990 = vrot.slane %v1885, 2
      %v1991 = vsel %vm912, %v1988, %v1990
      %v1992 = vrot.slane %v1886, 2
      %v1993 = vrot.slane %v1887, 2
      %v1994 = vsel %vm912, %v1992, %v1993
      %v1995 = vrot.slane %v1888, 2
      %v1996 = vsel %vm912, %v1993, %v1995
      %v1997 = vrot.slane %v1889, 2
      %v1998 = vrot.slane %v1890, 2
      %v1999 = vsel %vm912, %v1997, %v1998
      %v2000 = vrot.slane %v1891, 2
      %v2001 = vsel %vm912, %v1998, %v2000
      %v2002 = vrot.slane %v1892, 2
      %v2003 = vrot.slane %v1893, 2
      %v2004 = vsel %vm912, %v2002, %v2003
      %v2005 = vrot.slane %v1894, 2
      %v2006 = vsel %vm912, %v2003, %v2005
      %v2007 = vrot.slane %v1895, 2
      %v2008 = vrot.slane %v1896, 2
      %v2009 = vsel %vm912, %v2007, %v2008
      %v2010 = vrot.slane %v1897, 2
      %v2011 = vsel %vm912, %v2008, %v2010
      %v2012 = vrot.slane %v1898, 2
      %v2013 = vrot.slane %v1899, 2
      %v2014 = vsel %vm912, %v2012, %v2013
      %v2015 = vrot.slane %v1900, 2
      %v2016 = vsel %vm912, %v2013, %v2015
      %v2017 = vrot.slane %v1901, 2
      %v2018 = vrot.slane %v1902, 2
      %v2019 = vsel %vm912, %v2017, %v2018
      %v2020 = vrot.slane %v1903, 2
      %v2021 = vsel %vm912, %v2018, %v2020
      %v2022 = vrot.slane %v1904, 2
      %v2023 = vrot.slane %v1905, 2
      %v2024 = vsel %vm912, %v2022, %v2023
      %v2025 = vrot.slane %v1906, 2
      %v2026 = vsel %vm912, %v2023, %v2025
      %v2027 = vrot.slane %v1907, 2
      %v2028 = vrot.slane %v1908, 2
      %v2029 = vsel %vm912, %v2027, %v2028
      %v2030 = vrot.slane %v1909, 2
      %v2031 = vsel %vm912, %v2028, %v2030
      %v2032 = vrot.slane %v1910, 2
      %v2033 = vrot.slane %v1911, 2
      %v2034 = vsel %vm912, %v2032, %v2033
      %v2035 = vrot.slane %v1912, 2
      %v2036 = vsel %vm912, %v2033, %v2035
      %v2037 = vrot.slane %v1913, 2
      %v2038 = vrot.slane %v1914, 2
      %v2039 = vsel %vm912, %v2037, %v2038
      %v2040 = vrot.slane %v1915, 2
      %v2041 = vsel %vm912, %v2038, %v2040
      %v2042 = vrot.slane %v1916, 2
      %v2043 = vrot.slane %v1917, 2
      %v2044 = vsel %vm912, %v2042, %v2043
      %v2045 = vrot.slane %v1918, 2
      %v2046 = vsel %vm912, %v2043, %v2045
      %v2079 = vadd.f32 %v1834, %v1969
      %v2080 = vadd.f32 %v1835, %v1971
      %v2081 = vadd.f32 %v1836, %v1974
      %v2082 = vadd.f32 %v1837, %v1976
      %v2083 = vadd.f32 %v1838, %v1979
      %v2084 = vadd.f32 %v1839, %v1981
      %v2085 = vadd.f32 %v1840, %v1984
      %v2086 = vadd.f32 %v1841, %v1986
      %v2087 = vadd.f32 %v1842, %v1989
      %v2088 = vadd.f32 %v1843, %v1991
      %v2089 = vadd.f32 %v1844, %v1994
      %v2090 = vadd.f32 %v1845, %v1996
      %v2091 = vadd.f32 %v1846, %v1999
      %v2092 = vadd.f32 %v1847, %v2001
      %v2093 = vadd.f32 %v1848, %v2004
      %v2094 = vadd.f32 %v1849, %v2006
      %v2095 = vadd.f32 %v1850, %v2009
      %v2096 = vadd.f32 %v1851, %v2011
      %v2097 = vadd.f32 %v1852, %v2014
      %v2098 = vadd.f32 %v1853, %v2016
      %v2099 = vadd.f32 %v1854, %v2019
      %v2100 = vadd.f32 %v1855, %v2021
      %v2101 = vadd.f32 %v1856, %v2024
      %v2102 = vadd.f32 %v1857, %v2026
      %v2103 = vadd.f32 %v1858, %v2029
      %v2104 = vadd.f32 %v1859, %v2031
      %v2105 = vadd.f32 %v1860, %v2034
      %v2106 = vadd.f32 %v1861, %v2036
      %v2107 = vadd.f32 %v1862, %v2039
      %v2108 = vadd.f32 %v1863, %v2041
      %v2109 = vadd.f32 %v1864, %v2044
      %v2110 = vadd.f32 %v1865, %v2046
      %v2111 = vld [vmem:[%s370 + $0x8] sm:$0x1]
      %v2112 = vlaneseq
      %v2113 = vshrl.u32 %v2112, 7
      %v2114 = vsub.s32 0, %v2113
      %v2115 = vrot.slane %v2111, %v2114
      %v2116 = vmul.f32 %v451, %v2115
      %v2117 = vmul.f32 %v452, %v2115
      %v2118 = vmul.f32 %v453, %v2115
      %v2119 = vmul.f32 %v454, %v2115
      %v2120 = vmul.f32 %v455, %v2115
      %v2121 = vmul.f32 %v456, %v2115
      %v2122 = vmul.f32 %v457, %v2115
      %v2123 = vmul.f32 %v458, %v2115
      %v2124 = vmul.f32 %v459, %v2115
      %v2125 = vmul.f32 %v460, %v2115
      %v2126 = vmul.f32 %v461, %v2115
      %v2127 = vmul.f32 %v462, %v2115
      %v2128 = vmul.f32 %v463, %v2115
      %v2129 = vmul.f32 %v464, %v2115
      %v2130 = vmul.f32 %v465, %v2115
      %v2131 = vmul.f32 %v466, %v2115
      %v2132 = vmul.f32 %v467, %v2115
      %v2133 = vmul.f32 %v468, %v2115
      %v2134 = vmul.f32 %v469, %v2115
      %v2135 = vmul.f32 %v470, %v2115
      %v2136 = vmul.f32 %v471, %v2115
      %v2137 = vmul.f32 %v472, %v2115
      %v2138 = vmul.f32 %v473, %v2115
      %v2139 = vmul.f32 %v474, %v2115
      %v2140 = vmul.f32 %v475, %v2115
      %v2141 = vmul.f32 %v476, %v2115
      %v2142 = vmul.f32 %v477, %v2115
      %v2143 = vmul.f32 %v478, %v2115
      %v2144 = vmul.f32 %v479, %v2115
      %v2145 = vmul.f32 %v480, %v2115
      %v2146 = vmul.f32 %v481, %v2115
      %v2147 = vmul.f32 %v482, %v2115
      %v2148 = vmul.f32 %v483, %v2115
      %v2149 = vmul.f32 %v484, %v2115
      %v2150 = vmul.f32 %v485, %v2115
      %v2151 = vmul.f32 %v486, %v2115
      %v2152 = vmul.f32 %v487, %v2115
      %v2153 = vmul.f32 %v488, %v2115
      %v2154 = vmul.f32 %v489, %v2115
      %v2155 = vmul.f32 %v490, %v2115
      %v2156 = vmul.f32 %v491, %v2115
      %v2157 = vmul.f32 %v492, %v2115
      %v2158 = vmul.f32 %v493, %v2115
      %v2159 = vmul.f32 %v494, %v2115
      %v2160 = vmul.f32 %v495, %v2115
      %v2161 = vmul.f32 %v1549, %v2115
      %v2162 = vmul.f32 %v1550, %v2115
      %v2163 = vmul.f32 %v1551, %v2115
      %v2212 = vrot.slane %v2116, 3
      %v2213 = vrot.slane %v2117, 3
      %v2214 = vsel %vm1158, %v2212, %v2213
      %v2215 = vrot.slane %v2118, 3
      %v2216 = vsel %vm1158, %v2213, %v2215
      %v2217 = vrot.slane %v2119, 3
      %v2218 = vrot.slane %v2120, 3
      %v2219 = vsel %vm1158, %v2217, %v2218
      %v2220 = vrot.slane %v2121, 3
      %v2221 = vsel %vm1158, %v2218, %v2220
      %v2222 = vrot.slane %v2122, 3
      %v2223 = vrot.slane %v2123, 3
      %v2224 = vsel %vm1158, %v2222, %v2223
      %v2225 = vrot.slane %v2124, 3
      %v2226 = vsel %vm1158, %v2223, %v2225
      %v2227 = vrot.slane %v2125, 3
      %v2228 = vrot.slane %v2126, 3
      %v2229 = vsel %vm1158, %v2227, %v2228
      %v2230 = vrot.slane %v2127, 3
      %v2231 = vsel %vm1158, %v2228, %v2230
      %v2232 = vrot.slane %v2128, 3
      %v2233 = vrot.slane %v2129, 3
      %v2234 = vsel %vm1158, %v2232, %v2233
      %v2235 = vrot.slane %v2130, 3
      %v2236 = vsel %vm1158, %v2233, %v2235
      %v2237 = vrot.slane %v2131, 3
      %v2238 = vrot.slane %v2132, 3
      %v2239 = vsel %vm1158, %v2237, %v2238
      %v2240 = vrot.slane %v2133, 3
      %v2241 = vsel %vm1158, %v2238, %v2240
      %v2242 = vrot.slane %v2134, 3
      %v2243 = vrot.slane %v2135, 3
      %v2244 = vsel %vm1158, %v2242, %v2243
      %v2245 = vrot.slane %v2136, 3
      %v2246 = vsel %vm1158, %v2243, %v2245
      %v2247 = vrot.slane %v2137, 3
      %v2248 = vrot.slane %v2138, 3
      %v2249 = vsel %vm1158, %v2247, %v2248
      %v2250 = vrot.slane %v2139, 3
      %v2251 = vsel %vm1158, %v2248, %v2250
      %v2252 = vrot.slane %v2140, 3
      %v2253 = vrot.slane %v2141, 3
      %v2254 = vsel %vm1158, %v2252, %v2253
      %v2255 = vrot.slane %v2142, 3
      %v2256 = vsel %vm1158, %v2253, %v2255
      %v2257 = vrot.slane %v2143, 3
      %v2258 = vrot.slane %v2144, 3
      %v2259 = vsel %vm1158, %v2257, %v2258
      %v2260 = vrot.slane %v2145, 3
      %v2261 = vsel %vm1158, %v2258, %v2260
      %v2262 = vrot.slane %v2146, 3
      %v2263 = vrot.slane %v2147, 3
      %v2264 = vsel %vm1158, %v2262, %v2263
      %v2265 = vrot.slane %v2148, 3
      %v2266 = vsel %vm1158, %v2263, %v2265
      %v2267 = vrot.slane %v2149, 3
      %v2268 = vrot.slane %v2150, 3
      %v2269 = vsel %vm1158, %v2267, %v2268
      %v2270 = vrot.slane %v2151, 3
      %v2271 = vsel %vm1158, %v2268, %v2270
      %v2272 = vrot.slane %v2152, 3
      %v2273 = vrot.slane %v2153, 3
      %v2274 = vsel %vm1158, %v2272, %v2273
      %v2275 = vrot.slane %v2154, 3
      %v2276 = vsel %vm1158, %v2273, %v2275
      %v2277 = vrot.slane %v2155, 3
      %v2278 = vrot.slane %v2156, 3
      %v2279 = vsel %vm1158, %v2277, %v2278
      %v2280 = vrot.slane %v2157, 3
      %v2281 = vsel %vm1158, %v2278, %v2280
      %v2282 = vrot.slane %v2158, 3
      %v2283 = vrot.slane %v2159, 3
      %v2284 = vsel %vm1158, %v2282, %v2283
      %v2285 = vrot.slane %v2160, 3
      %v2286 = vsel %vm1158, %v2283, %v2285
      %v2287 = vrot.slane %v2161, 3
      %v2288 = vrot.slane %v2162, 3
      %v2289 = vsel %vm1158, %v2287, %v2288
      %v2290 = vrot.slane %v2163, 3
      %v2291 = vsel %vm1158, %v2288, %v2290
      %v2324 = vadd.f32 %v2079, %v2214
      %v2325 = vadd.f32 %v2080, %v2216
      %v2326 = vadd.f32 %v2081, %v2219
      %v2327 = vadd.f32 %v2082, %v2221
      %v2328 = vadd.f32 %v2083, %v2224
      %v2329 = vadd.f32 %v2084, %v2226
      %v2330 = vadd.f32 %v2085, %v2229
      %v2331 = vadd.f32 %v2086, %v2231
      %v2332 = vadd.f32 %v2087, %v2234
      %v2333 = vadd.f32 %v2088, %v2236
      %v2334 = vadd.f32 %v2089, %v2239
      %v2335 = vadd.f32 %v2090, %v2241
      %v2336 = vadd.f32 %v2091, %v2244
      %v2337 = vadd.f32 %v2092, %v2246
      %v2338 = vadd.f32 %v2093, %v2249
      %v2339 = vadd.f32 %v2094, %v2251
      %v2340 = vadd.f32 %v2095, %v2254
      %v2341 = vadd.f32 %v2096, %v2256
      %v2342 = vadd.f32 %v2097, %v2259
      %v2343 = vadd.f32 %v2098, %v2261
      %v2344 = vadd.f32 %v2099, %v2264
      %v2345 = vadd.f32 %v2100, %v2266
      %v2346 = vadd.f32 %v2101, %v2269
      %v2347 = vadd.f32 %v2102, %v2271
      %v2348 = vadd.f32 %v2103, %v2274
      %v2349 = vadd.f32 %v2104, %v2276
      %v2350 = vadd.f32 %v2105, %v2279
      %v2351 = vadd.f32 %v2106, %v2281
      %v2352 = vadd.f32 %v2107, %v2284
      %v2353 = vadd.f32 %v2108, %v2286
      %v2354 = vadd.f32 %v2109, %v2289
      %v2355 = vadd.f32 %v2110, %v2291
      %v2356 = vld [vmem:[%s370 + $0x9] sm:$0x1]
      %v2357 = vlaneseq
      %v2358 = vshrl.u32 %v2357, 7
      %v2359 = vsub.s32 0, %v2358
      %v2360 = vrot.slane %v2356, %v2359
      %v2361 = vmul.f32 %v451, %v2360
      %v2362 = vmul.f32 %v452, %v2360
      %v2363 = vmul.f32 %v453, %v2360
      %v2364 = vmul.f32 %v454, %v2360
      %v2365 = vmul.f32 %v455, %v2360
      %v2366 = vmul.f32 %v456, %v2360
      %v2367 = vmul.f32 %v457, %v2360
      %v2368 = vmul.f32 %v458, %v2360
      %v2369 = vmul.f32 %v459, %v2360
      %v2370 = vmul.f32 %v460, %v2360
      %v2371 = vmul.f32 %v461, %v2360
      %v2372 = vmul.f32 %v462, %v2360
      %v2373 = vmul.f32 %v463, %v2360
      %v2374 = vmul.f32 %v464, %v2360
      %v2375 = vmul.f32 %v465, %v2360
      %v2376 = vmul.f32 %v466, %v2360
      %v2377 = vmul.f32 %v467, %v2360
      %v2378 = vmul.f32 %v468, %v2360
      %v2379 = vmul.f32 %v469, %v2360
      %v2380 = vmul.f32 %v470, %v2360
      %v2381 = vmul.f32 %v471, %v2360
      %v2382 = vmul.f32 %v472, %v2360
      %v2383 = vmul.f32 %v473, %v2360
      %v2384 = vmul.f32 %v474, %v2360
      %v2385 = vmul.f32 %v475, %v2360
      %v2386 = vmul.f32 %v476, %v2360
      %v2387 = vmul.f32 %v477, %v2360
      %v2388 = vmul.f32 %v478, %v2360
      %v2389 = vmul.f32 %v479, %v2360
      %v2390 = vmul.f32 %v480, %v2360
      %v2391 = vmul.f32 %v481, %v2360
      %v2392 = vmul.f32 %v482, %v2360
      %v2393 = vmul.f32 %v483, %v2360
      %v2394 = vmul.f32 %v484, %v2360
      %v2395 = vmul.f32 %v485, %v2360
      %v2396 = vmul.f32 %v486, %v2360
      %v2397 = vmul.f32 %v487, %v2360
      %v2398 = vmul.f32 %v488, %v2360
      %v2399 = vmul.f32 %v489, %v2360
      %v2400 = vmul.f32 %v490, %v2360
      %v2401 = vmul.f32 %v491, %v2360
      %v2402 = vmul.f32 %v492, %v2360
      %v2403 = vmul.f32 %v493, %v2360
      %v2404 = vmul.f32 %v494, %v2360
      %v2405 = vmul.f32 %v495, %v2360
      %v2406 = vmul.f32 %v1549, %v2360
      %v2407 = vmul.f32 %v1550, %v2360
      %v2408 = vmul.f32 %v1551, %v2360
      %v2457 = vrot.slane %v2361, 4
      %v2458 = vrot.slane %v2362, 4
      %v2459 = vsel %vm1404, %v2457, %v2458
      %v2460 = vrot.slane %v2363, 4
      %v2461 = vsel %vm1404, %v2458, %v2460
      %v2462 = vrot.slane %v2364, 4
      %v2463 = vrot.slane %v2365, 4
      %v2464 = vsel %vm1404, %v2462, %v2463
      %v2465 = vrot.slane %v2366, 4
      %v2466 = vsel %vm1404, %v2463, %v2465
      %v2467 = vrot.slane %v2367, 4
      %v2468 = vrot.slane %v2368, 4
      %v2469 = vsel %vm1404, %v2467, %v2468
      %v2470 = vrot.slane %v2369, 4
      %v2471 = vsel %vm1404, %v2468, %v2470
      %v2472 = vrot.slane %v2370, 4
      %v2473 = vrot.slane %v2371, 4
      %v2474 = vsel %vm1404, %v2472, %v2473
      %v2475 = vrot.slane %v2372, 4
      %v2476 = vsel %vm1404, %v2473, %v2475
      %v2477 = vrot.slane %v2373, 4
      %v2478 = vrot.slane %v2374, 4
      %v2479 = vsel %vm1404, %v2477, %v2478
      %v2480 = vrot.slane %v2375, 4
      %v2481 = vsel %vm1404, %v2478, %v2480
      %v2482 = vrot.slane %v2376, 4
      %v2483 = vrot.slane %v2377, 4
      %v2484 = vsel %vm1404, %v2482, %v2483
      %v2485 = vrot.slane %v2378, 4
      %v2486 = vsel %vm1404, %v2483, %v2485
      %v2487 = vrot.slane %v2379, 4
      %v2488 = vrot.slane %v2380, 4
      %v2489 = vsel %vm1404, %v2487, %v2488
      %v2490 = vrot.slane %v2381, 4
      %v2491 = vsel %vm1404, %v2488, %v2490
      %v2492 = vrot.slane %v2382, 4
      %v2493 = vrot.slane %v2383, 4
      %v2494 = vsel %vm1404, %v2492, %v2493
      %v2495 = vrot.slane %v2384, 4
      %v2496 = vsel %vm1404, %v2493, %v2495
      %v2497 = vrot.slane %v2385, 4
      %v2498 = vrot.slane %v2386, 4
      %v2499 = vsel %vm1404, %v2497, %v2498
      %v2500 = vrot.slane %v2387, 4
      %v2501 = vsel %vm1404, %v2498, %v2500
      %v2502 = vrot.slane %v2388, 4
      %v2503 = vrot.slane %v2389, 4
      %v2504 = vsel %vm1404, %v2502, %v2503
      %v2505 = vrot.slane %v2390, 4
      %v2506 = vsel %vm1404, %v2503, %v2505
      %v2507 = vrot.slane %v2391, 4
      %v2508 = vrot.slane %v2392, 4
      %v2509 = vsel %vm1404, %v2507, %v2508
      %v2510 = vrot.slane %v2393, 4
      %v2511 = vsel %vm1404, %v2508, %v2510
      %v2512 = vrot.slane %v2394, 4
      %v2513 = vrot.slane %v2395, 4
      %v2514 = vsel %vm1404, %v2512, %v2513
      %v2515 = vrot.slane %v2396, 4
      %v2516 = vsel %vm1404, %v2513, %v2515
      %v2517 = vrot.slane %v2397, 4
      %v2518 = vrot.slane %v2398, 4
      %v2519 = vsel %vm1404, %v2517, %v2518
      %v2520 = vrot.slane %v2399, 4
      %v2521 = vsel %vm1404, %v2518, %v2520
      %v2522 = vrot.slane %v2400, 4
      %v2523 = vrot.slane %v2401, 4
      %v2524 = vsel %vm1404, %v2522, %v2523
      %v2525 = vrot.slane %v2402, 4
      %v2526 = vsel %vm1404, %v2523, %v2525
      %v2527 = vrot.slane %v2403, 4
      %v2528 = vrot.slane %v2404, 4
      %v2529 = vsel %vm1404, %v2527, %v2528
      %v2530 = vrot.slane %v2405, 4
      %v2531 = vsel %vm1404, %v2528, %v2530
      %v2532 = vrot.slane %v2406, 4
      %v2533 = vrot.slane %v2407, 4
      %v2534 = vsel %vm1404, %v2532, %v2533
      %v2535 = vrot.slane %v2408, 4
      %v2536 = vsel %vm1404, %v2533, %v2535
      %v2569 = vadd.f32 %v2324, %v2459
      %v2570 = vadd.f32 %v2325, %v2461
      %v2571 = vadd.f32 %v2326, %v2464
      %v2572 = vadd.f32 %v2327, %v2466
      %v2573 = vadd.f32 %v2328, %v2469
      %v2574 = vadd.f32 %v2329, %v2471
      %v2575 = vadd.f32 %v2330, %v2474
      %v2576 = vadd.f32 %v2331, %v2476
      %v2577 = vadd.f32 %v2332, %v2479
      %v2578 = vadd.f32 %v2333, %v2481
      %v2579 = vadd.f32 %v2334, %v2484
      %v2580 = vadd.f32 %v2335, %v2486
      %v2581 = vadd.f32 %v2336, %v2489
      %v2582 = vadd.f32 %v2337, %v2491
      %v2583 = vadd.f32 %v2338, %v2494
      %v2584 = vadd.f32 %v2339, %v2496
      %v2585 = vadd.f32 %v2340, %v2499
      %v2586 = vadd.f32 %v2341, %v2501
      %v2587 = vadd.f32 %v2342, %v2504
      %v2588 = vadd.f32 %v2343, %v2506
      %v2589 = vadd.f32 %v2344, %v2509
      %v2590 = vadd.f32 %v2345, %v2511
      %v2591 = vadd.f32 %v2346, %v2514
      %v2592 = vadd.f32 %v2347, %v2516
      %v2593 = vadd.f32 %v2348, %v2519
      %v2594 = vadd.f32 %v2349, %v2521
      %v2595 = vadd.f32 %v2350, %v2524
      %v2596 = vadd.f32 %v2351, %v2526
      %v2597 = vadd.f32 %v2352, %v2529
      %v2598 = vadd.f32 %v2353, %v2531
      %v2599 = vadd.f32 %v2354, %v2534
      %v2600 = vadd.f32 %v2355, %v2536
      %v2601 = vunpack.c.l.bf16 %v439
      %v2602 = vunpack.c.l.bf16 %v440
      %v2603 = vunpack.c.l.bf16 %v441
      %v2604 = vld [vmem:[%s370 + $0xa] sm:$0x1]
      %v2605 = vlaneseq
      %v2606 = vshrl.u32 %v2605, 7
      %v2607 = vsub.s32 0, %v2606
      %v2608 = vrot.slane %v2604, %v2607
      %v2609 = vmul.f32 %v454, %v2608
      %v2610 = vmul.f32 %v455, %v2608
      %v2611 = vmul.f32 %v457, %v2608
      %v2612 = vmul.f32 %v458, %v2608
      %v2613 = vmul.f32 %v460, %v2608
      %v2614 = vmul.f32 %v461, %v2608
      %v2615 = vmul.f32 %v463, %v2608
      %v2616 = vmul.f32 %v464, %v2608
      %v2617 = vmul.f32 %v466, %v2608
      %v2618 = vmul.f32 %v467, %v2608
      %v2619 = vmul.f32 %v469, %v2608
      %v2620 = vmul.f32 %v470, %v2608
      %v2621 = vmul.f32 %v472, %v2608
      %v2622 = vmul.f32 %v473, %v2608
      %v2623 = vmul.f32 %v475, %v2608
      %v2624 = vmul.f32 %v476, %v2608
      %v2625 = vmul.f32 %v478, %v2608
      %v2626 = vmul.f32 %v479, %v2608
      %v2627 = vmul.f32 %v481, %v2608
      %v2628 = vmul.f32 %v482, %v2608
      %v2629 = vmul.f32 %v484, %v2608
      %v2630 = vmul.f32 %v485, %v2608
      %v2631 = vmul.f32 %v487, %v2608
      %v2632 = vmul.f32 %v488, %v2608
      %v2633 = vmul.f32 %v490, %v2608
      %v2634 = vmul.f32 %v491, %v2608
      %v2635 = vmul.f32 %v493, %v2608
      %v2636 = vmul.f32 %v494, %v2608
      %v2637 = vmul.f32 %v1549, %v2608
      %v2638 = vmul.f32 %v1550, %v2608
      %v2639 = vmul.f32 %v2601, %v2608
      %v2640 = vmul.f32 %v2602, %v2608
      %v2641 = vadd.f32 %v2569, %v2609
      %v2642 = vadd.f32 %v2570, %v2610
      %v2643 = vadd.f32 %v2571, %v2611
      %v2644 = vadd.f32 %v2572, %v2612
      %v2645 = vadd.f32 %v2573, %v2613
      %v2646 = vadd.f32 %v2574, %v2614
      %v2647 = vadd.f32 %v2575, %v2615
      %v2648 = vadd.f32 %v2576, %v2616
      %v2649 = vadd.f32 %v2577, %v2617
      %v2650 = vadd.f32 %v2578, %v2618
      %v2651 = vadd.f32 %v2579, %v2619
      %v2652 = vadd.f32 %v2580, %v2620
      %v2653 = vadd.f32 %v2581, %v2621
      %v2654 = vadd.f32 %v2582, %v2622
      %v2655 = vadd.f32 %v2583, %v2623
      %v2656 = vadd.f32 %v2584, %v2624
      %v2657 = vadd.f32 %v2585, %v2625
      %v2658 = vadd.f32 %v2586, %v2626
      %v2659 = vadd.f32 %v2587, %v2627
      %v2660 = vadd.f32 %v2588, %v2628
      %v2661 = vadd.f32 %v2589, %v2629
      %v2662 = vadd.f32 %v2590, %v2630
      %v2663 = vadd.f32 %v2591, %v2631
      %v2664 = vadd.f32 %v2592, %v2632
      %v2665 = vadd.f32 %v2593, %v2633
      %v2666 = vadd.f32 %v2594, %v2634
      %v2667 = vadd.f32 %v2595, %v2635
      %v2668 = vadd.f32 %v2596, %v2636
      %v2669 = vadd.f32 %v2597, %v2637
      %v2670 = vadd.f32 %v2598, %v2638
      %v2671 = vadd.f32 %v2599, %v2639
      %v2672 = vadd.f32 %v2600, %v2640
      %v2673 = vld [vmem:[%s370 + $0xb] sm:$0x1]
      %v2674 = vlaneseq
      %v2675 = vshrl.u32 %v2674, 7
      %v2676 = vsub.s32 0, %v2675
      %v2677 = vrot.slane %v2673, %v2676
      %v2678 = vmul.f32 %v454, %v2677
      %v2679 = vmul.f32 %v455, %v2677
      %v2680 = vmul.f32 %v456, %v2677
      %v2681 = vmul.f32 %v457, %v2677
      %v2682 = vmul.f32 %v458, %v2677
      %v2683 = vmul.f32 %v459, %v2677
      %v2684 = vmul.f32 %v460, %v2677
      %v2685 = vmul.f32 %v461, %v2677
      %v2686 = vmul.f32 %v462, %v2677
      %v2687 = vmul.f32 %v463, %v2677
      %v2688 = vmul.f32 %v464, %v2677
      %v2689 = vmul.f32 %v465, %v2677
      %v2690 = vmul.f32 %v466, %v2677
      %v2691 = vmul.f32 %v467, %v2677
      %v2692 = vmul.f32 %v468, %v2677
      %v2693 = vmul.f32 %v469, %v2677
      %v2694 = vmul.f32 %v470, %v2677
      %v2695 = vmul.f32 %v471, %v2677
      %v2696 = vmul.f32 %v472, %v2677
      %v2697 = vmul.f32 %v473, %v2677
      %v2698 = vmul.f32 %v474, %v2677
      %v2699 = vmul.f32 %v475, %v2677
      %v2700 = vmul.f32 %v476, %v2677
      %v2701 = vmul.f32 %v477, %v2677
      %v2702 = vmul.f32 %v478, %v2677
      %v2703 = vmul.f32 %v479, %v2677
      %v2704 = vmul.f32 %v480, %v2677
      %v2705 = vmul.f32 %v481, %v2677
      %v2706 = vmul.f32 %v482, %v2677
      %v2707 = vmul.f32 %v483, %v2677
      %v2708 = vmul.f32 %v484, %v2677
      %v2709 = vmul.f32 %v485, %v2677
      %v2710 = vmul.f32 %v486, %v2677
      %v2711 = vmul.f32 %v487, %v2677
      %v2712 = vmul.f32 %v488, %v2677
      %v2713 = vmul.f32 %v489, %v2677
      %v2714 = vmul.f32 %v490, %v2677
      %v2715 = vmul.f32 %v491, %v2677
      %v2716 = vmul.f32 %v492, %v2677
      %v2717 = vmul.f32 %v493, %v2677
      %v2718 = vmul.f32 %v494, %v2677
      %v2719 = vmul.f32 %v495, %v2677
      %v2720 = vmul.f32 %v1549, %v2677
      %v2721 = vmul.f32 %v1550, %v2677
      %v2722 = vmul.f32 %v1551, %v2677
      %v2723 = vmul.f32 %v2601, %v2677
      %v2724 = vmul.f32 %v2602, %v2677
      %v2725 = vmul.f32 %v2603, %v2677
      %v2774 = vrot.slane %v2678, 1
      %v2775 = vrot.slane %v2679, 1
      %v2776 = vsel %vm666, %v2774, %v2775
      %v2777 = vrot.slane %v2680, 1
      %v2778 = vsel %vm666, %v2775, %v2777
      %v2779 = vrot.slane %v2681, 1
      %v2780 = vrot.slane %v2682, 1
      %v2781 = vsel %vm666, %v2779, %v2780
      %v2782 = vrot.slane %v2683, 1
      %v2783 = vsel %vm666, %v2780, %v2782
      %v2784 = vrot.slane %v2684, 1
      %v2785 = vrot.slane %v2685, 1
      %v2786 = vsel %vm666, %v2784, %v2785
      %v2787 = vrot.slane %v2686, 1
      %v2788 = vsel %vm666, %v2785, %v2787
      %v2789 = vrot.slane %v2687, 1
      %v2790 = vrot.slane %v2688, 1
      %v2791 = vsel %vm666, %v2789, %v2790
      %v2792 = vrot.slane %v2689, 1
      %v2793 = vsel %vm666, %v2790, %v2792
      %v2794 = vrot.slane %v2690, 1
      %v2795 = vrot.slane %v2691, 1
      %v2796 = vsel %vm666, %v2794, %v2795
      %v2797 = vrot.slane %v2692, 1
      %v2798 = vsel %vm666, %v2795, %v2797
      %v2799 = vrot.slane %v2693, 1
      %v2800 = vrot.slane %v2694, 1
      %v2801 = vsel %vm666, %v2799, %v2800
      %v2802 = vrot.slane %v2695, 1
      %v2803 = vsel %vm666, %v2800, %v2802
      %v2804 = vrot.slane %v2696, 1
      %v2805 = vrot.slane %v2697, 1
      %v2806 = vsel %vm666, %v2804, %v2805
      %v2807 = vrot.slane %v2698, 1
      %v2808 = vsel %vm666, %v2805, %v2807
      %v2809 = vrot.slane %v2699, 1
      %v2810 = vrot.slane %v2700, 1
      %v2811 = vsel %vm666, %v2809, %v2810
      %v2812 = vrot.slane %v2701, 1
      %v2813 = vsel %vm666, %v2810, %v2812
      %v2814 = vrot.slane %v2702, 1
      %v2815 = vrot.slane %v2703, 1
      %v2816 = vsel %vm666, %v2814, %v2815
      %v2817 = vrot.slane %v2704, 1
      %v2818 = vsel %vm666, %v2815, %v2817
      %v2819 = vrot.slane %v2705, 1
      %v2820 = vrot.slane %v2706, 1
      %v2821 = vsel %vm666, %v2819, %v2820
      %v2822 = vrot.slane %v2707, 1
      %v2823 = vsel %vm666, %v2820, %v2822
      %v2824 = vrot.slane %v2708, 1
      %v2825 = vrot.slane %v2709, 1
      %v2826 = vsel %vm666, %v2824, %v2825
      %v2827 = vrot.slane %v2710, 1
      %v2828 = vsel %vm666, %v2825, %v2827
      %v2829 = vrot.slane %v2711, 1
      %v2830 = vrot.slane %v2712, 1
      %v2831 = vsel %vm666, %v2829, %v2830
      %v2832 = vrot.slane %v2713, 1
      %v2833 = vsel %vm666, %v2830, %v2832
      %v2834 = vrot.slane %v2714, 1
      %v2835 = vrot.slane %v2715, 1
      %v2836 = vsel %vm666, %v2834, %v2835
      %v2837 = vrot.slane %v2716, 1
      %v2838 = vsel %vm666, %v2835, %v2837
      %v2839 = vrot.slane %v2717, 1
      %v2840 = vrot.slane %v2718, 1
      %v2841 = vsel %vm666, %v2839, %v2840
      %v2842 = vrot.slane %v2719, 1
      %v2843 = vsel %vm666, %v2840, %v2842
      %v2844 = vrot.slane %v2720, 1
      %v2845 = vrot.slane %v2721, 1
      %v2846 = vsel %vm666, %v2844, %v2845
      %v2847 = vrot.slane %v2722, 1
      %v2848 = vsel %vm666, %v2845, %v2847
      %v2849 = vrot.slane %v2723, 1
      %v2850 = vrot.slane %v2724, 1
      %v2851 = vsel %vm666, %v2849, %v2850
      %v2852 = vrot.slane %v2725, 1
      %v2853 = vsel %vm666, %v2850, %v2852
      %v2886 = vadd.f32 %v2641, %v2776
      %v2887 = vadd.f32 %v2642, %v2778
      %v2888 = vadd.f32 %v2643, %v2781
      %v2889 = vadd.f32 %v2644, %v2783
      %v2890 = vadd.f32 %v2645, %v2786
      %v2891 = vadd.f32 %v2646, %v2788
      %v2892 = vadd.f32 %v2647, %v2791
      %v2893 = vadd.f32 %v2648, %v2793
      %v2894 = vadd.f32 %v2649, %v2796
      %v2895 = vadd.f32 %v2650, %v2798
      %v2896 = vadd.f32 %v2651, %v2801
      %v2897 = vadd.f32 %v2652, %v2803
      %v2898 = vadd.f32 %v2653, %v2806
      %v2899 = vadd.f32 %v2654, %v2808
      %v2900 = vadd.f32 %v2655, %v2811
      %v2901 = vadd.f32 %v2656, %v2813
      %v2902 = vadd.f32 %v2657, %v2816
      %v2903 = vadd.f32 %v2658, %v2818
      %v2904 = vadd.f32 %v2659, %v2821
      %v2905 = vadd.f32 %v2660, %v2823
      %v2906 = vadd.f32 %v2661, %v2826
      %v2907 = vadd.f32 %v2662, %v2828
      %v2908 = vadd.f32 %v2663, %v2831
      %v2909 = vadd.f32 %v2664, %v2833
      %v2910 = vadd.f32 %v2665, %v2836
      %v2911 = vadd.f32 %v2666, %v2838
      %v2912 = vadd.f32 %v2667, %v2841
      %v2913 = vadd.f32 %v2668, %v2843
      %v2914 = vadd.f32 %v2669, %v2846
      %v2915 = vadd.f32 %v2670, %v2848
      %v2916 = vadd.f32 %v2671, %v2851
      %v2917 = vadd.f32 %v2672, %v2853
      %v2918 = vld [vmem:[%s370 + $0xc] sm:$0x1]
      %v2919 = vlaneseq
      %v2920 = vshrl.u32 %v2919, 7
      %v2921 = vsub.s32 0, %v2920
      %v2922 = vrot.slane %v2918, %v2921
      %v2923 = vmul.f32 %v454, %v2922
      %v2924 = vmul.f32 %v455, %v2922
      %v2925 = vmul.f32 %v456, %v2922
      %v2926 = vmul.f32 %v457, %v2922
      %v2927 = vmul.f32 %v458, %v2922
      %v2928 = vmul.f32 %v459, %v2922
      %v2929 = vmul.f32 %v460, %v2922
      %v2930 = vmul.f32 %v461, %v2922
      %v2931 = vmul.f32 %v462, %v2922
      %v2932 = vmul.f32 %v463, %v2922
      %v2933 = vmul.f32 %v464, %v2922
      %v2934 = vmul.f32 %v465, %v2922
      %v2935 = vmul.f32 %v466, %v2922
      %v2936 = vmul.f32 %v467, %v2922
      %v2937 = vmul.f32 %v468, %v2922
      %v2938 = vmul.f32 %v469, %v2922
      %v2939 = vmul.f32 %v470, %v2922
      %v2940 = vmul.f32 %v471, %v2922
      %v2941 = vmul.f32 %v472, %v2922
      %v2942 = vmul.f32 %v473, %v2922
      %v2943 = vmul.f32 %v474, %v2922
      %v2944 = vmul.f32 %v475, %v2922
      %v2945 = vmul.f32 %v476, %v2922
      %v2946 = vmul.f32 %v477, %v2922
      %v2947 = vmul.f32 %v478, %v2922
      %v2948 = vmul.f32 %v479, %v2922
      %v2949 = vmul.f32 %v480, %v2922
      %v2950 = vmul.f32 %v481, %v2922
      %v2951 = vmul.f32 %v482, %v2922
      %v2952 = vmul.f32 %v483, %v2922
      %v2953 = vmul.f32 %v484, %v2922
      %v2954 = vmul.f32 %v485, %v2922
      %v2955 = vmul.f32 %v486, %v2922
      %v2956 = vmul.f32 %v487, %v2922
      %v2957 = vmul.f32 %v488, %v2922
      %v2958 = vmul.f32 %v489, %v2922
      %v2959 = vmul.f32 %v490, %v2922
      %v2960 = vmul.f32 %v491, %v2922
      %v2961 = vmul.f32 %v492, %v2922
      %v2962 = vmul.f32 %v493, %v2922
      %v2963 = vmul.f32 %v494, %v2922
      %v2964 = vmul.f32 %v495, %v2922
      %v2965 = vmul.f32 %v1549, %v2922
      %v2966 = vmul.f32 %v1550, %v2922
      %v2967 = vmul.f32 %v1551, %v2922
      %v2968 = vmul.f32 %v2601, %v2922
      %v2969 = vmul.f32 %v2602, %v2922
      %v2970 = vmul.f32 %v2603, %v2922
      %v3019 = vrot.slane %v2923, 2
      %v3020 = vrot.slane %v2924, 2
      %v3021 = vsel %vm912, %v3019, %v3020
      %v3022 = vrot.slane %v2925, 2
      %v3023 = vsel %vm912, %v3020, %v3022
      %v3024 = vrot.slane %v2926, 2
      %v3025 = vrot.slane %v2927, 2
      %v3026 = vsel %vm912, %v3024, %v3025
      %v3027 = vrot.slane %v2928, 2
      %v3028 = vsel %vm912, %v3025, %v3027
      %v3029 = vrot.slane %v2929, 2
      %v3030 = vrot.slane %v2930, 2
      %v3031 = vsel %vm912, %v3029, %v3030
      %v3032 = vrot.slane %v2931, 2
      %v3033 = vsel %vm912, %v3030, %v3032
      %v3034 = vrot.slane %v2932, 2
      %v3035 = vrot.slane %v2933, 2
      %v3036 = vsel %vm912, %v3034, %v3035
      %v3037 = vrot.slane %v2934, 2
      %v3038 = vsel %vm912, %v3035, %v3037
      %v3039 = vrot.slane %v2935, 2
      %v3040 = vrot.slane %v2936, 2
      %v3041 = vsel %vm912, %v3039, %v3040
      %v3042 = vrot.slane %v2937, 2
      %v3043 = vsel %vm912, %v3040, %v3042
      %v3044 = vrot.slane %v2938, 2
      %v3045 = vrot.slane %v2939, 2
      %v3046 = vsel %vm912, %v3044, %v3045
      %v3047 = vrot.slane %v2940, 2
      %v3048 = vsel %vm912, %v3045, %v3047
      %v3049 = vrot.slane %v2941, 2
      %v3050 = vrot.slane %v2942, 2
      %v3051 = vsel %vm912, %v3049, %v3050
      %v3052 = vrot.slane %v2943, 2
      %v3053 = vsel %vm912, %v3050, %v3052
      %v3054 = vrot.slane %v2944, 2
      %v3055 = vrot.slane %v2945, 2
      %v3056 = vsel %vm912, %v3054, %v3055
      %v3057 = vrot.slane %v2946, 2
      %v3058 = vsel %vm912, %v3055, %v3057
      %v3059 = vrot.slane %v2947, 2
      %v3060 = vrot.slane %v2948, 2
      %v3061 = vsel %vm912, %v3059, %v3060
      %v3062 = vrot.slane %v2949, 2
      %v3063 = vsel %vm912, %v3060, %v3062
      %v3064 = vrot.slane %v2950, 2
      %v3065 = vrot.slane %v2951, 2
      %v3066 = vsel %vm912, %v3064, %v3065
      %v3067 = vrot.slane %v2952, 2
      %v3068 = vsel %vm912, %v3065, %v3067
      %v3069 = vrot.slane %v2953, 2
      %v3070 = vrot.slane %v2954, 2
      %v3071 = vsel %vm912, %v3069, %v3070
      %v3072 = vrot.slane %v2955, 2
      %v3073 = vsel %vm912, %v3070, %v3072
      %v3074 = vrot.slane %v2956, 2
      %v3075 = vrot.slane %v2957, 2
      %v3076 = vsel %vm912, %v3074, %v3075
      %v3077 = vrot.slane %v2958, 2
      %v3078 = vsel %vm912, %v3075, %v3077
      %v3079 = vrot.slane %v2959, 2
      %v3080 = vrot.slane %v2960, 2
      %v3081 = vsel %vm912, %v3079, %v3080
      %v3082 = vrot.slane %v2961, 2
      %v3083 = vsel %vm912, %v3080, %v3082
      %v3084 = vrot.slane %v2962, 2
      %v3085 = vrot.slane %v2963, 2
      %v3086 = vsel %vm912, %v3084, %v3085
      %v3087 = vrot.slane %v2964, 2
      %v3088 = vsel %vm912, %v3085, %v3087
      %v3089 = vrot.slane %v2965, 2
      %v3090 = vrot.slane %v2966, 2
      %v3091 = vsel %vm912, %v3089, %v3090
      %v3092 = vrot.slane %v2967, 2
      %v3093 = vsel %vm912, %v3090, %v3092
      %v3094 = vrot.slane %v2968, 2
      %v3095 = vrot.slane %v2969, 2
      %v3096 = vsel %vm912, %v3094, %v3095
      %v3097 = vrot.slane %v2970, 2
      %v3098 = vsel %vm912, %v3095, %v3097
      %v3131 = vadd.f32 %v2886, %v3021
      %v3132 = vadd.f32 %v2887, %v3023
      %v3133 = vadd.f32 %v2888, %v3026
      %v3134 = vadd.f32 %v2889, %v3028
      %v3135 = vadd.f32 %v2890, %v3031
      %v3136 = vadd.f32 %v2891, %v3033
      %v3137 = vadd.f32 %v2892, %v3036
      %v3138 = vadd.f32 %v2893, %v3038
      %v3139 = vadd.f32 %v2894, %v3041
      %v3140 = vadd.f32 %v2895, %v3043
      %v3141 = vadd.f32 %v2896, %v3046
      %v3142 = vadd.f32 %v2897, %v3048
      %v3143 = vadd.f32 %v2898, %v3051
      %v3144 = vadd.f32 %v2899, %v3053
      %v3145 = vadd.f32 %v2900, %v3056
      %v3146 = vadd.f32 %v2901, %v3058
      %v3147 = vadd.f32 %v2902, %v3061
      %v3148 = vadd.f32 %v2903, %v3063
      %v3149 = vadd.f32 %v2904, %v3066
      %v3150 = vadd.f32 %v2905, %v3068
      %v3151 = vadd.f32 %v2906, %v3071
      %v3152 = vadd.f32 %v2907, %v3073
      %v3153 = vadd.f32 %v2908, %v3076
      %v3154 = vadd.f32 %v2909, %v3078
      %v3155 = vadd.f32 %v2910, %v3081
      %v3156 = vadd.f32 %v2911, %v3083
      %v3157 = vadd.f32 %v2912, %v3086
      %v3158 = vadd.f32 %v2913, %v3088
      %v3159 = vadd.f32 %v2914, %v3091
      %v3160 = vadd.f32 %v2915, %v3093
      %v3161 = vadd.f32 %v2916, %v3096
      %v3162 = vadd.f32 %v2917, %v3098
      %v3163 = vld [vmem:[%s370 + $0xd] sm:$0x1]
      %v3164 = vlaneseq
      %v3165 = vshrl.u32 %v3164, 7
      %v3166 = vsub.s32 0, %v3165
      %v3167 = vrot.slane %v3163, %v3166
      %v3168 = vmul.f32 %v454, %v3167
      %v3169 = vmul.f32 %v455, %v3167
      %v3170 = vmul.f32 %v456, %v3167
      %v3171 = vmul.f32 %v457, %v3167
      %v3172 = vmul.f32 %v458, %v3167
      %v3173 = vmul.f32 %v459, %v3167
      %v3174 = vmul.f32 %v460, %v3167
      %v3175 = vmul.f32 %v461, %v3167
      %v3176 = vmul.f32 %v462, %v3167
      %v3177 = vmul.f32 %v463, %v3167
      %v3178 = vmul.f32 %v464, %v3167
      %v3179 = vmul.f32 %v465, %v3167
      %v3180 = vmul.f32 %v466, %v3167
      %v3181 = vmul.f32 %v467, %v3167
      %v3182 = vmul.f32 %v468, %v3167
      %v3183 = vmul.f32 %v469, %v3167
      %v3184 = vmul.f32 %v470, %v3167
      %v3185 = vmul.f32 %v471, %v3167
      %v3186 = vmul.f32 %v472, %v3167
      %v3187 = vmul.f32 %v473, %v3167
      %v3188 = vmul.f32 %v474, %v3167
      %v3189 = vmul.f32 %v475, %v3167
      %v3190 = vmul.f32 %v476, %v3167
      %v3191 = vmul.f32 %v477, %v3167
      %v3192 = vmul.f32 %v478, %v3167
      %v3193 = vmul.f32 %v479, %v3167
      %v3194 = vmul.f32 %v480, %v3167
      %v3195 = vmul.f32 %v481, %v3167
      %v3196 = vmul.f32 %v482, %v3167
      %v3197 = vmul.f32 %v483, %v3167
      %v3198 = vmul.f32 %v484, %v3167
      %v3199 = vmul.f32 %v485, %v3167
      %v3200 = vmul.f32 %v486, %v3167
      %v3201 = vmul.f32 %v487, %v3167
      %v3202 = vmul.f32 %v488, %v3167
      %v3203 = vmul.f32 %v489, %v3167
      %v3204 = vmul.f32 %v490, %v3167
      %v3205 = vmul.f32 %v491, %v3167
      %v3206 = vmul.f32 %v492, %v3167
      %v3207 = vmul.f32 %v493, %v3167
      %v3208 = vmul.f32 %v494, %v3167
      %v3209 = vmul.f32 %v495, %v3167
      %v3210 = vmul.f32 %v1549, %v3167
      %v3211 = vmul.f32 %v1550, %v3167
      %v3212 = vmul.f32 %v1551, %v3167
      %v3213 = vmul.f32 %v2601, %v3167
      %v3214 = vmul.f32 %v2602, %v3167
      %v3215 = vmul.f32 %v2603, %v3167
      %v3264 = vrot.slane %v3168, 3
      %v3265 = vrot.slane %v3169, 3
      %v3266 = vsel %vm1158, %v3264, %v3265
      %v3267 = vrot.slane %v3170, 3
      %v3268 = vsel %vm1158, %v3265, %v3267
      %v3269 = vrot.slane %v3171, 3
      %v3270 = vrot.slane %v3172, 3
      %v3271 = vsel %vm1158, %v3269, %v3270
      %v3272 = vrot.slane %v3173, 3
      %v3273 = vsel %vm1158, %v3270, %v3272
      %v3274 = vrot.slane %v3174, 3
      %v3275 = vrot.slane %v3175, 3
      %v3276 = vsel %vm1158, %v3274, %v3275
      %v3277 = vrot.slane %v3176, 3
      %v3278 = vsel %vm1158, %v3275, %v3277
      %v3279 = vrot.slane %v3177, 3
      %v3280 = vrot.slane %v3178, 3
      %v3281 = vsel %vm1158, %v3279, %v3280
      %v3282 = vrot.slane %v3179, 3
      %v3283 = vsel %vm1158, %v3280, %v3282
      %v3284 = vrot.slane %v3180, 3
      %v3285 = vrot.slane %v3181, 3
      %v3286 = vsel %vm1158, %v3284, %v3285
      %v3287 = vrot.slane %v3182, 3
      %v3288 = vsel %vm1158, %v3285, %v3287
      %v3289 = vrot.slane %v3183, 3
      %v3290 = vrot.slane %v3184, 3
      %v3291 = vsel %vm1158, %v3289, %v3290
      %v3292 = vrot.slane %v3185, 3
      %v3293 = vsel %vm1158, %v3290, %v3292
      %v3294 = vrot.slane %v3186, 3
      %v3295 = vrot.slane %v3187, 3
      %v3296 = vsel %vm1158, %v3294, %v3295
      %v3297 = vrot.slane %v3188, 3
      %v3298 = vsel %vm1158, %v3295, %v3297
      %v3299 = vrot.slane %v3189, 3
      %v3300 = vrot.slane %v3190, 3
      %v3301 = vsel %vm1158, %v3299, %v3300
      %v3302 = vrot.slane %v3191, 3
      %v3303 = vsel %vm1158, %v3300, %v3302
      %v3304 = vrot.slane %v3192, 3
      %v3305 = vrot.slane %v3193, 3
      %v3306 = vsel %vm1158, %v3304, %v3305
      %v3307 = vrot.slane %v3194, 3
      %v3308 = vsel %vm1158, %v3305, %v3307
      %v3309 = vrot.slane %v3195, 3
      %v3310 = vrot.slane %v3196, 3
      %v3311 = vsel %vm1158, %v3309, %v3310
      %v3312 = vrot.slane %v3197, 3
      %v3313 = vsel %vm1158, %v3310, %v3312
      %v3314 = vrot.slane %v3198, 3
      %v3315 = vrot.slane %v3199, 3
      %v3316 = vsel %vm1158, %v3314, %v3315
      %v3317 = vrot.slane %v3200, 3
      %v3318 = vsel %vm1158, %v3315, %v3317
      %v3319 = vrot.slane %v3201, 3
      %v3320 = vrot.slane %v3202, 3
      %v3321 = vsel %vm1158, %v3319, %v3320
      %v3322 = vrot.slane %v3203, 3
      %v3323 = vsel %vm1158, %v3320, %v3322
      %v3324 = vrot.slane %v3204, 3
      %v3325 = vrot.slane %v3205, 3
      %v3326 = vsel %vm1158, %v3324, %v3325
      %v3327 = vrot.slane %v3206, 3
      %v3328 = vsel %vm1158, %v3325, %v3327
      %v3329 = vrot.slane %v3207, 3
      %v3330 = vrot.slane %v3208, 3
      %v3331 = vsel %vm1158, %v3329, %v3330
      %v3332 = vrot.slane %v3209, 3
      %v3333 = vsel %vm1158, %v3330, %v3332
      %v3334 = vrot.slane %v3210, 3
      %v3335 = vrot.slane %v3211, 3
      %v3336 = vsel %vm1158, %v3334, %v3335
      %v3337 = vrot.slane %v3212, 3
      %v3338 = vsel %vm1158, %v3335, %v3337
      %v3339 = vrot.slane %v3213, 3
      %v3340 = vrot.slane %v3214, 3
      %v3341 = vsel %vm1158, %v3339, %v3340
      %v3342 = vrot.slane %v3215, 3
      %v3343 = vsel %vm1158, %v3340, %v3342
      %v3376 = vadd.f32 %v3131, %v3266
      %v3377 = vadd.f32 %v3132, %v3268
      %v3378 = vadd.f32 %v3133, %v3271
      %v3379 = vadd.f32 %v3134, %v3273
      %v3380 = vadd.f32 %v3135, %v3276
      %v3381 = vadd.f32 %v3136, %v3278
      %v3382 = vadd.f32 %v3137, %v3281
      %v3383 = vadd.f32 %v3138, %v3283
      %v3384 = vadd.f32 %v3139, %v3286
      %v3385 = vadd.f32 %v3140, %v3288
      %v3386 = vadd.f32 %v3141, %v3291
      %v3387 = vadd.f32 %v3142, %v3293
      %v3388 = vadd.f32 %v3143, %v3296
      %v3389 = vadd.f32 %v3144, %v3298
      %v3390 = vadd.f32 %v3145, %v3301
      %v3391 = vadd.f32 %v3146, %v3303
      %v3392 = vadd.f32 %v3147, %v3306
      %v3393 = vadd.f32 %v3148, %v3308
      %v3394 = vadd.f32 %v3149, %v3311
      %v3395 = vadd.f32 %v3150, %v3313
      %v3396 = vadd.f32 %v3151, %v3316
      %v3397 = vadd.f32 %v3152, %v3318
      %v3398 = vadd.f32 %v3153, %v3321
      %v3399 = vadd.f32 %v3154, %v3323
      %v3400 = vadd.f32 %v3155, %v3326
      %v3401 = vadd.f32 %v3156, %v3328
      %v3402 = vadd.f32 %v3157, %v3331
      %v3403 = vadd.f32 %v3158, %v3333
      %v3404 = vadd.f32 %v3159, %v3336
      %v3405 = vadd.f32 %v3160, %v3338
      %v3406 = vadd.f32 %v3161, %v3341
      %v3407 = vadd.f32 %v3162, %v3343
      %v3408 = vld [vmem:[%s370 + $0xe] sm:$0x1]
      %v3409 = vlaneseq
      %v3410 = vshrl.u32 %v3409, 7
      %v3411 = vsub.s32 0, %v3410
      %v3412 = vrot.slane %v3408, %v3411
      %v3413 = vmul.f32 %v454, %v3412
      %v3414 = vmul.f32 %v455, %v3412
      %v3415 = vmul.f32 %v456, %v3412
      %v3416 = vmul.f32 %v457, %v3412
      %v3417 = vmul.f32 %v458, %v3412
      %v3418 = vmul.f32 %v459, %v3412
      %v3419 = vmul.f32 %v460, %v3412
      %v3420 = vmul.f32 %v461, %v3412
      %v3421 = vmul.f32 %v462, %v3412
      %v3422 = vmul.f32 %v463, %v3412
      %v3423 = vmul.f32 %v464, %v3412
      %v3424 = vmul.f32 %v465, %v3412
      %v3425 = vmul.f32 %v466, %v3412
      %v3426 = vmul.f32 %v467, %v3412
      %v3427 = vmul.f32 %v468, %v3412
      %v3428 = vmul.f32 %v469, %v3412
      %v3429 = vmul.f32 %v470, %v3412
      %v3430 = vmul.f32 %v471, %v3412
      %v3431 = vmul.f32 %v472, %v3412
      %v3432 = vmul.f32 %v473, %v3412
      %v3433 = vmul.f32 %v474, %v3412
      %v3434 = vmul.f32 %v475, %v3412
      %v3435 = vmul.f32 %v476, %v3412
      %v3436 = vmul.f32 %v477, %v3412
      %v3437 = vmul.f32 %v478, %v3412
      %v3438 = vmul.f32 %v479, %v3412
      %v3439 = vmul.f32 %v480, %v3412
      %v3440 = vmul.f32 %v481, %v3412
      %v3441 = vmul.f32 %v482, %v3412
      %v3442 = vmul.f32 %v483, %v3412
      %v3443 = vmul.f32 %v484, %v3412
      %v3444 = vmul.f32 %v485, %v3412
      %v3445 = vmul.f32 %v486, %v3412
      %v3446 = vmul.f32 %v487, %v3412
      %v3447 = vmul.f32 %v488, %v3412
      %v3448 = vmul.f32 %v489, %v3412
      %v3449 = vmul.f32 %v490, %v3412
      %v3450 = vmul.f32 %v491, %v3412
      %v3451 = vmul.f32 %v492, %v3412
      %v3452 = vmul.f32 %v493, %v3412
      %v3453 = vmul.f32 %v494, %v3412
      %v3454 = vmul.f32 %v495, %v3412
      %v3455 = vmul.f32 %v1549, %v3412
      %v3456 = vmul.f32 %v1550, %v3412
      %v3457 = vmul.f32 %v1551, %v3412
      %v3458 = vmul.f32 %v2601, %v3412
      %v3459 = vmul.f32 %v2602, %v3412
      %v3460 = vmul.f32 %v2603, %v3412
      %v3509 = vrot.slane %v3413, 4
      %v3510 = vrot.slane %v3414, 4
      %v3511 = vsel %vm1404, %v3509, %v3510
      %v3512 = vrot.slane %v3415, 4
      %v3513 = vsel %vm1404, %v3510, %v3512
      %v3514 = vrot.slane %v3416, 4
      %v3515 = vrot.slane %v3417, 4
      %v3516 = vsel %vm1404, %v3514, %v3515
      %v3517 = vrot.slane %v3418, 4
      %v3518 = vsel %vm1404, %v3515, %v3517
      %v3519 = vrot.slane %v3419, 4
      %v3520 = vrot.slane %v3420, 4
      %v3521 = vsel %vm1404, %v3519, %v3520
      %v3522 = vrot.slane %v3421, 4
      %v3523 = vsel %vm1404, %v3520, %v3522
      %v3524 = vrot.slane %v3422, 4
      %v3525 = vrot.slane %v3423, 4
      %v3526 = vsel %vm1404, %v3524, %v3525
      %v3527 = vrot.slane %v3424, 4
      %v3528 = vsel %vm1404, %v3525, %v3527
      %v3529 = vrot.slane %v3425, 4
      %v3530 = vrot.slane %v3426, 4
      %v3531 = vsel %vm1404, %v3529, %v3530
      %v3532 = vrot.slane %v3427, 4
      %v3533 = vsel %vm1404, %v3530, %v3532
      %v3534 = vrot.slane %v3428, 4
      %v3535 = vrot.slane %v3429, 4
      %v3536 = vsel %vm1404, %v3534, %v3535
      %v3537 = vrot.slane %v3430, 4
      %v3538 = vsel %vm1404, %v3535, %v3537
      %v3539 = vrot.slane %v3431, 4
      %v3540 = vrot.slane %v3432, 4
      %v3541 = vsel %vm1404, %v3539, %v3540
      %v3542 = vrot.slane %v3433, 4
      %v3543 = vsel %vm1404, %v3540, %v3542
      %v3544 = vrot.slane %v3434, 4
      %v3545 = vrot.slane %v3435, 4
      %v3546 = vsel %vm1404, %v3544, %v3545
      %v3547 = vrot.slane %v3436, 4
      %v3548 = vsel %vm1404, %v3545, %v3547
      %v3549 = vrot.slane %v3437, 4
      %v3550 = vrot.slane %v3438, 4
      %v3551 = vsel %vm1404, %v3549, %v3550
      %v3552 = vrot.slane %v3439, 4
      %v3553 = vsel %vm1404, %v3550, %v3552
      %v3554 = vrot.slane %v3440, 4
      %v3555 = vrot.slane %v3441, 4
      %v3556 = vsel %vm1404, %v3554, %v3555
      %v3557 = vrot.slane %v3442, 4
      %v3558 = vsel %vm1404, %v3555, %v3557
      %v3559 = vrot.slane %v3443, 4
      %v3560 = vrot.slane %v3444, 4
      %v3561 = vsel %vm1404, %v3559, %v3560
      %v3562 = vrot.slane %v3445, 4
      %v3563 = vsel %vm1404, %v3560, %v3562
      %v3564 = vrot.slane %v3446, 4
      %v3565 = vrot.slane %v3447, 4
      %v3566 = vsel %vm1404, %v3564, %v3565
      %v3567 = vrot.slane %v3448, 4
      %v3568 = vsel %vm1404, %v3565, %v3567
      %v3569 = vrot.slane %v3449, 4
      %v3570 = vrot.slane %v3450, 4
      %v3571 = vsel %vm1404, %v3569, %v3570
      %v3572 = vrot.slane %v3451, 4
      %v3573 = vsel %vm1404, %v3570, %v3572
      %v3574 = vrot.slane %v3452, 4
      %v3575 = vrot.slane %v3453, 4
      %v3576 = vsel %vm1404, %v3574, %v3575
      %v3577 = vrot.slane %v3454, 4
      %v3578 = vsel %vm1404, %v3575, %v3577
      %v3579 = vrot.slane %v3455, 4
      %v3580 = vrot.slane %v3456, 4
      %v3581 = vsel %vm1404, %v3579, %v3580
      %v3582 = vrot.slane %v3457, 4
      %v3583 = vsel %vm1404, %v3580, %v3582
      %v3584 = vrot.slane %v3458, 4
      %v3585 = vrot.slane %v3459, 4
      %v3586 = vsel %vm1404, %v3584, %v3585
      %v3587 = vrot.slane %v3460, 4
      %v3588 = vsel %vm1404, %v3585, %v3587
      %v3621 = vadd.f32 %v3376, %v3511
      %v3622 = vadd.f32 %v3377, %v3513
      %v3623 = vadd.f32 %v3378, %v3516
      %v3624 = vadd.f32 %v3379, %v3518
      %v3625 = vadd.f32 %v3380, %v3521
      %v3626 = vadd.f32 %v3381, %v3523
      %v3627 = vadd.f32 %v3382, %v3526
      %v3628 = vadd.f32 %v3383, %v3528
      %v3629 = vadd.f32 %v3384, %v3531
      %v3630 = vadd.f32 %v3385, %v3533
      %v3631 = vadd.f32 %v3386, %v3536
      %v3632 = vadd.f32 %v3387, %v3538
      %v3633 = vadd.f32 %v3388, %v3541
      %v3634 = vadd.f32 %v3389, %v3543
      %v3635 = vadd.f32 %v3390, %v3546
      %v3636 = vadd.f32 %v3391, %v3548
      %v3637 = vadd.f32 %v3392, %v3551
      %v3638 = vadd.f32 %v3393, %v3553
      %v3639 = vadd.f32 %v3394, %v3556
      %v3640 = vadd.f32 %v3395, %v3558
      %v3641 = vadd.f32 %v3396, %v3561
      %v3642 = vadd.f32 %v3397, %v3563
      %v3643 = vadd.f32 %v3398, %v3566
      %v3644 = vadd.f32 %v3399, %v3568
      %v3645 = vadd.f32 %v3400, %v3571
      %v3646 = vadd.f32 %v3401, %v3573
      %v3647 = vadd.f32 %v3402, %v3576
      %v3648 = vadd.f32 %v3403, %v3578
      %v3649 = vadd.f32 %v3404, %v3581
      %v3650 = vadd.f32 %v3405, %v3583
      %v3651 = vadd.f32 %v3406, %v3586
      %v3652 = vadd.f32 %v3407, %v3588
      %v3653 = vunpack.c.l.bf16 %v442
      %v3654 = vunpack.c.l.bf16 %v443
      %v3655 = vunpack.c.l.bf16 %v444
      %v3656 = vld [vmem:[%s370 + $0xf] sm:$0x1]
      %v3657 = vlaneseq
      %v3658 = vshrl.u32 %v3657, 7
      %v3659 = vsub.s32 0, %v3658
      %v3660 = vrot.slane %v3656, %v3659
      %v3661 = vmul.f32 %v457, %v3660
      %v3662 = vmul.f32 %v458, %v3660
      %v3663 = vmul.f32 %v460, %v3660
      %v3664 = vmul.f32 %v461, %v3660
      %v3665 = vmul.f32 %v463, %v3660
      %v3666 = vmul.f32 %v464, %v3660
      %v3667 = vmul.f32 %v466, %v3660
      %v3668 = vmul.f32 %v467, %v3660
      %v3669 = vmul.f32 %v469, %v3660
      %v3670 = vmul.f32 %v470, %v3660
      %v3671 = vmul.f32 %v472, %v3660
      %v3672 = vmul.f32 %v473, %v3660
      %v3673 = vmul.f32 %v475, %v3660
      %v3674 = vmul.f32 %v476, %v3660
      %v3675 = vmul.f32 %v478, %v3660
      %v3676 = vmul.f32 %v479, %v3660
      %v3677 = vmul.f32 %v481, %v3660
      %v3678 = vmul.f32 %v482, %v3660
      %v3679 = vmul.f32 %v484, %v3660
      %v3680 = vmul.f32 %v485, %v3660
      %v3681 = vmul.f32 %v487, %v3660
      %v3682 = vmul.f32 %v488, %v3660
      %v3683 = vmul.f32 %v490, %v3660
      %v3684 = vmul.f32 %v491, %v3660
      %v3685 = vmul.f32 %v493, %v3660
      %v3686 = vmul.f32 %v494, %v3660
      %v3687 = vmul.f32 %v1549, %v3660
      %v3688 = vmul.f32 %v1550, %v3660
      %v3689 = vmul.f32 %v2601, %v3660
      %v3690 = vmul.f32 %v2602, %v3660
      %v3691 = vmul.f32 %v3653, %v3660
      %v3692 = vmul.f32 %v3654, %v3660
      %v3693 = vadd.f32 %v3621, %v3661
      %v3694 = vadd.f32 %v3622, %v3662
      %v3695 = vadd.f32 %v3623, %v3663
      %v3696 = vadd.f32 %v3624, %v3664
      %v3697 = vadd.f32 %v3625, %v3665
      %v3698 = vadd.f32 %v3626, %v3666
      %v3699 = vadd.f32 %v3627, %v3667
      %v3700 = vadd.f32 %v3628, %v3668
      %v3701 = vadd.f32 %v3629, %v3669
      %v3702 = vadd.f32 %v3630, %v3670
      %v3703 = vadd.f32 %v3631, %v3671
      %v3704 = vadd.f32 %v3632, %v3672
      %v3705 = vadd.f32 %v3633, %v3673
      %v3706 = vadd.f32 %v3634, %v3674
      %v3707 = vadd.f32 %v3635, %v3675
      %v3708 = vadd.f32 %v3636, %v3676
      %v3709 = vadd.f32 %v3637, %v3677
      %v3710 = vadd.f32 %v3638, %v3678
      %v3711 = vadd.f32 %v3639, %v3679
      %v3712 = vadd.f32 %v3640, %v3680
      %v3713 = vadd.f32 %v3641, %v3681
      %v3714 = vadd.f32 %v3642, %v3682
      %v3715 = vadd.f32 %v3643, %v3683
      %v3716 = vadd.f32 %v3644, %v3684
      %v3717 = vadd.f32 %v3645, %v3685
      %v3718 = vadd.f32 %v3646, %v3686
      %v3719 = vadd.f32 %v3647, %v3687
      %v3720 = vadd.f32 %v3648, %v3688
      %v3721 = vadd.f32 %v3649, %v3689
      %v3722 = vadd.f32 %v3650, %v3690
      %v3723 = vadd.f32 %v3651, %v3691
      %v3724 = vadd.f32 %v3652, %v3692
      %v3725 = vld [vmem:[%s370 + $0x10] sm:$0x1]
      %v3726 = vlaneseq
      %v3727 = vshrl.u32 %v3726, 7
      %v3728 = vsub.s32 0, %v3727
      %v3729 = vrot.slane %v3725, %v3728
      %v3730 = vmul.f32 %v457, %v3729
      %v3731 = vmul.f32 %v458, %v3729
      %v3732 = vmul.f32 %v459, %v3729
      %v3733 = vmul.f32 %v460, %v3729
      %v3734 = vmul.f32 %v461, %v3729
      %v3735 = vmul.f32 %v462, %v3729
      %v3736 = vmul.f32 %v463, %v3729
      %v3737 = vmul.f32 %v464, %v3729
      %v3738 = vmul.f32 %v465, %v3729
      %v3739 = vmul.f32 %v466, %v3729
      %v3740 = vmul.f32 %v467, %v3729
      %v3741 = vmul.f32 %v468, %v3729
      %v3742 = vmul.f32 %v469, %v3729
      %v3743 = vmul.f32 %v470, %v3729
      %v3744 = vmul.f32 %v471, %v3729
      %v3745 = vmul.f32 %v472, %v3729
      %v3746 = vmul.f32 %v473, %v3729
      %v3747 = vmul.f32 %v474, %v3729
      %v3748 = vmul.f32 %v475, %v3729
      %v3749 = vmul.f32 %v476, %v3729
      %v3750 = vmul.f32 %v477, %v3729
      %v3751 = vmul.f32 %v478, %v3729
      %v3752 = vmul.f32 %v479, %v3729
      %v3753 = vmul.f32 %v480, %v3729
      %v3754 = vmul.f32 %v481, %v3729
      %v3755 = vmul.f32 %v482, %v3729
      %v3756 = vmul.f32 %v483, %v3729
      %v3757 = vmul.f32 %v484, %v3729
      %v3758 = vmul.f32 %v485, %v3729
      %v3759 = vmul.f32 %v486, %v3729
      %v3760 = vmul.f32 %v487, %v3729
      %v3761 = vmul.f32 %v488, %v3729
      %v3762 = vmul.f32 %v489, %v3729
      %v3763 = vmul.f32 %v490, %v3729
      %v3764 = vmul.f32 %v491, %v3729
      %v3765 = vmul.f32 %v492, %v3729
      %v3766 = vmul.f32 %v493, %v3729
      %v3767 = vmul.f32 %v494, %v3729
      %v3768 = vmul.f32 %v495, %v3729
      %v3769 = vmul.f32 %v1549, %v3729
      %v3770 = vmul.f32 %v1550, %v3729
      %v3771 = vmul.f32 %v1551, %v3729
      %v3772 = vmul.f32 %v2601, %v3729
      %v3773 = vmul.f32 %v2602, %v3729
      %v3774 = vmul.f32 %v2603, %v3729
      %v3775 = vmul.f32 %v3653, %v3729
      %v3776 = vmul.f32 %v3654, %v3729
      %v3777 = vmul.f32 %v3655, %v3729
      %v3826 = vrot.slane %v3730, 1
      %v3827 = vrot.slane %v3731, 1
      %v3828 = vsel %vm666, %v3826, %v3827
      %v3829 = vrot.slane %v3732, 1
      %v3830 = vsel %vm666, %v3827, %v3829
      %v3831 = vrot.slane %v3733, 1
      %v3832 = vrot.slane %v3734, 1
      %v3833 = vsel %vm666, %v3831, %v3832
      %v3834 = vrot.slane %v3735, 1
      %v3835 = vsel %vm666, %v3832, %v3834
      %v3836 = vrot.slane %v3736, 1
      %v3837 = vrot.slane %v3737, 1
      %v3838 = vsel %vm666, %v3836, %v3837
      %v3839 = vrot.slane %v3738, 1
      %v3840 = vsel %vm666, %v3837, %v3839
      %v3841 = vrot.slane %v3739, 1
      %v3842 = vrot.slane %v3740, 1
      %v3843 = vsel %vm666, %v3841, %v3842
      %v3844 = vrot.slane %v3741, 1
      %v3845 = vsel %vm666, %v3842, %v3844
      %v3846 = vrot.slane %v3742, 1
      %v3847 = vrot.slane %v3743, 1
      %v3848 = vsel %vm666, %v3846, %v3847
      %v3849 = vrot.slane %v3744, 1
      %v3850 = vsel %vm666, %v3847, %v3849
      %v3851 = vrot.slane %v3745, 1
      %v3852 = vrot.slane %v3746, 1
      %v3853 = vsel %vm666, %v3851, %v3852
      %v3854 = vrot.slane %v3747, 1
      %v3855 = vsel %vm666, %v3852, %v3854
      %v3856 = vrot.slane %v3748, 1
      %v3857 = vrot.slane %v3749, 1
      %v3858 = vsel %vm666, %v3856, %v3857
      %v3859 = vrot.slane %v3750, 1
      %v3860 = vsel %vm666, %v3857, %v3859
      %v3861 = vrot.slane %v3751, 1
      %v3862 = vrot.slane %v3752, 1
      %v3863 = vsel %vm666, %v3861, %v3862
      %v3864 = vrot.slane %v3753, 1
      %v3865 = vsel %vm666, %v3862, %v3864
      %v3866 = vrot.slane %v3754, 1
      %v3867 = vrot.slane %v3755, 1
      %v3868 = vsel %vm666, %v3866, %v3867
      %v3869 = vrot.slane %v3756, 1
      %v3870 = vsel %vm666, %v3867, %v3869
      %v3871 = vrot.slane %v3757, 1
      %v3872 = vrot.slane %v3758, 1
      %v3873 = vsel %vm666, %v3871, %v3872
      %v3874 = vrot.slane %v3759, 1
      %v3875 = vsel %vm666, %v3872, %v3874
      %v3876 = vrot.slane %v3760, 1
      %v3877 = vrot.slane %v3761, 1
      %v3878 = vsel %vm666, %v3876, %v3877
      %v3879 = vrot.slane %v3762, 1
      %v3880 = vsel %vm666, %v3877, %v3879
      %v3881 = vrot.slane %v3763, 1
      %v3882 = vrot.slane %v3764, 1
      %v3883 = vsel %vm666, %v3881, %v3882
      %v3884 = vrot.slane %v3765, 1
      %v3885 = vsel %vm666, %v3882, %v3884
      %v3886 = vrot.slane %v3766, 1
      %v3887 = vrot.slane %v3767, 1
      %v3888 = vsel %vm666, %v3886, %v3887
      %v3889 = vrot.slane %v3768, 1
      %v3890 = vsel %vm666, %v3887, %v3889
      %v3891 = vrot.slane %v3769, 1
      %v3892 = vrot.slane %v3770, 1
      %v3893 = vsel %vm666, %v3891, %v3892
      %v3894 = vrot.slane %v3771, 1
      %v3895 = vsel %vm666, %v3892, %v3894
      %v3896 = vrot.slane %v3772, 1
      %v3897 = vrot.slane %v3773, 1
      %v3898 = vsel %vm666, %v3896, %v3897
      %v3899 = vrot.slane %v3774, 1
      %v3900 = vsel %vm666, %v3897, %v3899
      %v3901 = vrot.slane %v3775, 1
      %v3902 = vrot.slane %v3776, 1
      %v3903 = vsel %vm666, %v3901, %v3902
      %v3904 = vrot.slane %v3777, 1
      %v3905 = vsel %vm666, %v3902, %v3904
      %v3938 = vadd.f32 %v3693, %v3828
      %v3939 = vadd.f32 %v3694, %v3830
      %v3940 = vadd.f32 %v3695, %v3833
      %v3941 = vadd.f32 %v3696, %v3835
      %v3942 = vadd.f32 %v3697, %v3838
      %v3943 = vadd.f32 %v3698, %v3840
      %v3944 = vadd.f32 %v3699, %v3843
      %v3945 = vadd.f32 %v3700, %v3845
      %v3946 = vadd.f32 %v3701, %v3848
      %v3947 = vadd.f32 %v3702, %v3850
      %v3948 = vadd.f32 %v3703, %v3853
      %v3949 = vadd.f32 %v3704, %v3855
      %v3950 = vadd.f32 %v3705, %v3858
      %v3951 = vadd.f32 %v3706, %v3860
      %v3952 = vadd.f32 %v3707, %v3863
      %v3953 = vadd.f32 %v3708, %v3865
      %v3954 = vadd.f32 %v3709, %v3868
      %v3955 = vadd.f32 %v3710, %v3870
      %v3956 = vadd.f32 %v3711, %v3873
      %v3957 = vadd.f32 %v3712, %v3875
      %v3958 = vadd.f32 %v3713, %v3878
      %v3959 = vadd.f32 %v3714, %v3880
      %v3960 = vadd.f32 %v3715, %v3883
      %v3961 = vadd.f32 %v3716, %v3885
      %v3962 = vadd.f32 %v3717, %v3888
      %v3963 = vadd.f32 %v3718, %v3890
      %v3964 = vadd.f32 %v3719, %v3893
      %v3965 = vadd.f32 %v3720, %v3895
      %v3966 = vadd.f32 %v3721, %v3898
      %v3967 = vadd.f32 %v3722, %v3900
      %v3968 = vadd.f32 %v3723, %v3903
      %v3969 = vadd.f32 %v3724, %v3905
      %v3970 = vld [vmem:[%s370 + $0x11] sm:$0x1]
      %v3971 = vlaneseq
      %v3972 = vshrl.u32 %v3971, 7
      %v3973 = vsub.s32 0, %v3972
      %v3974 = vrot.slane %v3970, %v3973
      %v3975 = vmul.f32 %v457, %v3974
      %v3976 = vmul.f32 %v458, %v3974
      %v3977 = vmul.f32 %v459, %v3974
      %v3978 = vmul.f32 %v460, %v3974
      %v3979 = vmul.f32 %v461, %v3974
      %v3980 = vmul.f32 %v462, %v3974
      %v3981 = vmul.f32 %v463, %v3974
      %v3982 = vmul.f32 %v464, %v3974
      %v3983 = vmul.f32 %v465, %v3974
      %v3984 = vmul.f32 %v466, %v3974
      %v3985 = vmul.f32 %v467, %v3974
      %v3986 = vmul.f32 %v468, %v3974
      %v3987 = vmul.f32 %v469, %v3974
      %v3988 = vmul.f32 %v470, %v3974
      %v3989 = vmul.f32 %v471, %v3974
      %v3990 = vmul.f32 %v472, %v3974
      %v3991 = vmul.f32 %v473, %v3974
      %v3992 = vmul.f32 %v474, %v3974
      %v3993 = vmul.f32 %v475, %v3974
      %v3994 = vmul.f32 %v476, %v3974
      %v3995 = vmul.f32 %v477, %v3974
      %v3996 = vmul.f32 %v478, %v3974
      %v3997 = vmul.f32 %v479, %v3974
      %v3998 = vmul.f32 %v480, %v3974
      %v3999 = vmul.f32 %v481, %v3974
      %v4000 = vmul.f32 %v482, %v3974
      %v4001 = vmul.f32 %v483, %v3974
      %v4002 = vmul.f32 %v484, %v3974
      %v4003 = vmul.f32 %v485, %v3974
      %v4004 = vmul.f32 %v486, %v3974
      %v4005 = vmul.f32 %v487, %v3974
      %v4006 = vmul.f32 %v488, %v3974
      %v4007 = vmul.f32 %v489, %v3974
      %v4008 = vmul.f32 %v490, %v3974
      %v4009 = vmul.f32 %v491, %v3974
      %v4010 = vmul.f32 %v492, %v3974
      %v4011 = vmul.f32 %v493, %v3974
      %v4012 = vmul.f32 %v494, %v3974
      %v4013 = vmul.f32 %v495, %v3974
      %v4014 = vmul.f32 %v1549, %v3974
      %v4015 = vmul.f32 %v1550, %v3974
      %v4016 = vmul.f32 %v1551, %v3974
      %v4017 = vmul.f32 %v2601, %v3974
      %v4018 = vmul.f32 %v2602, %v3974
      %v4019 = vmul.f32 %v2603, %v3974
      %v4020 = vmul.f32 %v3653, %v3974
      %v4021 = vmul.f32 %v3654, %v3974
      %v4022 = vmul.f32 %v3655, %v3974
      %v4071 = vrot.slane %v3975, 2
      %v4072 = vrot.slane %v3976, 2
      %v4073 = vsel %vm912, %v4071, %v4072
      %v4074 = vrot.slane %v3977, 2
      %v4075 = vsel %vm912, %v4072, %v4074
      %v4076 = vrot.slane %v3978, 2
      %v4077 = vrot.slane %v3979, 2
      %v4078 = vsel %vm912, %v4076, %v4077
      %v4079 = vrot.slane %v3980, 2
      %v4080 = vsel %vm912, %v4077, %v4079
      %v4081 = vrot.slane %v3981, 2
      %v4082 = vrot.slane %v3982, 2
      %v4083 = vsel %vm912, %v4081, %v4082
      %v4084 = vrot.slane %v3983, 2
      %v4085 = vsel %vm912, %v4082, %v4084
      %v4086 = vrot.slane %v3984, 2
      %v4087 = vrot.slane %v3985, 2
      %v4088 = vsel %vm912, %v4086, %v4087
      %v4089 = vrot.slane %v3986, 2
      %v4090 = vsel %vm912, %v4087, %v4089
      %v4091 = vrot.slane %v3987, 2
      %v4092 = vrot.slane %v3988, 2
      %v4093 = vsel %vm912, %v4091, %v4092
      %v4094 = vrot.slane %v3989, 2
      %v4095 = vsel %vm912, %v4092, %v4094
      %v4096 = vrot.slane %v3990, 2
      %v4097 = vrot.slane %v3991, 2
      %v4098 = vsel %vm912, %v4096, %v4097
      %v4099 = vrot.slane %v3992, 2
      %v4100 = vsel %vm912, %v4097, %v4099
      %v4101 = vrot.slane %v3993, 2
      %v4102 = vrot.slane %v3994, 2
      %v4103 = vsel %vm912, %v4101, %v4102
      %v4104 = vrot.slane %v3995, 2
      %v4105 = vsel %vm912, %v4102, %v4104
      %v4106 = vrot.slane %v3996, 2
      %v4107 = vrot.slane %v3997, 2
      %v4108 = vsel %vm912, %v4106, %v4107
      %v4109 = vrot.slane %v3998, 2
      %v4110 = vsel %vm912, %v4107, %v4109
      %v4111 = vrot.slane %v3999, 2
      %v4112 = vrot.slane %v4000, 2
      %v4113 = vsel %vm912, %v4111, %v4112
      %v4114 = vrot.slane %v4001, 2
      %v4115 = vsel %vm912, %v4112, %v4114
      %v4116 = vrot.slane %v4002, 2
      %v4117 = vrot.slane %v4003, 2
      %v4118 = vsel %vm912, %v4116, %v4117
      %v4119 = vrot.slane %v4004, 2
      %v4120 = vsel %vm912, %v4117, %v4119
      %v4121 = vrot.slane %v4005, 2
      %v4122 = vrot.slane %v4006, 2
      %v4123 = vsel %vm912, %v4121, %v4122
      %v4124 = vrot.slane %v4007, 2
      %v4125 = vsel %vm912, %v4122, %v4124
      %v4126 = vrot.slane %v4008, 2
      %v4127 = vrot.slane %v4009, 2
      %v4128 = vsel %vm912, %v4126, %v4127
      %v4129 = vrot.slane %v4010, 2
      %v4130 = vsel %vm912, %v4127, %v4129
      %v4131 = vrot.slane %v4011, 2
      %v4132 = vrot.slane %v4012, 2
      %v4133 = vsel %vm912, %v4131, %v4132
      %v4134 = vrot.slane %v4013, 2
      %v4135 = vsel %vm912, %v4132, %v4134
      %v4136 = vrot.slane %v4014, 2
      %v4137 = vrot.slane %v4015, 2
      %v4138 = vsel %vm912, %v4136, %v4137
      %v4139 = vrot.slane %v4016, 2
      %v4140 = vsel %vm912, %v4137, %v4139
      %v4141 = vrot.slane %v4017, 2
      %v4142 = vrot.slane %v4018, 2
      %v4143 = vsel %vm912, %v4141, %v4142
      %v4144 = vrot.slane %v4019, 2
      %v4145 = vsel %vm912, %v4142, %v4144
      %v4146 = vrot.slane %v4020, 2
      %v4147 = vrot.slane %v4021, 2
      %v4148 = vsel %vm912, %v4146, %v4147
      %v4149 = vrot.slane %v4022, 2
      %v4150 = vsel %vm912, %v4147, %v4149
      %v4183 = vadd.f32 %v3938, %v4073
      %v4184 = vadd.f32 %v3939, %v4075
      %v4185 = vadd.f32 %v3940, %v4078
      %v4186 = vadd.f32 %v3941, %v4080
      %v4187 = vadd.f32 %v3942, %v4083
      %v4188 = vadd.f32 %v3943, %v4085
      %v4189 = vadd.f32 %v3944, %v4088
      %v4190 = vadd.f32 %v3945, %v4090
      %v4191 = vadd.f32 %v3946, %v4093
      %v4192 = vadd.f32 %v3947, %v4095
      %v4193 = vadd.f32 %v3948, %v4098
      %v4194 = vadd.f32 %v3949, %v4100
      %v4195 = vadd.f32 %v3950, %v4103
      %v4196 = vadd.f32 %v3951, %v4105
      %v4197 = vadd.f32 %v3952, %v4108
      %v4198 = vadd.f32 %v3953, %v4110
      %v4199 = vadd.f32 %v3954, %v4113
      %v4200 = vadd.f32 %v3955, %v4115
      %v4201 = vadd.f32 %v3956, %v4118
      %v4202 = vadd.f32 %v3957, %v4120
      %v4203 = vadd.f32 %v3958, %v4123
      %v4204 = vadd.f32 %v3959, %v4125
      %v4205 = vadd.f32 %v3960, %v4128
      %v4206 = vadd.f32 %v3961, %v4130
      %v4207 = vadd.f32 %v3962, %v4133
      %v4208 = vadd.f32 %v3963, %v4135
      %v4209 = vadd.f32 %v3964, %v4138
      %v4210 = vadd.f32 %v3965, %v4140
      %v4211 = vadd.f32 %v3966, %v4143
      %v4212 = vadd.f32 %v3967, %v4145
      %v4213 = vadd.f32 %v3968, %v4148
      %v4214 = vadd.f32 %v3969, %v4150
      %v4215 = vld [vmem:[%s370 + $0x12] sm:$0x1]
      %v4216 = vlaneseq
      %v4217 = vshrl.u32 %v4216, 7
      %v4218 = vsub.s32 0, %v4217
      %v4219 = vrot.slane %v4215, %v4218
      %v4220 = vmul.f32 %v457, %v4219
      %v4221 = vmul.f32 %v458, %v4219
      %v4222 = vmul.f32 %v459, %v4219
      %v4223 = vmul.f32 %v460, %v4219
      %v4224 = vmul.f32 %v461, %v4219
      %v4225 = vmul.f32 %v462, %v4219
      %v4226 = vmul.f32 %v463, %v4219
      %v4227 = vmul.f32 %v464, %v4219
      %v4228 = vmul.f32 %v465, %v4219
      %v4229 = vmul.f32 %v466, %v4219
      %v4230 = vmul.f32 %v467, %v4219
      %v4231 = vmul.f32 %v468, %v4219
      %v4232 = vmul.f32 %v469, %v4219
      %v4233 = vmul.f32 %v470, %v4219
      %v4234 = vmul.f32 %v471, %v4219
      %v4235 = vmul.f32 %v472, %v4219
      %v4236 = vmul.f32 %v473, %v4219
      %v4237 = vmul.f32 %v474, %v4219
      %v4238 = vmul.f32 %v475, %v4219
      %v4239 = vmul.f32 %v476, %v4219
      %v4240 = vmul.f32 %v477, %v4219
      %v4241 = vmul.f32 %v478, %v4219
      %v4242 = vmul.f32 %v479, %v4219
      %v4243 = vmul.f32 %v480, %v4219
      %v4244 = vmul.f32 %v481, %v4219
      %v4245 = vmul.f32 %v482, %v4219
      %v4246 = vmul.f32 %v483, %v4219
      %v4247 = vmul.f32 %v484, %v4219
      %v4248 = vmul.f32 %v485, %v4219
      %v4249 = vmul.f32 %v486, %v4219
      %v4250 = vmul.f32 %v487, %v4219
      %v4251 = vmul.f32 %v488, %v4219
      %v4252 = vmul.f32 %v489, %v4219
      %v4253 = vmul.f32 %v490, %v4219
      %v4254 = vmul.f32 %v491, %v4219
      %v4255 = vmul.f32 %v492, %v4219
      %v4256 = vmul.f32 %v493, %v4219
      %v4257 = vmul.f32 %v494, %v4219
      %v4258 = vmul.f32 %v495, %v4219
      %v4259 = vmul.f32 %v1549, %v4219
      %v4260 = vmul.f32 %v1550, %v4219
      %v4261 = vmul.f32 %v1551, %v4219
      %v4262 = vmul.f32 %v2601, %v4219
      %v4263 = vmul.f32 %v2602, %v4219
      %v4264 = vmul.f32 %v2603, %v4219
      %v4265 = vmul.f32 %v3653, %v4219
      %v4266 = vmul.f32 %v3654, %v4219
      %v4267 = vmul.f32 %v3655, %v4219
      %v4316 = vrot.slane %v4220, 3
      %v4317 = vrot.slane %v4221, 3
      %v4318 = vsel %vm1158, %v4316, %v4317
      %v4319 = vrot.slane %v4222, 3
      %v4320 = vsel %vm1158, %v4317, %v4319
      %v4321 = vrot.slane %v4223, 3
      %v4322 = vrot.slane %v4224, 3
      %v4323 = vsel %vm1158, %v4321, %v4322
      %v4324 = vrot.slane %v4225, 3
      %v4325 = vsel %vm1158, %v4322, %v4324
      %v4326 = vrot.slane %v4226, 3
      %v4327 = vrot.slane %v4227, 3
      %v4328 = vsel %vm1158, %v4326, %v4327
      %v4329 = vrot.slane %v4228, 3
      %v4330 = vsel %vm1158, %v4327, %v4329
      %v4331 = vrot.slane %v4229, 3
      %v4332 = vrot.slane %v4230, 3
      %v4333 = vsel %vm1158, %v4331, %v4332
      %v4334 = vrot.slane %v4231, 3
      %v4335 = vsel %vm1158, %v4332, %v4334
      %v4336 = vrot.slane %v4232, 3
      %v4337 = vrot.slane %v4233, 3
      %v4338 = vsel %vm1158, %v4336, %v4337
      %v4339 = vrot.slane %v4234, 3
      %v4340 = vsel %vm1158, %v4337, %v4339
      %v4341 = vrot.slane %v4235, 3
      %v4342 = vrot.slane %v4236, 3
      %v4343 = vsel %vm1158, %v4341, %v4342
      %v4344 = vrot.slane %v4237, 3
      %v4345 = vsel %vm1158, %v4342, %v4344
      %v4346 = vrot.slane %v4238, 3
      %v4347 = vrot.slane %v4239, 3
      %v4348 = vsel %vm1158, %v4346, %v4347
      %v4349 = vrot.slane %v4240, 3
      %v4350 = vsel %vm1158, %v4347, %v4349
      %v4351 = vrot.slane %v4241, 3
      %v4352 = vrot.slane %v4242, 3
      %v4353 = vsel %vm1158, %v4351, %v4352
      %v4354 = vrot.slane %v4243, 3
      %v4355 = vsel %vm1158, %v4352, %v4354
      %v4356 = vrot.slane %v4244, 3
      %v4357 = vrot.slane %v4245, 3
      %v4358 = vsel %vm1158, %v4356, %v4357
      %v4359 = vrot.slane %v4246, 3
      %v4360 = vsel %vm1158, %v4357, %v4359
      %v4361 = vrot.slane %v4247, 3
      %v4362 = vrot.slane %v4248, 3
      %v4363 = vsel %vm1158, %v4361, %v4362
      %v4364 = vrot.slane %v4249, 3
      %v4365 = vsel %vm1158, %v4362, %v4364
      %v4366 = vrot.slane %v4250, 3
      %v4367 = vrot.slane %v4251, 3
      %v4368 = vsel %vm1158, %v4366, %v4367
      %v4369 = vrot.slane %v4252, 3
      %v4370 = vsel %vm1158, %v4367, %v4369
      %v4371 = vrot.slane %v4253, 3
      %v4372 = vrot.slane %v4254, 3
      %v4373 = vsel %vm1158, %v4371, %v4372
      %v4374 = vrot.slane %v4255, 3
      %v4375 = vsel %vm1158, %v4372, %v4374
      %v4376 = vrot.slane %v4256, 3
      %v4377 = vrot.slane %v4257, 3
      %v4378 = vsel %vm1158, %v4376, %v4377
      %v4379 = vrot.slane %v4258, 3
      %v4380 = vsel %vm1158, %v4377, %v4379
      %v4381 = vrot.slane %v4259, 3
      %v4382 = vrot.slane %v4260, 3
      %v4383 = vsel %vm1158, %v4381, %v4382
      %v4384 = vrot.slane %v4261, 3
      %v4385 = vsel %vm1158, %v4382, %v4384
      %v4386 = vrot.slane %v4262, 3
      %v4387 = vrot.slane %v4263, 3
      %v4388 = vsel %vm1158, %v4386, %v4387
      %v4389 = vrot.slane %v4264, 3
      %v4390 = vsel %vm1158, %v4387, %v4389
      %v4391 = vrot.slane %v4265, 3
      %v4392 = vrot.slane %v4266, 3
      %v4393 = vsel %vm1158, %v4391, %v4392
      %v4394 = vrot.slane %v4267, 3
      %v4395 = vsel %vm1158, %v4392, %v4394
      %v4428 = vadd.f32 %v4183, %v4318
      %v4429 = vadd.f32 %v4184, %v4320
      %v4430 = vadd.f32 %v4185, %v4323
      %v4431 = vadd.f32 %v4186, %v4325
      %v4432 = vadd.f32 %v4187, %v4328
      %v4433 = vadd.f32 %v4188, %v4330
      %v4434 = vadd.f32 %v4189, %v4333
      %v4435 = vadd.f32 %v4190, %v4335
      %v4436 = vadd.f32 %v4191, %v4338
      %v4437 = vadd.f32 %v4192, %v4340
      %v4438 = vadd.f32 %v4193, %v4343
      %v4439 = vadd.f32 %v4194, %v4345
      %v4440 = vadd.f32 %v4195, %v4348
      %v4441 = vadd.f32 %v4196, %v4350
      %v4442 = vadd.f32 %v4197, %v4353
      %v4443 = vadd.f32 %v4198, %v4355
      %v4444 = vadd.f32 %v4199, %v4358
      %v4445 = vadd.f32 %v4200, %v4360
      %v4446 = vadd.f32 %v4201, %v4363
      %v4447 = vadd.f32 %v4202, %v4365
      %v4448 = vadd.f32 %v4203, %v4368
      %v4449 = vadd.f32 %v4204, %v4370
      %v4450 = vadd.f32 %v4205, %v4373
      %v4451 = vadd.f32 %v4206, %v4375
      %v4452 = vadd.f32 %v4207, %v4378
      %v4453 = vadd.f32 %v4208, %v4380
      %v4454 = vadd.f32 %v4209, %v4383
      %v4455 = vadd.f32 %v4210, %v4385
      %v4456 = vadd.f32 %v4211, %v4388
      %v4457 = vadd.f32 %v4212, %v4390
      %v4458 = vadd.f32 %v4213, %v4393
      %v4459 = vadd.f32 %v4214, %v4395
      %v4460 = vld [vmem:[%s370 + $0x13] sm:$0x1]
      %v4461 = vlaneseq
      %v4462 = vshrl.u32 %v4461, 7
      %v4463 = vsub.s32 0, %v4462
      %v4464 = vrot.slane %v4460, %v4463
      %v4465 = vmul.f32 %v457, %v4464
      %v4466 = vmul.f32 %v458, %v4464
      %v4467 = vmul.f32 %v459, %v4464
      %v4468 = vmul.f32 %v460, %v4464
      %v4469 = vmul.f32 %v461, %v4464
      %v4470 = vmul.f32 %v462, %v4464
      %v4471 = vmul.f32 %v463, %v4464
      %v4472 = vmul.f32 %v464, %v4464
      %v4473 = vmul.f32 %v465, %v4464
      %v4474 = vmul.f32 %v466, %v4464
      %v4475 = vmul.f32 %v467, %v4464
      %v4476 = vmul.f32 %v468, %v4464
      %v4477 = vmul.f32 %v469, %v4464
      %v4478 = vmul.f32 %v470, %v4464
      %v4479 = vmul.f32 %v471, %v4464
      %v4480 = vmul.f32 %v472, %v4464
      %v4481 = vmul.f32 %v473, %v4464
      %v4482 = vmul.f32 %v474, %v4464
      %v4483 = vmul.f32 %v475, %v4464
      %v4484 = vmul.f32 %v476, %v4464
      %v4485 = vmul.f32 %v477, %v4464
      %v4486 = vmul.f32 %v478, %v4464
      %v4487 = vmul.f32 %v479, %v4464
      %v4488 = vmul.f32 %v480, %v4464
      %v4489 = vmul.f32 %v481, %v4464
      %v4490 = vmul.f32 %v482, %v4464
      %v4491 = vmul.f32 %v483, %v4464
      %v4492 = vmul.f32 %v484, %v4464
      %v4493 = vmul.f32 %v485, %v4464
      %v4494 = vmul.f32 %v486, %v4464
      %v4495 = vmul.f32 %v487, %v4464
      %v4496 = vmul.f32 %v488, %v4464
      %v4497 = vmul.f32 %v489, %v4464
      %v4498 = vmul.f32 %v490, %v4464
      %v4499 = vmul.f32 %v491, %v4464
      %v4500 = vmul.f32 %v492, %v4464
      %v4501 = vmul.f32 %v493, %v4464
      %v4502 = vmul.f32 %v494, %v4464
      %v4503 = vmul.f32 %v495, %v4464
      %v4504 = vmul.f32 %v1549, %v4464
      %v4505 = vmul.f32 %v1550, %v4464
      %v4506 = vmul.f32 %v1551, %v4464
      %v4507 = vmul.f32 %v2601, %v4464
      %v4508 = vmul.f32 %v2602, %v4464
      %v4509 = vmul.f32 %v2603, %v4464
      %v4510 = vmul.f32 %v3653, %v4464
      %v4511 = vmul.f32 %v3654, %v4464
      %v4512 = vmul.f32 %v3655, %v4464
      %v4561 = vrot.slane %v4465, 4
      %v4562 = vrot.slane %v4466, 4
      %v4563 = vsel %vm1404, %v4561, %v4562
      %v4564 = vrot.slane %v4467, 4
      %v4565 = vsel %vm1404, %v4562, %v4564
      %v4566 = vrot.slane %v4468, 4
      %v4567 = vrot.slane %v4469, 4
      %v4568 = vsel %vm1404, %v4566, %v4567
      %v4569 = vrot.slane %v4470, 4
      %v4570 = vsel %vm1404, %v4567, %v4569
      %v4571 = vrot.slane %v4471, 4
      %v4572 = vrot.slane %v4472, 4
      %v4573 = vsel %vm1404, %v4571, %v4572
      %v4574 = vrot.slane %v4473, 4
      %v4575 = vsel %vm1404, %v4572, %v4574
      %v4576 = vrot.slane %v4474, 4
      %v4577 = vrot.slane %v4475, 4
      %v4578 = vsel %vm1404, %v4576, %v4577
      %v4579 = vrot.slane %v4476, 4
      %v4580 = vsel %vm1404, %v4577, %v4579
      %v4581 = vrot.slane %v4477, 4
      %v4582 = vrot.slane %v4478, 4
      %v4583 = vsel %vm1404, %v4581, %v4582
      %v4584 = vrot.slane %v4479, 4
      %v4585 = vsel %vm1404, %v4582, %v4584
      %v4586 = vrot.slane %v4480, 4
      %v4587 = vrot.slane %v4481, 4
      %v4588 = vsel %vm1404, %v4586, %v4587
      %v4589 = vrot.slane %v4482, 4
      %v4590 = vsel %vm1404, %v4587, %v4589
      %v4591 = vrot.slane %v4483, 4
      %v4592 = vrot.slane %v4484, 4
      %v4593 = vsel %vm1404, %v4591, %v4592
      %v4594 = vrot.slane %v4485, 4
      %v4595 = vsel %vm1404, %v4592, %v4594
      %v4596 = vrot.slane %v4486, 4
      %v4597 = vrot.slane %v4487, 4
      %v4598 = vsel %vm1404, %v4596, %v4597
      %v4599 = vrot.slane %v4488, 4
      %v4600 = vsel %vm1404, %v4597, %v4599
      %v4601 = vrot.slane %v4489, 4
      %v4602 = vrot.slane %v4490, 4
      %v4603 = vsel %vm1404, %v4601, %v4602
      %v4604 = vrot.slane %v4491, 4
      %v4605 = vsel %vm1404, %v4602, %v4604
      %v4606 = vrot.slane %v4492, 4
      %v4607 = vrot.slane %v4493, 4
      %v4608 = vsel %vm1404, %v4606, %v4607
      %v4609 = vrot.slane %v4494, 4
      %v4610 = vsel %vm1404, %v4607, %v4609
      %v4611 = vrot.slane %v4495, 4
      %v4612 = vrot.slane %v4496, 4
      %v4613 = vsel %vm1404, %v4611, %v4612
      %v4614 = vrot.slane %v4497, 4
      %v4615 = vsel %vm1404, %v4612, %v4614
      %v4616 = vrot.slane %v4498, 4
      %v4617 = vrot.slane %v4499, 4
      %v4618 = vsel %vm1404, %v4616, %v4617
      %v4619 = vrot.slane %v4500, 4
      %v4620 = vsel %vm1404, %v4617, %v4619
      %v4621 = vrot.slane %v4501, 4
      %v4622 = vrot.slane %v4502, 4
      %v4623 = vsel %vm1404, %v4621, %v4622
      %v4624 = vrot.slane %v4503, 4
      %v4625 = vsel %vm1404, %v4622, %v4624
      %v4626 = vrot.slane %v4504, 4
      %v4627 = vrot.slane %v4505, 4
      %v4628 = vsel %vm1404, %v4626, %v4627
      %v4629 = vrot.slane %v4506, 4
      %v4630 = vsel %vm1404, %v4627, %v4629
      %v4631 = vrot.slane %v4507, 4
      %v4632 = vrot.slane %v4508, 4
      %v4633 = vsel %vm1404, %v4631, %v4632
      %v4634 = vrot.slane %v4509, 4
      %v4635 = vsel %vm1404, %v4632, %v4634
      %v4636 = vrot.slane %v4510, 4
      %v4637 = vrot.slane %v4511, 4
      %v4638 = vsel %vm1404, %v4636, %v4637
      %v4639 = vrot.slane %v4512, 4
      %v4640 = vsel %vm1404, %v4637, %v4639
      %v4673 = vadd.f32 %v4428, %v4563
      %v4674 = vadd.f32 %v4429, %v4565
      %v4675 = vadd.f32 %v4430, %v4568
      %v4676 = vadd.f32 %v4431, %v4570
      %v4677 = vadd.f32 %v4432, %v4573
      %v4678 = vadd.f32 %v4433, %v4575
      %v4679 = vadd.f32 %v4434, %v4578
      %v4680 = vadd.f32 %v4435, %v4580
      %v4681 = vadd.f32 %v4436, %v4583
      %v4682 = vadd.f32 %v4437, %v4585
      %v4683 = vadd.f32 %v4438, %v4588
      %v4684 = vadd.f32 %v4439, %v4590
      %v4685 = vadd.f32 %v4440, %v4593
      %v4686 = vadd.f32 %v4441, %v4595
      %v4687 = vadd.f32 %v4442, %v4598
      %v4688 = vadd.f32 %v4443, %v4600
      %v4689 = vadd.f32 %v4444, %v4603
      %v4690 = vadd.f32 %v4445, %v4605
      %v4691 = vadd.f32 %v4446, %v4608
      %v4692 = vadd.f32 %v4447, %v4610
      %v4693 = vadd.f32 %v4448, %v4613
      %v4694 = vadd.f32 %v4449, %v4615
      %v4695 = vadd.f32 %v4450, %v4618
      %v4696 = vadd.f32 %v4451, %v4620
      %v4697 = vadd.f32 %v4452, %v4623
      %v4698 = vadd.f32 %v4453, %v4625
      %v4699 = vadd.f32 %v4454, %v4628
      %v4700 = vadd.f32 %v4455, %v4630
      %v4701 = vadd.f32 %v4456, %v4633
      %v4702 = vadd.f32 %v4457, %v4635
      %v4703 = vadd.f32 %v4458, %v4638
      %v4704 = vadd.f32 %v4459, %v4640
      %v4705 = vunpack.c.l.bf16 %v445
      %v4706 = vunpack.c.l.bf16 %v446
      %v4707 = vunpack.c.l.bf16 %v447
      %v4708 = vld [vmem:[%s370 + $0x14] sm:$0x1]
      %v4709 = vlaneseq
      %v4710 = vshrl.u32 %v4709, 7
      %v4711 = vsub.s32 0, %v4710
      %v4712 = vrot.slane %v4708, %v4711
      %v4713 = vmul.f32 %v460, %v4712
      %v4714 = vmul.f32 %v461, %v4712
      %v4715 = vmul.f32 %v463, %v4712
      %v4716 = vmul.f32 %v464, %v4712
      %v4717 = vmul.f32 %v466, %v4712
      %v4718 = vmul.f32 %v467, %v4712
      %v4719 = vmul.f32 %v469, %v4712
      %v4720 = vmul.f32 %v470, %v4712
      %v4721 = vmul.f32 %v472, %v4712
      %v4722 = vmul.f32 %v473, %v4712
      %v4723 = vmul.f32 %v475, %v4712
      %v4724 = vmul.f32 %v476, %v4712
      %v4725 = vmul.f32 %v478, %v4712
      %v4726 = vmul.f32 %v479, %v4712
      %v4727 = vmul.f32 %v481, %v4712
      %v4728 = vmul.f32 %v482, %v4712
      %v4729 = vmul.f32 %v484, %v4712
      %v4730 = vmul.f32 %v485, %v4712
      %v4731 = vmul.f32 %v487, %v4712
      %v4732 = vmul.f32 %v488, %v4712
      %v4733 = vmul.f32 %v490, %v4712
      %v4734 = vmul.f32 %v491, %v4712
      %v4735 = vmul.f32 %v493, %v4712
      %v4736 = vmul.f32 %v494, %v4712
      %v4737 = vmul.f32 %v1549, %v4712
      %v4738 = vmul.f32 %v1550, %v4712
      %v4739 = vmul.f32 %v2601, %v4712
      %v4740 = vmul.f32 %v2602, %v4712
      %v4741 = vmul.f32 %v3653, %v4712
      %v4742 = vmul.f32 %v3654, %v4712
      %v4743 = vmul.f32 %v4705, %v4712
      %v4744 = vmul.f32 %v4706, %v4712
      %v4745 = vadd.f32 %v4673, %v4713
      %v4746 = vadd.f32 %v4674, %v4714
      %v4747 = vadd.f32 %v4675, %v4715
      %v4748 = vadd.f32 %v4676, %v4716
      %v4749 = vadd.f32 %v4677, %v4717
      %v4750 = vadd.f32 %v4678, %v4718
      %v4751 = vadd.f32 %v4679, %v4719
      %v4752 = vadd.f32 %v4680, %v4720
      %v4753 = vadd.f32 %v4681, %v4721
      %v4754 = vadd.f32 %v4682, %v4722
      %v4755 = vadd.f32 %v4683, %v4723
      %v4756 = vadd.f32 %v4684, %v4724
      %v4757 = vadd.f32 %v4685, %v4725
      %v4758 = vadd.f32 %v4686, %v4726
      %v4759 = vadd.f32 %v4687, %v4727
      %v4760 = vadd.f32 %v4688, %v4728
      %v4761 = vadd.f32 %v4689, %v4729
      %v4762 = vadd.f32 %v4690, %v4730
      %v4763 = vadd.f32 %v4691, %v4731
      %v4764 = vadd.f32 %v4692, %v4732
      %v4765 = vadd.f32 %v4693, %v4733
      %v4766 = vadd.f32 %v4694, %v4734
      %v4767 = vadd.f32 %v4695, %v4735
      %v4768 = vadd.f32 %v4696, %v4736
      %v4769 = vadd.f32 %v4697, %v4737
      %v4770 = vadd.f32 %v4698, %v4738
      %v4771 = vadd.f32 %v4699, %v4739
      %v4772 = vadd.f32 %v4700, %v4740
      %v4773 = vadd.f32 %v4701, %v4741
      %v4774 = vadd.f32 %v4702, %v4742
      %v4775 = vadd.f32 %v4703, %v4743
      %v4776 = vadd.f32 %v4704, %v4744
      %v4777 = vld [vmem:[%s370 + $0x15] sm:$0x1]
      %v4778 = vlaneseq
      %v4779 = vshrl.u32 %v4778, 7
      %v4780 = vsub.s32 0, %v4779
      %v4781 = vrot.slane %v4777, %v4780
      %v4782 = vmul.f32 %v460, %v4781
      %v4783 = vmul.f32 %v461, %v4781
      %v4784 = vmul.f32 %v462, %v4781
      %v4785 = vmul.f32 %v463, %v4781
      %v4786 = vmul.f32 %v464, %v4781
      %v4787 = vmul.f32 %v465, %v4781
      %v4788 = vmul.f32 %v466, %v4781
      %v4789 = vmul.f32 %v467, %v4781
      %v4790 = vmul.f32 %v468, %v4781
      %v4791 = vmul.f32 %v469, %v4781
      %v4792 = vmul.f32 %v470, %v4781
      %v4793 = vmul.f32 %v471, %v4781
      %v4794 = vmul.f32 %v472, %v4781
      %v4795 = vmul.f32 %v473, %v4781
      %v4796 = vmul.f32 %v474, %v4781
      %v4797 = vmul.f32 %v475, %v4781
      %v4798 = vmul.f32 %v476, %v4781
      %v4799 = vmul.f32 %v477, %v4781
      %v4800 = vmul.f32 %v478, %v4781
      %v4801 = vmul.f32 %v479, %v4781
      %v4802 = vmul.f32 %v480, %v4781
      %v4803 = vmul.f32 %v481, %v4781
      %v4804 = vmul.f32 %v482, %v4781
      %v4805 = vmul.f32 %v483, %v4781
      %v4806 = vmul.f32 %v484, %v4781
      %v4807 = vmul.f32 %v485, %v4781
      %v4808 = vmul.f32 %v486, %v4781
      %v4809 = vmul.f32 %v487, %v4781
      %v4810 = vmul.f32 %v488, %v4781
      %v4811 = vmul.f32 %v489, %v4781
      %v4812 = vmul.f32 %v490, %v4781
      %v4813 = vmul.f32 %v491, %v4781
      %v4814 = vmul.f32 %v492, %v4781
      %v4815 = vmul.f32 %v493, %v4781
      %v4816 = vmul.f32 %v494, %v4781
      %v4817 = vmul.f32 %v495, %v4781
      %v4818 = vmul.f32 %v1549, %v4781
      %v4819 = vmul.f32 %v1550, %v4781
      %v4820 = vmul.f32 %v1551, %v4781
      %v4821 = vmul.f32 %v2601, %v4781
      %v4822 = vmul.f32 %v2602, %v4781
      %v4823 = vmul.f32 %v2603, %v4781
      %v4824 = vmul.f32 %v3653, %v4781
      %v4825 = vmul.f32 %v3654, %v4781
      %v4826 = vmul.f32 %v3655, %v4781
      %v4827 = vmul.f32 %v4705, %v4781
      %v4828 = vmul.f32 %v4706, %v4781
      %v4829 = vmul.f32 %v4707, %v4781
      %v4878 = vrot.slane %v4782, 1
      %v4879 = vrot.slane %v4783, 1
      %v4880 = vsel %vm666, %v4878, %v4879
      %v4881 = vrot.slane %v4784, 1
      %v4882 = vsel %vm666, %v4879, %v4881
      %v4883 = vrot.slane %v4785, 1
      %v4884 = vrot.slane %v4786, 1
      %v4885 = vsel %vm666, %v4883, %v4884
      %v4886 = vrot.slane %v4787, 1
      %v4887 = vsel %vm666, %v4884, %v4886
      %v4888 = vrot.slane %v4788, 1
      %v4889 = vrot.slane %v4789, 1
      %v4890 = vsel %vm666, %v4888, %v4889
      %v4891 = vrot.slane %v4790, 1
      %v4892 = vsel %vm666, %v4889, %v4891
      %v4893 = vrot.slane %v4791, 1
      %v4894 = vrot.slane %v4792, 1
      %v4895 = vsel %vm666, %v4893, %v4894
      %v4896 = vrot.slane %v4793, 1
      %v4897 = vsel %vm666, %v4894, %v4896
      %v4898 = vrot.slane %v4794, 1
      %v4899 = vrot.slane %v4795, 1
      %v4900 = vsel %vm666, %v4898, %v4899
      %v4901 = vrot.slane %v4796, 1
      %v4902 = vsel %vm666, %v4899, %v4901
      %v4903 = vrot.slane %v4797, 1
      %v4904 = vrot.slane %v4798, 1
      %v4905 = vsel %vm666, %v4903, %v4904
      %v4906 = vrot.slane %v4799, 1
      %v4907 = vsel %vm666, %v4904, %v4906
      %v4908 = vrot.slane %v4800, 1
      %v4909 = vrot.slane %v4801, 1
      %v4910 = vsel %vm666, %v4908, %v4909
      %v4911 = vrot.slane %v4802, 1
      %v4912 = vsel %vm666, %v4909, %v4911
      %v4913 = vrot.slane %v4803, 1
      %v4914 = vrot.slane %v4804, 1
      %v4915 = vsel %vm666, %v4913, %v4914
      %v4916 = vrot.slane %v4805, 1
      %v4917 = vsel %vm666, %v4914, %v4916
      %v4918 = vrot.slane %v4806, 1
      %v4919 = vrot.slane %v4807, 1
      %v4920 = vsel %vm666, %v4918, %v4919
      %v4921 = vrot.slane %v4808, 1
      %v4922 = vsel %vm666, %v4919, %v4921
      %v4923 = vrot.slane %v4809, 1
      %v4924 = vrot.slane %v4810, 1
      %v4925 = vsel %vm666, %v4923, %v4924
      %v4926 = vrot.slane %v4811, 1
      %v4927 = vsel %vm666, %v4924, %v4926
      %v4928 = vrot.slane %v4812, 1
      %v4929 = vrot.slane %v4813, 1
      %v4930 = vsel %vm666, %v4928, %v4929
      %v4931 = vrot.slane %v4814, 1
      %v4932 = vsel %vm666, %v4929, %v4931
      %v4933 = vrot.slane %v4815, 1
      %v4934 = vrot.slane %v4816, 1
      %v4935 = vsel %vm666, %v4933, %v4934
      %v4936 = vrot.slane %v4817, 1
      %v4937 = vsel %vm666, %v4934, %v4936
      %v4938 = vrot.slane %v4818, 1
      %v4939 = vrot.slane %v4819, 1
      %v4940 = vsel %vm666, %v4938, %v4939
      %v4941 = vrot.slane %v4820, 1
      %v4942 = vsel %vm666, %v4939, %v4941
      %v4943 = vrot.slane %v4821, 1
      %v4944 = vrot.slane %v4822, 1
      %v4945 = vsel %vm666, %v4943, %v4944
      %v4946 = vrot.slane %v4823, 1
      %v4947 = vsel %vm666, %v4944, %v4946
      %v4948 = vrot.slane %v4824, 1
      %v4949 = vrot.slane %v4825, 1
      %v4950 = vsel %vm666, %v4948, %v4949
      %v4951 = vrot.slane %v4826, 1
      %v4952 = vsel %vm666, %v4949, %v4951
      %v4953 = vrot.slane %v4827, 1
      %v4954 = vrot.slane %v4828, 1
      %v4955 = vsel %vm666, %v4953, %v4954
      %v4956 = vrot.slane %v4829, 1
      %v4957 = vsel %vm666, %v4954, %v4956
      %v4990 = vadd.f32 %v4745, %v4880
      %v4991 = vadd.f32 %v4746, %v4882
      %v4992 = vadd.f32 %v4747, %v4885
      %v4993 = vadd.f32 %v4748, %v4887
      %v4994 = vadd.f32 %v4749, %v4890
      %v4995 = vadd.f32 %v4750, %v4892
      %v4996 = vadd.f32 %v4751, %v4895
      %v4997 = vadd.f32 %v4752, %v4897
      %v4998 = vadd.f32 %v4753, %v4900
      %v4999 = vadd.f32 %v4754, %v4902
      %v5000 = vadd.f32 %v4755, %v4905
      %v5001 = vadd.f32 %v4756, %v4907
      %v5002 = vadd.f32 %v4757, %v4910
      %v5003 = vadd.f32 %v4758, %v4912
      %v5004 = vadd.f32 %v4759, %v4915
      %v5005 = vadd.f32 %v4760, %v4917
      %v5006 = vadd.f32 %v4761, %v4920
      %v5007 = vadd.f32 %v4762, %v4922
      %v5008 = vadd.f32 %v4763, %v4925
      %v5009 = vadd.f32 %v4764, %v4927
      %v5010 = vadd.f32 %v4765, %v4930
      %v5011 = vadd.f32 %v4766, %v4932
      %v5012 = vadd.f32 %v4767, %v4935
      %v5013 = vadd.f32 %v4768, %v4937
      %v5014 = vadd.f32 %v4769, %v4940
      %v5015 = vadd.f32 %v4770, %v4942
      %v5016 = vadd.f32 %v4771, %v4945
      %v5017 = vadd.f32 %v4772, %v4947
      %v5018 = vadd.f32 %v4773, %v4950
      %v5019 = vadd.f32 %v4774, %v4952
      %v5020 = vadd.f32 %v4775, %v4955
      %v5021 = vadd.f32 %v4776, %v4957
      %v5022 = vld [vmem:[%s370 + $0x16] sm:$0x1]
      %v5023 = vlaneseq
      %v5024 = vshrl.u32 %v5023, 7
      %v5025 = vsub.s32 0, %v5024
      %v5026 = vrot.slane %v5022, %v5025
      %v5027 = vmul.f32 %v460, %v5026
      %v5028 = vmul.f32 %v461, %v5026
      %v5029 = vmul.f32 %v462, %v5026
      %v5030 = vmul.f32 %v463, %v5026
      %v5031 = vmul.f32 %v464, %v5026
      %v5032 = vmul.f32 %v465, %v5026
      %v5033 = vmul.f32 %v466, %v5026
      %v5034 = vmul.f32 %v467, %v5026
      %v5035 = vmul.f32 %v468, %v5026
      %v5036 = vmul.f32 %v469, %v5026
      %v5037 = vmul.f32 %v470, %v5026
      %v5038 = vmul.f32 %v471, %v5026
      %v5039 = vmul.f32 %v472, %v5026
      %v5040 = vmul.f32 %v473, %v5026
      %v5041 = vmul.f32 %v474, %v5026
      %v5042 = vmul.f32 %v475, %v5026
      %v5043 = vmul.f32 %v476, %v5026
      %v5044 = vmul.f32 %v477, %v5026
      %v5045 = vmul.f32 %v478, %v5026
      %v5046 = vmul.f32 %v479, %v5026
      %v5047 = vmul.f32 %v480, %v5026
      %v5048 = vmul.f32 %v481, %v5026
      %v5049 = vmul.f32 %v482, %v5026
      %v5050 = vmul.f32 %v483, %v5026
      %v5051 = vmul.f32 %v484, %v5026
      %v5052 = vmul.f32 %v485, %v5026
      %v5053 = vmul.f32 %v486, %v5026
      %v5054 = vmul.f32 %v487, %v5026
      %v5055 = vmul.f32 %v488, %v5026
      %v5056 = vmul.f32 %v489, %v5026
      %v5057 = vmul.f32 %v490, %v5026
      %v5058 = vmul.f32 %v491, %v5026
      %v5059 = vmul.f32 %v492, %v5026
      %v5060 = vmul.f32 %v493, %v5026
      %v5061 = vmul.f32 %v494, %v5026
      %v5062 = vmul.f32 %v495, %v5026
      %v5063 = vmul.f32 %v1549, %v5026
      %v5064 = vmul.f32 %v1550, %v5026
      %v5065 = vmul.f32 %v1551, %v5026
      %v5066 = vmul.f32 %v2601, %v5026
      %v5067 = vmul.f32 %v2602, %v5026
      %v5068 = vmul.f32 %v2603, %v5026
      %v5069 = vmul.f32 %v3653, %v5026
      %v5070 = vmul.f32 %v3654, %v5026
      %v5071 = vmul.f32 %v3655, %v5026
      %v5072 = vmul.f32 %v4705, %v5026
      %v5073 = vmul.f32 %v4706, %v5026
      %v5074 = vmul.f32 %v4707, %v5026
      %v5123 = vrot.slane %v5027, 2
      %v5124 = vrot.slane %v5028, 2
      %v5125 = vsel %vm912, %v5123, %v5124
      %v5126 = vrot.slane %v5029, 2
      %v5127 = vsel %vm912, %v5124, %v5126
      %v5128 = vrot.slane %v5030, 2
      %v5129 = vrot.slane %v5031, 2
      %v5130 = vsel %vm912, %v5128, %v5129
      %v5131 = vrot.slane %v5032, 2
      %v5132 = vsel %vm912, %v5129, %v5131
      %v5133 = vrot.slane %v5033, 2
      %v5134 = vrot.slane %v5034, 2
      %v5135 = vsel %vm912, %v5133, %v5134
      %v5136 = vrot.slane %v5035, 2
      %v5137 = vsel %vm912, %v5134, %v5136
      %v5138 = vrot.slane %v5036, 2
      %v5139 = vrot.slane %v5037, 2
      %v5140 = vsel %vm912, %v5138, %v5139
      %v5141 = vrot.slane %v5038, 2
      %v5142 = vsel %vm912, %v5139, %v5141
      %v5143 = vrot.slane %v5039, 2
      %v5144 = vrot.slane %v5040, 2
      %v5145 = vsel %vm912, %v5143, %v5144
      %v5146 = vrot.slane %v5041, 2
      %v5147 = vsel %vm912, %v5144, %v5146
      %v5148 = vrot.slane %v5042, 2
      %v5149 = vrot.slane %v5043, 2
      %v5150 = vsel %vm912, %v5148, %v5149
      %v5151 = vrot.slane %v5044, 2
      %v5152 = vsel %vm912, %v5149, %v5151
      %v5153 = vrot.slane %v5045, 2
      %v5154 = vrot.slane %v5046, 2
      %v5155 = vsel %vm912, %v5153, %v5154
      %v5156 = vrot.slane %v5047, 2
      %v5157 = vsel %vm912, %v5154, %v5156
      %v5158 = vrot.slane %v5048, 2
      %v5159 = vrot.slane %v5049, 2
      %v5160 = vsel %vm912, %v5158, %v5159
      %v5161 = vrot.slane %v5050, 2
      %v5162 = vsel %vm912, %v5159, %v5161
      %v5163 = vrot.slane %v5051, 2
      %v5164 = vrot.slane %v5052, 2
      %v5165 = vsel %vm912, %v5163, %v5164
      %v5166 = vrot.slane %v5053, 2
      %v5167 = vsel %vm912, %v5164, %v5166
      %v5168 = vrot.slane %v5054, 2
      %v5169 = vrot.slane %v5055, 2
      %v5170 = vsel %vm912, %v5168, %v5169
      %v5171 = vrot.slane %v5056, 2
      %v5172 = vsel %vm912, %v5169, %v5171
      %v5173 = vrot.slane %v5057, 2
      %v5174 = vrot.slane %v5058, 2
      %v5175 = vsel %vm912, %v5173, %v5174
      %v5176 = vrot.slane %v5059, 2
      %v5177 = vsel %vm912, %v5174, %v5176
      %v5178 = vrot.slane %v5060, 2
      %v5179 = vrot.slane %v5061, 2
      %v5180 = vsel %vm912, %v5178, %v5179
      %v5181 = vrot.slane %v5062, 2
      %v5182 = vsel %vm912, %v5179, %v5181
      %v5183 = vrot.slane %v5063, 2
      %v5184 = vrot.slane %v5064, 2
      %v5185 = vsel %vm912, %v5183, %v5184
      %v5186 = vrot.slane %v5065, 2
      %v5187 = vsel %vm912, %v5184, %v5186
      %v5188 = vrot.slane %v5066, 2
      %v5189 = vrot.slane %v5067, 2
      %v5190 = vsel %vm912, %v5188, %v5189
      %v5191 = vrot.slane %v5068, 2
      %v5192 = vsel %vm912, %v5189, %v5191
      %v5193 = vrot.slane %v5069, 2
      %v5194 = vrot.slane %v5070, 2
      %v5195 = vsel %vm912, %v5193, %v5194
      %v5196 = vrot.slane %v5071, 2
      %v5197 = vsel %vm912, %v5194, %v5196
      %v5198 = vrot.slane %v5072, 2
      %v5199 = vrot.slane %v5073, 2
      %v5200 = vsel %vm912, %v5198, %v5199
      %v5201 = vrot.slane %v5074, 2
      %v5202 = vsel %vm912, %v5199, %v5201
      %v5235 = vadd.f32 %v4990, %v5125
      %v5236 = vadd.f32 %v4991, %v5127
      %v5237 = vadd.f32 %v4992, %v5130
      %v5238 = vadd.f32 %v4993, %v5132
      %v5239 = vadd.f32 %v4994, %v5135
      %v5240 = vadd.f32 %v4995, %v5137
      %v5241 = vadd.f32 %v4996, %v5140
      %v5242 = vadd.f32 %v4997, %v5142
      %v5243 = vadd.f32 %v4998, %v5145
      %v5244 = vadd.f32 %v4999, %v5147
      %v5245 = vadd.f32 %v5000, %v5150
      %v5246 = vadd.f32 %v5001, %v5152
      %v5247 = vadd.f32 %v5002, %v5155
      %v5248 = vadd.f32 %v5003, %v5157
      %v5249 = vadd.f32 %v5004, %v5160
      %v5250 = vadd.f32 %v5005, %v5162
      %v5251 = vadd.f32 %v5006, %v5165
      %v5252 = vadd.f32 %v5007, %v5167
      %v5253 = vadd.f32 %v5008, %v5170
      %v5254 = vadd.f32 %v5009, %v5172
      %v5255 = vadd.f32 %v5010, %v5175
      %v5256 = vadd.f32 %v5011, %v5177
      %v5257 = vadd.f32 %v5012, %v5180
      %v5258 = vadd.f32 %v5013, %v5182
      %v5259 = vadd.f32 %v5014, %v5185
      %v5260 = vadd.f32 %v5015, %v5187
      %v5261 = vadd.f32 %v5016, %v5190
      %v5262 = vadd.f32 %v5017, %v5192
      %v5263 = vadd.f32 %v5018, %v5195
      %v5264 = vadd.f32 %v5019, %v5197
      %v5265 = vadd.f32 %v5020, %v5200
      %v5266 = vadd.f32 %v5021, %v5202
      %v5267 = vld [vmem:[%s370 + $0x17] sm:$0x1]
      %v5268 = vlaneseq
      %v5269 = vshrl.u32 %v5268, 7
      %v5270 = vsub.s32 0, %v5269
      %v5271 = vrot.slane %v5267, %v5270
      %v5272 = vmul.f32 %v460, %v5271
      %v5273 = vmul.f32 %v461, %v5271
      %v5274 = vmul.f32 %v462, %v5271
      %v5275 = vmul.f32 %v463, %v5271
      %v5276 = vmul.f32 %v464, %v5271
      %v5277 = vmul.f32 %v465, %v5271
      %v5278 = vmul.f32 %v466, %v5271
      %v5279 = vmul.f32 %v467, %v5271
      %v5280 = vmul.f32 %v468, %v5271
      %v5281 = vmul.f32 %v469, %v5271
      %v5282 = vmul.f32 %v470, %v5271
      %v5283 = vmul.f32 %v471, %v5271
      %v5284 = vmul.f32 %v472, %v5271
      %v5285 = vmul.f32 %v473, %v5271
      %v5286 = vmul.f32 %v474, %v5271
      %v5287 = vmul.f32 %v475, %v5271
      %v5288 = vmul.f32 %v476, %v5271
      %v5289 = vmul.f32 %v477, %v5271
      %v5290 = vmul.f32 %v478, %v5271
      %v5291 = vmul.f32 %v479, %v5271
      %v5292 = vmul.f32 %v480, %v5271
      %v5293 = vmul.f32 %v481, %v5271
      %v5294 = vmul.f32 %v482, %v5271
      %v5295 = vmul.f32 %v483, %v5271
      %v5296 = vmul.f32 %v484, %v5271
      %v5297 = vmul.f32 %v485, %v5271
      %v5298 = vmul.f32 %v486, %v5271
      %v5299 = vmul.f32 %v487, %v5271
      %v5300 = vmul.f32 %v488, %v5271
      %v5301 = vmul.f32 %v489, %v5271
      %v5302 = vmul.f32 %v490, %v5271
      %v5303 = vmul.f32 %v491, %v5271
      %v5304 = vmul.f32 %v492, %v5271
      %v5305 = vmul.f32 %v493, %v5271
      %v5306 = vmul.f32 %v494, %v5271
      %v5307 = vmul.f32 %v495, %v5271
      %v5308 = vmul.f32 %v1549, %v5271
      %v5309 = vmul.f32 %v1550, %v5271
      %v5310 = vmul.f32 %v1551, %v5271
      %v5311 = vmul.f32 %v2601, %v5271
      %v5312 = vmul.f32 %v2602, %v5271
      %v5313 = vmul.f32 %v2603, %v5271
      %v5314 = vmul.f32 %v3653, %v5271
      %v5315 = vmul.f32 %v3654, %v5271
      %v5316 = vmul.f32 %v3655, %v5271
      %v5317 = vmul.f32 %v4705, %v5271
      %v5318 = vmul.f32 %v4706, %v5271
      %v5319 = vmul.f32 %v4707, %v5271
      %v5368 = vrot.slane %v5272, 3
      %v5369 = vrot.slane %v5273, 3
      %v5370 = vsel %vm1158, %v5368, %v5369
      %v5371 = vrot.slane %v5274, 3
      %v5372 = vsel %vm1158, %v5369, %v5371
      %v5373 = vrot.slane %v5275, 3
      %v5374 = vrot.slane %v5276, 3
      %v5375 = vsel %vm1158, %v5373, %v5374
      %v5376 = vrot.slane %v5277, 3
      %v5377 = vsel %vm1158, %v5374, %v5376
      %v5378 = vrot.slane %v5278, 3
      %v5379 = vrot.slane %v5279, 3
      %v5380 = vsel %vm1158, %v5378, %v5379
      %v5381 = vrot.slane %v5280, 3
      %v5382 = vsel %vm1158, %v5379, %v5381
      %v5383 = vrot.slane %v5281, 3
      %v5384 = vrot.slane %v5282, 3
      %v5385 = vsel %vm1158, %v5383, %v5384
      %v5386 = vrot.slane %v5283, 3
      %v5387 = vsel %vm1158, %v5384, %v5386
      %v5388 = vrot.slane %v5284, 3
      %v5389 = vrot.slane %v5285, 3
      %v5390 = vsel %vm1158, %v5388, %v5389
      %v5391 = vrot.slane %v5286, 3
      %v5392 = vsel %vm1158, %v5389, %v5391
      %v5393 = vrot.slane %v5287, 3
      %v5394 = vrot.slane %v5288, 3
      %v5395 = vsel %vm1158, %v5393, %v5394
      %v5396 = vrot.slane %v5289, 3
      %v5397 = vsel %vm1158, %v5394, %v5396
      %v5398 = vrot.slane %v5290, 3
      %v5399 = vrot.slane %v5291, 3
      %v5400 = vsel %vm1158, %v5398, %v5399
      %v5401 = vrot.slane %v5292, 3
      %v5402 = vsel %vm1158, %v5399, %v5401
      %v5403 = vrot.slane %v5293, 3
      %v5404 = vrot.slane %v5294, 3
      %v5405 = vsel %vm1158, %v5403, %v5404
      %v5406 = vrot.slane %v5295, 3
      %v5407 = vsel %vm1158, %v5404, %v5406
      %v5408 = vrot.slane %v5296, 3
      %v5409 = vrot.slane %v5297, 3
      %v5410 = vsel %vm1158, %v5408, %v5409
      %v5411 = vrot.slane %v5298, 3
      %v5412 = vsel %vm1158, %v5409, %v5411
      %v5413 = vrot.slane %v5299, 3
      %v5414 = vrot.slane %v5300, 3
      %v5415 = vsel %vm1158, %v5413, %v5414
      %v5416 = vrot.slane %v5301, 3
      %v5417 = vsel %vm1158, %v5414, %v5416
      %v5418 = vrot.slane %v5302, 3
      %v5419 = vrot.slane %v5303, 3
      %v5420 = vsel %vm1158, %v5418, %v5419
      %v5421 = vrot.slane %v5304, 3
      %v5422 = vsel %vm1158, %v5419, %v5421
      %v5423 = vrot.slane %v5305, 3
      %v5424 = vrot.slane %v5306, 3
      %v5425 = vsel %vm1158, %v5423, %v5424
      %v5426 = vrot.slane %v5307, 3
      %v5427 = vsel %vm1158, %v5424, %v5426
      %v5428 = vrot.slane %v5308, 3
      %v5429 = vrot.slane %v5309, 3
      %v5430 = vsel %vm1158, %v5428, %v5429
      %v5431 = vrot.slane %v5310, 3
      %v5432 = vsel %vm1158, %v5429, %v5431
      %v5433 = vrot.slane %v5311, 3
      %v5434 = vrot.slane %v5312, 3
      %v5435 = vsel %vm1158, %v5433, %v5434
      %v5436 = vrot.slane %v5313, 3
      %v5437 = vsel %vm1158, %v5434, %v5436
      %v5438 = vrot.slane %v5314, 3
      %v5439 = vrot.slane %v5315, 3
      %v5440 = vsel %vm1158, %v5438, %v5439
      %v5441 = vrot.slane %v5316, 3
      %v5442 = vsel %vm1158, %v5439, %v5441
      %v5443 = vrot.slane %v5317, 3
      %v5444 = vrot.slane %v5318, 3
      %v5445 = vsel %vm1158, %v5443, %v5444
      %v5446 = vrot.slane %v5319, 3
      %v5447 = vsel %vm1158, %v5444, %v5446
      %v5480 = vadd.f32 %v5235, %v5370
      %v5481 = vadd.f32 %v5236, %v5372
      %v5482 = vadd.f32 %v5237, %v5375
      %v5483 = vadd.f32 %v5238, %v5377
      %v5484 = vadd.f32 %v5239, %v5380
      %v5485 = vadd.f32 %v5240, %v5382
      %v5486 = vadd.f32 %v5241, %v5385
      %v5487 = vadd.f32 %v5242, %v5387
      %v5488 = vadd.f32 %v5243, %v5390
      %v5489 = vadd.f32 %v5244, %v5392
      %v5490 = vadd.f32 %v5245, %v5395
      %v5491 = vadd.f32 %v5246, %v5397
      %v5492 = vadd.f32 %v5247, %v5400
      %v5493 = vadd.f32 %v5248, %v5402
      %v5494 = vadd.f32 %v5249, %v5405
      %v5495 = vadd.f32 %v5250, %v5407
      %v5496 = vadd.f32 %v5251, %v5410
      %v5497 = vadd.f32 %v5252, %v5412
      %v5498 = vadd.f32 %v5253, %v5415
      %v5499 = vadd.f32 %v5254, %v5417
      %v5500 = vadd.f32 %v5255, %v5420
      %v5501 = vadd.f32 %v5256, %v5422
      %v5502 = vadd.f32 %v5257, %v5425
      %v5503 = vadd.f32 %v5258, %v5427
      %v5504 = vadd.f32 %v5259, %v5430
      %v5505 = vadd.f32 %v5260, %v5432
      %v5506 = vadd.f32 %v5261, %v5435
      %v5507 = vadd.f32 %v5262, %v5437
      %v5508 = vadd.f32 %v5263, %v5440
      %v5509 = vadd.f32 %v5264, %v5442
      %v5510 = vadd.f32 %v5265, %v5445
      %v5511 = vadd.f32 %v5266, %v5447
      %v5512 = vld [vmem:[%s370 + $0x18] sm:$0x1]
      %v5513 = vlaneseq
      %v5514 = vshrl.u32 %v5513, 7
      %v5515 = vsub.s32 0, %v5514
      %v5516 = vrot.slane %v5512, %v5515
      %v5517 = vmul.f32 %v460, %v5516
      %v5518 = vmul.f32 %v461, %v5516
      %v5519 = vmul.f32 %v462, %v5516
      %v5520 = vmul.f32 %v463, %v5516
      %v5521 = vmul.f32 %v464, %v5516
      %v5522 = vmul.f32 %v465, %v5516
      %v5523 = vmul.f32 %v466, %v5516
      %v5524 = vmul.f32 %v467, %v5516
      %v5525 = vmul.f32 %v468, %v5516
      %v5526 = vmul.f32 %v469, %v5516
      %v5527 = vmul.f32 %v470, %v5516
      %v5528 = vmul.f32 %v471, %v5516
      %v5529 = vmul.f32 %v472, %v5516
      %v5530 = vmul.f32 %v473, %v5516
      %v5531 = vmul.f32 %v474, %v5516
      %v5532 = vmul.f32 %v475, %v5516
      %v5533 = vmul.f32 %v476, %v5516
      %v5534 = vmul.f32 %v477, %v5516
      %v5535 = vmul.f32 %v478, %v5516
      %v5536 = vmul.f32 %v479, %v5516
      %v5537 = vmul.f32 %v480, %v5516
      %v5538 = vmul.f32 %v481, %v5516
      %v5539 = vmul.f32 %v482, %v5516
      %v5540 = vmul.f32 %v483, %v5516
      %v5541 = vmul.f32 %v484, %v5516
      %v5542 = vmul.f32 %v485, %v5516
      %v5543 = vmul.f32 %v486, %v5516
      %v5544 = vmul.f32 %v487, %v5516
      %v5545 = vmul.f32 %v488, %v5516
      %v5546 = vmul.f32 %v489, %v5516
      %v5547 = vmul.f32 %v490, %v5516
      %v5548 = vmul.f32 %v491, %v5516
      %v5549 = vmul.f32 %v492, %v5516
      %v5550 = vmul.f32 %v493, %v5516
      %v5551 = vmul.f32 %v494, %v5516
      %v5552 = vmul.f32 %v495, %v5516
      %v5553 = vmul.f32 %v1549, %v5516
      %v5554 = vmul.f32 %v1550, %v5516
      %v5555 = vmul.f32 %v1551, %v5516
      %v5556 = vmul.f32 %v2601, %v5516
      %v5557 = vmul.f32 %v2602, %v5516
      %v5558 = vmul.f32 %v2603, %v5516
      %v5559 = vmul.f32 %v3653, %v5516
      %v5560 = vmul.f32 %v3654, %v5516
      %v5561 = vmul.f32 %v3655, %v5516
      %v5562 = vmul.f32 %v4705, %v5516
      %v5563 = vmul.f32 %v4706, %v5516
      %v5564 = vmul.f32 %v4707, %v5516
      %v5613 = vrot.slane %v5517, 4
      %v5614 = vrot.slane %v5518, 4
      %v5615 = vsel %vm1404, %v5613, %v5614
      %v5616 = vrot.slane %v5519, 4
      %v5617 = vsel %vm1404, %v5614, %v5616
      %v5618 = vrot.slane %v5520, 4
      %v5619 = vrot.slane %v5521, 4
      %v5620 = vsel %vm1404, %v5618, %v5619
      %v5621 = vrot.slane %v5522, 4
      %v5622 = vsel %vm1404, %v5619, %v5621
      %v5623 = vrot.slane %v5523, 4
      %v5624 = vrot.slane %v5524, 4
      %v5625 = vsel %vm1404, %v5623, %v5624
      %v5626 = vrot.slane %v5525, 4
      %v5627 = vsel %vm1404, %v5624, %v5626
      %v5628 = vrot.slane %v5526, 4
      %v5629 = vrot.slane %v5527, 4
      %v5630 = vsel %vm1404, %v5628, %v5629
      %v5631 = vrot.slane %v5528, 4
      %v5632 = vsel %vm1404, %v5629, %v5631
      %v5633 = vrot.slane %v5529, 4
      %v5634 = vrot.slane %v5530, 4
      %v5635 = vsel %vm1404, %v5633, %v5634
      %v5636 = vrot.slane %v5531, 4
      %v5637 = vsel %vm1404, %v5634, %v5636
      %v5638 = vrot.slane %v5532, 4
      %v5639 = vrot.slane %v5533, 4
      %v5640 = vsel %vm1404, %v5638, %v5639
      %v5641 = vrot.slane %v5534, 4
      %v5642 = vsel %vm1404, %v5639, %v5641
      %v5643 = vrot.slane %v5535, 4
      %v5644 = vrot.slane %v5536, 4
      %v5645 = vsel %vm1404, %v5643, %v5644
      %v5646 = vrot.slane %v5537, 4
      %v5647 = vsel %vm1404, %v5644, %v5646
      %v5648 = vrot.slane %v5538, 4
      %v5649 = vrot.slane %v5539, 4
      %v5650 = vsel %vm1404, %v5648, %v5649
      %v5651 = vrot.slane %v5540, 4
      %v5652 = vsel %vm1404, %v5649, %v5651
      %v5653 = vrot.slane %v5541, 4
      %v5654 = vrot.slane %v5542, 4
      %v5655 = vsel %vm1404, %v5653, %v5654
      %v5656 = vrot.slane %v5543, 4
      %v5657 = vsel %vm1404, %v5654, %v5656
      %v5658 = vrot.slane %v5544, 4
      %v5659 = vrot.slane %v5545, 4
      %v5660 = vsel %vm1404, %v5658, %v5659
      %v5661 = vrot.slane %v5546, 4
      %v5662 = vsel %vm1404, %v5659, %v5661
      %v5663 = vrot.slane %v5547, 4
      %v5664 = vrot.slane %v5548, 4
      %v5665 = vsel %vm1404, %v5663, %v5664
      %v5666 = vrot.slane %v5549, 4
      %v5667 = vsel %vm1404, %v5664, %v5666
      %v5668 = vrot.slane %v5550, 4
      %v5669 = vrot.slane %v5551, 4
      %v5670 = vsel %vm1404, %v5668, %v5669
      %v5671 = vrot.slane %v5552, 4
      %v5672 = vsel %vm1404, %v5669, %v5671
      %v5673 = vrot.slane %v5553, 4
      %v5674 = vrot.slane %v5554, 4
      %v5675 = vsel %vm1404, %v5673, %v5674
      %v5676 = vrot.slane %v5555, 4
      %v5677 = vsel %vm1404, %v5674, %v5676
      %v5678 = vrot.slane %v5556, 4
      %v5679 = vrot.slane %v5557, 4
      %v5680 = vsel %vm1404, %v5678, %v5679
      %v5681 = vrot.slane %v5558, 4
      %v5682 = vsel %vm1404, %v5679, %v5681
      %v5683 = vrot.slane %v5559, 4
      %v5684 = vrot.slane %v5560, 4
      %v5685 = vsel %vm1404, %v5683, %v5684
      %v5686 = vrot.slane %v5561, 4
      %v5687 = vsel %vm1404, %v5684, %v5686
      %v5688 = vrot.slane %v5562, 4
      %v5689 = vrot.slane %v5563, 4
      %v5690 = vsel %vm1404, %v5688, %v5689
      %v5691 = vrot.slane %v5564, 4
      %v5692 = vsel %vm1404, %v5689, %v5691
      %v5725 = vadd.f32 %v5480, %v5615
      %v5726 = vadd.f32 %v5481, %v5617
      %v5727 = vadd.f32 %v5482, %v5620
      %v5728 = vadd.f32 %v5483, %v5622
      %v5729 = vadd.f32 %v5484, %v5625
      %v5730 = vadd.f32 %v5485, %v5627
      %v5731 = vadd.f32 %v5486, %v5630
      %v5732 = vadd.f32 %v5487, %v5632
      %v5733 = vadd.f32 %v5488, %v5635
      %v5734 = vadd.f32 %v5489, %v5637
      %v5735 = vadd.f32 %v5490, %v5640
      %v5736 = vadd.f32 %v5491, %v5642
      %v5737 = vadd.f32 %v5492, %v5645
      %v5738 = vadd.f32 %v5493, %v5647
      %v5739 = vadd.f32 %v5494, %v5650
      %v5740 = vadd.f32 %v5495, %v5652
      %v5741 = vadd.f32 %v5496, %v5655
      %v5742 = vadd.f32 %v5497, %v5657
      %v5743 = vadd.f32 %v5498, %v5660
      %v5744 = vadd.f32 %v5499, %v5662
      %v5745 = vadd.f32 %v5500, %v5665
      %v5746 = vadd.f32 %v5501, %v5667
      %v5747 = vadd.f32 %v5502, %v5670
      %v5748 = vadd.f32 %v5503, %v5672
      %v5749 = vadd.f32 %v5504, %v5675
      %v5750 = vadd.f32 %v5505, %v5677
      %v5751 = vadd.f32 %v5506, %v5680
      %v5752 = vadd.f32 %v5507, %v5682
      %v5753 = vadd.f32 %v5508, %v5685
      %v5754 = vadd.f32 %v5509, %v5687
      %v5755 = vadd.f32 %v5510, %v5690
      %v5756 = vadd.f32 %v5511, %v5692
      %v5757 = vld [vmem:[%s373] sm:$0x1]
      %v5759 = vlaneseq
      %v5760 = vshrl.u32 %v5759, 7
      %v5761 = vsub.s32 0, %v5760
      %v5762 = vrot.slane %v5757, %v5761
      %v5764 = vadd.f32 %v5725, %v5762
      %v5765 = vadd.f32 %v5726, %v5762
      %v5766 = vadd.f32 %v5727, %v5762
      %v5767 = vadd.f32 %v5728, %v5762
      %v5768 = vadd.f32 %v5729, %v5762
      %v5769 = vadd.f32 %v5730, %v5762
      %v5770 = vadd.f32 %v5731, %v5762
      %v5771 = vadd.f32 %v5732, %v5762
      %v5772 = vadd.f32 %v5733, %v5762
      %v5773 = vadd.f32 %v5734, %v5762
      %v5774 = vadd.f32 %v5735, %v5762
      %v5775 = vadd.f32 %v5736, %v5762
      %v5776 = vadd.f32 %v5737, %v5762
      %v5777 = vadd.f32 %v5738, %v5762
      %v5778 = vadd.f32 %v5739, %v5762
      %v5779 = vadd.f32 %v5740, %v5762
      %v5780 = vadd.f32 %v5741, %v5762
      %v5781 = vadd.f32 %v5742, %v5762
      %v5782 = vadd.f32 %v5743, %v5762
      %v5783 = vadd.f32 %v5744, %v5762
      %v5784 = vadd.f32 %v5745, %v5762
      %v5785 = vadd.f32 %v5746, %v5762
      %v5786 = vadd.f32 %v5747, %v5762
      %v5787 = vadd.f32 %v5748, %v5762
      %v5788 = vadd.f32 %v5749, %v5762
      %v5789 = vadd.f32 %v5750, %v5762
      %v5790 = vadd.f32 %v5751, %v5762
      %v5791 = vadd.f32 %v5752, %v5762
      %v5792 = vadd.f32 %v5753, %v5762
      %v5793 = vadd.f32 %v5754, %v5762
      %v5794 = vadd.f32 %v5755, %v5762
      %v5795 = vadd.f32 %v5756, %v5762
      %v5796 = vsub.f32 0.0, %v5764
      %v5797 = vsub.f32 0.0, %v5765
      %v5798 = vsub.f32 0.0, %v5766
      %v5799 = vsub.f32 0.0, %v5767
      %v5800 = vsub.f32 0.0, %v5768
      %v5801 = vsub.f32 0.0, %v5769
      %v5802 = vsub.f32 0.0, %v5770
      %v5803 = vsub.f32 0.0, %v5771
      %v5804 = vsub.f32 0.0, %v5772
      %v5805 = vsub.f32 0.0, %v5773
      %v5806 = vsub.f32 0.0, %v5774
      %v5807 = vsub.f32 0.0, %v5775
      %v5808 = vsub.f32 0.0, %v5776
      %v5809 = vsub.f32 0.0, %v5777
      %v5810 = vsub.f32 0.0, %v5778
      %v5811 = vsub.f32 0.0, %v5779
      %v5812 = vsub.f32 0.0, %v5780
      %v5813 = vsub.f32 0.0, %v5781
      %v5814 = vsub.f32 0.0, %v5782
      %v5815 = vsub.f32 0.0, %v5783
      %v5816 = vsub.f32 0.0, %v5784
      %v5817 = vsub.f32 0.0, %v5785
      %v5818 = vsub.f32 0.0, %v5786
      %v5819 = vsub.f32 0.0, %v5787
      %v5820 = vsub.f32 0.0, %v5788
      %v5821 = vsub.f32 0.0, %v5789
      %v5822 = vsub.f32 0.0, %v5790
      %v5823 = vsub.f32 0.0, %v5791
      %v5824 = vsub.f32 0.0, %v5792
      %v5825 = vsub.f32 0.0, %v5793
      %v5826 = vsub.f32 0.0, %v5794
      %v5827 = vsub.f32 0.0, %v5795
      %v5828 = vmul.f32 %v5796, 1.442695
      %v5829 = vpow.pop %v5828
      %v5830 = vmul.f32 %v5797, 1.442695
      %v5831 = vpow.pop %v5830
      %v5832 = vmul.f32 %v5798, 1.442695
      %v5833 = vpow.pop %v5832
      %v5834 = vmul.f32 %v5799, 1.442695
      %v5835 = vpow.pop %v5834
      %v5836 = vmul.f32 %v5800, 1.442695
      %v5837 = vpow.pop %v5836
      %v5838 = vmul.f32 %v5801, 1.442695
      %v5839 = vpow.pop %v5838
      %v5840 = vmul.f32 %v5802, 1.442695
      %v5841 = vpow.pop %v5840
      %v5842 = vmul.f32 %v5803, 1.442695
      %v5843 = vpow.pop %v5842
      %v5844 = vmul.f32 %v5804, 1.442695
      %v5845 = vpow.pop %v5844
      %v5846 = vmul.f32 %v5805, 1.442695
      %v5847 = vpow.pop %v5846
      %v5848 = vmul.f32 %v5806, 1.442695
      %v5849 = vpow.pop %v5848
      %v5850 = vmul.f32 %v5807, 1.442695
      %v5851 = vpow.pop %v5850
      %v5852 = vmul.f32 %v5808, 1.442695
      %v5853 = vpow.pop %v5852
      %v5854 = vmul.f32 %v5809, 1.442695
      %v5855 = vpow.pop %v5854
      %v5856 = vmul.f32 %v5810, 1.442695
      %v5857 = vpow.pop %v5856
      %v5858 = vmul.f32 %v5811, 1.442695
      %v5859 = vpow.pop %v5858
      %v5860 = vmul.f32 %v5812, 1.442695
      %v5861 = vpow.pop %v5860
      %v5862 = vmul.f32 %v5813, 1.442695
      %v5863 = vpow.pop %v5862
      %v5864 = vmul.f32 %v5814, 1.442695
      %v5865 = vpow.pop %v5864
      %v5866 = vmul.f32 %v5815, 1.442695
      %v5867 = vpow.pop %v5866
      %v5868 = vmul.f32 %v5816, 1.442695
      %v5869 = vpow.pop %v5868
      %v5870 = vmul.f32 %v5817, 1.442695
      %v5871 = vpow.pop %v5870
      %v5872 = vmul.f32 %v5818, 1.442695
      %v5873 = vpow.pop %v5872
      %v5874 = vmul.f32 %v5819, 1.442695
      %v5875 = vpow.pop %v5874
      %v5876 = vmul.f32 %v5820, 1.442695
      %v5877 = vpow.pop %v5876
      %v5878 = vmul.f32 %v5821, 1.442695
      %v5879 = vpow.pop %v5878
      %v5880 = vmul.f32 %v5822, 1.442695
      %v5881 = vpow.pop %v5880
      %v5882 = vmul.f32 %v5823, 1.442695
      %v5883 = vpow.pop %v5882
      %v5884 = vmul.f32 %v5824, 1.442695
      %v5885 = vpow.pop %v5884
      %v5886 = vmul.f32 %v5825, 1.442695
      %v5887 = vpow.pop %v5886
      %v5888 = vmul.f32 %v5826, 1.442695
      %v5889 = vpow.pop %v5888
      %v5890 = vmul.f32 %v5827, 1.442695
      %v5891 = vpow.pop %v5890
      %v5892 = vadd.f32 %v5829, 1.0
      %v5893 = vadd.f32 %v5831, 1.0
      %v5894 = vadd.f32 %v5833, 1.0
      %v5895 = vadd.f32 %v5835, 1.0
      %v5896 = vadd.f32 %v5837, 1.0
      %v5897 = vadd.f32 %v5839, 1.0
      %v5898 = vadd.f32 %v5841, 1.0
      %v5899 = vadd.f32 %v5843, 1.0
      %v5900 = vadd.f32 %v5845, 1.0
      %v5901 = vadd.f32 %v5847, 1.0
      %v5902 = vadd.f32 %v5849, 1.0
      %v5903 = vadd.f32 %v5851, 1.0
      %v5904 = vadd.f32 %v5853, 1.0
      %v5905 = vadd.f32 %v5855, 1.0
      %v5906 = vadd.f32 %v5857, 1.0
      %v5907 = vadd.f32 %v5859, 1.0
      %v5908 = vadd.f32 %v5861, 1.0
      %v5909 = vadd.f32 %v5863, 1.0
      %v5910 = vadd.f32 %v5865, 1.0
      %v5911 = vadd.f32 %v5867, 1.0
      %v5912 = vadd.f32 %v5869, 1.0
      %v5913 = vadd.f32 %v5871, 1.0
      %v5914 = vadd.f32 %v5873, 1.0
      %v5915 = vadd.f32 %v5875, 1.0
      %v5916 = vadd.f32 %v5877, 1.0
      %v5917 = vadd.f32 %v5879, 1.0
      %v5918 = vadd.f32 %v5881, 1.0
      %v5919 = vadd.f32 %v5883, 1.0
      %v5920 = vadd.f32 %v5885, 1.0
      %v5921 = vadd.f32 %v5887, 1.0
      %v5922 = vadd.f32 %v5889, 1.0
      %v5923 = vadd.f32 %v5891, 1.0
      %v5924 = vrcp.pop %v5892
      %v5925 = vmul.f32 1.0, %v5924
      %v5926 = vrcp.pop %v5893
      %v5927 = vmul.f32 1.0, %v5926
      %v5928 = vrcp.pop %v5894
      %v5929 = vmul.f32 1.0, %v5928
      %v5930 = vrcp.pop %v5895
      %v5931 = vmul.f32 1.0, %v5930
      %v5932 = vrcp.pop %v5896
      %v5933 = vmul.f32 1.0, %v5932
      %v5934 = vrcp.pop %v5897
      %v5935 = vmul.f32 1.0, %v5934
      %v5936 = vrcp.pop %v5898
      %v5937 = vmul.f32 1.0, %v5936
      %v5938 = vrcp.pop %v5899
      %v5939 = vmul.f32 1.0, %v5938
      %v5940 = vrcp.pop %v5900
      %v5941 = vmul.f32 1.0, %v5940
      %v5942 = vrcp.pop %v5901
      %v5943 = vmul.f32 1.0, %v5942
      %v5944 = vrcp.pop %v5902
      %v5945 = vmul.f32 1.0, %v5944
      %v5946 = vrcp.pop %v5903
      %v5947 = vmul.f32 1.0, %v5946
      %v5948 = vrcp.pop %v5904
      %v5949 = vmul.f32 1.0, %v5948
      %v5950 = vrcp.pop %v5905
      %v5951 = vmul.f32 1.0, %v5950
      %v5952 = vrcp.pop %v5906
      %v5953 = vmul.f32 1.0, %v5952
      %v5954 = vrcp.pop %v5907
      %v5955 = vmul.f32 1.0, %v5954
      %v5956 = vrcp.pop %v5908
      %v5957 = vmul.f32 1.0, %v5956
      %v5958 = vrcp.pop %v5909
      %v5959 = vmul.f32 1.0, %v5958
      %v5960 = vrcp.pop %v5910
      %v5961 = vmul.f32 1.0, %v5960
      %v5962 = vrcp.pop %v5911
      %v5963 = vmul.f32 1.0, %v5962
      %v5964 = vrcp.pop %v5912
      %v5965 = vmul.f32 1.0, %v5964
      %v5966 = vrcp.pop %v5913
      %v5967 = vmul.f32 1.0, %v5966
      %v5968 = vrcp.pop %v5914
      %v5969 = vmul.f32 1.0, %v5968
      %v5970 = vrcp.pop %v5915
      %v5971 = vmul.f32 1.0, %v5970
      %v5972 = vrcp.pop %v5916
      %v5973 = vmul.f32 1.0, %v5972
      %v5974 = vrcp.pop %v5917
      %v5975 = vmul.f32 1.0, %v5974
      %v5976 = vrcp.pop %v5918
      %v5977 = vmul.f32 1.0, %v5976
      %v5978 = vrcp.pop %v5919
      %v5979 = vmul.f32 1.0, %v5978
      %v5980 = vrcp.pop %v5920
      %v5981 = vmul.f32 1.0, %v5980
      %v5982 = vrcp.pop %v5921
      %v5983 = vmul.f32 1.0, %v5982
      %v5984 = vrcp.pop %v5922
      %v5985 = vmul.f32 1.0, %v5984
      %v5986 = vrcp.pop %v5923
      %v5987 = vmul.f32 1.0, %v5986
      %v5988 = vmul.f32 %v5764, %v5925
      %v5989 = vmul.f32 %v5765, %v5927
      %v5990 = vmul.f32 %v5766, %v5929
      %v5991 = vmul.f32 %v5767, %v5931
      %v5992 = vmul.f32 %v5768, %v5933
      %v5993 = vmul.f32 %v5769, %v5935
      %v5994 = vmul.f32 %v5770, %v5937
      %v5995 = vmul.f32 %v5771, %v5939
      %v5996 = vmul.f32 %v5772, %v5941
      %v5997 = vmul.f32 %v5773, %v5943
      %v5998 = vmul.f32 %v5774, %v5945
      %v5999 = vmul.f32 %v5775, %v5947
      %v6000 = vmul.f32 %v5776, %v5949
      %v6001 = vmul.f32 %v5777, %v5951
      %v6002 = vmul.f32 %v5778, %v5953
      %v6003 = vmul.f32 %v5779, %v5955
      %v6004 = vmul.f32 %v5780, %v5957
      %v6005 = vmul.f32 %v5781, %v5959
      %v6006 = vmul.f32 %v5782, %v5961
      %v6007 = vmul.f32 %v5783, %v5963
      %v6008 = vmul.f32 %v5784, %v5965
      %v6009 = vmul.f32 %v5785, %v5967
      %v6010 = vmul.f32 %v5786, %v5969
      %v6011 = vmul.f32 %v5787, %v5971
      %v6012 = vmul.f32 %v5788, %v5973
      %v6013 = vmul.f32 %v5789, %v5975
      %v6014 = vmul.f32 %v5790, %v5977
      %v6015 = vmul.f32 %v5791, %v5979
      %v6016 = vmul.f32 %v5792, %v5981
      %v6017 = vmul.f32 %v5793, %v5983
      %v6018 = vmul.f32 %v5794, %v5985
      %v6019 = vmul.f32 %v5795, %v5987
      %v6020 = vpack.c.bf16 %v5989, %v5988
      %v6021 = vpack.c.bf16 %v5991, %v5990
      %v6022 = vpack.c.bf16 %v5993, %v5992
      %v6023 = vpack.c.bf16 %v5995, %v5994
      %v6024 = vpack.c.bf16 %v5997, %v5996
      %v6025 = vpack.c.bf16 %v5999, %v5998
      %v6026 = vpack.c.bf16 %v6001, %v6000
      %v6027 = vpack.c.bf16 %v6003, %v6002
      %v6028 = vpack.c.bf16 %v6005, %v6004
      %v6029 = vpack.c.bf16 %v6007, %v6006
      %v6030 = vpack.c.bf16 %v6009, %v6008
      %v6031 = vpack.c.bf16 %v6011, %v6010
      %v6032 = vpack.c.bf16 %v6013, %v6012
      %v6033 = vpack.c.bf16 %v6015, %v6014
      %v6034 = vpack.c.bf16 %v6017, %v6016
      %v6035 = vpack.c.bf16 %v6019, %v6018
      %v6052 = vunpack.c.l.b16 %v6020
      %v6053 = vunpack.c.h.b16 %v6020
      %v6054 = vunpack.c.l.b16 %v6021
      %v6055 = vunpack.c.h.b16 %v6021
      %v6056 = vunpack.c.l.b16 %v6022
      %v6057 = vunpack.c.h.b16 %v6022
      %v6058 = vunpack.c.l.b16 %v6023
      %v6059 = vunpack.c.h.b16 %v6023
      %v6060 = vunpack.c.l.b16 %v6024
      %v6061 = vunpack.c.h.b16 %v6024
      %v6062 = vunpack.c.l.b16 %v6025
      %v6063 = vunpack.c.h.b16 %v6025
      %v6064 = vunpack.c.l.b16 %v6026
      %v6065 = vunpack.c.h.b16 %v6026
      %v6066 = vunpack.c.l.b16 %v6027
      %v6067 = vunpack.c.h.b16 %v6027
      %v6068 = vunpack.c.l.b16 %v6028
      %v6069 = vunpack.c.h.b16 %v6028
      %v6070 = vunpack.c.l.b16 %v6029
      %v6071 = vunpack.c.h.b16 %v6029
      %v6072 = vunpack.c.l.b16 %v6030
      %v6073 = vunpack.c.h.b16 %v6030
      %v6074 = vunpack.c.l.b16 %v6031
      %v6075 = vunpack.c.h.b16 %v6031
      %v6076 = vunpack.c.l.b16 %v6032
      %v6077 = vunpack.c.h.b16 %v6032
      %v6078 = vunpack.c.l.b16 %v6033
      %v6079 = vunpack.c.h.b16 %v6033
      %v6080 = vunpack.c.l.b16 %v6034
      %v6081 = vunpack.c.h.b16 %v6034
      %v6082 = vunpack.c.l.b16 %v6035
      %v6083 = vunpack.c.h.b16 %v6035
      %v6084 = vpack.c.b16 %v6052, %v6052
      %v6085 = vpack.c.b16 %v6053, %v6053
      %v6086 = vpack.c.b16 %v6054, %v6054
      %v6087 = vpack.c.b16 %v6055, %v6055
      %v6088 = vpack.c.b16 %v6056, %v6056
      %v6089 = vpack.c.b16 %v6057, %v6057
      %v6090 = vpack.c.b16 %v6058, %v6058
      %v6091 = vpack.c.b16 %v6059, %v6059
      %v6092 = vpack.c.b16 %v6060, %v6060
      %v6093 = vpack.c.b16 %v6061, %v6061
      %v6094 = vpack.c.b16 %v6062, %v6062
      %v6095 = vpack.c.b16 %v6063, %v6063
      %v6096 = vpack.c.b16 %v6064, %v6064
      %v6097 = vpack.c.b16 %v6065, %v6065
      %v6098 = vpack.c.b16 %v6066, %v6066
      %v6099 = vpack.c.b16 %v6067, %v6067
      %v6100 = vpack.c.b16 %v6068, %v6068
      %v6101 = vpack.c.b16 %v6069, %v6069
      %v6102 = vpack.c.b16 %v6070, %v6070
      %v6103 = vpack.c.b16 %v6071, %v6071
      %v6104 = vpack.c.b16 %v6072, %v6072
      %v6105 = vpack.c.b16 %v6073, %v6073
      %v6106 = vpack.c.b16 %v6074, %v6074
      %v6107 = vpack.c.b16 %v6075, %v6075
      %v6108 = vpack.c.b16 %v6076, %v6076
      %v6109 = vpack.c.b16 %v6077, %v6077
      %v6110 = vpack.c.b16 %v6078, %v6078
      %v6111 = vpack.c.b16 %v6079, %v6079
      %v6112 = vpack.c.b16 %v6080, %v6080
      %v6113 = vpack.c.b16 %v6081, %v6081
      %v6114 = vpack.c.b16 %v6082, %v6082
      %v6115 = vpack.c.b16 %v6083, %v6083
      %6148 = vst [vmem:[%s386] sm:$0xf] %v6084
      %6149 = vst [vmem:[%s386 + $0x4] sm:$0xf] %v6085
      %6150 = vst [vmem:[%s386 + $0x8] sm:$0xf] %v6086
      %6151 = vst [vmem:[%s386 + $0xc] sm:$0xf] %v6087
      %6152 = vst [vmem:[%s386 + $0x10] sm:$0xf] %v6088
      %6153 = vst [vmem:[%s386 + $0x14] sm:$0xf] %v6089
      %6154 = vst [vmem:[%s386 + $0x18] sm:$0xf] %v6090
      %6155 = vst [vmem:[%s386 + $0x1c] sm:$0xf] %v6091
      %6156 = vst [vmem:[%s386 + $0x20] sm:$0xf] %v6092
      %6157 = vst [vmem:[%s386 + $0x24] sm:$0xf] %v6093
      %6158 = vst [vmem:[%s386 + $0x28] sm:$0xf] %v6094
      %6159 = vst [vmem:[%s386 + $0x2c] sm:$0xf] %v6095
      %6160 = vst [vmem:[%s386 + $0x30] sm:$0xf] %v6096
      %6161 = vst [vmem:[%s386 + $0x34] sm:$0xf] %v6097
      %6162 = vst [vmem:[%s386 + $0x38] sm:$0xf] %v6098
      %6163 = vst [vmem:[%s386 + $0x3c] sm:$0xf] %v6099
      %6164 = vst [vmem:[%s386 + $0x40] sm:$0xf] %v6100
      %6165 = vst [vmem:[%s386 + $0x44] sm:$0xf] %v6101
      %6166 = vst [vmem:[%s386 + $0x48] sm:$0xf] %v6102
      %6167 = vst [vmem:[%s386 + $0x4c] sm:$0xf] %v6103
      %6168 = vst [vmem:[%s386 + $0x50] sm:$0xf] %v6104
      %6169 = vst [vmem:[%s386 + $0x54] sm:$0xf] %v6105
      %6170 = vst [vmem:[%s386 + $0x58] sm:$0xf] %v6106
      %6171 = vst [vmem:[%s386 + $0x5c] sm:$0xf] %v6107
      %6172 = vst [vmem:[%s386 + $0x60] sm:$0xf] %v6108
      %6173 = vst [vmem:[%s386 + $0x64] sm:$0xf] %v6109
      %6174 = vst [vmem:[%s386 + $0x68] sm:$0xf] %v6110
      %6175 = vst [vmem:[%s386 + $0x6c] sm:$0xf] %v6111
      %6176 = vst [vmem:[%s386 + $0x70] sm:$0xf] %v6112
      %6177 = vst [vmem:[%s386 + $0x74] sm:$0xf] %v6113
      %6178 = vst [vmem:[%s386 + $0x78] sm:$0xf] %v6114
      %6179 = vst [vmem:[%s386 + $0x7c] sm:$0xf] %v6115
      %s6180 = smul.u32 16, %s22
      %p6181 = scmp.lt.s32.totalorder %s20, 1
      %s6182 = scalar_select %p6181, %s20, 1
      %p6183 = scmp.lt.s32.totalorder %s6180, 15
      %s6184 = scalar_select %p6183, %s6180, 15
      %p6185 = scmp.lt.s32.totalorder %s21, 0
      %s6186 = scalar_select %p6185, %s21, 0
      %s6187 = smul.addr %s6184, 2
      %s6188 = sadd.s32 %s6186, %s6187
      %s6189 = smul.addr %s6182, 32
      %s6190 = sadd.s32 %s6188, %s6189
      %s6191 = smul.addr %s6190, 4
      %s6192 = scalar_lea.vmem %s4, %s6191
      // Predicated region
      $region37: #{gsconvns_forward.4} parent=35 // pred_check
        %p6193 = pneg %p172
      $region38: #{gsconvns_forward.4} parent=35 // pred_check_branch
        %6195 = sbr.rel (%p6193) target = $region40
      $region39: #{gsconvns_forward.4} parent=35 // pred_region
        %s6196 = smul.u32 16, %s22
      $region40: #{gsconvns_forward.4} parent=35 // pred_fallthru
        _
    $region36: #{gsconvns_forward.4} parent=5 // pred_fallthru
      _
    %p6197 = scmp.le.s32.totalorder 2, %s10
    // Predicated region
    $region41: #{gsconvns_forward.4} parent=5 // pred_check
      %p6198 = pneg %p6197
    $region42: #{gsconvns_forward.4} parent=5 // pred_check_branch
      %6200 = sbr.rel (%p6198) target = $region44
    $region43: #{gsconvns_forward.4} parent=5 // pred_region
      %s6201 = ssub.s32 %s10, 2
      // Predicated region
      $region45: #{gsconvns_forward.4} parent=43 // pred_check
        %p6202 = pneg %p178
      $region46: #{gsconvns_forward.4} parent=43 // pred_check_branch
        %6204 = sbr.rel (%p6202) target = $region48
      $region47: #{gsconvns_forward.4} parent=43 // pred_region
        %s6205 = smul.u32 16, %s25
        %p6206 = scmp.lt.s32.totalorder %s23, 1
        %s6207 = scalar_select %p6206, %s23, 1
        %p6208 = scmp.lt.s32.totalorder %s6205, 15
        %s6209 = scalar_select %p6208, %s6205, 15
        %p6210 = scmp.lt.s32.totalorder %s24, 0
        %s6211 = scalar_select %p6210, %s24, 0
        %s6212 = smul.addr %s6209, 2
        %s6213 = sadd.s32 %s6211, %s6212
        %s6214 = smul.addr %s6207, 32
        %s6215 = sadd.s32 %s6213, %s6214
        %s6216 = smul.addr %s6215, 4
        %s6217 = scalar_lea.vmem %s4, %s6216
      $region48: #{gsconvns_forward.4} parent=43 // pred_fallthru
        _
    $region44: #{gsconvns_forward.4} parent=5 // pred_fallthru
      _
  $region6: #{gsconvns_forward.4} parent=0 // loop_footer
    %s14 = sadd.s32 1, %s10
  $region7: #{gsconvns_forward.4} parent=0 // loop_footer_branch
    %9 = sbr.rel target = $region3
  $region8: #{gsconvns_forward.4} parent=0 // loop_exit
    _

</llo_original>
